<compile_context>
chip_gen: v7x
topology: tpu7x:2x2x1
jax: 0.10.0
libtpu: 0.0.40
codegen_flags: <defaults>
</compile_context>

<pallas_src>
import functools

import numpy as np
import jax
import jax.numpy as jnp
from jax.experimental import pallas as pl
from jax.experimental.pallas import tpu as pltpu


def _round_up(x, m):
    return (x + m - 1) // m * m


# ----------------------------------------------------------------------------
# Fused kernel: one grid step == `ips` batch images stacked along lanes.
# ----------------------------------------------------------------------------
def _upconv_kernel(fu_ref, fd_ref, gmat_ref, mask_ref,
                   upw_ref, upb_ref, wxw_ref, wgw_ref, bxg_ref,
                   psw_ref, psb_ref, b1w_ref, b1b_ref, b2w_ref, b2b_ref,
                   o_ref, buf_ref,
                   *, in_ch, out_ch, ips, su_pad, l_pad, margin, offsets):
    f32 = jnp.float32
    n_lanes = ips * l_pad

    # Only the halo margins must be zero (ring/pad-lane taps read into them);
    # the data region is fully overwritten each step.  Two 128-aligned stores.
    zeros_m = jnp.zeros((buf_ref.shape[0], margin), f32)
    buf_ref[:, 0:margin] = zeros_m
    buf_ref[:, margin + n_lanes:margin + n_lanes + margin] = zeros_m

    mask = mask_ref[...]                                      # (1, n_lanes)

    def conv3x3(w_ref, cin):
        # 9 accumulated small-K matmuls; the statically shifted halo slice is
        # read directly as the MXU RHS -- no materialized im2col scratch.
        acc = None
        for k, off in enumerate(offsets):
            rhs = buf_ref[0:cin, margin + off:margin + off + n_lanes]
            t = jnp.dot(w_ref[k], rhs, preferred_element_type=f32)
            acc = t if acc is None else acc + t
        return acc

    # -- nearest x2 upsample + zero-pad + flatten: constant 0/1 gather matmul,
    #    written straight into the halo buffer with 128-aligned stores. ------
    gmat = gmat_ref[...].astype(f32)                          # bf16 -> f32
    for img in range(ips):
        fu_img = fu_ref[:, img * su_pad:(img + 1) * su_pad]
        buf_ref[0:in_ch, margin + img * l_pad:margin + (img + 1) * l_pad] = (
            jnp.dot(fu_img, gmat, preferred_element_type=f32))

    # -- up-conv 3x3 (in_ch -> out_ch); mask zeroes ring & pad lanes ---------
    fu = (conv3x3(upw_ref, in_ch) + upb_ref[...]) * mask      # (out_ch, N)

    # -- attention gate: 1x1 convs as direct matmuls, no buffer round-trip ---
    fd = fd_ref[...]                                          # (out_ch, N)
    r = jnp.maximum(
        jnp.dot(wxw_ref[...], fu, preferred_element_type=f32)
        + jnp.dot(wgw_ref[...], fd, preferred_element_type=f32)
        + bxg_ref[...], 0.0)
    s = jax.nn.sigmoid(
        jnp.dot(psw_ref[...], r, preferred_element_type=f32) + psb_ref[...])
    att = fu * (s + 1.0)                  # fu == 0 on ring/pad  =>  att == 0

    # -- block conv1 on the virtual concat [fu ; att] ------------------------
    buf_ref[0:out_ch, margin:margin + n_lanes] = fu
    buf_ref[out_ch:2 * out_ch, margin:margin + n_lanes] = att
    x1 = jnp.maximum(conv3x3(b1w_ref, 2 * out_ch) + b1b_ref[...], 0.0) * mask

    # -- block conv2: reads ONLY rows 0:out_ch (= x1); stale att rows unused -
    buf_ref[0:out_ch, margin:margin + n_lanes] = x1
    x2 = jnp.maximum(conv3x3(b2w_ref, out_ch) + b2b_ref[...], 0.0)

    o_ref[...] = x2.astype(o_ref.dtype)


# ----------------------------------------------------------------------------
# Host-side constant builders (trace-time numpy, folded into the executable).
# ----------------------------------------------------------------------------
def _upsample_gather(h, w, hp, wp, su_pad, l_pad):
    """(su_pad, l_pad) 0/1 matrix: nearest x2 upsample + zero-pad + flatten."""
    ws = w // 2
    g = np.zeros((su_pad, l_pad), np.float32)
    for a in range(1, h + 1):
        for b in range(1, w + 1):
            g[((a - 1) // 2) * ws + (b - 1) // 2, a * wp + b] = 1.0
    return g


def _interior_mask(h, w, wp, l_pad, ips):
    """(1, ips*l_pad) mask: 1 on interior pixels, 0 on ring and pad lanes."""
    m = np.zeros((1, l_pad), np.float32)
    for a in range(1, h + 1):
        m[0, a * wp + 1:a * wp + 1 + w] = 1.0
    return np.tile(m, (1, ips))


def _pack_taps(w):
    """(Cout, Cin, 3, 3) torch-layout weight -> (9, Cout, Cin), tap-major."""
    cout, cin, kh, kw = w.shape
    assert kh == 3 and kw == 3
    return jnp.transpose(w, (2, 3, 0, 1)).reshape(kh * kw, cout, cin)


# ----------------------------------------------------------------------------
# UpConv forward (NCHW in / NCHW out).
# ----------------------------------------------------------------------------
@jax.jit
def upconv_forward(from_down, from_up, params):
    n, out_ch, h, w = from_down.shape
    in_ch, hs, ws = from_up.shape[1], from_up.shape[2], from_up.shape[3]
    assert (h, w) == (2 * hs, 2 * ws)

    hp, wp = h + 2, w + 2
    l = hp * wp                               # flattened padded spatial (324)
    l_pad = _round_up(l, 128)                 # lane-dense per-image slot (384)
    su = hs * ws
    su_pad = _round_up(su, 128)
    margin = _round_up(wp + 1, 128)           # 128-aligned halo >= max|offset|
    offsets = tuple((dy - 1) * wp + (dx - 1)
                    for dy in range(3) for dx in range(3))

    # Grid layout: 2 parallel steps on 2-TensorCore parts (v7x), otherwise a
    # single step with the whole batch stacked along lanes.
    try:
        kind = jax.devices()[0].device_kind.lower()
        two_tc = ("v7" in kind) or ("7x" in kind)
    except Exception:                                     # pragma: no cover
        two_tc = False
    grid_steps = 2 if (two_tc and n >= 2) else 1
    ips = -(-n // grid_steps)                 # images per grid step (ceil)
    n_pad = grid_steps * ips
    n_lanes = ips * l_pad
    buf_rows = max(in_ch, 2 * out_ch)
    buf_w = n_lanes + 2 * margin

    # --- wrapper-side layout plumbing: channel-major, batch stacked in lanes.
    fu = from_up.reshape(n, in_ch, su)
    fu = jnp.pad(fu, ((0, n_pad - n), (0, 0), (0, su_pad - su)))
    fu_stacked = jnp.transpose(fu, (1, 0, 2)).reshape(in_ch, n_pad * su_pad)

    fd = jnp.pad(from_down, ((0, n_pad - n), (0, 0), (1, 1), (1, 1)))
    fd = fd.reshape(n_pad, out_ch, l)
    fd = jnp.pad(fd, ((0, 0), (0, 0), (0, l_pad - l)))
    fd_stacked = jnp.transpose(fd, (1, 0, 2)).reshape(out_ch, n_pad * l_pad)

    gmat = jnp.asarray(_upsample_gather(h, w, hp, wp, su_pad, l_pad),
                       dtype=jnp.bfloat16)     # 0/1 matrix: lossless in bf16
    mask = jnp.asarray(_interior_mask(h, w, wp, l_pad, ips))

    # Conv weights are tiny (<2 KB each): keep f32 for accuracy, DMA is free.
    upw = _pack_taps(params["up_w"])
    b1w = _pack_taps(params["b1_w"])
    b2w = _pack_taps(params["b2_w"])
    wxw = params["wx_w"].reshape(out_ch, out_ch)
    wgw = params["wg_w"].reshape(out_ch, out_ch)
    psw = params["psi_w"].reshape(out_ch, out_ch)
    bxg = (params["wx_b"] + params["wg_b"]).reshape(out_ch, 1)
    psb = params["psi_b"].reshape(out_ch, 1)
    upb = params["up_b"].reshape(out_ch, 1)
    b1b = params["b1_b"].reshape(out_ch, 1)
    b2b = params["b2_b"].reshape(out_ch, 1)

    def whole(x):
        nd = x.ndim
        return pl.BlockSpec(x.shape, lambda i: (0,) * nd)

    kernel = functools.partial(
        _upconv_kernel, in_ch=in_ch, out_ch=out_ch, ips=ips, su_pad=su_pad,
        l_pad=l_pad, margin=margin, offsets=offsets)

    out = pl.pallas_call(
        kernel,
        out_shape=jax.ShapeDtypeStruct((out_ch, n_pad * l_pad),
                                       from_down.dtype),
        grid_spec=pltpu.PrefetchScalarGridSpec(
            num_scalar_prefetch=0,
            grid=(grid_steps,),
            in_specs=[
                pl.BlockSpec((in_ch, ips * su_pad), lambda i: (0, i)),
                pl.BlockSpec((out_ch, n_lanes), lambda i: (0, i)),
                whole(gmat), whole(mask),
                whole(upw), whole(upb),
                whole(wxw), whole(wgw), whole(bxg), whole(psw), whole(psb),
                whole(b1w), whole(b1b), whole(b2w), whole(b2b),
            ],
            out_specs=pl.BlockSpec((out_ch, n_lanes), lambda i: (0, i)),
            scratch_shapes=[pltpu.VMEM((buf_rows, buf_w), jnp.float32)],
        ),
        compiler_params=pltpu.CompilerParams(
            dimension_semantics=("parallel",)),
    )(fu_stacked, fd_stacked, gmat, mask, upw, upb, wxw, wgw, bxg, psw, psb,
      b1w, b1b, b2w, b2b)

    # TODO(synk): at large batch this halo-strip is an extra output pass over
    # HBM; emit interior-only in-kernel or fuse the slice into the consumer.
    out = out.reshape(out_ch, n_pad, l_pad)[:, :n, :l]
    out = out.reshape(out_ch, n, hp, wp)[:, :, 1:h + 1, 1:w + 1]
    return jnp.transpose(out, (1, 0, 2, 3))


# ----------------------------------------------------------------------------
# Pure-XLA reference (for a correctness sanity check only).
# ----------------------------------------------------------------------------
def upconv_reference(from_down, from_up, params):
    hi = jax.lax.Precision.HIGHEST

    def conv(x, w, b, pad):
        y = jax.lax.conv_general_dilated(
            x, w, window_strides=(1, 1), padding=[(pad, pad), (pad, pad)],
            dimension_numbers=("NCHW", "OIHW", "NCHW"), precision=hi)
        return y + b[None, :, None, None]

    fu = jnp.repeat(jnp.repeat(from_up, 2, axis=2), 2, axis=3)
    fu = conv(fu, params["up_w"], params["up_b"], 1)
    xa = conv(fu, params["wx_w"], params["wx_b"], 0)
    ga = conv(from_down, params["wg_w"], params["wg_b"], 0)
    s = jax.nn.sigmoid(conv(jnp.maximum(xa + ga, 0.0),
                            params["psi_w"], params["psi_b"], 0))
    att = fu * (s + 1.0)
    x = jnp.concatenate([fu, att], axis=1)
    x = jnp.maximum(conv(x, params["b1_w"], params["b1_b"], 1), 0.0)
    x = jnp.maximum(conv(x, params["b2_w"], params["b2_b"], 1), 0.0)
    return x


# ----------------------------------------------------------------------------
# Deterministic parameter init (PyTorch-style uniform +-1/sqrt(fan_in)).
# ----------------------------------------------------------------------------
def _conv_init(key, cout, cin, k):
    kw_, kb_ = jax.random.split(key)
    bound = 1.0 / (cin * k * k) ** 0.5
    w = jax.random.uniform(kw_, (cout, cin, k, k), jnp.float32, -bound, bound)
    b = jax.random.uniform(kb_, (cout,), jnp.float32, -bound, bound)
    return w, b


def make_params(key, in_channels, out_channels):
    keys = jax.random.split(key, 6)
    p = {}
    p["up_w"], p["up_b"] = _conv_init(keys[0], out_channels, in_channels, 3)
    p["wx_w"], p["wx_b"] = _conv_init(keys[1], out_channels, out_channels, 1)
    p["wg_w"], p["wg_b"] = _conv_init(keys[2], out_channels, out_channels, 1)
    p["psi_w"], p["psi_b"] = _conv_init(keys[3], out_channels, out_channels, 1)
    p["b1_w"], p["b1_b"] = _conv_init(keys[4], out_channels, 2 * out_channels, 3)
    p["b2_w"], p["b2_b"] = _conv_init(keys[5], out_channels, out_channels, 3)
    return p


if __name__ == "__main__":
    in_channels, out_channels = 8, 4
    n, h, w = 2, 16, 16                          # from_down spatial size

    key = jax.random.PRNGKey(0)
    k_fd, k_fu, k_p = jax.random.split(key, 3)
    from_down = jax.random.normal(k_fd, (n, out_channels, h, w), jnp.float32)
    from_up = jax.random.normal(k_fu, (n, in_channels, h // 2, w // 2),
                                jnp.float32)
    params = make_params(k_p, in_channels, out_channels)

    out = jax.block_until_ready(upconv_forward(from_down, from_up, params))
    assert out.shape == (n, out_channels, h, w), out.shape

    ref = jax.block_until_ready(upconv_reference(from_down, from_up, params))
    np.testing.assert_allclose(np.asarray(out), np.asarray(ref),
                               rtol=2e-2, atol=2e-2)
    print("KERNEL_OK")
</pallas_src>

<mosaic_0001>
module attributes {stable_mosaic.version = 11 : i64} {
  func.func @_upconv_kernel(%arg0: i32, %arg1: memref<8x256xf32, #tpu.memory_space<vmem>>, %arg2: memref<4x768xf32, #tpu.memory_space<vmem>>, %arg3: memref<128x384xbf16, #tpu.memory_space<vmem>>, %arg4: memref<1x768xf32, #tpu.memory_space<vmem>>, %arg5: memref<9x4x8xf32, #tpu.memory_space<vmem>>, %arg6: memref<4x1xf32, #tpu.memory_space<vmem>>, %arg7: memref<4x4xf32, #tpu.memory_space<vmem>>, %arg8: memref<4x4xf32, #tpu.memory_space<vmem>>, %arg9: memref<4x1xf32, #tpu.memory_space<vmem>>, %arg10: memref<4x4xf32, #tpu.memory_space<vmem>>, %arg11: memref<4x1xf32, #tpu.memory_space<vmem>>, %arg12: memref<9x4x8xf32, #tpu.memory_space<vmem>>, %arg13: memref<4x1xf32, #tpu.memory_space<vmem>>, %arg14: memref<9x4x4xf32, #tpu.memory_space<vmem>>, %arg15: memref<4x1xf32, #tpu.memory_space<vmem>>, %arg16: memref<4x768xf32, #tpu.memory_space<vmem>>, %arg17: memref<8x1024xf32, #tpu.memory_space<vmem>>) attributes {dimension_semantics = [#tpu.dimension_semantics<parallel>], iteration_bounds = array<i64: 1>, scalar_prefetch = 0 : i64, scratch_operands = 1 : i64, tpu.core_type = #tpu.core_type<tc>, window_params = [{transform_indices = @transform_0, window_bounds = array<i64: 8, 256>}, {transform_indices = @transform_1, window_bounds = array<i64: 4, 768>}, {pipeline_mode = #tpu.pipeline_mode<synchronous>, transform_indices = @transform_2, window_bounds = array<i64: 128, 384>}, {pipeline_mode = #tpu.pipeline_mode<synchronous>, transform_indices = @transform_3, window_bounds = array<i64: 1, 768>}, {pipeline_mode = #tpu.pipeline_mode<synchronous>, transform_indices = @transform_4, window_bounds = array<i64: 9, 4, 8>}, {pipeline_mode = #tpu.pipeline_mode<synchronous>, transform_indices = @transform_5, window_bounds = array<i64: 4, 1>}, {pipeline_mode = #tpu.pipeline_mode<synchronous>, transform_indices = @transform_6, window_bounds = array<i64: 4, 4>}, {pipeline_mode = #tpu.pipeline_mode<synchronous>, transform_indices = @transform_7, window_bounds = array<i64: 4, 4>}, {pipeline_mode = #tpu.pipeline_mode<synchronous>, transform_indices = @transform_8, window_bounds = array<i64: 4, 1>}, {pipeline_mode = #tpu.pipeline_mode<synchronous>, transform_indices = @transform_9, window_bounds = array<i64: 4, 4>}, {pipeline_mode = #tpu.pipeline_mode<synchronous>, transform_indices = @transform_10, window_bounds = array<i64: 4, 1>}, {pipeline_mode = #tpu.pipeline_mode<synchronous>, transform_indices = @transform_11, window_bounds = array<i64: 9, 4, 8>}, {pipeline_mode = #tpu.pipeline_mode<synchronous>, transform_indices = @transform_12, window_bounds = array<i64: 4, 1>}, {pipeline_mode = #tpu.pipeline_mode<synchronous>, transform_indices = @transform_13, window_bounds = array<i64: 9, 4, 4>}, {pipeline_mode = #tpu.pipeline_mode<synchronous>, transform_indices = @transform_14, window_bounds = array<i64: 4, 1>}, {transform_indices = @transform_15, window_bounds = array<i64: 4, 768>}]} {
    %cst = arith.constant 0.000000e+00 : f32
    %0 = vector.broadcast %cst : f32 to vector<8x128xf32>
    %c0 = arith.constant 0 : index
    %c0_0 = arith.constant 0 : index
    %1 = vector.load %arg17[%c0, %c0_0] : memref<8x1024xf32, #tpu.memory_space<vmem>>, vector<8x128xf32>
    tpu.vector_store %arg17[%c0, %c0_0], %0 {strides = array<i32>} : memref<8x1024xf32, #tpu.memory_space<vmem>>, vector<8x128xf32>,
    %c0_1 = arith.constant 0 : index
    %c896 = arith.constant 896 : index
    %2 = vector.load %arg17[%c0_1, %c896] : memref<8x1024xf32, #tpu.memory_space<vmem>>, vector<8x128xf32>
    tpu.vector_store %arg17[%c0_1, %c896], %0 {strides = array<i32>} : memref<8x1024xf32, #tpu.memory_space<vmem>>, vector<8x128xf32>,
    %c0_2 = arith.constant 0 : index
    %c0_3 = arith.constant 0 : index
    %3 = vector.load %arg4[%c0_2, %c0_3] : memref<1x768xf32, #tpu.memory_space<vmem>>, vector<1x768xf32>
    %c0_4 = arith.constant 0 : index
    %c0_5 = arith.constant 0 : index
    %4 = vector.load %arg3[%c0_4, %c0_5] : memref<128x384xbf16, #tpu.memory_space<vmem>>, vector<128x384xbf16>
    %5 = arith.extf %4 : vector<128x384xbf16> to vector<128x384xf32>
    %c0_6 = arith.constant 0 : index
    %c0_7 = arith.constant 0 : index
    %6 = vector.load %arg1[%c0_6, %c0_7] : memref<8x256xf32, #tpu.memory_space<vmem>>, vector<8x128xf32>
    %cst_8 = arith.constant dense<0.000000e+00> : vector<8x384xf32>
    %7 = tpu.matmul %6, %5, %cst_8 {dimension_numbers = #tpu.dot_dimension_numbers<[1], [0], [0], [1], [0, 0, 1, 1], [], []>} : vector<8x128xf32>, vector<128x384xf32>, vector<8x384xf32> -> vector<8x384xf32>
    %c0_9 = arith.constant 0 : index
    %c128 = arith.constant 128 : index
    %8 = vector.load %arg17[%c0_9, %c128] : memref<8x1024xf32, #tpu.memory_space<vmem>>, vector<8x384xf32>
    tpu.vector_store %arg17[%c0_9, %c128], %7 {strides = array<i32>} : memref<8x1024xf32, #tpu.memory_space<vmem>>, vector<8x384xf32>,
    %c0_10 = arith.constant 0 : index
    %c128_11 = arith.constant 128 : index
    %9 = vector.load %arg1[%c0_10, %c128_11] : memref<8x256xf32, #tpu.memory_space<vmem>>, vector<8x128xf32>
    %cst_12 = arith.constant dense<0.000000e+00> : vector<8x384xf32>
    %10 = tpu.matmul %9, %5, %cst_12 {dimension_numbers = #tpu.dot_dimension_numbers<[1], [0], [0], [1], [0, 0, 1, 1], [], []>} : vector<8x128xf32>, vector<128x384xf32>, vector<8x384xf32> -> vector<8x384xf32>
    %c0_13 = arith.constant 0 : index
    %c512 = arith.constant 512 : index
    %11 = vector.load %arg17[%c0_13, %c512] : memref<8x1024xf32, #tpu.memory_space<vmem>>, vector<8x384xf32>
    tpu.vector_store %arg17[%c0_13, %c512], %10 {strides = array<i32>} : memref<8x1024xf32, #tpu.memory_space<vmem>>, vector<8x384xf32>,
    %c0_14 = arith.constant 0 : index
    %c109 = arith.constant 109 : index
    %12 = vector.load %arg17[%c0_14, %c109] : memref<8x1024xf32, #tpu.memory_space<vmem>>, vector<8x768xf32>
    %c0_15 = arith.constant 0 : index
    %c0_16 = arith.constant 0 : index
    %c0_17 = arith.constant 0 : index
    %13 = vector.load %arg5[%c0_15, %c0_16, %c0_17] : memref<9x4x8xf32, #tpu.memory_space<vmem>>, vector<1x4x8xf32>
    %14 = vector.shape_cast %13 : vector<1x4x8xf32> to vector<4x8xf32>
    %cst_18 = arith.constant dense<0.000000e+00> : vector<4x768xf32>
    %15 = tpu.matmul %14, %12, %cst_18 {dimension_numbers = #tpu.dot_dimension_numbers<[1], [0], [0], [1], [0, 0, 1, 1], [], []>} : vector<4x8xf32>, vector<8x768xf32>, vector<4x768xf32> -> vector<4x768xf32>
    %c0_19 = arith.constant 0 : index
    %c110 = arith.constant 110 : index
    %16 = vector.load %arg17[%c0_19, %c110] : memref<8x1024xf32, #tpu.memory_space<vmem>>, vector<8x768xf32>
    %c1 = arith.constant 1 : index
    %c0_20 = arith.constant 0 : index
    %c0_21 = arith.constant 0 : index
    %17 = vector.load %arg5[%c1, %c0_20, %c0_21] : memref<9x4x8xf32, #tpu.memory_space<vmem>>, vector<1x4x8xf32>
    %18 = vector.shape_cast %17 : vector<1x4x8xf32> to vector<4x8xf32>
    %cst_22 = arith.constant dense<0.000000e+00> : vector<4x768xf32>
    %19 = tpu.matmul %18, %16, %cst_22 {dimension_numbers = #tpu.dot_dimension_numbers<[1], [0], [0], [1], [0, 0, 1, 1], [], []>} : vector<4x8xf32>, vector<8x768xf32>, vector<4x768xf32> -> vector<4x768xf32>
    %20 = arith.addf %15, %19 : vector<4x768xf32>
    %c0_23 = arith.constant 0 : index
    %c111 = arith.constant 111 : index
    %21 = vector.load %arg17[%c0_23, %c111] : memref<8x1024xf32, #tpu.memory_space<vmem>>, vector<8x768xf32>
    %c2 = arith.constant 2 : index
    %c0_24 = arith.constant 0 : index
    %c0_25 = arith.constant 0 : index
    %22 = vector.load %arg5[%c2, %c0_24, %c0_25] : memref<9x4x8xf32, #tpu.memory_space<vmem>>, vector<1x4x8xf32>
    %23 = vector.shape_cast %22 : vector<1x4x8xf32> to vector<4x8xf32>
    %cst_26 = arith.constant dense<0.000000e+00> : vector<4x768xf32>
    %24 = tpu.matmul %23, %21, %cst_26 {dimension_numbers = #tpu.dot_dimension_numbers<[1], [0], [0], [1], [0, 0, 1, 1], [], []>} : vector<4x8xf32>, vector<8x768xf32>, vector<4x768xf32> -> vector<4x768xf32>
    %25 = arith.addf %20, %24 : vector<4x768xf32>
    %c0_27 = arith.constant 0 : index
    %c127 = arith.constant 127 : index
    %26 = vector.load %arg17[%c0_27, %c127] : memref<8x1024xf32, #tpu.memory_space<vmem>>, vector<8x768xf32>
    %c3 = arith.constant 3 : index
    %c0_28 = arith.constant 0 : index
    %c0_29 = arith.constant 0 : index
    %27 = vector.load %arg5[%c3, %c0_28, %c0_29] : memref<9x4x8xf32, #tpu.memory_space<vmem>>, vector<1x4x8xf32>
    %28 = vector.shape_cast %27 : vector<1x4x8xf32> to vector<4x8xf32>
    %cst_30 = arith.constant dense<0.000000e+00> : vector<4x768xf32>
    %29 = tpu.matmul %28, %26, %cst_30 {dimension_numbers = #tpu.dot_dimension_numbers<[1], [0], [0], [1], [0, 0, 1, 1], [], []>} : vector<4x8xf32>, vector<8x768xf32>, vector<4x768xf32> -> vector<4x768xf32>
    %30 = arith.addf %25, %29 : vector<4x768xf32>
    %c0_31 = arith.constant 0 : index
    %c128_32 = arith.constant 128 : index
    %31 = vector.load %arg17[%c0_31, %c128_32] : memref<8x1024xf32, #tpu.memory_space<vmem>>, vector<8x768xf32>
    %c4 = arith.constant 4 : index
    %c0_33 = arith.constant 0 : index
    %c0_34 = arith.constant 0 : index
    %32 = vector.load %arg5[%c4, %c0_33, %c0_34] : memref<9x4x8xf32, #tpu.memory_space<vmem>>, vector<1x4x8xf32>
    %33 = vector.shape_cast %32 : vector<1x4x8xf32> to vector<4x8xf32>
    %cst_35 = arith.constant dense<0.000000e+00> : vector<4x768xf32>
    %34 = tpu.matmul %33, %31, %cst_35 {dimension_numbers = #tpu.dot_dimension_numbers<[1], [0], [0], [1], [0, 0, 1, 1], [], []>} : vector<4x8xf32>, vector<8x768xf32>, vector<4x768xf32> -> vector<4x768xf32>
    %35 = arith.addf %30, %34 : vector<4x768xf32>
    %c0_36 = arith.constant 0 : index
    %c129 = arith.constant 129 : index
    %36 = vector.load %arg17[%c0_36, %c129] : memref<8x1024xf32, #tpu.memory_space<vmem>>, vector<8x768xf32>
    %c5 = arith.constant 5 : index
    %c0_37 = arith.constant 0 : index
    %c0_38 = arith.constant 0 : index
    %37 = vector.load %arg5[%c5, %c0_37, %c0_38] : memref<9x4x8xf32, #tpu.memory_space<vmem>>, vector<1x4x8xf32>
    %38 = vector.shape_cast %37 : vector<1x4x8xf32> to vector<4x8xf32>
    %cst_39 = arith.constant dense<0.000000e+00> : vector<4x768xf32>
    %39 = tpu.matmul %38, %36, %cst_39 {dimension_numbers = #tpu.dot_dimension_numbers<[1], [0], [0], [1], [0, 0, 1, 1], [], []>} : vector<4x8xf32>, vector<8x768xf32>, vector<4x768xf32> -> vector<4x768xf32>
    %40 = arith.addf %35, %39 : vector<4x768xf32>
    %c0_40 = arith.constant 0 : index
    %c145 = arith.constant 145 : index
    %41 = vector.load %arg17[%c0_40, %c145] : memref<8x1024xf32, #tpu.memory_space<vmem>>, vector<8x768xf32>
    %c6 = arith.constant 6 : index
    %c0_41 = arith.constant 0 : index
    %c0_42 = arith.constant 0 : index
    %42 = vector.load %arg5[%c6, %c0_41, %c0_42] : memref<9x4x8xf32, #tpu.memory_space<vmem>>, vector<1x4x8xf32>
    %43 = vector.shape_cast %42 : vector<1x4x8xf32> to vector<4x8xf32>
    %cst_43 = arith.constant dense<0.000000e+00> : vector<4x768xf32>
    %44 = tpu.matmul %43, %41, %cst_43 {dimension_numbers = #tpu.dot_dimension_numbers<[1], [0], [0], [1], [0, 0, 1, 1], [], []>} : vector<4x8xf32>, vector<8x768xf32>, vector<4x768xf32> -> vector<4x768xf32>
    %45 = arith.addf %40, %44 : vector<4x768xf32>
    %c0_44 = arith.constant 0 : index
    %c146 = arith.constant 146 : index
    %46 = vector.load %arg17[%c0_44, %c146] : memref<8x1024xf32, #tpu.memory_space<vmem>>, vector<8x768xf32>
    %c7 = arith.constant 7 : index
    %c0_45 = arith.constant 0 : index
    %c0_46 = arith.constant 0 : index
    %47 = vector.load %arg5[%c7, %c0_45, %c0_46] : memref<9x4x8xf32, #tpu.memory_space<vmem>>, vector<1x4x8xf32>
    %48 = vector.shape_cast %47 : vector<1x4x8xf32> to vector<4x8xf32>
    %cst_47 = arith.constant dense<0.000000e+00> : vector<4x768xf32>
    %49 = tpu.matmul %48, %46, %cst_47 {dimension_numbers = #tpu.dot_dimension_numbers<[1], [0], [0], [1], [0, 0, 1, 1], [], []>} : vector<4x8xf32>, vector<8x768xf32>, vector<4x768xf32> -> vector<4x768xf32>
    %50 = arith.addf %45, %49 : vector<4x768xf32>
    %c0_48 = arith.constant 0 : index
    %c147 = arith.constant 147 : index
    %51 = vector.load %arg17[%c0_48, %c147] : memref<8x1024xf32, #tpu.memory_space<vmem>>, vector<8x768xf32>
    %c8 = arith.constant 8 : index
    %c0_49 = arith.constant 0 : index
    %c0_50 = arith.constant 0 : index
    %52 = vector.load %arg5[%c8, %c0_49, %c0_50] : memref<9x4x8xf32, #tpu.memory_space<vmem>>, vector<1x4x8xf32>
    %53 = vector.shape_cast %52 : vector<1x4x8xf32> to vector<4x8xf32>
    %cst_51 = arith.constant dense<0.000000e+00> : vector<4x768xf32>
    %54 = tpu.matmul %53, %51, %cst_51 {dimension_numbers = #tpu.dot_dimension_numbers<[1], [0], [0], [1], [0, 0, 1, 1], [], []>} : vector<4x8xf32>, vector<8x768xf32>, vector<4x768xf32> -> vector<4x768xf32>
    %55 = arith.addf %50, %54 : vector<4x768xf32>
    %c0_52 = arith.constant 0 : index
    %c0_53 = arith.constant 0 : index
    %56 = vector.load %arg6[%c0_52, %c0_53] : memref<4x1xf32, #tpu.memory_space<vmem>>, vector<4x1xf32>
    %57 = vector.broadcast %56 : vector<4x1xf32> to vector<4x768xf32>
    %58 = arith.addf %55, %57 : vector<4x768xf32>
    %59 = vector.broadcast %3 : vector<1x768xf32> to vector<4x768xf32>
    %60 = arith.mulf %58, %59 : vector<4x768xf32>
    %c0_54 = arith.constant 0 : index
    %c0_55 = arith.constant 0 : index
    %61 = vector.load %arg2[%c0_54, %c0_55] : memref<4x768xf32, #tpu.memory_space<vmem>>, vector<4x768xf32>
    %c0_56 = arith.constant 0 : index
    %c0_57 = arith.constant 0 : index
    %62 = vector.load %arg7[%c0_56, %c0_57] : memref<4x4xf32, #tpu.memory_space<vmem>>, vector<4x4xf32>
    %cst_58 = arith.constant dense<0.000000e+00> : vector<4x768xf32>
    %63 = tpu.matmul %62, %60, %cst_58 {dimension_numbers = #tpu.dot_dimension_numbers<[1], [0], [0], [1], [0, 0, 1, 1], [], []>} : vector<4x4xf32>, vector<4x768xf32>, vector<4x768xf32> -> vector<4x768xf32>
    %c0_59 = arith.constant 0 : index
    %c0_60 = arith.constant 0 : index
    %64 = vector.load %arg8[%c0_59, %c0_60] : memref<4x4xf32, #tpu.memory_space<vmem>>, vector<4x4xf32>
    %cst_61 = arith.constant dense<0.000000e+00> : vector<4x768xf32>
    %65 = tpu.matmul %64, %61, %cst_61 {dimension_numbers = #tpu.dot_dimension_numbers<[1], [0], [0], [1], [0, 0, 1, 1], [], []>} : vector<4x4xf32>, vector<4x768xf32>, vector<4x768xf32> -> vector<4x768xf32>
    %66 = arith.addf %63, %65 : vector<4x768xf32>
    %c0_62 = arith.constant 0 : index
    %c0_63 = arith.constant 0 : index
    %67 = vector.load %arg9[%c0_62, %c0_63] : memref<4x1xf32, #tpu.memory_space<vmem>>, vector<4x1xf32>
    %68 = vector.broadcast %67 : vector<4x1xf32> to vector<4x768xf32>
    %69 = arith.addf %66, %68 : vector<4x768xf32>
    %cst_64 = arith.constant 0.000000e+00 : f32
    %70 = vector.broadcast %cst_64 : f32 to vector<4x768xf32>
    %71 = arith.maximumf %69, %70 : vector<4x768xf32>
    %c0_65 = arith.constant 0 : index
    %c0_66 = arith.constant 0 : index
    %72 = vector.load %arg10[%c0_65, %c0_66] : memref<4x4xf32, #tpu.memory_space<vmem>>, vector<4x4xf32>
    %cst_67 = arith.constant dense<0.000000e+00> : vector<4x768xf32>
    %73 = tpu.matmul %72, %71, %cst_67 {dimension_numbers = #tpu.dot_dimension_numbers<[1], [0], [0], [1], [0, 0, 1, 1], [], []>} : vector<4x4xf32>, vector<4x768xf32>, vector<4x768xf32> -> vector<4x768xf32>
    %c0_68 = arith.constant 0 : index
    %c0_69 = arith.constant 0 : index
    %74 = vector.load %arg11[%c0_68, %c0_69] : memref<4x1xf32, #tpu.memory_space<vmem>>, vector<4x1xf32>
    %75 = vector.broadcast %74 : vector<4x1xf32> to vector<4x768xf32>
    %76 = arith.addf %73, %75 : vector<4x768xf32>
    %77 = arith.negf %76 : vector<4x768xf32>
    %78 = math.exp %77 : vector<4x768xf32>
    %cst_70 = arith.constant 1.000000e+00 : f32
    %79 = vector.broadcast %cst_70 : f32 to vector<4x768xf32>
    %80 = arith.addf %79, %78 : vector<4x768xf32>
    %81 = arith.divf %79, %80 : vector<4x768xf32>
    %cst_71 = arith.constant 1.000000e+00 : f32
    %82 = vector.broadcast %cst_71 : f32 to vector<4x768xf32>
    %83 = arith.addf %81, %82 : vector<4x768xf32>
    %84 = arith.mulf %60, %83 : vector<4x768xf32>
    %c0_72 = arith.constant 0 : index
    %c128_73 = arith.constant 128 : index
    %85 = vector.load %arg17[%c0_72, %c128_73] : memref<8x1024xf32, #tpu.memory_space<vmem>>, vector<4x768xf32>
    tpu.vector_store %arg17[%c0_72, %c128_73], %60 {strides = array<i32>} : memref<8x1024xf32, #tpu.memory_space<vmem>>, vector<4x768xf32>,
    %c4_74 = arith.constant 4 : index
    %c128_75 = arith.constant 128 : index
    %86 = vector.load %arg17[%c4_74, %c128_75] : memref<8x1024xf32, #tpu.memory_space<vmem>>, vector<4x768xf32>
    tpu.vector_store %arg17[%c4_74, %c128_75], %84 {strides = array<i32>} : memref<8x1024xf32, #tpu.memory_space<vmem>>, vector<4x768xf32>,
    %c0_76 = arith.constant 0 : index
    %c109_77 = arith.constant 109 : index
    %87 = vector.load %arg17[%c0_76, %c109_77] : memref<8x1024xf32, #tpu.memory_space<vmem>>, vector<8x768xf32>
    %c0_78 = arith.constant 0 : index
    %c0_79 = arith.constant 0 : index
    %c0_80 = arith.constant 0 : index
    %88 = vector.load %arg12[%c0_78, %c0_79, %c0_80] : memref<9x4x8xf32, #tpu.memory_space<vmem>>, vector<1x4x8xf32>
    %89 = vector.shape_cast %88 : vector<1x4x8xf32> to vector<4x8xf32>
    %cst_81 = arith.constant dense<0.000000e+00> : vector<4x768xf32>
    %90 = tpu.matmul %89, %87, %cst_81 {dimension_numbers = #tpu.dot_dimension_numbers<[1], [0], [0], [1], [0, 0, 1, 1], [], []>} : vector<4x8xf32>, vector<8x768xf32>, vector<4x768xf32> -> vector<4x768xf32>
    %c0_82 = arith.constant 0 : index
    %c110_83 = arith.constant 110 : index
    %91 = vector.load %arg17[%c0_82, %c110_83] : memref<8x1024xf32, #tpu.memory_space<vmem>>, vector<8x768xf32>
    %c1_84 = arith.constant 1 : index
    %c0_85 = arith.constant 0 : index
    %c0_86 = arith.constant 0 : index
    %92 = vector.load %arg12[%c1_84, %c0_85, %c0_86] : memref<9x4x8xf32, #tpu.memory_space<vmem>>, vector<1x4x8xf32>
    %93 = vector.shape_cast %92 : vector<1x4x8xf32> to vector<4x8xf32>
    %cst_87 = arith.constant dense<0.000000e+00> : vector<4x768xf32>
    %94 = tpu.matmul %93, %91, %cst_87 {dimension_numbers = #tpu.dot_dimension_numbers<[1], [0], [0], [1], [0, 0, 1, 1], [], []>} : vector<4x8xf32>, vector<8x768xf32>, vector<4x768xf32> -> vector<4x768xf32>
    %95 = arith.addf %90, %94 : vector<4x768xf32>
    %c0_88 = arith.constant 0 : index
    %c111_89 = arith.constant 111 : index
    %96 = vector.load %arg17[%c0_88, %c111_89] : memref<8x1024xf32, #tpu.memory_space<vmem>>, vector<8x768xf32>
    %c2_90 = arith.constant 2 : index
    %c0_91 = arith.constant 0 : index
    %c0_92 = arith.constant 0 : index
    %97 = vector.load %arg12[%c2_90, %c0_91, %c0_92] : memref<9x4x8xf32, #tpu.memory_space<vmem>>, vector<1x4x8xf32>
    %98 = vector.shape_cast %97 : vector<1x4x8xf32> to vector<4x8xf32>
    %cst_93 = arith.constant dense<0.000000e+00> : vector<4x768xf32>
    %99 = tpu.matmul %98, %96, %cst_93 {dimension_numbers = #tpu.dot_dimension_numbers<[1], [0], [0], [1], [0, 0, 1, 1], [], []>} : vector<4x8xf32>, vector<8x768xf32>, vector<4x768xf32> -> vector<4x768xf32>
    %100 = arith.addf %95, %99 : vector<4x768xf32>
    %c0_94 = arith.constant 0 : index
    %c127_95 = arith.constant 127 : index
    %101 = vector.load %arg17[%c0_94, %c127_95] : memref<8x1024xf32, #tpu.memory_space<vmem>>, vector<8x768xf32>
    %c3_96 = arith.constant 3 : index
    %c0_97 = arith.constant 0 : index
    %c0_98 = arith.constant 0 : index
    %102 = vector.load %arg12[%c3_96, %c0_97, %c0_98] : memref<9x4x8xf32, #tpu.memory_space<vmem>>, vector<1x4x8xf32>
    %103 = vector.shape_cast %102 : vector<1x4x8xf32> to vector<4x8xf32>
    %cst_99 = arith.constant dense<0.000000e+00> : vector<4x768xf32>
    %104 = tpu.matmul %103, %101, %cst_99 {dimension_numbers = #tpu.dot_dimension_numbers<[1], [0], [0], [1], [0, 0, 1, 1], [], []>} : vector<4x8xf32>, vector<8x768xf32>, vector<4x768xf32> -> vector<4x768xf32>
    %105 = arith.addf %100, %104 : vector<4x768xf32>
    %c0_100 = arith.constant 0 : index
    %c128_101 = arith.constant 128 : index
    %106 = vector.load %arg17[%c0_100, %c128_101] : memref<8x1024xf32, #tpu.memory_space<vmem>>, vector<8x768xf32>
    %c4_102 = arith.constant 4 : index
    %c0_103 = arith.constant 0 : index
    %c0_104 = arith.constant 0 : index
    %107 = vector.load %arg12[%c4_102, %c0_103, %c0_104] : memref<9x4x8xf32, #tpu.memory_space<vmem>>, vector<1x4x8xf32>
    %108 = vector.shape_cast %107 : vector<1x4x8xf32> to vector<4x8xf32>
    %cst_105 = arith.constant dense<0.000000e+00> : vector<4x768xf32>
    %109 = tpu.matmul %108, %106, %cst_105 {dimension_numbers = #tpu.dot_dimension_numbers<[1], [0], [0], [1], [0, 0, 1, 1], [], []>} : vector<4x8xf32>, vector<8x768xf32>, vector<4x768xf32> -> vector<4x768xf32>
    %110 = arith.addf %105, %109 : vector<4x768xf32>
    %c0_106 = arith.constant 0 : index
    %c129_107 = arith.constant 129 : index
    %111 = vector.load %arg17[%c0_106, %c129_107] : memref<8x1024xf32, #tpu.memory_space<vmem>>, vector<8x768xf32>
    %c5_108 = arith.constant 5 : index
    %c0_109 = arith.constant 0 : index
    %c0_110 = arith.constant 0 : index
    %112 = vector.load %arg12[%c5_108, %c0_109, %c0_110] : memref<9x4x8xf32, #tpu.memory_space<vmem>>, vector<1x4x8xf32>
    %113 = vector.shape_cast %112 : vector<1x4x8xf32> to vector<4x8xf32>
    %cst_111 = arith.constant dense<0.000000e+00> : vector<4x768xf32>
    %114 = tpu.matmul %113, %111, %cst_111 {dimension_numbers = #tpu.dot_dimension_numbers<[1], [0], [0], [1], [0, 0, 1, 1], [], []>} : vector<4x8xf32>, vector<8x768xf32>, vector<4x768xf32> -> vector<4x768xf32>
    %115 = arith.addf %110, %114 : vector<4x768xf32>
    %c0_112 = arith.constant 0 : index
    %c145_113 = arith.constant 145 : index
    %116 = vector.load %arg17[%c0_112, %c145_113] : memref<8x1024xf32, #tpu.memory_space<vmem>>, vector<8x768xf32>
    %c6_114 = arith.constant 6 : index
    %c0_115 = arith.constant 0 : index
    %c0_116 = arith.constant 0 : index
    %117 = vector.load %arg12[%c6_114, %c0_115, %c0_116] : memref<9x4x8xf32, #tpu.memory_space<vmem>>, vector<1x4x8xf32>
    %118 = vector.shape_cast %117 : vector<1x4x8xf32> to vector<4x8xf32>
    %cst_117 = arith.constant dense<0.000000e+00> : vector<4x768xf32>
    %119 = tpu.matmul %118, %116, %cst_117 {dimension_numbers = #tpu.dot_dimension_numbers<[1], [0], [0], [1], [0, 0, 1, 1], [], []>} : vector<4x8xf32>, vector<8x768xf32>, vector<4x768xf32> -> vector<4x768xf32>
    %120 = arith.addf %115, %119 : vector<4x768xf32>
    %c0_118 = arith.constant 0 : index
    %c146_119 = arith.constant 146 : index
    %121 = vector.load %arg17[%c0_118, %c146_119] : memref<8x1024xf32, #tpu.memory_space<vmem>>, vector<8x768xf32>
    %c7_120 = arith.constant 7 : index
    %c0_121 = arith.constant 0 : index
    %c0_122 = arith.constant 0 : index
    %122 = vector.load %arg12[%c7_120, %c0_121, %c0_122] : memref<9x4x8xf32, #tpu.memory_space<vmem>>, vector<1x4x8xf32>
    %123 = vector.shape_cast %122 : vector<1x4x8xf32> to vector<4x8xf32>
    %cst_123 = arith.constant dense<0.000000e+00> : vector<4x768xf32>
    %124 = tpu.matmul %123, %121, %cst_123 {dimension_numbers = #tpu.dot_dimension_numbers<[1], [0], [0], [1], [0, 0, 1, 1], [], []>} : vector<4x8xf32>, vector<8x768xf32>, vector<4x768xf32> -> vector<4x768xf32>
    %125 = arith.addf %120, %124 : vector<4x768xf32>
    %c0_124 = arith.constant 0 : index
    %c147_125 = arith.constant 147 : index
    %126 = vector.load %arg17[%c0_124, %c147_125] : memref<8x1024xf32, #tpu.memory_space<vmem>>, vector<8x768xf32>
    %c8_126 = arith.constant 8 : index
    %c0_127 = arith.constant 0 : index
    %c0_128 = arith.constant 0 : index
    %127 = vector.load %arg12[%c8_126, %c0_127, %c0_128] : memref<9x4x8xf32, #tpu.memory_space<vmem>>, vector<1x4x8xf32>
    %128 = vector.shape_cast %127 : vector<1x4x8xf32> to vector<4x8xf32>
    %cst_129 = arith.constant dense<0.000000e+00> : vector<4x768xf32>
    %129 = tpu.matmul %128, %126, %cst_129 {dimension_numbers = #tpu.dot_dimension_numbers<[1], [0], [0], [1], [0, 0, 1, 1], [], []>} : vector<4x8xf32>, vector<8x768xf32>, vector<4x768xf32> -> vector<4x768xf32>
    %130 = arith.addf %125, %129 : vector<4x768xf32>
    %c0_130 = arith.constant 0 : index
    %c0_131 = arith.constant 0 : index
    %131 = vector.load %arg13[%c0_130, %c0_131] : memref<4x1xf32, #tpu.memory_space<vmem>>, vector<4x1xf32>
    %132 = vector.broadcast %131 : vector<4x1xf32> to vector<4x768xf32>
    %133 = arith.addf %130, %132 : vector<4x768xf32>
    %cst_132 = arith.constant 0.000000e+00 : f32
    %134 = vector.broadcast %cst_132 : f32 to vector<4x768xf32>
    %135 = arith.maximumf %133, %134 : vector<4x768xf32>
    %136 = vector.broadcast %3 : vector<1x768xf32> to vector<4x768xf32>
    %137 = arith.mulf %135, %136 : vector<4x768xf32>
    %c0_133 = arith.constant 0 : index
    %c128_134 = arith.constant 128 : index
    %138 = vector.load %arg17[%c0_133, %c128_134] : memref<8x1024xf32, #tpu.memory_space<vmem>>, vector<4x768xf32>
    tpu.vector_store %arg17[%c0_133, %c128_134], %137 {strides = array<i32>} : memref<8x1024xf32, #tpu.memory_space<vmem>>, vector<4x768xf32>,
    %c0_135 = arith.constant 0 : index
    %c109_136 = arith.constant 109 : index
    %139 = vector.load %arg17[%c0_135, %c109_136] : memref<8x1024xf32, #tpu.memory_space<vmem>>, vector<4x768xf32>
    %c0_137 = arith.constant 0 : index
    %c0_138 = arith.constant 0 : index
    %c0_139 = arith.constant 0 : index
    %140 = vector.load %arg14[%c0_137, %c0_138, %c0_139] : memref<9x4x4xf32, #tpu.memory_space<vmem>>, vector<1x4x4xf32>
    %141 = vector.shape_cast %140 : vector<1x4x4xf32> to vector<4x4xf32>
    %cst_140 = arith.constant dense<0.000000e+00> : vector<4x768xf32>
    %142 = tpu.matmul %141, %139, %cst_140 {dimension_numbers = #tpu.dot_dimension_numbers<[1], [0], [0], [1], [0, 0, 1, 1], [], []>} : vector<4x4xf32>, vector<4x768xf32>, vector<4x768xf32> -> vector<4x768xf32>
    %c0_141 = arith.constant 0 : index
    %c110_142 = arith.constant 110 : index
    %143 = vector.load %arg17[%c0_141, %c110_142] : memref<8x1024xf32, #tpu.memory_space<vmem>>, vector<4x768xf32>
    %c1_143 = arith.constant 1 : index
    %c0_144 = arith.constant 0 : index
    %c0_145 = arith.constant 0 : index
    %144 = vector.load %arg14[%c1_143, %c0_144, %c0_145] : memref<9x4x4xf32, #tpu.memory_space<vmem>>, vector<1x4x4xf32>
    %145 = vector.shape_cast %144 : vector<1x4x4xf32> to vector<4x4xf32>
    %cst_146 = arith.constant dense<0.000000e+00> : vector<4x768xf32>
    %146 = tpu.matmul %145, %143, %cst_146 {dimension_numbers = #tpu.dot_dimension_numbers<[1], [0], [0], [1], [0, 0, 1, 1], [], []>} : vector<4x4xf32>, vector<4x768xf32>, vector<4x768xf32> -> vector<4x768xf32>
    %147 = arith.addf %142, %146 : vector<4x768xf32>
    %c0_147 = arith.constant 0 : index
    %c111_148 = arith.constant 111 : index
    %148 = vector.load %arg17[%c0_147, %c111_148] : memref<8x1024xf32, #tpu.memory_space<vmem>>, vector<4x768xf32>
    %c2_149 = arith.constant 2 : index
    %c0_150 = arith.constant 0 : index
    %c0_151 = arith.constant 0 : index
    %149 = vector.load %arg14[%c2_149, %c0_150, %c0_151] : memref<9x4x4xf32, #tpu.memory_space<vmem>>, vector<1x4x4xf32>
    %150 = vector.shape_cast %149 : vector<1x4x4xf32> to vector<4x4xf32>
    %cst_152 = arith.constant dense<0.000000e+00> : vector<4x768xf32>
    %151 = tpu.matmul %150, %148, %cst_152 {dimension_numbers = #tpu.dot_dimension_numbers<[1], [0], [0], [1], [0, 0, 1, 1], [], []>} : vector<4x4xf32>, vector<4x768xf32>, vector<4x768xf32> -> vector<4x768xf32>
    %152 = arith.addf %147, %151 : vector<4x768xf32>
    %c0_153 = arith.constant 0 : index
    %c127_154 = arith.constant 127 : index
    %153 = vector.load %arg17[%c0_153, %c127_154] : memref<8x1024xf32, #tpu.memory_space<vmem>>, vector<4x768xf32>
    %c3_155 = arith.constant 3 : index
    %c0_156 = arith.constant 0 : index
    %c0_157 = arith.constant 0 : index
    %154 = vector.load %arg14[%c3_155, %c0_156, %c0_157] : memref<9x4x4xf32, #tpu.memory_space<vmem>>, vector<1x4x4xf32>
    %155 = vector.shape_cast %154 : vector<1x4x4xf32> to vector<4x4xf32>
    %cst_158 = arith.constant dense<0.000000e+00> : vector<4x768xf32>
    %156 = tpu.matmul %155, %153, %cst_158 {dimension_numbers = #tpu.dot_dimension_numbers<[1], [0], [0], [1], [0, 0, 1, 1], [], []>} : vector<4x4xf32>, vector<4x768xf32>, vector<4x768xf32> -> vector<4x768xf32>
    %157 = arith.addf %152, %156 : vector<4x768xf32>
    %c0_159 = arith.constant 0 : index
    %c128_160 = arith.constant 128 : index
    %158 = vector.load %arg17[%c0_159, %c128_160] : memref<8x1024xf32, #tpu.memory_space<vmem>>, vector<4x768xf32>
    %c4_161 = arith.constant 4 : index
    %c0_162 = arith.constant 0 : index
    %c0_163 = arith.constant 0 : index
    %159 = vector.load %arg14[%c4_161, %c0_162, %c0_163] : memref<9x4x4xf32, #tpu.memory_space<vmem>>, vector<1x4x4xf32>
    %160 = vector.shape_cast %159 : vector<1x4x4xf32> to vector<4x4xf32>
    %cst_164 = arith.constant dense<0.000000e+00> : vector<4x768xf32>
    %161 = tpu.matmul %160, %158, %cst_164 {dimension_numbers = #tpu.dot_dimension_numbers<[1], [0], [0], [1], [0, 0, 1, 1], [], []>} : vector<4x4xf32>, vector<4x768xf32>, vector<4x768xf32> -> vector<4x768xf32>
    %162 = arith.addf %157, %161 : vector<4x768xf32>
    %c0_165 = arith.constant 0 : index
    %c129_166 = arith.constant 129 : index
    %163 = vector.load %arg17[%c0_165, %c129_166] : memref<8x1024xf32, #tpu.memory_space<vmem>>, vector<4x768xf32>
    %c5_167 = arith.constant 5 : index
    %c0_168 = arith.constant 0 : index
    %c0_169 = arith.constant 0 : index
    %164 = vector.load %arg14[%c5_167, %c0_168, %c0_169] : memref<9x4x4xf32, #tpu.memory_space<vmem>>, vector<1x4x4xf32>
    %165 = vector.shape_cast %164 : vector<1x4x4xf32> to vector<4x4xf32>
    %cst_170 = arith.constant dense<0.000000e+00> : vector<4x768xf32>
    %166 = tpu.matmul %165, %163, %cst_170 {dimension_numbers = #tpu.dot_dimension_numbers<[1], [0], [0], [1], [0, 0, 1, 1], [], []>} : vector<4x4xf32>, vector<4x768xf32>, vector<4x768xf32> -> vector<4x768xf32>
    %167 = arith.addf %162, %166 : vector<4x768xf32>
    %c0_171 = arith.constant 0 : index
    %c145_172 = arith.constant 145 : index
    %168 = vector.load %arg17[%c0_171, %c145_172] : memref<8x1024xf32, #tpu.memory_space<vmem>>, vector<4x768xf32>
    %c6_173 = arith.constant 6 : index
    %c0_174 = arith.constant 0 : index
    %c0_175 = arith.constant 0 : index
    %169 = vector.load %arg14[%c6_173, %c0_174, %c0_175] : memref<9x4x4xf32, #tpu.memory_space<vmem>>, vector<1x4x4xf32>
    %170 = vector.shape_cast %169 : vector<1x4x4xf32> to vector<4x4xf32>
    %cst_176 = arith.constant dense<0.000000e+00> : vector<4x768xf32>
    %171 = tpu.matmul %170, %168, %cst_176 {dimension_numbers = #tpu.dot_dimension_numbers<[1], [0], [0], [1], [0, 0, 1, 1], [], []>} : vector<4x4xf32>, vector<4x768xf32>, vector<4x768xf32> -> vector<4x768xf32>
    %172 = arith.addf %167, %171 : vector<4x768xf32>
    %c0_177 = arith.constant 0 : index
    %c146_178 = arith.constant 146 : index
    %173 = vector.load %arg17[%c0_177, %c146_178] : memref<8x1024xf32, #tpu.memory_space<vmem>>, vector<4x768xf32>
    %c7_179 = arith.constant 7 : index
    %c0_180 = arith.constant 0 : index
    %c0_181 = arith.constant 0 : index
    %174 = vector.load %arg14[%c7_179, %c0_180, %c0_181] : memref<9x4x4xf32, #tpu.memory_space<vmem>>, vector<1x4x4xf32>
    %175 = vector.shape_cast %174 : vector<1x4x4xf32> to vector<4x4xf32>
    %cst_182 = arith.constant dense<0.000000e+00> : vector<4x768xf32>
    %176 = tpu.matmul %175, %173, %cst_182 {dimension_numbers = #tpu.dot_dimension_numbers<[1], [0], [0], [1], [0, 0, 1, 1], [], []>} : vector<4x4xf32>, vector<4x768xf32>, vector<4x768xf32> -> vector<4x768xf32>
    %177 = arith.addf %172, %176 : vector<4x768xf32>
    %c0_183 = arith.constant 0 : index
    %c147_184 = arith.constant 147 : index
    %178 = vector.load %arg17[%c0_183, %c147_184] : memref<8x1024xf32, #tpu.memory_space<vmem>>, vector<4x768xf32>
    %c8_185 = arith.constant 8 : index
    %c0_186 = arith.constant 0 : index
    %c0_187 = arith.constant 0 : index
    %179 = vector.load %arg14[%c8_185, %c0_186, %c0_187] : memref<9x4x4xf32, #tpu.memory_space<vmem>>, vector<1x4x4xf32>
    %180 = vector.shape_cast %179 : vector<1x4x4xf32> to vector<4x4xf32>
    %cst_188 = arith.constant dense<0.000000e+00> : vector<4x768xf32>
    %181 = tpu.matmul %180, %178, %cst_188 {dimension_numbers = #tpu.dot_dimension_numbers<[1], [0], [0], [1], [0, 0, 1, 1], [], []>} : vector<4x4xf32>, vector<4x768xf32>, vector<4x768xf32> -> vector<4x768xf32>
    %182 = arith.addf %177, %181 : vector<4x768xf32>
    %c0_189 = arith.constant 0 : index
    %c0_190 = arith.constant 0 : index
    %183 = vector.load %arg15[%c0_189, %c0_190] : memref<4x1xf32, #tpu.memory_space<vmem>>, vector<4x1xf32>
    %184 = vector.broadcast %183 : vector<4x1xf32> to vector<4x768xf32>
    %185 = arith.addf %182, %184 : vector<4x768xf32>
    %cst_191 = arith.constant 0.000000e+00 : f32
    %186 = vector.broadcast %cst_191 : f32 to vector<4x768xf32>
    %187 = arith.maximumf %185, %186 : vector<4x768xf32>
    %c0_192 = arith.constant 0 : index
    %c0_193 = arith.constant 0 : index
    %188 = vector.load %arg16[%c0_192, %c0_193] : memref<4x768xf32, #tpu.memory_space<vmem>>, vector<4x768xf32>
    tpu.vector_store %arg16[%c0_192, %c0_193], %187 {strides = array<i32>} : memref<4x768xf32, #tpu.memory_space<vmem>>, vector<4x768xf32>,
    return
  }
  func.func @transform_0(%arg0: i32) -> (i32, i32) {
    %c0_i32 = arith.constant 0 : i32
    %c0_i32_0 = arith.constant 0 : i32
    return %c0_i32, %arg0 : i32, i32
  }
  func.func @transform_1(%arg0: i32) -> (i32, i32) {
    %c0_i32 = arith.constant 0 : i32
    %c0_i32_0 = arith.constant 0 : i32
    return %c0_i32, %arg0 : i32, i32
  }
  func.func @transform_2(%arg0: i32) -> (i32, i32) {
    %c0_i32 = arith.constant 0 : i32
    %c0_i32_0 = arith.constant 0 : i32
    %c0_i32_1 = arith.constant 0 : i32
    return %c0_i32, %c0_i32_0 : i32, i32
  }
  func.func @transform_3(%arg0: i32) -> (i32, i32) {
    %c0_i32 = arith.constant 0 : i32
    %c0_i32_0 = arith.constant 0 : i32
    %c0_i32_1 = arith.constant 0 : i32
    return %c0_i32, %c0_i32_0 : i32, i32
  }
  func.func @transform_4(%arg0: i32) -> (i32, i32, i32) {
    %c0_i32 = arith.constant 0 : i32
    %c0_i32_0 = arith.constant 0 : i32
    %c0_i32_1 = arith.constant 0 : i32
    %c0_i32_2 = arith.constant 0 : i32
    return %c0_i32, %c0_i32_0, %c0_i32_1 : i32, i32, i32
  }
  func.func @transform_5(%arg0: i32) -> (i32, i32) {
    %c0_i32 = arith.constant 0 : i32
    %c0_i32_0 = arith.constant 0 : i32
    %c0_i32_1 = arith.constant 0 : i32
    return %c0_i32, %c0_i32_0 : i32, i32
  }
  func.func @transform_6(%arg0: i32) -> (i32, i32) {
    %c0_i32 = arith.constant 0 : i32
    %c0_i32_0 = arith.constant 0 : i32
    %c0_i32_1 = arith.constant 0 : i32
    return %c0_i32, %c0_i32_0 : i32, i32
  }
  func.func @transform_7(%arg0: i32) -> (i32, i32) {
    %c0_i32 = arith.constant 0 : i32
    %c0_i32_0 = arith.constant 0 : i32
    %c0_i32_1 = arith.constant 0 : i32
    return %c0_i32, %c0_i32_0 : i32, i32
  }
  func.func @transform_8(%arg0: i32) -> (i32, i32) {
    %c0_i32 = arith.constant 0 : i32
    %c0_i32_0 = arith.constant 0 : i32
    %c0_i32_1 = arith.constant 0 : i32
    return %c0_i32, %c0_i32_0 : i32, i32
  }
  func.func @transform_9(%arg0: i32) -> (i32, i32) {
    %c0_i32 = arith.constant 0 : i32
    %c0_i32_0 = arith.constant 0 : i32
    %c0_i32_1 = arith.constant 0 : i32
    return %c0_i32, %c0_i32_0 : i32, i32
  }
  func.func @transform_10(%arg0: i32) -> (i32, i32) {
    %c0_i32 = arith.constant 0 : i32
    %c0_i32_0 = arith.constant 0 : i32
    %c0_i32_1 = arith.constant 0 : i32
    return %c0_i32, %c0_i32_0 : i32, i32
  }
  func.func @transform_11(%arg0: i32) -> (i32, i32, i32) {
    %c0_i32 = arith.constant 0 : i32
    %c0_i32_0 = arith.constant 0 : i32
    %c0_i32_1 = arith.constant 0 : i32
    %c0_i32_2 = arith.constant 0 : i32
    return %c0_i32, %c0_i32_0, %c0_i32_1 : i32, i32, i32
  }
  func.func @transform_12(%arg0: i32) -> (i32, i32) {
    %c0_i32 = arith.constant 0 : i32
    %c0_i32_0 = arith.constant 0 : i32
    %c0_i32_1 = arith.constant 0 : i32
    return %c0_i32, %c0_i32_0 : i32, i32
  }
  func.func @transform_13(%arg0: i32) -> (i32, i32, i32) {
    %c0_i32 = arith.constant 0 : i32
    %c0_i32_0 = arith.constant 0 : i32
    %c0_i32_1 = arith.constant 0 : i32
    %c0_i32_2 = arith.constant 0 : i32
    return %c0_i32, %c0_i32_0, %c0_i32_1 : i32, i32, i32
  }
  func.func @transform_14(%arg0: i32) -> (i32, i32) {
    %c0_i32 = arith.constant 0 : i32
    %c0_i32_0 = arith.constant 0 : i32
    %c0_i32_1 = arith.constant 0 : i32
    return %c0_i32, %c0_i32_0 : i32, i32
  }
  func.func @transform_15(%arg0: i32) -> (i32, i32) {
    %c0_i32 = arith.constant 0 : i32
    %c0_i32_0 = arith.constant 0 : i32
    return %c0_i32, %arg0 : i32, i32
  }
}

</mosaic_0001>

<llo_original>
// kernel: upconv_forward.1
$region0: #{upconv_forward.1}
  #allocation0 [shape = 'u32[]', space=smem, size = 0x4, offset = 0x4, fixed_abs, tag = 'smem constant byte address 0x4 - core index']
  #allocation1 [shape = 'u32[144,128]{1,0:T(1,128)}', space=vmem, size = 0x12000, scoped, tag = 'internal scratch']
  #allocation2 [shape = 'f32[8,1024]{1,0:T(8,128)}', space=vmem, size = 0x8000, scoped, tag = 'scratch operand']
  %s0 = inlined_call_operand.vmem [shape: f32[8,256], index: 0, kind: input, shape index: {}]
  %s1 = inlined_call_operand.vmem [shape: f32[4,768], index: 1, kind: input, shape index: {}]
  %s2 = inlined_call_operand.vmem [shape: bf16[128,384], index: 2, kind: input, shape index: {}]
  %s3 = inlined_call_operand.vmem [shape: f32[1,768], index: 3, kind: input, shape index: {}]
  %s4 = inlined_call_operand.vmem [shape: f32[9,4,8], index: 4, kind: input, shape index: {}]
  %s5 = inlined_call_operand.vmem [shape: f32[4,1], index: 5, kind: input, shape index: {}]
  %s6 = inlined_call_operand.vmem [shape: f32[4,4], index: 6, kind: input, shape index: {}]
  %s7 = inlined_call_operand.vmem [shape: f32[4,4], index: 7, kind: input, shape index: {}]
  %s8 = inlined_call_operand.vmem [shape: f32[4,1], index: 8, kind: input, shape index: {}]
  %s9 = inlined_call_operand.vmem [shape: f32[4,4], index: 9, kind: input, shape index: {}]
  %s10 = inlined_call_operand.vmem [shape: f32[4,1], index: 10, kind: input, shape index: {}]
  %s11 = inlined_call_operand.vmem [shape: f32[9,4,8], index: 11, kind: input, shape index: {}]
  %s12 = inlined_call_operand.vmem [shape: f32[4,1], index: 12, kind: input, shape index: {}]
  %s13 = inlined_call_operand.vmem [shape: f32[9,4,4], index: 13, kind: input, shape index: {}]
  %s14 = inlined_call_operand.vmem [shape: f32[4,1], index: 14, kind: input, shape index: {}]
  %s15 = inlined_call_operand.vmem [shape: f32[4,768], index: 15, kind: output, shape index: {}]
  %s16 = sld [smem:[#allocation0]]
  $region70: #{upconv_forward.1} parent=0
    _
  %s18 = ssub.s32 1, %s16
  %s19 = scalar_select 0, %s18, %s16
  // Predicated region
  $region2: #{upconv_forward.1} parent=0 // pred_check
    _
  $region3: #{upconv_forward.1} parent=0 // pred_check_branch
    %21 = sbr.rel (0) target = $region5
  $region4: #{upconv_forward.1} parent=0 // pred_region
    _
  $region5: #{upconv_forward.1} parent=0 // pred_fallthru
    _
  // Predicated region
  $region6: #{upconv_forward.1} parent=0 // pred_check
    _
  $region7: #{upconv_forward.1} parent=0 // pred_check_branch
    %23 = sbr.rel (0) target = $region9
  $region8: #{upconv_forward.1} parent=0 // pred_region
    _
  $region9: #{upconv_forward.1} parent=0 // pred_fallthru
    _
  // Predicated region
  $region10: #{upconv_forward.1} parent=0 // pred_check
    _
  $region11: #{upconv_forward.1} parent=0 // pred_check_branch
    %25 = sbr.rel (0) target = $region13
  $region12: #{upconv_forward.1} parent=0 // pred_region
    _
  $region13: #{upconv_forward.1} parent=0 // pred_fallthru
    _
  // Predicated region
  $region14: #{upconv_forward.1} parent=0 // pred_check
    _
  $region15: #{upconv_forward.1} parent=0 // pred_check_branch
    %27 = sbr.rel (0) target = $region17
  $region16: #{upconv_forward.1} parent=0 // pred_region
    _
  $region17: #{upconv_forward.1} parent=0 // pred_fallthru
    _
  // Predicated region
  $region18: #{upconv_forward.1} parent=0 // pred_check
    _
  $region19: #{upconv_forward.1} parent=0 // pred_check_branch
    %29 = sbr.rel (0) target = $region21
  $region20: #{upconv_forward.1} parent=0 // pred_region
    _
  $region21: #{upconv_forward.1} parent=0 // pred_fallthru
    _
  // Predicated region
  $region22: #{upconv_forward.1} parent=0 // pred_check
    _
  $region23: #{upconv_forward.1} parent=0 // pred_check_branch
    %31 = sbr.rel (0) target = $region25
  $region24: #{upconv_forward.1} parent=0 // pred_region
    _
  $region25: #{upconv_forward.1} parent=0 // pred_fallthru
    _
  // Predicated region
  $region26: #{upconv_forward.1} parent=0 // pred_check
    _
  $region27: #{upconv_forward.1} parent=0 // pred_check_branch
    %33 = sbr.rel (0) target = $region29
  $region28: #{upconv_forward.1} parent=0 // pred_region
    _
  $region29: #{upconv_forward.1} parent=0 // pred_fallthru
    _
  // Predicated region
  $region30: #{upconv_forward.1} parent=0 // pred_check
    _
  $region31: #{upconv_forward.1} parent=0 // pred_check_branch
    %35 = sbr.rel (0) target = $region33
  $region32: #{upconv_forward.1} parent=0 // pred_region
    _
  $region33: #{upconv_forward.1} parent=0 // pred_fallthru
    _
  // Predicated region
  $region34: #{upconv_forward.1} parent=0 // pred_check
    _
  $region35: #{upconv_forward.1} parent=0 // pred_check_branch
    %37 = sbr.rel (0) target = $region37
  $region36: #{upconv_forward.1} parent=0 // pred_region
    _
  $region37: #{upconv_forward.1} parent=0 // pred_fallthru
    _
  // Predicated region
  $region38: #{upconv_forward.1} parent=0 // pred_check
    _
  $region39: #{upconv_forward.1} parent=0 // pred_check_branch
    %39 = sbr.rel (0) target = $region41
  $region40: #{upconv_forward.1} parent=0 // pred_region
    _
  $region41: #{upconv_forward.1} parent=0 // pred_fallthru
    _
  // Predicated region
  $region42: #{upconv_forward.1} parent=0 // pred_check
    _
  $region43: #{upconv_forward.1} parent=0 // pred_check_branch
    %41 = sbr.rel (0) target = $region45
  $region44: #{upconv_forward.1} parent=0 // pred_region
    _
  $region45: #{upconv_forward.1} parent=0 // pred_fallthru
    _
  // Predicated region
  $region46: #{upconv_forward.1} parent=0 // pred_check
    _
  $region47: #{upconv_forward.1} parent=0 // pred_check_branch
    %43 = sbr.rel (0) target = $region49
  $region48: #{upconv_forward.1} parent=0 // pred_region
    _
  $region49: #{upconv_forward.1} parent=0 // pred_fallthru
    _
  // Predicated region
  $region50: #{upconv_forward.1} parent=0 // pred_check
    _
  $region51: #{upconv_forward.1} parent=0 // pred_check_branch
    %45 = sbr.rel (0) target = $region53
  $region52: #{upconv_forward.1} parent=0 // pred_region
    _
  $region53: #{upconv_forward.1} parent=0 // pred_fallthru
    _
  // Predicated region
  $region54: #{upconv_forward.1} parent=0 // pred_check
    _
  $region55: #{upconv_forward.1} parent=0 // pred_check_branch
    %47 = sbr.rel (0) target = $region57
  $region56: #{upconv_forward.1} parent=0 // pred_region
    _
  $region57: #{upconv_forward.1} parent=0 // pred_fallthru
    _
  // Predicated region
  $region58: #{upconv_forward.1} parent=0 // pred_check
    _
  $region59: #{upconv_forward.1} parent=0 // pred_check_branch
    %49 = sbr.rel (0) target = $region61
  $region60: #{upconv_forward.1} parent=0 // pred_region
    _
  $region61: #{upconv_forward.1} parent=0 // pred_fallthru
    _
  %50 = vst [vmem:[#allocation2] sm:$0xff] 0.0
  %51 = vst [vmem:[#allocation2 + $0x38] sm:$0xff] 0.0
  %v52 = vld [vmem:[%s3] sm:$0x3f]
  %v53 = vld [vmem:[%s2] sm:$0xff]
  %v54 = vld [vmem:[%s2 + $0x8] sm:$0xf]
  %v55 = vld [vmem:[%s2 + $0xc] sm:$0xff]
  %v56 = vld [vmem:[%s2 + $0x14] sm:$0xf]
  %v57 = vld [vmem:[%s2 + $0x18] sm:$0xff]
  %v58 = vld [vmem:[%s2 + $0x20] sm:$0xf]
  %v59 = vld [vmem:[%s2 + $0x24] sm:$0xff]
  %v60 = vld [vmem:[%s2 + $0x2c] sm:$0xf]
  %v61 = vld [vmem:[%s2 + $0x30] sm:$0xff]
  %v62 = vld [vmem:[%s2 + $0x38] sm:$0xf]
  %v63 = vld [vmem:[%s2 + $0x3c] sm:$0xff]
  %v64 = vld [vmem:[%s2 + $0x44] sm:$0xf]
  %v65 = vld [vmem:[%s2 + $0x48] sm:$0xff]
  %v66 = vld [vmem:[%s2 + $0x50] sm:$0xf]
  %v67 = vld [vmem:[%s2 + $0x54] sm:$0xff]
  %v68 = vld [vmem:[%s2 + $0x5c] sm:$0xf]
  %v69 = vld [vmem:[%s2 + $0x60] sm:$0xff]
  %v70 = vld [vmem:[%s2 + $0x68] sm:$0xf]
  %v71 = vld [vmem:[%s2 + $0x6c] sm:$0xff]
  %v72 = vld [vmem:[%s2 + $0x74] sm:$0xf]
  %v73 = vld [vmem:[%s2 + $0x78] sm:$0xff]
  %v74 = vld [vmem:[%s2 + $0x80] sm:$0xf]
  %v75 = vld [vmem:[%s2 + $0x84] sm:$0xff]
  %v76 = vld [vmem:[%s2 + $0x8c] sm:$0xf]
  %v77 = vld [vmem:[%s2 + $0x90] sm:$0xff]
  %v78 = vld [vmem:[%s2 + $0x98] sm:$0xf]
  %v79 = vld [vmem:[%s2 + $0x9c] sm:$0xff]
  %v80 = vld [vmem:[%s2 + $0xa4] sm:$0xf]
  %v81 = vld [vmem:[%s2 + $0xa8] sm:$0xff]
  %v82 = vld [vmem:[%s2 + $0xb0] sm:$0xf]
  %v83 = vld [vmem:[%s2 + $0xb4] sm:$0xff]
  %v84 = vld [vmem:[%s2 + $0xbc] sm:$0xf]
  %v85 = vunpack.c.l.bf16 %v53
  %v86 = vunpack.c.h.bf16 %v53
  %v87 = vunpack.c.l.bf16 %v54
  %v88 = vunpack.c.l.bf16 %v55
  %v89 = vunpack.c.h.bf16 %v55
  %v90 = vunpack.c.l.bf16 %v56
  %v91 = vunpack.c.l.bf16 %v57
  %v92 = vunpack.c.h.bf16 %v57
  %v93 = vunpack.c.l.bf16 %v58
  %v94 = vunpack.c.l.bf16 %v59
  %v95 = vunpack.c.h.bf16 %v59
  %v96 = vunpack.c.l.bf16 %v60
  %v97 = vunpack.c.l.bf16 %v61
  %v98 = vunpack.c.h.bf16 %v61
  %v99 = vunpack.c.l.bf16 %v62
  %v100 = vunpack.c.l.bf16 %v63
  %v101 = vunpack.c.h.bf16 %v63
  %v102 = vunpack.c.l.bf16 %v64
  %v103 = vunpack.c.l.bf16 %v65
  %v104 = vunpack.c.h.bf16 %v65
  %v105 = vunpack.c.l.bf16 %v66
  %v106 = vunpack.c.l.bf16 %v67
  %v107 = vunpack.c.h.bf16 %v67
  %v108 = vunpack.c.l.bf16 %v68
  %v109 = vunpack.c.l.bf16 %v69
  %v110 = vunpack.c.h.bf16 %v69
  %v111 = vunpack.c.l.bf16 %v70
  %v112 = vunpack.c.l.bf16 %v71
  %v113 = vunpack.c.h.bf16 %v71
  %v114 = vunpack.c.l.bf16 %v72
  %v115 = vunpack.c.l.bf16 %v73
  %v116 = vunpack.c.h.bf16 %v73
  %v117 = vunpack.c.l.bf16 %v74
  %v118 = vunpack.c.l.bf16 %v75
  %v119 = vunpack.c.h.bf16 %v75
  %v120 = vunpack.c.l.bf16 %v76
  %v121 = vunpack.c.l.bf16 %v77
  %v122 = vunpack.c.h.bf16 %v77
  %v123 = vunpack.c.l.bf16 %v78
  %v124 = vunpack.c.l.bf16 %v79
  %v125 = vunpack.c.h.bf16 %v79
  %v126 = vunpack.c.l.bf16 %v80
  %v127 = vunpack.c.l.bf16 %v81
  %v128 = vunpack.c.h.bf16 %v81
  %v129 = vunpack.c.l.bf16 %v82
  %v130 = vunpack.c.l.bf16 %v83
  %v131 = vunpack.c.h.bf16 %v83
  %v132 = vunpack.c.l.bf16 %v84
  %v133 = vld [vmem:[%s0] sm:$0xff]
  %134 = vmatprep.subr.mxu0 %v86
  %135 = vmatpush1.msra.mxu0 %v85
  %136 = vmatprep.subr.mxu0 %v89
  %137 = vmatpush1.msra.mxu0 %v88
  %138 = vmatprep.subr.mxu0 %v92
  %139 = vmatpush1.msra.mxu0 %v91
  %140 = vmatprep.subr.mxu0 %v95
  %141 = vmatpush1.msra.mxu0 %v94
  %142 = vmatprep.subr.mxu0 %v98
  %143 = vmatpush1.msra.mxu0 %v97
  %144 = vmatprep.subr.mxu0 %v101
  %145 = vmatpush1.msra.mxu0 %v100
  %146 = vmatprep.subr.mxu0 %v104
  %147 = vmatpush1.msra.mxu0 %v103
  %148 = vmatprep.subr.mxu0 %v107
  %149 = vmatpush1.msra.mxu0 %v106
  %150 = vmatprep.subr.mxu0 %v110
  %151 = vmatpush1.msra.mxu0 %v109
  %152 = vmatprep.subr.mxu0 %v113
  %153 = vmatpush1.msra.mxu0 %v112
  %154 = vmatprep.subr.mxu0 %v116
  %155 = vmatpush1.msra.mxu0 %v115
  %156 = vmatprep.subr.mxu0 %v119
  %157 = vmatpush1.msra.mxu0 %v118
  %158 = vmatprep.subr.mxu0 %v122
  %159 = vmatpush1.msra.mxu0 %v121
  %160 = vmatprep.subr.mxu0 %v125
  %161 = vmatpush1.msra.mxu0 %v124
  %162 = vmatprep.subr.mxu0 %v128
  %163 = vmatpush1.msra.mxu0 %v127
  %164 = vmatprep.subr.mxu0 %v131
  %165 = vmatpush1.msra.mxu0 %v130
  %166 = vmatprep.subr.mxu0 0.0
  %167 = vmatpush1.msra.mxu0 0.0
  %168 = vmatprep.subr.mxu0 0.0
  %169 = vmatpush1.msra.mxu0 0.0
  %170 = vmatprep.subr.mxu0 0.0
  %171 = vmatpush1.msra.mxu0 0.0
  %172 = vmatprep.subr.mxu0 0.0
  %173 = vmatpush1.msra.mxu0 0.0
  %174 = vmatprep.subr.mxu0 0.0
  %175 = vmatpush1.msra.mxu0 0.0
  %176 = vmatprep.subr.mxu0 0.0
  %177 = vmatpush1.msra.mxu0 0.0
  %178 = vmatprep.subr.mxu0 0.0
  %179 = vmatpush1.msra.mxu0 0.0
  %180 = vmatprep.subr.mxu0 0.0
  %181 = vmatpush1.msra.mxu0 0.0
  %182 = vmatprep.subr.mxu0 0.0
  %183 = vmatpush1.msra.mxu0 0.0
  %184 = vmatprep.subr.mxu0 0.0
  %185 = vmatpush1.msra.mxu0 0.0
  %186 = vmatprep.subr.mxu0 0.0
  %187 = vmatpush1.msra.mxu0 0.0
  %188 = vmatprep.subr.mxu0 0.0
  %189 = vmatpush1.msra.mxu0 0.0
  %190 = vmatprep.subr.mxu0 0.0
  %191 = vmatpush1.msra.mxu0 0.0
  %192 = vmatprep.subr.mxu0 0.0
  %193 = vmatpush1.msra.mxu0 0.0
  %194 = vmatprep.subr.mxu0 0.0
  %195 = vmatpush1.msra.mxu0 0.0
  %196 = vmatprep.subr.mxu0 0.0
  %197 = vmatpush1.msra.mxu0 0.0
  %198 = vmatprep.mubr.f32.mxu0 0.0
  %199 = vmatmul.mubr.f32.gmra.mrb[0].mxu0 %v133
  %v200 = vpop.f32.mrb[0].mxu0
  %v201 = vadd.f32 0.0, %v200
  %v202 = vpop.f32.mrb[0].mxu0
  %v203 = vadd.f32 0.0, %v202
  %204 = vdwg.mxu0
  %205 = vmatprep.subr.mxu0 0.0
  %206 = vmatpush1.msra.mxu0 %v87
  %207 = vmatprep.subr.mxu0 0.0
  %208 = vmatpush1.msra.mxu0 %v90
  %209 = vmatprep.subr.mxu0 0.0
  %210 = vmatpush1.msra.mxu0 %v93
  %211 = vmatprep.subr.mxu0 0.0
  %212 = vmatpush1.msra.mxu0 %v96
  %213 = vmatprep.subr.mxu0 0.0
  %214 = vmatpush1.msra.mxu0 %v99
  %215 = vmatprep.subr.mxu0 0.0
  %216 = vmatpush1.msra.mxu0 %v102
  %217 = vmatprep.subr.mxu0 0.0
  %218 = vmatpush1.msra.mxu0 %v105
  %219 = vmatprep.subr.mxu0 0.0
  %220 = vmatpush1.msra.mxu0 %v108
  %221 = vmatprep.subr.mxu0 0.0
  %222 = vmatpush1.msra.mxu0 %v111
  %223 = vmatprep.subr.mxu0 0.0
  %224 = vmatpush1.msra.mxu0 %v114
  %225 = vmatprep.subr.mxu0 0.0
  %226 = vmatpush1.msra.mxu0 %v117
  %227 = vmatprep.subr.mxu0 0.0
  %228 = vmatpush1.msra.mxu0 %v120
  %229 = vmatprep.subr.mxu0 0.0
  %230 = vmatpush1.msra.mxu0 %v123
  %231 = vmatprep.subr.mxu0 0.0
  %232 = vmatpush1.msra.mxu0 %v126
  %233 = vmatprep.subr.mxu0 0.0
  %234 = vmatpush1.msra.mxu0 %v129
  %235 = vmatprep.subr.mxu0 0.0
  %236 = vmatpush1.msra.mxu0 %v132
  %237 = vmatprep.subr.mxu0 0.0
  %238 = vmatpush1.msra.mxu0 0.0
  %239 = vmatprep.subr.mxu0 0.0
  %240 = vmatpush1.msra.mxu0 0.0
  %241 = vmatprep.subr.mxu0 0.0
  %242 = vmatpush1.msra.mxu0 0.0
  %243 = vmatprep.subr.mxu0 0.0
  %244 = vmatpush1.msra.mxu0 0.0
  %245 = vmatprep.subr.mxu0 0.0
  %246 = vmatpush1.msra.mxu0 0.0
  %247 = vmatprep.subr.mxu0 0.0
  %248 = vmatpush1.msra.mxu0 0.0
  %249 = vmatprep.subr.mxu0 0.0
  %250 = vmatpush1.msra.mxu0 0.0
  %251 = vmatprep.subr.mxu0 0.0
  %252 = vmatpush1.msra.mxu0 0.0
  %253 = vmatprep.subr.mxu0 0.0
  %254 = vmatpush1.msra.mxu0 0.0
  %255 = vmatprep.subr.mxu0 0.0
  %256 = vmatpush1.msra.mxu0 0.0
  %257 = vmatprep.subr.mxu0 0.0
  %258 = vmatpush1.msra.mxu0 0.0
  %259 = vmatprep.subr.mxu0 0.0
  %260 = vmatpush1.msra.mxu0 0.0
  %261 = vmatprep.subr.mxu0 0.0
  %262 = vmatpush1.msra.mxu0 0.0
  %263 = vmatprep.subr.mxu0 0.0
  %264 = vmatpush1.msra.mxu0 0.0
  %265 = vmatprep.subr.mxu0 0.0
  %266 = vmatpush1.msra.mxu0 0.0
  %267 = vmatprep.subr.mxu0 0.0
  %268 = vmatpush1.msra.mxu0 0.0
  %269 = vmatprep.mubr.f32.mxu0 0.0
  %270 = vmatmul.mubr.f32.gmra.mrb[0].mxu0 %v133
  %v271 = vpop.f32.mrb[0].mxu0
  %v272 = vadd.f32 0.0, %v271
  %v273 = vpop.f32.mrb[0].mxu0
  %274 = vdwg.mxu0
  %275 = vst [vmem:[#allocation2 + $0x8] sm:$0xff] %v201
  %276 = vst [vmem:[#allocation2 + $0x10] sm:$0xff] %v203
  %277 = vst [vmem:[#allocation2 + $0x18] sm:$0xff] %v272
  %v278 = vld [vmem:[%s0 + $0x8] sm:$0xff]
  %279 = vmatprep.subr.mxu0 %v86
  %280 = vmatpush1.msra.mxu0 %v85
  %281 = vmatprep.subr.mxu0 %v89
  %282 = vmatpush1.msra.mxu0 %v88
  %283 = vmatprep.subr.mxu0 %v92
  %284 = vmatpush1.msra.mxu0 %v91
  %285 = vmatprep.subr.mxu0 %v95
  %286 = vmatpush1.msra.mxu0 %v94
  %287 = vmatprep.subr.mxu0 %v98
  %288 = vmatpush1.msra.mxu0 %v97
  %289 = vmatprep.subr.mxu0 %v101
  %290 = vmatpush1.msra.mxu0 %v100
  %291 = vmatprep.subr.mxu0 %v104
  %292 = vmatpush1.msra.mxu0 %v103
  %293 = vmatprep.subr.mxu0 %v107
  %294 = vmatpush1.msra.mxu0 %v106
  %295 = vmatprep.subr.mxu0 %v110
  %296 = vmatpush1.msra.mxu0 %v109
  %297 = vmatprep.subr.mxu0 %v113
  %298 = vmatpush1.msra.mxu0 %v112
  %299 = vmatprep.subr.mxu0 %v116
  %300 = vmatpush1.msra.mxu0 %v115
  %301 = vmatprep.subr.mxu0 %v119
  %302 = vmatpush1.msra.mxu0 %v118
  %303 = vmatprep.subr.mxu0 %v122
  %304 = vmatpush1.msra.mxu0 %v121
  %305 = vmatprep.subr.mxu0 %v125
  %306 = vmatpush1.msra.mxu0 %v124
  %307 = vmatprep.subr.mxu0 %v128
  %308 = vmatpush1.msra.mxu0 %v127
  %309 = vmatprep.subr.mxu0 %v131
  %310 = vmatpush1.msra.mxu0 %v130
  %311 = vmatprep.subr.mxu0 0.0
  %312 = vmatpush1.msra.mxu0 0.0
  %313 = vmatprep.subr.mxu0 0.0
  %314 = vmatpush1.msra.mxu0 0.0
  %315 = vmatprep.subr.mxu0 0.0
  %316 = vmatpush1.msra.mxu0 0.0
  %317 = vmatprep.subr.mxu0 0.0
  %318 = vmatpush1.msra.mxu0 0.0
  %319 = vmatprep.subr.mxu0 0.0
  %320 = vmatpush1.msra.mxu0 0.0
  %321 = vmatprep.subr.mxu0 0.0
  %322 = vmatpush1.msra.mxu0 0.0
  %323 = vmatprep.subr.mxu0 0.0
  %324 = vmatpush1.msra.mxu0 0.0
  %325 = vmatprep.subr.mxu0 0.0
  %326 = vmatpush1.msra.mxu0 0.0
  %327 = vmatprep.subr.mxu0 0.0
  %328 = vmatpush1.msra.mxu0 0.0
  %329 = vmatprep.subr.mxu0 0.0
  %330 = vmatpush1.msra.mxu0 0.0
  %331 = vmatprep.subr.mxu0 0.0
  %332 = vmatpush1.msra.mxu0 0.0
  %333 = vmatprep.subr.mxu0 0.0
  %334 = vmatpush1.msra.mxu0 0.0
  %335 = vmatprep.subr.mxu0 0.0
  %336 = vmatpush1.msra.mxu0 0.0
  %337 = vmatprep.subr.mxu0 0.0
  %338 = vmatpush1.msra.mxu0 0.0
  %339 = vmatprep.subr.mxu0 0.0
  %340 = vmatpush1.msra.mxu0 0.0
  %341 = vmatprep.subr.mxu0 0.0
  %342 = vmatpush1.msra.mxu0 0.0
  %343 = vmatprep.mubr.f32.mxu0 0.0
  %344 = vmatmul.mubr.f32.gmra.mrb[0].mxu0 %v278
  %v345 = vpop.f32.mrb[0].mxu0
  %v346 = vadd.f32 0.0, %v345
  %v347 = vpop.f32.mrb[0].mxu0
  %v348 = vadd.f32 0.0, %v347
  %349 = vdwg.mxu0
  %350 = vmatprep.subr.mxu0 0.0
  %351 = vmatpush1.msra.mxu0 %v87
  %352 = vmatprep.subr.mxu0 0.0
  %353 = vmatpush1.msra.mxu0 %v90
  %354 = vmatprep.subr.mxu0 0.0
  %355 = vmatpush1.msra.mxu0 %v93
  %356 = vmatprep.subr.mxu0 0.0
  %357 = vmatpush1.msra.mxu0 %v96
  %358 = vmatprep.subr.mxu0 0.0
  %359 = vmatpush1.msra.mxu0 %v99
  %360 = vmatprep.subr.mxu0 0.0
  %361 = vmatpush1.msra.mxu0 %v102
  %362 = vmatprep.subr.mxu0 0.0
  %363 = vmatpush1.msra.mxu0 %v105
  %364 = vmatprep.subr.mxu0 0.0
  %365 = vmatpush1.msra.mxu0 %v108
  %366 = vmatprep.subr.mxu0 0.0
  %367 = vmatpush1.msra.mxu0 %v111
  %368 = vmatprep.subr.mxu0 0.0
  %369 = vmatpush1.msra.mxu0 %v114
  %370 = vmatprep.subr.mxu0 0.0
  %371 = vmatpush1.msra.mxu0 %v117
  %372 = vmatprep.subr.mxu0 0.0
  %373 = vmatpush1.msra.mxu0 %v120
  %374 = vmatprep.subr.mxu0 0.0
  %375 = vmatpush1.msra.mxu0 %v123
  %376 = vmatprep.subr.mxu0 0.0
  %377 = vmatpush1.msra.mxu0 %v126
  %378 = vmatprep.subr.mxu0 0.0
  %379 = vmatpush1.msra.mxu0 %v129
  %380 = vmatprep.subr.mxu0 0.0
  %381 = vmatpush1.msra.mxu0 %v132
  %382 = vmatprep.subr.mxu0 0.0
  %383 = vmatpush1.msra.mxu0 0.0
  %384 = vmatprep.subr.mxu0 0.0
  %385 = vmatpush1.msra.mxu0 0.0
  %386 = vmatprep.subr.mxu0 0.0
  %387 = vmatpush1.msra.mxu0 0.0
  %388 = vmatprep.subr.mxu0 0.0
  %389 = vmatpush1.msra.mxu0 0.0
  %390 = vmatprep.subr.mxu0 0.0
  %391 = vmatpush1.msra.mxu0 0.0
  %392 = vmatprep.subr.mxu0 0.0
  %393 = vmatpush1.msra.mxu0 0.0
  %394 = vmatprep.subr.mxu0 0.0
  %395 = vmatpush1.msra.mxu0 0.0
  %396 = vmatprep.subr.mxu0 0.0
  %397 = vmatpush1.msra.mxu0 0.0
  %398 = vmatprep.subr.mxu0 0.0
  %399 = vmatpush1.msra.mxu0 0.0
  %400 = vmatprep.subr.mxu0 0.0
  %401 = vmatpush1.msra.mxu0 0.0
  %402 = vmatprep.subr.mxu0 0.0
  %403 = vmatpush1.msra.mxu0 0.0
  %404 = vmatprep.subr.mxu0 0.0
  %405 = vmatpush1.msra.mxu0 0.0
  %406 = vmatprep.subr.mxu0 0.0
  %407 = vmatpush1.msra.mxu0 0.0
  %408 = vmatprep.subr.mxu0 0.0
  %409 = vmatpush1.msra.mxu0 0.0
  %410 = vmatprep.subr.mxu0 0.0
  %411 = vmatpush1.msra.mxu0 0.0
  %412 = vmatprep.subr.mxu0 0.0
  %413 = vmatpush1.msra.mxu0 0.0
  %414 = vmatprep.mubr.f32.mxu0 0.0
  %415 = vmatmul.mubr.f32.gmra.mrb[0].mxu0 %v278
  %v416 = vpop.f32.mrb[0].mxu0
  %v417 = vadd.f32 0.0, %v416
  %v418 = vpop.f32.mrb[0].mxu0
  %419 = vdwg.mxu0
  %420 = vst [vmem:[#allocation2 + $0x20] sm:$0xff] %v346
  %421 = vst [vmem:[#allocation2 + $0x28] sm:$0xff] %v348
  %422 = vst [vmem:[#allocation2 + $0x30] sm:$0xff] %v417
  %v423 = vld [vmem:[#allocation2] sm:$0xff]
  %v424 = vld [vmem:[#allocation2 + $0x8] sm:$0xff]
  %v425 = vld [vmem:[#allocation2 + $0x10] sm:$0xff]
  %v426 = vld [vmem:[#allocation2 + $0x18] sm:$0xff]
  %v427 = vld [vmem:[#allocation2 + $0x20] sm:$0xff]
  %v428 = vld [vmem:[#allocation2 + $0x28] sm:$0xff]
  %v429 = vld [vmem:[#allocation2 + $0x30] sm:$0xff]
  %v430 = vld [vmem:[%s4] sm:$0xf]
  %s431 = scalar_lea.vmem %s4, 4
  %v432 = vld [vmem:[%s431] sm:$0xf]
  %440 = vrot.lane.b32.xlu0 %v423, 18
  %v441 = vpop.permute.xlu0 %440
  %442 = vrot.lane.b32.xlu0 %v424, 18
  %v443 = vpop.permute.xlu0 %442
  %444 = vrot.lane.b32.xlu0 %v425, 18
  %v445 = vpop.permute.xlu0 %444
  %446 = vrot.lane.b32.xlu0 %v426, 18
  %v447 = vpop.permute.xlu0 %446
  %448 = vrot.lane.b32.xlu0 %v427, 18
  %v449 = vpop.permute.xlu0 %448
  %450 = vrot.lane.b32.xlu0 %v428, 18
  %v451 = vpop.permute.xlu0 %450
  %452 = vrot.lane.b32.xlu0 %v429, 18
  %v453 = vpop.permute.xlu0 %452
  %vm454 = vcmask 146432
  %v455 = vsel %vm454, %v441, %v443
  %v456 = vsel %vm454, %v443, %v445
  %v457 = vsel %vm454, %v445, %v447
  %v458 = vsel %vm454, %v447, %v449
  %v459 = vsel %vm454, %v449, %v451
  %v460 = vsel %vm454, %v451, %v453
  %vm467 = vcmask 64512
  %v469 = vsel %vm467, %v432, 0
  %471 = vmatprep.subr.mxu0 %v456
  %472 = vmatpush1.msra.mxu0 %v455
  %473 = vmatprep.subr.mxu0 0.0
  %474 = vmatpush1.msra.mxu0 0.0
  %475 = vmatprep.subr.mxu0 0.0
  %476 = vmatpush1.msra.mxu0 0.0
  %477 = vmatprep.subr.mxu0 0.0
  %478 = vmatpush1.msra.mxu0 0.0
  %479 = vmatprep.subr.mxu0 0.0
  %480 = vmatpush1.msra.mxu0 0.0
  %481 = vmatprep.subr.mxu0 0.0
  %482 = vmatpush1.msra.mxu0 0.0
  %483 = vmatprep.subr.mxu0 0.0
  %484 = vmatpush1.msra.mxu0 0.0
  %485 = vmatprep.subr.mxu0 0.0
  %486 = vmatpush1.msra.mxu0 0.0
  %487 = vmatprep.subr.mxu0 0.0
  %488 = vmatpush1.msra.mxu0 0.0
  %489 = vmatprep.subr.mxu0 0.0
  %490 = vmatpush1.msra.mxu0 0.0
  %491 = vmatprep.subr.mxu0 0.0
  %492 = vmatpush1.msra.mxu0 0.0
  %493 = vmatprep.subr.mxu0 0.0
  %494 = vmatpush1.msra.mxu0 0.0
  %495 = vmatprep.subr.mxu0 0.0
  %496 = vmatpush1.msra.mxu0 0.0
  %497 = vmatprep.subr.mxu0 0.0
  %498 = vmatpush1.msra.mxu0 0.0
  %499 = vmatprep.subr.mxu0 0.0
  %500 = vmatpush1.msra.mxu0 0.0
  %501 = vmatprep.subr.mxu0 0.0
  %502 = vmatpush1.msra.mxu0 0.0
  %503 = vmatprep.subr.mxu0 0.0
  %504 = vmatpush1.msra.mxu0 0.0
  %505 = vmatprep.subr.mxu0 0.0
  %506 = vmatpush1.msra.mxu0 0.0
  %507 = vmatprep.subr.mxu0 0.0
  %508 = vmatpush1.msra.mxu0 0.0
  %509 = vmatprep.subr.mxu0 0.0
  %510 = vmatpush1.msra.mxu0 0.0
  %511 = vmatprep.subr.mxu0 0.0
  %512 = vmatpush1.msra.mxu0 0.0
  %513 = vmatprep.subr.mxu0 0.0
  %514 = vmatpush1.msra.mxu0 0.0
  %515 = vmatprep.subr.mxu0 0.0
  %516 = vmatpush1.msra.mxu0 0.0
  %517 = vmatprep.subr.mxu0 0.0
  %518 = vmatpush1.msra.mxu0 0.0
  %519 = vmatprep.subr.mxu0 0.0
  %520 = vmatpush1.msra.mxu0 0.0
  %521 = vmatprep.subr.mxu0 0.0
  %522 = vmatpush1.msra.mxu0 0.0
  %523 = vmatprep.subr.mxu0 0.0
  %524 = vmatpush1.msra.mxu0 0.0
  %525 = vmatprep.subr.mxu0 0.0
  %526 = vmatpush1.msra.mxu0 0.0
  %527 = vmatprep.subr.mxu0 0.0
  %528 = vmatpush1.msra.mxu0 0.0
  %529 = vmatprep.subr.mxu0 0.0
  %530 = vmatpush1.msra.mxu0 0.0
  %531 = vmatprep.subr.mxu0 0.0
  %532 = vmatpush1.msra.mxu0 0.0
  %533 = vmatprep.subr.mxu0 0.0
  %534 = vmatpush1.msra.mxu0 0.0
  %535 = vmatprep.mubr.f32.mxu0 0.0
  %536 = vmatmul.mubr.f32.gmra.mrb[0].mxu0 %v469
  %v537 = vpop.f32.mrb[0].mxu0
  %v538 = vadd.f32 0.0, %v537
  %v539 = vpop.f32.mrb[0].mxu0
  %v540 = vadd.f32 0.0, %v539
  %541 = vdwg.mxu0
  %542 = vmatprep.subr.mxu0 %v458
  %543 = vmatpush1.msra.mxu0 %v457
  %544 = vmatprep.subr.mxu0 0.0
  %545 = vmatpush1.msra.mxu0 0.0
  %546 = vmatprep.subr.mxu0 0.0
  %547 = vmatpush1.msra.mxu0 0.0
  %548 = vmatprep.subr.mxu0 0.0
  %549 = vmatpush1.msra.mxu0 0.0
  %550 = vmatprep.subr.mxu0 0.0
  %551 = vmatpush1.msra.mxu0 0.0
  %552 = vmatprep.subr.mxu0 0.0
  %553 = vmatpush1.msra.mxu0 0.0
  %554 = vmatprep.subr.mxu0 0.0
  %555 = vmatpush1.msra.mxu0 0.0
  %556 = vmatprep.subr.mxu0 0.0
  %557 = vmatpush1.msra.mxu0 0.0
  %558 = vmatprep.subr.mxu0 0.0
  %559 = vmatpush1.msra.mxu0 0.0
  %560 = vmatprep.subr.mxu0 0.0
  %561 = vmatpush1.msra.mxu0 0.0
  %562 = vmatprep.subr.mxu0 0.0
  %563 = vmatpush1.msra.mxu0 0.0
  %564 = vmatprep.subr.mxu0 0.0
  %565 = vmatpush1.msra.mxu0 0.0
  %566 = vmatprep.subr.mxu0 0.0
  %567 = vmatpush1.msra.mxu0 0.0
  %568 = vmatprep.subr.mxu0 0.0
  %569 = vmatpush1.msra.mxu0 0.0
  %570 = vmatprep.subr.mxu0 0.0
  %571 = vmatpush1.msra.mxu0 0.0
  %572 = vmatprep.subr.mxu0 0.0
  %573 = vmatpush1.msra.mxu0 0.0
  %574 = vmatprep.subr.mxu0 0.0
  %575 = vmatpush1.msra.mxu0 0.0
  %576 = vmatprep.subr.mxu0 0.0
  %577 = vmatpush1.msra.mxu0 0.0
  %578 = vmatprep.subr.mxu0 0.0
  %579 = vmatpush1.msra.mxu0 0.0
  %580 = vmatprep.subr.mxu0 0.0
  %581 = vmatpush1.msra.mxu0 0.0
  %582 = vmatprep.subr.mxu0 0.0
  %583 = vmatpush1.msra.mxu0 0.0
  %584 = vmatprep.subr.mxu0 0.0
  %585 = vmatpush1.msra.mxu0 0.0
  %586 = vmatprep.subr.mxu0 0.0
  %587 = vmatpush1.msra.mxu0 0.0
  %588 = vmatprep.subr.mxu0 0.0
  %589 = vmatpush1.msra.mxu0 0.0
  %590 = vmatprep.subr.mxu0 0.0
  %591 = vmatpush1.msra.mxu0 0.0
  %592 = vmatprep.subr.mxu0 0.0
  %593 = vmatpush1.msra.mxu0 0.0
  %594 = vmatprep.subr.mxu0 0.0
  %595 = vmatpush1.msra.mxu0 0.0
  %596 = vmatprep.subr.mxu0 0.0
  %597 = vmatpush1.msra.mxu0 0.0
  %598 = vmatprep.subr.mxu0 0.0
  %599 = vmatpush1.msra.mxu0 0.0
  %600 = vmatprep.subr.mxu0 0.0
  %601 = vmatpush1.msra.mxu0 0.0
  %602 = vmatprep.subr.mxu0 0.0
  %603 = vmatpush1.msra.mxu0 0.0
  %604 = vmatprep.subr.mxu0 0.0
  %605 = vmatpush1.msra.mxu0 0.0
  %606 = vmatprep.mubr.f32.mxu0 0.0
  %607 = vmatmul.mubr.f32.gmra.mrb[0].mxu0 %v469
  %v608 = vpop.f32.mrb[0].mxu0
  %v609 = vadd.f32 0.0, %v608
  %v610 = vpop.f32.mrb[0].mxu0
  %v611 = vadd.f32 0.0, %v610
  %612 = vdwg.mxu0
  %613 = vmatprep.subr.mxu0 %v460
  %614 = vmatpush1.msra.mxu0 %v459
  %615 = vmatprep.subr.mxu0 0.0
  %616 = vmatpush1.msra.mxu0 0.0
  %617 = vmatprep.subr.mxu0 0.0
  %618 = vmatpush1.msra.mxu0 0.0
  %619 = vmatprep.subr.mxu0 0.0
  %620 = vmatpush1.msra.mxu0 0.0
  %621 = vmatprep.subr.mxu0 0.0
  %622 = vmatpush1.msra.mxu0 0.0
  %623 = vmatprep.subr.mxu0 0.0
  %624 = vmatpush1.msra.mxu0 0.0
  %625 = vmatprep.subr.mxu0 0.0
  %626 = vmatpush1.msra.mxu0 0.0
  %627 = vmatprep.subr.mxu0 0.0
  %628 = vmatpush1.msra.mxu0 0.0
  %629 = vmatprep.subr.mxu0 0.0
  %630 = vmatpush1.msra.mxu0 0.0
  %631 = vmatprep.subr.mxu0 0.0
  %632 = vmatpush1.msra.mxu0 0.0
  %633 = vmatprep.subr.mxu0 0.0
  %634 = vmatpush1.msra.mxu0 0.0
  %635 = vmatprep.subr.mxu0 0.0
  %636 = vmatpush1.msra.mxu0 0.0
  %637 = vmatprep.subr.mxu0 0.0
  %638 = vmatpush1.msra.mxu0 0.0
  %639 = vmatprep.subr.mxu0 0.0
  %640 = vmatpush1.msra.mxu0 0.0
  %641 = vmatprep.subr.mxu0 0.0
  %642 = vmatpush1.msra.mxu0 0.0
  %643 = vmatprep.subr.mxu0 0.0
  %644 = vmatpush1.msra.mxu0 0.0
  %645 = vmatprep.subr.mxu0 0.0
  %646 = vmatpush1.msra.mxu0 0.0
  %647 = vmatprep.subr.mxu0 0.0
  %648 = vmatpush1.msra.mxu0 0.0
  %649 = vmatprep.subr.mxu0 0.0
  %650 = vmatpush1.msra.mxu0 0.0
  %651 = vmatprep.subr.mxu0 0.0
  %652 = vmatpush1.msra.mxu0 0.0
  %653 = vmatprep.subr.mxu0 0.0
  %654 = vmatpush1.msra.mxu0 0.0
  %655 = vmatprep.subr.mxu0 0.0
  %656 = vmatpush1.msra.mxu0 0.0
  %657 = vmatprep.subr.mxu0 0.0
  %658 = vmatpush1.msra.mxu0 0.0
  %659 = vmatprep.subr.mxu0 0.0
  %660 = vmatpush1.msra.mxu0 0.0
  %661 = vmatprep.subr.mxu0 0.0
  %662 = vmatpush1.msra.mxu0 0.0
  %663 = vmatprep.subr.mxu0 0.0
  %664 = vmatpush1.msra.mxu0 0.0
  %665 = vmatprep.subr.mxu0 0.0
  %666 = vmatpush1.msra.mxu0 0.0
  %667 = vmatprep.subr.mxu0 0.0
  %668 = vmatpush1.msra.mxu0 0.0
  %669 = vmatprep.subr.mxu0 0.0
  %670 = vmatpush1.msra.mxu0 0.0
  %671 = vmatprep.subr.mxu0 0.0
  %672 = vmatpush1.msra.mxu0 0.0
  %673 = vmatprep.subr.mxu0 0.0
  %674 = vmatpush1.msra.mxu0 0.0
  %675 = vmatprep.subr.mxu0 0.0
  %676 = vmatpush1.msra.mxu0 0.0
  %677 = vmatprep.mubr.f32.mxu0 0.0
  %678 = vmatmul.mubr.f32.gmra.mrb[0].mxu0 %v469
  %v679 = vpop.f32.mrb[0].mxu0
  %v680 = vadd.f32 0.0, %v679
  %v681 = vpop.f32.mrb[0].mxu0
  %v682 = vadd.f32 0.0, %v681
  %683 = vdwg.mxu0
  %684 = vrot.lane.b32.xlu0 %v423, 19
  %v685 = vpop.permute.xlu0 %684
  %686 = vrot.lane.b32.xlu0 %v424, 19
  %v687 = vpop.permute.xlu0 %686
  %688 = vrot.lane.b32.xlu0 %v425, 19
  %v689 = vpop.permute.xlu0 %688
  %690 = vrot.lane.b32.xlu0 %v426, 19
  %v691 = vpop.permute.xlu0 %690
  %692 = vrot.lane.b32.xlu0 %v427, 19
  %v693 = vpop.permute.xlu0 %692
  %694 = vrot.lane.b32.xlu0 %v428, 19
  %v695 = vpop.permute.xlu0 %694
  %696 = vrot.lane.b32.xlu0 %v429, 19
  %v697 = vpop.permute.xlu0 %696
  %vm698 = vcmask 154624
  %v699 = vsel %vm698, %v685, %v687
  %v700 = vsel %vm698, %v687, %v689
  %v701 = vsel %vm698, %v689, %v691
  %v702 = vsel %vm698, %v691, %v693
  %v703 = vsel %vm698, %v693, %v695
  %v704 = vsel %vm698, %v695, %v697
  %v712 = vsel %vm467, %v430, 0
  %714 = vmatprep.subr.mxu0 %v700
  %715 = vmatpush1.msra.mxu0 %v699
  %716 = vmatprep.subr.mxu0 0.0
  %717 = vmatpush1.msra.mxu0 0.0
  %718 = vmatprep.subr.mxu0 0.0
  %719 = vmatpush1.msra.mxu0 0.0
  %720 = vmatprep.subr.mxu0 0.0
  %721 = vmatpush1.msra.mxu0 0.0
  %722 = vmatprep.subr.mxu0 0.0
  %723 = vmatpush1.msra.mxu0 0.0
  %724 = vmatprep.subr.mxu0 0.0
  %725 = vmatpush1.msra.mxu0 0.0
  %726 = vmatprep.subr.mxu0 0.0
  %727 = vmatpush1.msra.mxu0 0.0
  %728 = vmatprep.subr.mxu0 0.0
  %729 = vmatpush1.msra.mxu0 0.0
  %730 = vmatprep.subr.mxu0 0.0
  %731 = vmatpush1.msra.mxu0 0.0
  %732 = vmatprep.subr.mxu0 0.0
  %733 = vmatpush1.msra.mxu0 0.0
  %734 = vmatprep.subr.mxu0 0.0
  %735 = vmatpush1.msra.mxu0 0.0
  %736 = vmatprep.subr.mxu0 0.0
  %737 = vmatpush1.msra.mxu0 0.0
  %738 = vmatprep.subr.mxu0 0.0
  %739 = vmatpush1.msra.mxu0 0.0
  %740 = vmatprep.subr.mxu0 0.0
  %741 = vmatpush1.msra.mxu0 0.0
  %742 = vmatprep.subr.mxu0 0.0
  %743 = vmatpush1.msra.mxu0 0.0
  %744 = vmatprep.subr.mxu0 0.0
  %745 = vmatpush1.msra.mxu0 0.0
  %746 = vmatprep.subr.mxu0 0.0
  %747 = vmatpush1.msra.mxu0 0.0
  %748 = vmatprep.subr.mxu0 0.0
  %749 = vmatpush1.msra.mxu0 0.0
  %750 = vmatprep.subr.mxu0 0.0
  %751 = vmatpush1.msra.mxu0 0.0
  %752 = vmatprep.subr.mxu0 0.0
  %753 = vmatpush1.msra.mxu0 0.0
  %754 = vmatprep.subr.mxu0 0.0
  %755 = vmatpush1.msra.mxu0 0.0
  %756 = vmatprep.subr.mxu0 0.0
  %757 = vmatpush1.msra.mxu0 0.0
  %758 = vmatprep.subr.mxu0 0.0
  %759 = vmatpush1.msra.mxu0 0.0
  %760 = vmatprep.subr.mxu0 0.0
  %761 = vmatpush1.msra.mxu0 0.0
  %762 = vmatprep.subr.mxu0 0.0
  %763 = vmatpush1.msra.mxu0 0.0
  %764 = vmatprep.subr.mxu0 0.0
  %765 = vmatpush1.msra.mxu0 0.0
  %766 = vmatprep.subr.mxu0 0.0
  %767 = vmatpush1.msra.mxu0 0.0
  %768 = vmatprep.subr.mxu0 0.0
  %769 = vmatpush1.msra.mxu0 0.0
  %770 = vmatprep.subr.mxu0 0.0
  %771 = vmatpush1.msra.mxu0 0.0
  %772 = vmatprep.subr.mxu0 0.0
  %773 = vmatpush1.msra.mxu0 0.0
  %774 = vmatprep.subr.mxu0 0.0
  %775 = vmatpush1.msra.mxu0 0.0
  %776 = vmatprep.subr.mxu0 0.0
  %777 = vmatpush1.msra.mxu0 0.0
  %778 = vmatprep.mubr.f32.mxu0 0.0
  %779 = vmatmul.mubr.f32.gmra.mrb[0].mxu0 %v712
  %v780 = vpop.f32.mrb[0].mxu0
  %v781 = vadd.f32 %v538, %v780
  %v782 = vpop.f32.mrb[0].mxu0
  %v783 = vadd.f32 %v540, %v782
  %784 = vdwg.mxu0
  %785 = vmatprep.subr.mxu0 %v702
  %786 = vmatpush1.msra.mxu0 %v701
  %787 = vmatprep.subr.mxu0 0.0
  %788 = vmatpush1.msra.mxu0 0.0
  %789 = vmatprep.subr.mxu0 0.0
  %790 = vmatpush1.msra.mxu0 0.0
  %791 = vmatprep.subr.mxu0 0.0
  %792 = vmatpush1.msra.mxu0 0.0
  %793 = vmatprep.subr.mxu0 0.0
  %794 = vmatpush1.msra.mxu0 0.0
  %795 = vmatprep.subr.mxu0 0.0
  %796 = vmatpush1.msra.mxu0 0.0
  %797 = vmatprep.subr.mxu0 0.0
  %798 = vmatpush1.msra.mxu0 0.0
  %799 = vmatprep.subr.mxu0 0.0
  %800 = vmatpush1.msra.mxu0 0.0
  %801 = vmatprep.subr.mxu0 0.0
  %802 = vmatpush1.msra.mxu0 0.0
  %803 = vmatprep.subr.mxu0 0.0
  %804 = vmatpush1.msra.mxu0 0.0
  %805 = vmatprep.subr.mxu0 0.0
  %806 = vmatpush1.msra.mxu0 0.0
  %807 = vmatprep.subr.mxu0 0.0
  %808 = vmatpush1.msra.mxu0 0.0
  %809 = vmatprep.subr.mxu0 0.0
  %810 = vmatpush1.msra.mxu0 0.0
  %811 = vmatprep.subr.mxu0 0.0
  %812 = vmatpush1.msra.mxu0 0.0
  %813 = vmatprep.subr.mxu0 0.0
  %814 = vmatpush1.msra.mxu0 0.0
  %815 = vmatprep.subr.mxu0 0.0
  %816 = vmatpush1.msra.mxu0 0.0
  %817 = vmatprep.subr.mxu0 0.0
  %818 = vmatpush1.msra.mxu0 0.0
  %819 = vmatprep.subr.mxu0 0.0
  %820 = vmatpush1.msra.mxu0 0.0
  %821 = vmatprep.subr.mxu0 0.0
  %822 = vmatpush1.msra.mxu0 0.0
  %823 = vmatprep.subr.mxu0 0.0
  %824 = vmatpush1.msra.mxu0 0.0
  %825 = vmatprep.subr.mxu0 0.0
  %826 = vmatpush1.msra.mxu0 0.0
  %827 = vmatprep.subr.mxu0 0.0
  %828 = vmatpush1.msra.mxu0 0.0
  %829 = vmatprep.subr.mxu0 0.0
  %830 = vmatpush1.msra.mxu0 0.0
  %831 = vmatprep.subr.mxu0 0.0
  %832 = vmatpush1.msra.mxu0 0.0
  %833 = vmatprep.subr.mxu0 0.0
  %834 = vmatpush1.msra.mxu0 0.0
  %835 = vmatprep.subr.mxu0 0.0
  %836 = vmatpush1.msra.mxu0 0.0
  %837 = vmatprep.subr.mxu0 0.0
  %838 = vmatpush1.msra.mxu0 0.0
  %839 = vmatprep.subr.mxu0 0.0
  %840 = vmatpush1.msra.mxu0 0.0
  %841 = vmatprep.subr.mxu0 0.0
  %842 = vmatpush1.msra.mxu0 0.0
  %843 = vmatprep.subr.mxu0 0.0
  %844 = vmatpush1.msra.mxu0 0.0
  %845 = vmatprep.subr.mxu0 0.0
  %846 = vmatpush1.msra.mxu0 0.0
  %847 = vmatprep.subr.mxu0 0.0
  %848 = vmatpush1.msra.mxu0 0.0
  %849 = vmatprep.mubr.f32.mxu0 0.0
  %850 = vmatmul.mubr.f32.gmra.mrb[0].mxu0 %v712
  %v851 = vpop.f32.mrb[0].mxu0
  %v852 = vadd.f32 %v609, %v851
  %v853 = vpop.f32.mrb[0].mxu0
  %v854 = vadd.f32 %v611, %v853
  %855 = vdwg.mxu0
  %856 = vmatprep.subr.mxu0 %v704
  %857 = vmatpush1.msra.mxu0 %v703
  %858 = vmatprep.subr.mxu0 0.0
  %859 = vmatpush1.msra.mxu0 0.0
  %860 = vmatprep.subr.mxu0 0.0
  %861 = vmatpush1.msra.mxu0 0.0
  %862 = vmatprep.subr.mxu0 0.0
  %863 = vmatpush1.msra.mxu0 0.0
  %864 = vmatprep.subr.mxu0 0.0
  %865 = vmatpush1.msra.mxu0 0.0
  %866 = vmatprep.subr.mxu0 0.0
  %867 = vmatpush1.msra.mxu0 0.0
  %868 = vmatprep.subr.mxu0 0.0
  %869 = vmatpush1.msra.mxu0 0.0
  %870 = vmatprep.subr.mxu0 0.0
  %871 = vmatpush1.msra.mxu0 0.0
  %872 = vmatprep.subr.mxu0 0.0
  %873 = vmatpush1.msra.mxu0 0.0
  %874 = vmatprep.subr.mxu0 0.0
  %875 = vmatpush1.msra.mxu0 0.0
  %876 = vmatprep.subr.mxu0 0.0
  %877 = vmatpush1.msra.mxu0 0.0
  %878 = vmatprep.subr.mxu0 0.0
  %879 = vmatpush1.msra.mxu0 0.0
  %880 = vmatprep.subr.mxu0 0.0
  %881 = vmatpush1.msra.mxu0 0.0
  %882 = vmatprep.subr.mxu0 0.0
  %883 = vmatpush1.msra.mxu0 0.0
  %884 = vmatprep.subr.mxu0 0.0
  %885 = vmatpush1.msra.mxu0 0.0
  %886 = vmatprep.subr.mxu0 0.0
  %887 = vmatpush1.msra.mxu0 0.0
  %888 = vmatprep.subr.mxu0 0.0
  %889 = vmatpush1.msra.mxu0 0.0
  %890 = vmatprep.subr.mxu0 0.0
  %891 = vmatpush1.msra.mxu0 0.0
  %892 = vmatprep.subr.mxu0 0.0
  %893 = vmatpush1.msra.mxu0 0.0
  %894 = vmatprep.subr.mxu0 0.0
  %895 = vmatpush1.msra.mxu0 0.0
  %896 = vmatprep.subr.mxu0 0.0
  %897 = vmatpush1.msra.mxu0 0.0
  %898 = vmatprep.subr.mxu0 0.0
  %899 = vmatpush1.msra.mxu0 0.0
  %900 = vmatprep.subr.mxu0 0.0
  %901 = vmatpush1.msra.mxu0 0.0
  %902 = vmatprep.subr.mxu0 0.0
  %903 = vmatpush1.msra.mxu0 0.0
  %904 = vmatprep.subr.mxu0 0.0
  %905 = vmatpush1.msra.mxu0 0.0
  %906 = vmatprep.subr.mxu0 0.0
  %907 = vmatpush1.msra.mxu0 0.0
  %908 = vmatprep.subr.mxu0 0.0
  %909 = vmatpush1.msra.mxu0 0.0
  %910 = vmatprep.subr.mxu0 0.0
  %911 = vmatpush1.msra.mxu0 0.0
  %912 = vmatprep.subr.mxu0 0.0
  %913 = vmatpush1.msra.mxu0 0.0
  %914 = vmatprep.subr.mxu0 0.0
  %915 = vmatpush1.msra.mxu0 0.0
  %916 = vmatprep.subr.mxu0 0.0
  %917 = vmatpush1.msra.mxu0 0.0
  %918 = vmatprep.subr.mxu0 0.0
  %919 = vmatpush1.msra.mxu0 0.0
  %920 = vmatprep.mubr.f32.mxu0 0.0
  %921 = vmatmul.mubr.f32.gmra.mrb[0].mxu0 %v712
  %v922 = vpop.f32.mrb[0].mxu0
  %v923 = vadd.f32 %v680, %v922
  %v924 = vpop.f32.mrb[0].mxu0
  %v925 = vadd.f32 %v682, %v924
  %926 = vdwg.mxu0
  %s927 = scalar_lea.vmem %s4, 8
  %v928 = vld [vmem:[%s927] sm:$0xf]
  %929 = vrot.lane.b32.xlu0 %v423, 17
  %v930 = vpop.permute.xlu0 %929
  %931 = vrot.lane.b32.xlu0 %v424, 17
  %v932 = vpop.permute.xlu0 %931
  %933 = vrot.lane.b32.xlu0 %v425, 17
  %v934 = vpop.permute.xlu0 %933
  %935 = vrot.lane.b32.xlu0 %v426, 17
  %v936 = vpop.permute.xlu0 %935
  %937 = vrot.lane.b32.xlu0 %v427, 17
  %v938 = vpop.permute.xlu0 %937
  %939 = vrot.lane.b32.xlu0 %v428, 17
  %v940 = vpop.permute.xlu0 %939
  %941 = vrot.lane.b32.xlu0 %v429, 17
  %v942 = vpop.permute.xlu0 %941
  %vm943 = vcmask 138240
  %v944 = vsel %vm943, %v930, %v932
  %v945 = vsel %vm943, %v932, %v934
  %v946 = vsel %vm943, %v934, %v936
  %v947 = vsel %vm943, %v936, %v938
  %v948 = vsel %vm943, %v938, %v940
  %v949 = vsel %vm943, %v940, %v942
  %v957 = vsel %vm467, %v928, 0
  %959 = vmatprep.subr.mxu0 %v945
  %960 = vmatpush1.msra.mxu0 %v944
  %961 = vmatprep.subr.mxu0 0.0
  %962 = vmatpush1.msra.mxu0 0.0
  %963 = vmatprep.subr.mxu0 0.0
  %964 = vmatpush1.msra.mxu0 0.0
  %965 = vmatprep.subr.mxu0 0.0
  %966 = vmatpush1.msra.mxu0 0.0
  %967 = vmatprep.subr.mxu0 0.0
  %968 = vmatpush1.msra.mxu0 0.0
  %969 = vmatprep.subr.mxu0 0.0
  %970 = vmatpush1.msra.mxu0 0.0
  %971 = vmatprep.subr.mxu0 0.0
  %972 = vmatpush1.msra.mxu0 0.0
  %973 = vmatprep.subr.mxu0 0.0
  %974 = vmatpush1.msra.mxu0 0.0
  %975 = vmatprep.subr.mxu0 0.0
  %976 = vmatpush1.msra.mxu0 0.0
  %977 = vmatprep.subr.mxu0 0.0
  %978 = vmatpush1.msra.mxu0 0.0
  %979 = vmatprep.subr.mxu0 0.0
  %980 = vmatpush1.msra.mxu0 0.0
  %981 = vmatprep.subr.mxu0 0.0
  %982 = vmatpush1.msra.mxu0 0.0
  %983 = vmatprep.subr.mxu0 0.0
  %984 = vmatpush1.msra.mxu0 0.0
  %985 = vmatprep.subr.mxu0 0.0
  %986 = vmatpush1.msra.mxu0 0.0
  %987 = vmatprep.subr.mxu0 0.0
  %988 = vmatpush1.msra.mxu0 0.0
  %989 = vmatprep.subr.mxu0 0.0
  %990 = vmatpush1.msra.mxu0 0.0
  %991 = vmatprep.subr.mxu0 0.0
  %992 = vmatpush1.msra.mxu0 0.0
  %993 = vmatprep.subr.mxu0 0.0
  %994 = vmatpush1.msra.mxu0 0.0
  %995 = vmatprep.subr.mxu0 0.0
  %996 = vmatpush1.msra.mxu0 0.0
  %997 = vmatprep.subr.mxu0 0.0
  %998 = vmatpush1.msra.mxu0 0.0
  %999 = vmatprep.subr.mxu0 0.0
  %1000 = vmatpush1.msra.mxu0 0.0
  %1001 = vmatprep.subr.mxu0 0.0
  %1002 = vmatpush1.msra.mxu0 0.0
  %1003 = vmatprep.subr.mxu0 0.0
  %1004 = vmatpush1.msra.mxu0 0.0
  %1005 = vmatprep.subr.mxu0 0.0
  %1006 = vmatpush1.msra.mxu0 0.0
  %1007 = vmatprep.subr.mxu0 0.0
  %1008 = vmatpush1.msra.mxu0 0.0
  %1009 = vmatprep.subr.mxu0 0.0
  %1010 = vmatpush1.msra.mxu0 0.0
  %1011 = vmatprep.subr.mxu0 0.0
  %1012 = vmatpush1.msra.mxu0 0.0
  %1013 = vmatprep.subr.mxu0 0.0
  %1014 = vmatpush1.msra.mxu0 0.0
  %1015 = vmatprep.subr.mxu0 0.0
  %1016 = vmatpush1.msra.mxu0 0.0
  %1017 = vmatprep.subr.mxu0 0.0
  %1018 = vmatpush1.msra.mxu0 0.0
  %1019 = vmatprep.subr.mxu0 0.0
  %1020 = vmatpush1.msra.mxu0 0.0
  %1021 = vmatprep.subr.mxu0 0.0
  %1022 = vmatpush1.msra.mxu0 0.0
  %1023 = vmatprep.mubr.f32.mxu0 0.0
  %1024 = vmatmul.mubr.f32.gmra.mrb[0].mxu0 %v957
  %v1025 = vpop.f32.mrb[0].mxu0
  %v1026 = vadd.f32 0.0, %v1025
  %v1027 = vpop.f32.mrb[0].mxu0
  %v1028 = vadd.f32 0.0, %v1027
  %1029 = vdwg.mxu0
  %1030 = vmatprep.subr.mxu0 %v947
  %1031 = vmatpush1.msra.mxu0 %v946
  %1032 = vmatprep.subr.mxu0 0.0
  %1033 = vmatpush1.msra.mxu0 0.0
  %1034 = vmatprep.subr.mxu0 0.0
  %1035 = vmatpush1.msra.mxu0 0.0
  %1036 = vmatprep.subr.mxu0 0.0
  %1037 = vmatpush1.msra.mxu0 0.0
  %1038 = vmatprep.subr.mxu0 0.0
  %1039 = vmatpush1.msra.mxu0 0.0
  %1040 = vmatprep.subr.mxu0 0.0
  %1041 = vmatpush1.msra.mxu0 0.0
  %1042 = vmatprep.subr.mxu0 0.0
  %1043 = vmatpush1.msra.mxu0 0.0
  %1044 = vmatprep.subr.mxu0 0.0
  %1045 = vmatpush1.msra.mxu0 0.0
  %1046 = vmatprep.subr.mxu0 0.0
  %1047 = vmatpush1.msra.mxu0 0.0
  %1048 = vmatprep.subr.mxu0 0.0
  %1049 = vmatpush1.msra.mxu0 0.0
  %1050 = vmatprep.subr.mxu0 0.0
  %1051 = vmatpush1.msra.mxu0 0.0
  %1052 = vmatprep.subr.mxu0 0.0
  %1053 = vmatpush1.msra.mxu0 0.0
  %1054 = vmatprep.subr.mxu0 0.0
  %1055 = vmatpush1.msra.mxu0 0.0
  %1056 = vmatprep.subr.mxu0 0.0
  %1057 = vmatpush1.msra.mxu0 0.0
  %1058 = vmatprep.subr.mxu0 0.0
  %1059 = vmatpush1.msra.mxu0 0.0
  %1060 = vmatprep.subr.mxu0 0.0
  %1061 = vmatpush1.msra.mxu0 0.0
  %1062 = vmatprep.subr.mxu0 0.0
  %1063 = vmatpush1.msra.mxu0 0.0
  %1064 = vmatprep.subr.mxu0 0.0
  %1065 = vmatpush1.msra.mxu0 0.0
  %1066 = vmatprep.subr.mxu0 0.0
  %1067 = vmatpush1.msra.mxu0 0.0
  %1068 = vmatprep.subr.mxu0 0.0
  %1069 = vmatpush1.msra.mxu0 0.0
  %1070 = vmatprep.subr.mxu0 0.0
  %1071 = vmatpush1.msra.mxu0 0.0
  %1072 = vmatprep.subr.mxu0 0.0
  %1073 = vmatpush1.msra.mxu0 0.0
  %1074 = vmatprep.subr.mxu0 0.0
  %1075 = vmatpush1.msra.mxu0 0.0
  %1076 = vmatprep.subr.mxu0 0.0
  %1077 = vmatpush1.msra.mxu0 0.0
  %1078 = vmatprep.subr.mxu0 0.0
  %1079 = vmatpush1.msra.mxu0 0.0
  %1080 = vmatprep.subr.mxu0 0.0
  %1081 = vmatpush1.msra.mxu0 0.0
  %1082 = vmatprep.subr.mxu0 0.0
  %1083 = vmatpush1.msra.mxu0 0.0
  %1084 = vmatprep.subr.mxu0 0.0
  %1085 = vmatpush1.msra.mxu0 0.0
  %1086 = vmatprep.subr.mxu0 0.0
  %1087 = vmatpush1.msra.mxu0 0.0
  %1088 = vmatprep.subr.mxu0 0.0
  %1089 = vmatpush1.msra.mxu0 0.0
  %1090 = vmatprep.subr.mxu0 0.0
  %1091 = vmatpush1.msra.mxu0 0.0
  %1092 = vmatprep.subr.mxu0 0.0
  %1093 = vmatpush1.msra.mxu0 0.0
  %1094 = vmatprep.mubr.f32.mxu0 0.0
  %1095 = vmatmul.mubr.f32.gmra.mrb[0].mxu0 %v957
  %v1096 = vpop.f32.mrb[0].mxu0
  %v1097 = vadd.f32 0.0, %v1096
  %v1098 = vpop.f32.mrb[0].mxu0
  %v1099 = vadd.f32 0.0, %v1098
  %1100 = vdwg.mxu0
  %1101 = vmatprep.subr.mxu0 %v949
  %1102 = vmatpush1.msra.mxu0 %v948
  %1103 = vmatprep.subr.mxu0 0.0
  %1104 = vmatpush1.msra.mxu0 0.0
  %1105 = vmatprep.subr.mxu0 0.0
  %1106 = vmatpush1.msra.mxu0 0.0
  %1107 = vmatprep.subr.mxu0 0.0
  %1108 = vmatpush1.msra.mxu0 0.0
  %1109 = vmatprep.subr.mxu0 0.0
  %1110 = vmatpush1.msra.mxu0 0.0
  %1111 = vmatprep.subr.mxu0 0.0
  %1112 = vmatpush1.msra.mxu0 0.0
  %1113 = vmatprep.subr.mxu0 0.0
  %1114 = vmatpush1.msra.mxu0 0.0
  %1115 = vmatprep.subr.mxu0 0.0
  %1116 = vmatpush1.msra.mxu0 0.0
  %1117 = vmatprep.subr.mxu0 0.0
  %1118 = vmatpush1.msra.mxu0 0.0
  %1119 = vmatprep.subr.mxu0 0.0
  %1120 = vmatpush1.msra.mxu0 0.0
  %1121 = vmatprep.subr.mxu0 0.0
  %1122 = vmatpush1.msra.mxu0 0.0
  %1123 = vmatprep.subr.mxu0 0.0
  %1124 = vmatpush1.msra.mxu0 0.0
  %1125 = vmatprep.subr.mxu0 0.0
  %1126 = vmatpush1.msra.mxu0 0.0
  %1127 = vmatprep.subr.mxu0 0.0
  %1128 = vmatpush1.msra.mxu0 0.0
  %1129 = vmatprep.subr.mxu0 0.0
  %1130 = vmatpush1.msra.mxu0 0.0
  %1131 = vmatprep.subr.mxu0 0.0
  %1132 = vmatpush1.msra.mxu0 0.0
  %1133 = vmatprep.subr.mxu0 0.0
  %1134 = vmatpush1.msra.mxu0 0.0
  %1135 = vmatprep.subr.mxu0 0.0
  %1136 = vmatpush1.msra.mxu0 0.0
  %1137 = vmatprep.subr.mxu0 0.0
  %1138 = vmatpush1.msra.mxu0 0.0
  %1139 = vmatprep.subr.mxu0 0.0
  %1140 = vmatpush1.msra.mxu0 0.0
  %1141 = vmatprep.subr.mxu0 0.0
  %1142 = vmatpush1.msra.mxu0 0.0
  %1143 = vmatprep.subr.mxu0 0.0
  %1144 = vmatpush1.msra.mxu0 0.0
  %1145 = vmatprep.subr.mxu0 0.0
  %1146 = vmatpush1.msra.mxu0 0.0
  %1147 = vmatprep.subr.mxu0 0.0
  %1148 = vmatpush1.msra.mxu0 0.0
  %1149 = vmatprep.subr.mxu0 0.0
  %1150 = vmatpush1.msra.mxu0 0.0
  %1151 = vmatprep.subr.mxu0 0.0
  %1152 = vmatpush1.msra.mxu0 0.0
  %1153 = vmatprep.subr.mxu0 0.0
  %1154 = vmatpush1.msra.mxu0 0.0
  %1155 = vmatprep.subr.mxu0 0.0
  %1156 = vmatpush1.msra.mxu0 0.0
  %1157 = vmatprep.subr.mxu0 0.0
  %1158 = vmatpush1.msra.mxu0 0.0
  %1159 = vmatprep.subr.mxu0 0.0
  %1160 = vmatpush1.msra.mxu0 0.0
  %1161 = vmatprep.subr.mxu0 0.0
  %1162 = vmatpush1.msra.mxu0 0.0
  %1163 = vmatprep.subr.mxu0 0.0
  %1164 = vmatpush1.msra.mxu0 0.0
  %1165 = vmatprep.mubr.f32.mxu0 0.0
  %1166 = vmatmul.mubr.f32.gmra.mrb[0].mxu0 %v957
  %v1167 = vpop.f32.mrb[0].mxu0
  %v1168 = vadd.f32 0.0, %v1167
  %v1169 = vpop.f32.mrb[0].mxu0
  %v1170 = vadd.f32 0.0, %v1169
  %1171 = vdwg.mxu0
  %v1172 = vadd.f32 %v781, %v1026
  %v1173 = vadd.f32 %v783, %v1028
  %v1174 = vadd.f32 %v852, %v1097
  %v1175 = vadd.f32 %v854, %v1099
  %v1176 = vadd.f32 %v923, %v1168
  %v1177 = vadd.f32 %v925, %v1170
  %s1178 = scalar_lea.vmem %s4, 12
  %v1179 = vld [vmem:[%s1178] sm:$0xf]
  %1180 = vrot.lane.b32.xlu0 %v423, 1
  %v1181 = vpop.permute.xlu0 %1180
  %1182 = vrot.lane.b32.xlu0 %v424, 1
  %v1183 = vpop.permute.xlu0 %1182
  %1184 = vrot.lane.b32.xlu0 %v425, 1
  %v1185 = vpop.permute.xlu0 %1184
  %1186 = vrot.lane.b32.xlu0 %v426, 1
  %v1187 = vpop.permute.xlu0 %1186
  %1188 = vrot.lane.b32.xlu0 %v427, 1
  %v1189 = vpop.permute.xlu0 %1188
  %1190 = vrot.lane.b32.xlu0 %v428, 1
  %v1191 = vpop.permute.xlu0 %1190
  %1192 = vrot.lane.b32.xlu0 %v429, 1
  %v1193 = vpop.permute.xlu0 %1192
  %vm1194 = vcmask 7168
  %v1195 = vsel %vm1194, %v1181, %v1183
  %v1196 = vsel %vm1194, %v1183, %v1185
  %v1197 = vsel %vm1194, %v1185, %v1187
  %v1198 = vsel %vm1194, %v1187, %v1189
  %v1199 = vsel %vm1194, %v1189, %v1191
  %v1200 = vsel %vm1194, %v1191, %v1193
  %v1208 = vsel %vm467, %v1179, 0
  %1210 = vmatprep.subr.mxu0 %v1196
  %1211 = vmatpush1.msra.mxu0 %v1195
  %1212 = vmatprep.subr.mxu0 0.0
  %1213 = vmatpush1.msra.mxu0 0.0
  %1214 = vmatprep.subr.mxu0 0.0
  %1215 = vmatpush1.msra.mxu0 0.0
  %1216 = vmatprep.subr.mxu0 0.0
  %1217 = vmatpush1.msra.mxu0 0.0
  %1218 = vmatprep.subr.mxu0 0.0
  %1219 = vmatpush1.msra.mxu0 0.0
  %1220 = vmatprep.subr.mxu0 0.0
  %1221 = vmatpush1.msra.mxu0 0.0
  %1222 = vmatprep.subr.mxu0 0.0
  %1223 = vmatpush1.msra.mxu0 0.0
  %1224 = vmatprep.subr.mxu0 0.0
  %1225 = vmatpush1.msra.mxu0 0.0
  %1226 = vmatprep.subr.mxu0 0.0
  %1227 = vmatpush1.msra.mxu0 0.0
  %1228 = vmatprep.subr.mxu0 0.0
  %1229 = vmatpush1.msra.mxu0 0.0
  %1230 = vmatprep.subr.mxu0 0.0
  %1231 = vmatpush1.msra.mxu0 0.0
  %1232 = vmatprep.subr.mxu0 0.0
  %1233 = vmatpush1.msra.mxu0 0.0
  %1234 = vmatprep.subr.mxu0 0.0
  %1235 = vmatpush1.msra.mxu0 0.0
  %1236 = vmatprep.subr.mxu0 0.0
  %1237 = vmatpush1.msra.mxu0 0.0
  %1238 = vmatprep.subr.mxu0 0.0
  %1239 = vmatpush1.msra.mxu0 0.0
  %1240 = vmatprep.subr.mxu0 0.0
  %1241 = vmatpush1.msra.mxu0 0.0
  %1242 = vmatprep.subr.mxu0 0.0
  %1243 = vmatpush1.msra.mxu0 0.0
  %1244 = vmatprep.subr.mxu0 0.0
  %1245 = vmatpush1.msra.mxu0 0.0
  %1246 = vmatprep.subr.mxu0 0.0
  %1247 = vmatpush1.msra.mxu0 0.0
  %1248 = vmatprep.subr.mxu0 0.0
  %1249 = vmatpush1.msra.mxu0 0.0
  %1250 = vmatprep.subr.mxu0 0.0
  %1251 = vmatpush1.msra.mxu0 0.0
  %1252 = vmatprep.subr.mxu0 0.0
  %1253 = vmatpush1.msra.mxu0 0.0
  %1254 = vmatprep.subr.mxu0 0.0
  %1255 = vmatpush1.msra.mxu0 0.0
  %1256 = vmatprep.subr.mxu0 0.0
  %1257 = vmatpush1.msra.mxu0 0.0
  %1258 = vmatprep.subr.mxu0 0.0
  %1259 = vmatpush1.msra.mxu0 0.0
  %1260 = vmatprep.subr.mxu0 0.0
  %1261 = vmatpush1.msra.mxu0 0.0
  %1262 = vmatprep.subr.mxu0 0.0
  %1263 = vmatpush1.msra.mxu0 0.0
  %1264 = vmatprep.subr.mxu0 0.0
  %1265 = vmatpush1.msra.mxu0 0.0
  %1266 = vmatprep.subr.mxu0 0.0
  %1267 = vmatpush1.msra.mxu0 0.0
  %1268 = vmatprep.subr.mxu0 0.0
  %1269 = vmatpush1.msra.mxu0 0.0
  %1270 = vmatprep.subr.mxu0 0.0
  %1271 = vmatpush1.msra.mxu0 0.0
  %1272 = vmatprep.subr.mxu0 0.0
  %1273 = vmatpush1.msra.mxu0 0.0
  %1274 = vmatprep.mubr.f32.mxu0 0.0
  %1275 = vmatmul.mubr.f32.gmra.mrb[0].mxu0 %v1208
  %v1276 = vpop.f32.mrb[0].mxu0
  %v1277 = vadd.f32 0.0, %v1276
  %v1278 = vpop.f32.mrb[0].mxu0
  %v1279 = vadd.f32 0.0, %v1278
  %1280 = vdwg.mxu0
  %1281 = vmatprep.subr.mxu0 %v1198
  %1282 = vmatpush1.msra.mxu0 %v1197
  %1283 = vmatprep.subr.mxu0 0.0
  %1284 = vmatpush1.msra.mxu0 0.0
  %1285 = vmatprep.subr.mxu0 0.0
  %1286 = vmatpush1.msra.mxu0 0.0
  %1287 = vmatprep.subr.mxu0 0.0
  %1288 = vmatpush1.msra.mxu0 0.0
  %1289 = vmatprep.subr.mxu0 0.0
  %1290 = vmatpush1.msra.mxu0 0.0
  %1291 = vmatprep.subr.mxu0 0.0
  %1292 = vmatpush1.msra.mxu0 0.0
  %1293 = vmatprep.subr.mxu0 0.0
  %1294 = vmatpush1.msra.mxu0 0.0
  %1295 = vmatprep.subr.mxu0 0.0
  %1296 = vmatpush1.msra.mxu0 0.0
  %1297 = vmatprep.subr.mxu0 0.0
  %1298 = vmatpush1.msra.mxu0 0.0
  %1299 = vmatprep.subr.mxu0 0.0
  %1300 = vmatpush1.msra.mxu0 0.0
  %1301 = vmatprep.subr.mxu0 0.0
  %1302 = vmatpush1.msra.mxu0 0.0
  %1303 = vmatprep.subr.mxu0 0.0
  %1304 = vmatpush1.msra.mxu0 0.0
  %1305 = vmatprep.subr.mxu0 0.0
  %1306 = vmatpush1.msra.mxu0 0.0
  %1307 = vmatprep.subr.mxu0 0.0
  %1308 = vmatpush1.msra.mxu0 0.0
  %1309 = vmatprep.subr.mxu0 0.0
  %1310 = vmatpush1.msra.mxu0 0.0
  %1311 = vmatprep.subr.mxu0 0.0
  %1312 = vmatpush1.msra.mxu0 0.0
  %1313 = vmatprep.subr.mxu0 0.0
  %1314 = vmatpush1.msra.mxu0 0.0
  %1315 = vmatprep.subr.mxu0 0.0
  %1316 = vmatpush1.msra.mxu0 0.0
  %1317 = vmatprep.subr.mxu0 0.0
  %1318 = vmatpush1.msra.mxu0 0.0
  %1319 = vmatprep.subr.mxu0 0.0
  %1320 = vmatpush1.msra.mxu0 0.0
  %1321 = vmatprep.subr.mxu0 0.0
  %1322 = vmatpush1.msra.mxu0 0.0
  %1323 = vmatprep.subr.mxu0 0.0
  %1324 = vmatpush1.msra.mxu0 0.0
  %1325 = vmatprep.subr.mxu0 0.0
  %1326 = vmatpush1.msra.mxu0 0.0
  %1327 = vmatprep.subr.mxu0 0.0
  %1328 = vmatpush1.msra.mxu0 0.0
  %1329 = vmatprep.subr.mxu0 0.0
  %1330 = vmatpush1.msra.mxu0 0.0
  %1331 = vmatprep.subr.mxu0 0.0
  %1332 = vmatpush1.msra.mxu0 0.0
  %1333 = vmatprep.subr.mxu0 0.0
  %1334 = vmatpush1.msra.mxu0 0.0
  %1335 = vmatprep.subr.mxu0 0.0
  %1336 = vmatpush1.msra.mxu0 0.0
  %1337 = vmatprep.subr.mxu0 0.0
  %1338 = vmatpush1.msra.mxu0 0.0
  %1339 = vmatprep.subr.mxu0 0.0
  %1340 = vmatpush1.msra.mxu0 0.0
  %1341 = vmatprep.subr.mxu0 0.0
  %1342 = vmatpush1.msra.mxu0 0.0
  %1343 = vmatprep.subr.mxu0 0.0
  %1344 = vmatpush1.msra.mxu0 0.0
  %1345 = vmatprep.mubr.f32.mxu0 0.0
  %1346 = vmatmul.mubr.f32.gmra.mrb[0].mxu0 %v1208
  %v1347 = vpop.f32.mrb[0].mxu0
  %v1348 = vadd.f32 0.0, %v1347
  %v1349 = vpop.f32.mrb[0].mxu0
  %v1350 = vadd.f32 0.0, %v1349
  %1351 = vdwg.mxu0
  %1352 = vmatprep.subr.mxu0 %v1200
  %1353 = vmatpush1.msra.mxu0 %v1199
  %1354 = vmatprep.subr.mxu0 0.0
  %1355 = vmatpush1.msra.mxu0 0.0
  %1356 = vmatprep.subr.mxu0 0.0
  %1357 = vmatpush1.msra.mxu0 0.0
  %1358 = vmatprep.subr.mxu0 0.0
  %1359 = vmatpush1.msra.mxu0 0.0
  %1360 = vmatprep.subr.mxu0 0.0
  %1361 = vmatpush1.msra.mxu0 0.0
  %1362 = vmatprep.subr.mxu0 0.0
  %1363 = vmatpush1.msra.mxu0 0.0
  %1364 = vmatprep.subr.mxu0 0.0
  %1365 = vmatpush1.msra.mxu0 0.0
  %1366 = vmatprep.subr.mxu0 0.0
  %1367 = vmatpush1.msra.mxu0 0.0
  %1368 = vmatprep.subr.mxu0 0.0
  %1369 = vmatpush1.msra.mxu0 0.0
  %1370 = vmatprep.subr.mxu0 0.0
  %1371 = vmatpush1.msra.mxu0 0.0
  %1372 = vmatprep.subr.mxu0 0.0
  %1373 = vmatpush1.msra.mxu0 0.0
  %1374 = vmatprep.subr.mxu0 0.0
  %1375 = vmatpush1.msra.mxu0 0.0
  %1376 = vmatprep.subr.mxu0 0.0
  %1377 = vmatpush1.msra.mxu0 0.0
  %1378 = vmatprep.subr.mxu0 0.0
  %1379 = vmatpush1.msra.mxu0 0.0
  %1380 = vmatprep.subr.mxu0 0.0
  %1381 = vmatpush1.msra.mxu0 0.0
  %1382 = vmatprep.subr.mxu0 0.0
  %1383 = vmatpush1.msra.mxu0 0.0
  %1384 = vmatprep.subr.mxu0 0.0
  %1385 = vmatpush1.msra.mxu0 0.0
  %1386 = vmatprep.subr.mxu0 0.0
  %1387 = vmatpush1.msra.mxu0 0.0
  %1388 = vmatprep.subr.mxu0 0.0
  %1389 = vmatpush1.msra.mxu0 0.0
  %1390 = vmatprep.subr.mxu0 0.0
  %1391 = vmatpush1.msra.mxu0 0.0
  %1392 = vmatprep.subr.mxu0 0.0
  %1393 = vmatpush1.msra.mxu0 0.0
  %1394 = vmatprep.subr.mxu0 0.0
  %1395 = vmatpush1.msra.mxu0 0.0
  %1396 = vmatprep.subr.mxu0 0.0
  %1397 = vmatpush1.msra.mxu0 0.0
  %1398 = vmatprep.subr.mxu0 0.0
  %1399 = vmatpush1.msra.mxu0 0.0
  %1400 = vmatprep.subr.mxu0 0.0
  %1401 = vmatpush1.msra.mxu0 0.0
  %1402 = vmatprep.subr.mxu0 0.0
  %1403 = vmatpush1.msra.mxu0 0.0
  %1404 = vmatprep.subr.mxu0 0.0
  %1405 = vmatpush1.msra.mxu0 0.0
  %1406 = vmatprep.subr.mxu0 0.0
  %1407 = vmatpush1.msra.mxu0 0.0
  %1408 = vmatprep.subr.mxu0 0.0
  %1409 = vmatpush1.msra.mxu0 0.0
  %1410 = vmatprep.subr.mxu0 0.0
  %1411 = vmatpush1.msra.mxu0 0.0
  %1412 = vmatprep.subr.mxu0 0.0
  %1413 = vmatpush1.msra.mxu0 0.0
  %1414 = vmatprep.subr.mxu0 0.0
  %1415 = vmatpush1.msra.mxu0 0.0
  %1416 = vmatprep.mubr.f32.mxu0 0.0
  %1417 = vmatmul.mubr.f32.gmra.mrb[0].mxu0 %v1208
  %v1418 = vpop.f32.mrb[0].mxu0
  %v1419 = vadd.f32 0.0, %v1418
  %v1420 = vpop.f32.mrb[0].mxu0
  %v1421 = vadd.f32 0.0, %v1420
  %1422 = vdwg.mxu0
  %v1423 = vadd.f32 %v1172, %v1277
  %v1424 = vadd.f32 %v1173, %v1279
  %v1425 = vadd.f32 %v1174, %v1348
  %v1426 = vadd.f32 %v1175, %v1350
  %v1427 = vadd.f32 %v1176, %v1419
  %v1428 = vadd.f32 %v1177, %v1421
  %s1429 = scalar_lea.vmem %s4, 16
  %v1430 = vld [vmem:[%s1429] sm:$0xf]
  %v1432 = vsel %vm467, %v1430, 0
  %1434 = vmatprep.subr.mxu0 %v425
  %1435 = vmatpush1.msra.mxu0 %v424
  %1436 = vmatprep.subr.mxu0 0.0
  %1437 = vmatpush1.msra.mxu0 0.0
  %1438 = vmatprep.subr.mxu0 0.0
  %1439 = vmatpush1.msra.mxu0 0.0
  %1440 = vmatprep.subr.mxu0 0.0
  %1441 = vmatpush1.msra.mxu0 0.0
  %1442 = vmatprep.subr.mxu0 0.0
  %1443 = vmatpush1.msra.mxu0 0.0
  %1444 = vmatprep.subr.mxu0 0.0
  %1445 = vmatpush1.msra.mxu0 0.0
  %1446 = vmatprep.subr.mxu0 0.0
  %1447 = vmatpush1.msra.mxu0 0.0
  %1448 = vmatprep.subr.mxu0 0.0
  %1449 = vmatpush1.msra.mxu0 0.0
  %1450 = vmatprep.subr.mxu0 0.0
  %1451 = vmatpush1.msra.mxu0 0.0
  %1452 = vmatprep.subr.mxu0 0.0
  %1453 = vmatpush1.msra.mxu0 0.0
  %1454 = vmatprep.subr.mxu0 0.0
  %1455 = vmatpush1.msra.mxu0 0.0
  %1456 = vmatprep.subr.mxu0 0.0
  %1457 = vmatpush1.msra.mxu0 0.0
  %1458 = vmatprep.subr.mxu0 0.0
  %1459 = vmatpush1.msra.mxu0 0.0
  %1460 = vmatprep.subr.mxu0 0.0
  %1461 = vmatpush1.msra.mxu0 0.0
  %1462 = vmatprep.subr.mxu0 0.0
  %1463 = vmatpush1.msra.mxu0 0.0
  %1464 = vmatprep.subr.mxu0 0.0
  %1465 = vmatpush1.msra.mxu0 0.0
  %1466 = vmatprep.subr.mxu0 0.0
  %1467 = vmatpush1.msra.mxu0 0.0
  %1468 = vmatprep.subr.mxu0 0.0
  %1469 = vmatpush1.msra.mxu0 0.0
  %1470 = vmatprep.subr.mxu0 0.0
  %1471 = vmatpush1.msra.mxu0 0.0
  %1472 = vmatprep.subr.mxu0 0.0
  %1473 = vmatpush1.msra.mxu0 0.0
  %1474 = vmatprep.subr.mxu0 0.0
  %1475 = vmatpush1.msra.mxu0 0.0
  %1476 = vmatprep.subr.mxu0 0.0
  %1477 = vmatpush1.msra.mxu0 0.0
  %1478 = vmatprep.subr.mxu0 0.0
  %1479 = vmatpush1.msra.mxu0 0.0
  %1480 = vmatprep.subr.mxu0 0.0
  %1481 = vmatpush1.msra.mxu0 0.0
  %1482 = vmatprep.subr.mxu0 0.0
  %1483 = vmatpush1.msra.mxu0 0.0
  %1484 = vmatprep.subr.mxu0 0.0
  %1485 = vmatpush1.msra.mxu0 0.0
  %1486 = vmatprep.subr.mxu0 0.0
  %1487 = vmatpush1.msra.mxu0 0.0
  %1488 = vmatprep.subr.mxu0 0.0
  %1489 = vmatpush1.msra.mxu0 0.0
  %1490 = vmatprep.subr.mxu0 0.0
  %1491 = vmatpush1.msra.mxu0 0.0
  %1492 = vmatprep.subr.mxu0 0.0
  %1493 = vmatpush1.msra.mxu0 0.0
  %1494 = vmatprep.subr.mxu0 0.0
  %1495 = vmatpush1.msra.mxu0 0.0
  %1496 = vmatprep.subr.mxu0 0.0
  %1497 = vmatpush1.msra.mxu0 0.0
  %1498 = vmatprep.mubr.f32.mxu0 0.0
  %1499 = vmatmul.mubr.f32.gmra.mrb[0].mxu0 %v1432
  %v1500 = vpop.f32.mrb[0].mxu0
  %v1501 = vadd.f32 0.0, %v1500
  %v1502 = vpop.f32.mrb[0].mxu0
  %v1503 = vadd.f32 0.0, %v1502
  %1504 = vdwg.mxu0
  %1505 = vmatprep.subr.mxu0 %v427
  %1506 = vmatpush1.msra.mxu0 %v426
  %1507 = vmatprep.subr.mxu0 0.0
  %1508 = vmatpush1.msra.mxu0 0.0
  %1509 = vmatprep.subr.mxu0 0.0
  %1510 = vmatpush1.msra.mxu0 0.0
  %1511 = vmatprep.subr.mxu0 0.0
  %1512 = vmatpush1.msra.mxu0 0.0
  %1513 = vmatprep.subr.mxu0 0.0
  %1514 = vmatpush1.msra.mxu0 0.0
  %1515 = vmatprep.subr.mxu0 0.0
  %1516 = vmatpush1.msra.mxu0 0.0
  %1517 = vmatprep.subr.mxu0 0.0
  %1518 = vmatpush1.msra.mxu0 0.0
  %1519 = vmatprep.subr.mxu0 0.0
  %1520 = vmatpush1.msra.mxu0 0.0
  %1521 = vmatprep.subr.mxu0 0.0
  %1522 = vmatpush1.msra.mxu0 0.0
  %1523 = vmatprep.subr.mxu0 0.0
  %1524 = vmatpush1.msra.mxu0 0.0
  %1525 = vmatprep.subr.mxu0 0.0
  %1526 = vmatpush1.msra.mxu0 0.0
  %1527 = vmatprep.subr.mxu0 0.0
  %1528 = vmatpush1.msra.mxu0 0.0
  %1529 = vmatprep.subr.mxu0 0.0
  %1530 = vmatpush1.msra.mxu0 0.0
  %1531 = vmatprep.subr.mxu0 0.0
  %1532 = vmatpush1.msra.mxu0 0.0
  %1533 = vmatprep.subr.mxu0 0.0
  %1534 = vmatpush1.msra.mxu0 0.0
  %1535 = vmatprep.subr.mxu0 0.0
  %1536 = vmatpush1.msra.mxu0 0.0
  %1537 = vmatprep.subr.mxu0 0.0
  %1538 = vmatpush1.msra.mxu0 0.0
  %1539 = vmatprep.subr.mxu0 0.0
  %1540 = vmatpush1.msra.mxu0 0.0
  %1541 = vmatprep.subr.mxu0 0.0
  %1542 = vmatpush1.msra.mxu0 0.0
  %1543 = vmatprep.subr.mxu0 0.0
  %1544 = vmatpush1.msra.mxu0 0.0
  %1545 = vmatprep.subr.mxu0 0.0
  %1546 = vmatpush1.msra.mxu0 0.0
  %1547 = vmatprep.subr.mxu0 0.0
  %1548 = vmatpush1.msra.mxu0 0.0
  %1549 = vmatprep.subr.mxu0 0.0
  %1550 = vmatpush1.msra.mxu0 0.0
  %1551 = vmatprep.subr.mxu0 0.0
  %1552 = vmatpush1.msra.mxu0 0.0
  %1553 = vmatprep.subr.mxu0 0.0
  %1554 = vmatpush1.msra.mxu0 0.0
  %1555 = vmatprep.subr.mxu0 0.0
  %1556 = vmatpush1.msra.mxu0 0.0
  %1557 = vmatprep.subr.mxu0 0.0
  %1558 = vmatpush1.msra.mxu0 0.0
  %1559 = vmatprep.subr.mxu0 0.0
  %1560 = vmatpush1.msra.mxu0 0.0
  %1561 = vmatprep.subr.mxu0 0.0
  %1562 = vmatpush1.msra.mxu0 0.0
  %1563 = vmatprep.subr.mxu0 0.0
  %1564 = vmatpush1.msra.mxu0 0.0
  %1565 = vmatprep.subr.mxu0 0.0
  %1566 = vmatpush1.msra.mxu0 0.0
  %1567 = vmatprep.subr.mxu0 0.0
  %1568 = vmatpush1.msra.mxu0 0.0
  %1569 = vmatprep.mubr.f32.mxu0 0.0
  %1570 = vmatmul.mubr.f32.gmra.mrb[0].mxu0 %v1432
  %v1571 = vpop.f32.mrb[0].mxu0
  %v1572 = vadd.f32 0.0, %v1571
  %v1573 = vpop.f32.mrb[0].mxu0
  %v1574 = vadd.f32 0.0, %v1573
  %1575 = vdwg.mxu0
  %1576 = vmatprep.subr.mxu0 %v429
  %1577 = vmatpush1.msra.mxu0 %v428
  %1578 = vmatprep.subr.mxu0 0.0
  %1579 = vmatpush1.msra.mxu0 0.0
  %1580 = vmatprep.subr.mxu0 0.0
  %1581 = vmatpush1.msra.mxu0 0.0
  %1582 = vmatprep.subr.mxu0 0.0
  %1583 = vmatpush1.msra.mxu0 0.0
  %1584 = vmatprep.subr.mxu0 0.0
  %1585 = vmatpush1.msra.mxu0 0.0
  %1586 = vmatprep.subr.mxu0 0.0
  %1587 = vmatpush1.msra.mxu0 0.0
  %1588 = vmatprep.subr.mxu0 0.0
  %1589 = vmatpush1.msra.mxu0 0.0
  %1590 = vmatprep.subr.mxu0 0.0
  %1591 = vmatpush1.msra.mxu0 0.0
  %1592 = vmatprep.subr.mxu0 0.0
  %1593 = vmatpush1.msra.mxu0 0.0
  %1594 = vmatprep.subr.mxu0 0.0
  %1595 = vmatpush1.msra.mxu0 0.0
  %1596 = vmatprep.subr.mxu0 0.0
  %1597 = vmatpush1.msra.mxu0 0.0
  %1598 = vmatprep.subr.mxu0 0.0
  %1599 = vmatpush1.msra.mxu0 0.0
  %1600 = vmatprep.subr.mxu0 0.0
  %1601 = vmatpush1.msra.mxu0 0.0
  %1602 = vmatprep.subr.mxu0 0.0
  %1603 = vmatpush1.msra.mxu0 0.0
  %1604 = vmatprep.subr.mxu0 0.0
  %1605 = vmatpush1.msra.mxu0 0.0
  %1606 = vmatprep.subr.mxu0 0.0
  %1607 = vmatpush1.msra.mxu0 0.0
  %1608 = vmatprep.subr.mxu0 0.0
  %1609 = vmatpush1.msra.mxu0 0.0
  %1610 = vmatprep.subr.mxu0 0.0
  %1611 = vmatpush1.msra.mxu0 0.0
  %1612 = vmatprep.subr.mxu0 0.0
  %1613 = vmatpush1.msra.mxu0 0.0
  %1614 = vmatprep.subr.mxu0 0.0
  %1615 = vmatpush1.msra.mxu0 0.0
  %1616 = vmatprep.subr.mxu0 0.0
  %1617 = vmatpush1.msra.mxu0 0.0
  %1618 = vmatprep.subr.mxu0 0.0
  %1619 = vmatpush1.msra.mxu0 0.0
  %1620 = vmatprep.subr.mxu0 0.0
  %1621 = vmatpush1.msra.mxu0 0.0
  %1622 = vmatprep.subr.mxu0 0.0
  %1623 = vmatpush1.msra.mxu0 0.0
  %1624 = vmatprep.subr.mxu0 0.0
  %1625 = vmatpush1.msra.mxu0 0.0
  %1626 = vmatprep.subr.mxu0 0.0
  %1627 = vmatpush1.msra.mxu0 0.0
  %1628 = vmatprep.subr.mxu0 0.0
  %1629 = vmatpush1.msra.mxu0 0.0
  %1630 = vmatprep.subr.mxu0 0.0
  %1631 = vmatpush1.msra.mxu0 0.0
  %1632 = vmatprep.subr.mxu0 0.0
  %1633 = vmatpush1.msra.mxu0 0.0
  %1634 = vmatprep.subr.mxu0 0.0
  %1635 = vmatpush1.msra.mxu0 0.0
  %1636 = vmatprep.subr.mxu0 0.0
  %1637 = vmatpush1.msra.mxu0 0.0
  %1638 = vmatprep.subr.mxu0 0.0
  %1639 = vmatpush1.msra.mxu0 0.0
  %1640 = vmatprep.mubr.f32.mxu0 0.0
  %1641 = vmatmul.mubr.f32.gmra.mrb[0].mxu0 %v1432
  %v1642 = vpop.f32.mrb[0].mxu0
  %v1643 = vadd.f32 0.0, %v1642
  %v1644 = vpop.f32.mrb[0].mxu0
  %v1645 = vadd.f32 0.0, %v1644
  %1646 = vdwg.mxu0
  %v1647 = vadd.f32 %v1423, %v1501
  %v1648 = vadd.f32 %v1424, %v1503
  %v1649 = vadd.f32 %v1425, %v1572
  %v1650 = vadd.f32 %v1426, %v1574
  %v1651 = vadd.f32 %v1427, %v1643
  %v1652 = vadd.f32 %v1428, %v1645
  %v1653 = vld [vmem:[#allocation2 + $0x8] sm:$0xff]
  %v1654 = vld [vmem:[#allocation2 + $0x10] sm:$0xff]
  %v1655 = vld [vmem:[#allocation2 + $0x18] sm:$0xff]
  %v1656 = vld [vmem:[#allocation2 + $0x20] sm:$0xff]
  %v1657 = vld [vmem:[#allocation2 + $0x28] sm:$0xff]
  %v1658 = vld [vmem:[#allocation2 + $0x30] sm:$0xff]
  %v1659 = vld [vmem:[#allocation2 + $0x38] sm:$0xff]
  %s1660 = scalar_lea.vmem %s4, 20
  %v1661 = vld [vmem:[%s1660] sm:$0xf]
  %1669 = vrot.lane.b32.xlu0 %v1653, 127
  %v1670 = vpop.permute.xlu0 %1669
  %1671 = vrot.lane.b32.xlu0 %v1654, 127
  %v1672 = vpop.permute.xlu0 %1671
  %1673 = vrot.lane.b32.xlu0 %v1655, 127
  %v1674 = vpop.permute.xlu0 %1673
  %1675 = vrot.lane.b32.xlu0 %v1656, 127
  %v1676 = vpop.permute.xlu0 %1675
  %1677 = vrot.lane.b32.xlu0 %v1657, 127
  %v1678 = vpop.permute.xlu0 %1677
  %1679 = vrot.lane.b32.xlu0 %v1658, 127
  %v1680 = vpop.permute.xlu0 %1679
  %1681 = vrot.lane.b32.xlu0 %v1659, 127
  %v1682 = vpop.permute.xlu0 %1681
  %vm1683 = vcmask 1039360
  %v1684 = vsel %vm1683, %v1670, %v1672
  %v1685 = vsel %vm1683, %v1672, %v1674
  %v1686 = vsel %vm1683, %v1674, %v1676
  %v1687 = vsel %vm1683, %v1676, %v1678
  %v1688 = vsel %vm1683, %v1678, %v1680
  %v1689 = vsel %vm1683, %v1680, %v1682
  %v1697 = vsel %vm467, %v1661, 0
  %1699 = vmatprep.subr.mxu0 %v1685
  %1700 = vmatpush1.msra.mxu0 %v1684
  %1701 = vmatprep.subr.mxu0 0.0
  %1702 = vmatpush1.msra.mxu0 0.0
  %1703 = vmatprep.subr.mxu0 0.0
  %1704 = vmatpush1.msra.mxu0 0.0
  %1705 = vmatprep.subr.mxu0 0.0
  %1706 = vmatpush1.msra.mxu0 0.0
  %1707 = vmatprep.subr.mxu0 0.0
  %1708 = vmatpush1.msra.mxu0 0.0
  %1709 = vmatprep.subr.mxu0 0.0
  %1710 = vmatpush1.msra.mxu0 0.0
  %1711 = vmatprep.subr.mxu0 0.0
  %1712 = vmatpush1.msra.mxu0 0.0
  %1713 = vmatprep.subr.mxu0 0.0
  %1714 = vmatpush1.msra.mxu0 0.0
  %1715 = vmatprep.subr.mxu0 0.0
  %1716 = vmatpush1.msra.mxu0 0.0
  %1717 = vmatprep.subr.mxu0 0.0
  %1718 = vmatpush1.msra.mxu0 0.0
  %1719 = vmatprep.subr.mxu0 0.0
  %1720 = vmatpush1.msra.mxu0 0.0
  %1721 = vmatprep.subr.mxu0 0.0
  %1722 = vmatpush1.msra.mxu0 0.0
  %1723 = vmatprep.subr.mxu0 0.0
  %1724 = vmatpush1.msra.mxu0 0.0
  %1725 = vmatprep.subr.mxu0 0.0
  %1726 = vmatpush1.msra.mxu0 0.0
  %1727 = vmatprep.subr.mxu0 0.0
  %1728 = vmatpush1.msra.mxu0 0.0
  %1729 = vmatprep.subr.mxu0 0.0
  %1730 = vmatpush1.msra.mxu0 0.0
  %1731 = vmatprep.subr.mxu0 0.0
  %1732 = vmatpush1.msra.mxu0 0.0
  %1733 = vmatprep.subr.mxu0 0.0
  %1734 = vmatpush1.msra.mxu0 0.0
  %1735 = vmatprep.subr.mxu0 0.0
  %1736 = vmatpush1.msra.mxu0 0.0
  %1737 = vmatprep.subr.mxu0 0.0
  %1738 = vmatpush1.msra.mxu0 0.0
  %1739 = vmatprep.subr.mxu0 0.0
  %1740 = vmatpush1.msra.mxu0 0.0
  %1741 = vmatprep.subr.mxu0 0.0
  %1742 = vmatpush1.msra.mxu0 0.0
  %1743 = vmatprep.subr.mxu0 0.0
  %1744 = vmatpush1.msra.mxu0 0.0
  %1745 = vmatprep.subr.mxu0 0.0
  %1746 = vmatpush1.msra.mxu0 0.0
  %1747 = vmatprep.subr.mxu0 0.0
  %1748 = vmatpush1.msra.mxu0 0.0
  %1749 = vmatprep.subr.mxu0 0.0
  %1750 = vmatpush1.msra.mxu0 0.0
  %1751 = vmatprep.subr.mxu0 0.0
  %1752 = vmatpush1.msra.mxu0 0.0
  %1753 = vmatprep.subr.mxu0 0.0
  %1754 = vmatpush1.msra.mxu0 0.0
  %1755 = vmatprep.subr.mxu0 0.0
  %1756 = vmatpush1.msra.mxu0 0.0
  %1757 = vmatprep.subr.mxu0 0.0
  %1758 = vmatpush1.msra.mxu0 0.0
  %1759 = vmatprep.subr.mxu0 0.0
  %1760 = vmatpush1.msra.mxu0 0.0
  %1761 = vmatprep.subr.mxu0 0.0
  %1762 = vmatpush1.msra.mxu0 0.0
  %1763 = vmatprep.mubr.f32.mxu0 0.0
  %1764 = vmatmul.mubr.f32.gmra.mrb[0].mxu0 %v1697
  %v1765 = vpop.f32.mrb[0].mxu0
  %v1766 = vadd.f32 0.0, %v1765
  %v1767 = vpop.f32.mrb[0].mxu0
  %v1768 = vadd.f32 0.0, %v1767
  %1769 = vdwg.mxu0
  %1770 = vmatprep.subr.mxu0 %v1687
  %1771 = vmatpush1.msra.mxu0 %v1686
  %1772 = vmatprep.subr.mxu0 0.0
  %1773 = vmatpush1.msra.mxu0 0.0
  %1774 = vmatprep.subr.mxu0 0.0
  %1775 = vmatpush1.msra.mxu0 0.0
  %1776 = vmatprep.subr.mxu0 0.0
  %1777 = vmatpush1.msra.mxu0 0.0
  %1778 = vmatprep.subr.mxu0 0.0
  %1779 = vmatpush1.msra.mxu0 0.0
  %1780 = vmatprep.subr.mxu0 0.0
  %1781 = vmatpush1.msra.mxu0 0.0
  %1782 = vmatprep.subr.mxu0 0.0
  %1783 = vmatpush1.msra.mxu0 0.0
  %1784 = vmatprep.subr.mxu0 0.0
  %1785 = vmatpush1.msra.mxu0 0.0
  %1786 = vmatprep.subr.mxu0 0.0
  %1787 = vmatpush1.msra.mxu0 0.0
  %1788 = vmatprep.subr.mxu0 0.0
  %1789 = vmatpush1.msra.mxu0 0.0
  %1790 = vmatprep.subr.mxu0 0.0
  %1791 = vmatpush1.msra.mxu0 0.0
  %1792 = vmatprep.subr.mxu0 0.0
  %1793 = vmatpush1.msra.mxu0 0.0
  %1794 = vmatprep.subr.mxu0 0.0
  %1795 = vmatpush1.msra.mxu0 0.0
  %1796 = vmatprep.subr.mxu0 0.0
  %1797 = vmatpush1.msra.mxu0 0.0
  %1798 = vmatprep.subr.mxu0 0.0
  %1799 = vmatpush1.msra.mxu0 0.0
  %1800 = vmatprep.subr.mxu0 0.0
  %1801 = vmatpush1.msra.mxu0 0.0
  %1802 = vmatprep.subr.mxu0 0.0
  %1803 = vmatpush1.msra.mxu0 0.0
  %1804 = vmatprep.subr.mxu0 0.0
  %1805 = vmatpush1.msra.mxu0 0.0
  %1806 = vmatprep.subr.mxu0 0.0
  %1807 = vmatpush1.msra.mxu0 0.0
  %1808 = vmatprep.subr.mxu0 0.0
  %1809 = vmatpush1.msra.mxu0 0.0
  %1810 = vmatprep.subr.mxu0 0.0
  %1811 = vmatpush1.msra.mxu0 0.0
  %1812 = vmatprep.subr.mxu0 0.0
  %1813 = vmatpush1.msra.mxu0 0.0
  %1814 = vmatprep.subr.mxu0 0.0
  %1815 = vmatpush1.msra.mxu0 0.0
  %1816 = vmatprep.subr.mxu0 0.0
  %1817 = vmatpush1.msra.mxu0 0.0
  %1818 = vmatprep.subr.mxu0 0.0
  %1819 = vmatpush1.msra.mxu0 0.0
  %1820 = vmatprep.subr.mxu0 0.0
  %1821 = vmatpush1.msra.mxu0 0.0
  %1822 = vmatprep.subr.mxu0 0.0
  %1823 = vmatpush1.msra.mxu0 0.0
  %1824 = vmatprep.subr.mxu0 0.0
  %1825 = vmatpush1.msra.mxu0 0.0
  %1826 = vmatprep.subr.mxu0 0.0
  %1827 = vmatpush1.msra.mxu0 0.0
  %1828 = vmatprep.subr.mxu0 0.0
  %1829 = vmatpush1.msra.mxu0 0.0
  %1830 = vmatprep.subr.mxu0 0.0
  %1831 = vmatpush1.msra.mxu0 0.0
  %1832 = vmatprep.subr.mxu0 0.0
  %1833 = vmatpush1.msra.mxu0 0.0
  %1834 = vmatprep.mubr.f32.mxu0 0.0
  %1835 = vmatmul.mubr.f32.gmra.mrb[0].mxu0 %v1697
  %v1836 = vpop.f32.mrb[0].mxu0
  %v1837 = vadd.f32 0.0, %v1836
  %v1838 = vpop.f32.mrb[0].mxu0
  %v1839 = vadd.f32 0.0, %v1838
  %1840 = vdwg.mxu0
  %1841 = vmatprep.subr.mxu0 %v1689
  %1842 = vmatpush1.msra.mxu0 %v1688
  %1843 = vmatprep.subr.mxu0 0.0
  %1844 = vmatpush1.msra.mxu0 0.0
  %1845 = vmatprep.subr.mxu0 0.0
  %1846 = vmatpush1.msra.mxu0 0.0
  %1847 = vmatprep.subr.mxu0 0.0
  %1848 = vmatpush1.msra.mxu0 0.0
  %1849 = vmatprep.subr.mxu0 0.0
  %1850 = vmatpush1.msra.mxu0 0.0
  %1851 = vmatprep.subr.mxu0 0.0
  %1852 = vmatpush1.msra.mxu0 0.0
  %1853 = vmatprep.subr.mxu0 0.0
  %1854 = vmatpush1.msra.mxu0 0.0
  %1855 = vmatprep.subr.mxu0 0.0
  %1856 = vmatpush1.msra.mxu0 0.0
  %1857 = vmatprep.subr.mxu0 0.0
  %1858 = vmatpush1.msra.mxu0 0.0
  %1859 = vmatprep.subr.mxu0 0.0
  %1860 = vmatpush1.msra.mxu0 0.0
  %1861 = vmatprep.subr.mxu0 0.0
  %1862 = vmatpush1.msra.mxu0 0.0
  %1863 = vmatprep.subr.mxu0 0.0
  %1864 = vmatpush1.msra.mxu0 0.0
  %1865 = vmatprep.subr.mxu0 0.0
  %1866 = vmatpush1.msra.mxu0 0.0
  %1867 = vmatprep.subr.mxu0 0.0
  %1868 = vmatpush1.msra.mxu0 0.0
  %1869 = vmatprep.subr.mxu0 0.0
  %1870 = vmatpush1.msra.mxu0 0.0
  %1871 = vmatprep.subr.mxu0 0.0
  %1872 = vmatpush1.msra.mxu0 0.0
  %1873 = vmatprep.subr.mxu0 0.0
  %1874 = vmatpush1.msra.mxu0 0.0
  %1875 = vmatprep.subr.mxu0 0.0
  %1876 = vmatpush1.msra.mxu0 0.0
  %1877 = vmatprep.subr.mxu0 0.0
  %1878 = vmatpush1.msra.mxu0 0.0
  %1879 = vmatprep.subr.mxu0 0.0
  %1880 = vmatpush1.msra.mxu0 0.0
  %1881 = vmatprep.subr.mxu0 0.0
  %1882 = vmatpush1.msra.mxu0 0.0
  %1883 = vmatprep.subr.mxu0 0.0
  %1884 = vmatpush1.msra.mxu0 0.0
  %1885 = vmatprep.subr.mxu0 0.0
  %1886 = vmatpush1.msra.mxu0 0.0
  %1887 = vmatprep.subr.mxu0 0.0
  %1888 = vmatpush1.msra.mxu0 0.0
  %1889 = vmatprep.subr.mxu0 0.0
  %1890 = vmatpush1.msra.mxu0 0.0
  %1891 = vmatprep.subr.mxu0 0.0
  %1892 = vmatpush1.msra.mxu0 0.0
  %1893 = vmatprep.subr.mxu0 0.0
  %1894 = vmatpush1.msra.mxu0 0.0
  %1895 = vmatprep.subr.mxu0 0.0
  %1896 = vmatpush1.msra.mxu0 0.0
  %1897 = vmatprep.subr.mxu0 0.0
  %1898 = vmatpush1.msra.mxu0 0.0
  %1899 = vmatprep.subr.mxu0 0.0
  %1900 = vmatpush1.msra.mxu0 0.0
  %1901 = vmatprep.subr.mxu0 0.0
  %1902 = vmatpush1.msra.mxu0 0.0
  %1903 = vmatprep.subr.mxu0 0.0
  %1904 = vmatpush1.msra.mxu0 0.0
  %1905 = vmatprep.mubr.f32.mxu0 0.0
  %1906 = vmatmul.mubr.f32.gmra.mrb[0].mxu0 %v1697
  %v1907 = vpop.f32.mrb[0].mxu0
  %v1908 = vadd.f32 0.0, %v1907
  %v1909 = vpop.f32.mrb[0].mxu0
  %v1910 = vadd.f32 0.0, %v1909
  %1911 = vdwg.mxu0
  %v1912 = vadd.f32 %v1647, %v1766
  %v1913 = vadd.f32 %v1648, %v1768
  %v1914 = vadd.f32 %v1649, %v1837
  %v1915 = vadd.f32 %v1650, %v1839
  %v1916 = vadd.f32 %v1651, %v1908
  %v1917 = vadd.f32 %v1652, %v1910
  %s1918 = scalar_lea.vmem %s4, 24
  %v1919 = vld [vmem:[%s1918] sm:$0xf]
  %1920 = vrot.lane.b32.xlu0 %v1653, 111
  %v1921 = vpop.permute.xlu0 %1920
  %1922 = vrot.lane.b32.xlu0 %v1654, 111
  %v1923 = vpop.permute.xlu0 %1922
  %1924 = vrot.lane.b32.xlu0 %v1655, 111
  %v1925 = vpop.permute.xlu0 %1924
  %1926 = vrot.lane.b32.xlu0 %v1656, 111
  %v1927 = vpop.permute.xlu0 %1926
  %1928 = vrot.lane.b32.xlu0 %v1657, 111
  %v1929 = vpop.permute.xlu0 %1928
  %1930 = vrot.lane.b32.xlu0 %v1658, 111
  %v1931 = vpop.permute.xlu0 %1930
  %1932 = vrot.lane.b32.xlu0 %v1659, 111
  %v1933 = vpop.permute.xlu0 %1932
  %vm1934 = vcmask 908288
  %v1935 = vsel %vm1934, %v1921, %v1923
  %v1936 = vsel %vm1934, %v1923, %v1925
  %v1937 = vsel %vm1934, %v1925, %v1927
  %v1938 = vsel %vm1934, %v1927, %v1929
  %v1939 = vsel %vm1934, %v1929, %v1931
  %v1940 = vsel %vm1934, %v1931, %v1933
  %v1948 = vsel %vm467, %v1919, 0
  %1950 = vmatprep.subr.mxu0 %v1936
  %1951 = vmatpush1.msra.mxu0 %v1935
  %1952 = vmatprep.subr.mxu0 0.0
  %1953 = vmatpush1.msra.mxu0 0.0
  %1954 = vmatprep.subr.mxu0 0.0
  %1955 = vmatpush1.msra.mxu0 0.0
  %1956 = vmatprep.subr.mxu0 0.0
  %1957 = vmatpush1.msra.mxu0 0.0
  %1958 = vmatprep.subr.mxu0 0.0
  %1959 = vmatpush1.msra.mxu0 0.0
  %1960 = vmatprep.subr.mxu0 0.0
  %1961 = vmatpush1.msra.mxu0 0.0
  %1962 = vmatprep.subr.mxu0 0.0
  %1963 = vmatpush1.msra.mxu0 0.0
  %1964 = vmatprep.subr.mxu0 0.0
  %1965 = vmatpush1.msra.mxu0 0.0
  %1966 = vmatprep.subr.mxu0 0.0
  %1967 = vmatpush1.msra.mxu0 0.0
  %1968 = vmatprep.subr.mxu0 0.0
  %1969 = vmatpush1.msra.mxu0 0.0
  %1970 = vmatprep.subr.mxu0 0.0
  %1971 = vmatpush1.msra.mxu0 0.0
  %1972 = vmatprep.subr.mxu0 0.0
  %1973 = vmatpush1.msra.mxu0 0.0
  %1974 = vmatprep.subr.mxu0 0.0
  %1975 = vmatpush1.msra.mxu0 0.0
  %1976 = vmatprep.subr.mxu0 0.0
  %1977 = vmatpush1.msra.mxu0 0.0
  %1978 = vmatprep.subr.mxu0 0.0
  %1979 = vmatpush1.msra.mxu0 0.0
  %1980 = vmatprep.subr.mxu0 0.0
  %1981 = vmatpush1.msra.mxu0 0.0
  %1982 = vmatprep.subr.mxu0 0.0
  %1983 = vmatpush1.msra.mxu0 0.0
  %1984 = vmatprep.subr.mxu0 0.0
  %1985 = vmatpush1.msra.mxu0 0.0
  %1986 = vmatprep.subr.mxu0 0.0
  %1987 = vmatpush1.msra.mxu0 0.0
  %1988 = vmatprep.subr.mxu0 0.0
  %1989 = vmatpush1.msra.mxu0 0.0
  %1990 = vmatprep.subr.mxu0 0.0
  %1991 = vmatpush1.msra.mxu0 0.0
  %1992 = vmatprep.subr.mxu0 0.0
  %1993 = vmatpush1.msra.mxu0 0.0
  %1994 = vmatprep.subr.mxu0 0.0
  %1995 = vmatpush1.msra.mxu0 0.0
  %1996 = vmatprep.subr.mxu0 0.0
  %1997 = vmatpush1.msra.mxu0 0.0
  %1998 = vmatprep.subr.mxu0 0.0
  %1999 = vmatpush1.msra.mxu0 0.0
  %2000 = vmatprep.subr.mxu0 0.0
  %2001 = vmatpush1.msra.mxu0 0.0
  %2002 = vmatprep.subr.mxu0 0.0
  %2003 = vmatpush1.msra.mxu0 0.0
  %2004 = vmatprep.subr.mxu0 0.0
  %2005 = vmatpush1.msra.mxu0 0.0
  %2006 = vmatprep.subr.mxu0 0.0
  %2007 = vmatpush1.msra.mxu0 0.0
  %2008 = vmatprep.subr.mxu0 0.0
  %2009 = vmatpush1.msra.mxu0 0.0
  %2010 = vmatprep.subr.mxu0 0.0
  %2011 = vmatpush1.msra.mxu0 0.0
  %2012 = vmatprep.subr.mxu0 0.0
  %2013 = vmatpush1.msra.mxu0 0.0
  %2014 = vmatprep.mubr.f32.mxu0 0.0
  %2015 = vmatmul.mubr.f32.gmra.mrb[0].mxu0 %v1948
  %v2016 = vpop.f32.mrb[0].mxu0
  %v2017 = vadd.f32 0.0, %v2016
  %v2018 = vpop.f32.mrb[0].mxu0
  %v2019 = vadd.f32 0.0, %v2018
  %2020 = vdwg.mxu0
  %2021 = vmatprep.subr.mxu0 %v1938
  %2022 = vmatpush1.msra.mxu0 %v1937
  %2023 = vmatprep.subr.mxu0 0.0
  %2024 = vmatpush1.msra.mxu0 0.0
  %2025 = vmatprep.subr.mxu0 0.0
  %2026 = vmatpush1.msra.mxu0 0.0
  %2027 = vmatprep.subr.mxu0 0.0
  %2028 = vmatpush1.msra.mxu0 0.0
  %2029 = vmatprep.subr.mxu0 0.0
  %2030 = vmatpush1.msra.mxu0 0.0
  %2031 = vmatprep.subr.mxu0 0.0
  %2032 = vmatpush1.msra.mxu0 0.0
  %2033 = vmatprep.subr.mxu0 0.0
  %2034 = vmatpush1.msra.mxu0 0.0
  %2035 = vmatprep.subr.mxu0 0.0
  %2036 = vmatpush1.msra.mxu0 0.0
  %2037 = vmatprep.subr.mxu0 0.0
  %2038 = vmatpush1.msra.mxu0 0.0
  %2039 = vmatprep.subr.mxu0 0.0
  %2040 = vmatpush1.msra.mxu0 0.0
  %2041 = vmatprep.subr.mxu0 0.0
  %2042 = vmatpush1.msra.mxu0 0.0
  %2043 = vmatprep.subr.mxu0 0.0
  %2044 = vmatpush1.msra.mxu0 0.0
  %2045 = vmatprep.subr.mxu0 0.0
  %2046 = vmatpush1.msra.mxu0 0.0
  %2047 = vmatprep.subr.mxu0 0.0
  %2048 = vmatpush1.msra.mxu0 0.0
  %2049 = vmatprep.subr.mxu0 0.0
  %2050 = vmatpush1.msra.mxu0 0.0
  %2051 = vmatprep.subr.mxu0 0.0
  %2052 = vmatpush1.msra.mxu0 0.0
  %2053 = vmatprep.subr.mxu0 0.0
  %2054 = vmatpush1.msra.mxu0 0.0
  %2055 = vmatprep.subr.mxu0 0.0
  %2056 = vmatpush1.msra.mxu0 0.0
  %2057 = vmatprep.subr.mxu0 0.0
  %2058 = vmatpush1.msra.mxu0 0.0
  %2059 = vmatprep.subr.mxu0 0.0
  %2060 = vmatpush1.msra.mxu0 0.0
  %2061 = vmatprep.subr.mxu0 0.0
  %2062 = vmatpush1.msra.mxu0 0.0
  %2063 = vmatprep.subr.mxu0 0.0
  %2064 = vmatpush1.msra.mxu0 0.0
  %2065 = vmatprep.subr.mxu0 0.0
  %2066 = vmatpush1.msra.mxu0 0.0
  %2067 = vmatprep.subr.mxu0 0.0
  %2068 = vmatpush1.msra.mxu0 0.0
  %2069 = vmatprep.subr.mxu0 0.0
  %2070 = vmatpush1.msra.mxu0 0.0
  %2071 = vmatprep.subr.mxu0 0.0
  %2072 = vmatpush1.msra.mxu0 0.0
  %2073 = vmatprep.subr.mxu0 0.0
  %2074 = vmatpush1.msra.mxu0 0.0
  %2075 = vmatprep.subr.mxu0 0.0
  %2076 = vmatpush1.msra.mxu0 0.0
  %2077 = vmatprep.subr.mxu0 0.0
  %2078 = vmatpush1.msra.mxu0 0.0
  %2079 = vmatprep.subr.mxu0 0.0
  %2080 = vmatpush1.msra.mxu0 0.0
  %2081 = vmatprep.subr.mxu0 0.0
  %2082 = vmatpush1.msra.mxu0 0.0
  %2083 = vmatprep.subr.mxu0 0.0
  %2084 = vmatpush1.msra.mxu0 0.0
  %2085 = vmatprep.mubr.f32.mxu0 0.0
  %2086 = vmatmul.mubr.f32.gmra.mrb[0].mxu0 %v1948
  %v2087 = vpop.f32.mrb[0].mxu0
  %v2088 = vadd.f32 0.0, %v2087
  %v2089 = vpop.f32.mrb[0].mxu0
  %v2090 = vadd.f32 0.0, %v2089
  %2091 = vdwg.mxu0
  %2092 = vmatprep.subr.mxu0 %v1940
  %2093 = vmatpush1.msra.mxu0 %v1939
  %2094 = vmatprep.subr.mxu0 0.0
  %2095 = vmatpush1.msra.mxu0 0.0
  %2096 = vmatprep.subr.mxu0 0.0
  %2097 = vmatpush1.msra.mxu0 0.0
  %2098 = vmatprep.subr.mxu0 0.0
  %2099 = vmatpush1.msra.mxu0 0.0
  %2100 = vmatprep.subr.mxu0 0.0
  %2101 = vmatpush1.msra.mxu0 0.0
  %2102 = vmatprep.subr.mxu0 0.0
  %2103 = vmatpush1.msra.mxu0 0.0
  %2104 = vmatprep.subr.mxu0 0.0
  %2105 = vmatpush1.msra.mxu0 0.0
  %2106 = vmatprep.subr.mxu0 0.0
  %2107 = vmatpush1.msra.mxu0 0.0
  %2108 = vmatprep.subr.mxu0 0.0
  %2109 = vmatpush1.msra.mxu0 0.0
  %2110 = vmatprep.subr.mxu0 0.0
  %2111 = vmatpush1.msra.mxu0 0.0
  %2112 = vmatprep.subr.mxu0 0.0
  %2113 = vmatpush1.msra.mxu0 0.0
  %2114 = vmatprep.subr.mxu0 0.0
  %2115 = vmatpush1.msra.mxu0 0.0
  %2116 = vmatprep.subr.mxu0 0.0
  %2117 = vmatpush1.msra.mxu0 0.0
  %2118 = vmatprep.subr.mxu0 0.0
  %2119 = vmatpush1.msra.mxu0 0.0
  %2120 = vmatprep.subr.mxu0 0.0
  %2121 = vmatpush1.msra.mxu0 0.0
  %2122 = vmatprep.subr.mxu0 0.0
  %2123 = vmatpush1.msra.mxu0 0.0
  %2124 = vmatprep.subr.mxu0 0.0
  %2125 = vmatpush1.msra.mxu0 0.0
  %2126 = vmatprep.subr.mxu0 0.0
  %2127 = vmatpush1.msra.mxu0 0.0
  %2128 = vmatprep.subr.mxu0 0.0
  %2129 = vmatpush1.msra.mxu0 0.0
  %2130 = vmatprep.subr.mxu0 0.0
  %2131 = vmatpush1.msra.mxu0 0.0
  %2132 = vmatprep.subr.mxu0 0.0
  %2133 = vmatpush1.msra.mxu0 0.0
  %2134 = vmatprep.subr.mxu0 0.0
  %2135 = vmatpush1.msra.mxu0 0.0
  %2136 = vmatprep.subr.mxu0 0.0
  %2137 = vmatpush1.msra.mxu0 0.0
  %2138 = vmatprep.subr.mxu0 0.0
  %2139 = vmatpush1.msra.mxu0 0.0
  %2140 = vmatprep.subr.mxu0 0.0
  %2141 = vmatpush1.msra.mxu0 0.0
  %2142 = vmatprep.subr.mxu0 0.0
  %2143 = vmatpush1.msra.mxu0 0.0
  %2144 = vmatprep.subr.mxu0 0.0
  %2145 = vmatpush1.msra.mxu0 0.0
  %2146 = vmatprep.subr.mxu0 0.0
  %2147 = vmatpush1.msra.mxu0 0.0
  %2148 = vmatprep.subr.mxu0 0.0
  %2149 = vmatpush1.msra.mxu0 0.0
  %2150 = vmatprep.subr.mxu0 0.0
  %2151 = vmatpush1.msra.mxu0 0.0
  %2152 = vmatprep.subr.mxu0 0.0
  %2153 = vmatpush1.msra.mxu0 0.0
  %2154 = vmatprep.subr.mxu0 0.0
  %2155 = vmatpush1.msra.mxu0 0.0
  %2156 = vmatprep.mubr.f32.mxu0 0.0
  %2157 = vmatmul.mubr.f32.gmra.mrb[0].mxu0 %v1948
  %v2158 = vpop.f32.mrb[0].mxu0
  %v2159 = vadd.f32 0.0, %v2158
  %v2160 = vpop.f32.mrb[0].mxu0
  %v2161 = vadd.f32 0.0, %v2160
  %2162 = vdwg.mxu0
  %v2163 = vadd.f32 %v1912, %v2017
  %v2164 = vadd.f32 %v1913, %v2019
  %v2165 = vadd.f32 %v1914, %v2088
  %v2166 = vadd.f32 %v1915, %v2090
  %v2167 = vadd.f32 %v1916, %v2159
  %v2168 = vadd.f32 %v1917, %v2161
  %s2169 = scalar_lea.vmem %s4, 28
  %v2170 = vld [vmem:[%s2169] sm:$0xf]
  %2171 = vrot.lane.b32.xlu0 %v1653, 110
  %v2172 = vpop.permute.xlu0 %2171
  %2173 = vrot.lane.b32.xlu0 %v1654, 110
  %v2174 = vpop.permute.xlu0 %2173
  %2175 = vrot.lane.b32.xlu0 %v1655, 110
  %v2176 = vpop.permute.xlu0 %2175
  %2177 = vrot.lane.b32.xlu0 %v1656, 110
  %v2178 = vpop.permute.xlu0 %2177
  %2179 = vrot.lane.b32.xlu0 %v1657, 110
  %v2180 = vpop.permute.xlu0 %2179
  %2181 = vrot.lane.b32.xlu0 %v1658, 110
  %v2182 = vpop.permute.xlu0 %2181
  %2183 = vrot.lane.b32.xlu0 %v1659, 110
  %v2184 = vpop.permute.xlu0 %2183
  %vm2185 = vcmask 900096
  %v2186 = vsel %vm2185, %v2172, %v2174
  %v2187 = vsel %vm2185, %v2174, %v2176
  %v2188 = vsel %vm2185, %v2176, %v2178
  %v2189 = vsel %vm2185, %v2178, %v2180
  %v2190 = vsel %vm2185, %v2180, %v2182
  %v2191 = vsel %vm2185, %v2182, %v2184
  %v2199 = vsel %vm467, %v2170, 0
  %2201 = vmatprep.subr.mxu0 %v2187
  %2202 = vmatpush1.msra.mxu0 %v2186
  %2203 = vmatprep.subr.mxu0 0.0
  %2204 = vmatpush1.msra.mxu0 0.0
  %2205 = vmatprep.subr.mxu0 0.0
  %2206 = vmatpush1.msra.mxu0 0.0
  %2207 = vmatprep.subr.mxu0 0.0
  %2208 = vmatpush1.msra.mxu0 0.0
  %2209 = vmatprep.subr.mxu0 0.0
  %2210 = vmatpush1.msra.mxu0 0.0
  %2211 = vmatprep.subr.mxu0 0.0
  %2212 = vmatpush1.msra.mxu0 0.0
  %2213 = vmatprep.subr.mxu0 0.0
  %2214 = vmatpush1.msra.mxu0 0.0
  %2215 = vmatprep.subr.mxu0 0.0
  %2216 = vmatpush1.msra.mxu0 0.0
  %2217 = vmatprep.subr.mxu0 0.0
  %2218 = vmatpush1.msra.mxu0 0.0
  %2219 = vmatprep.subr.mxu0 0.0
  %2220 = vmatpush1.msra.mxu0 0.0
  %2221 = vmatprep.subr.mxu0 0.0
  %2222 = vmatpush1.msra.mxu0 0.0
  %2223 = vmatprep.subr.mxu0 0.0
  %2224 = vmatpush1.msra.mxu0 0.0
  %2225 = vmatprep.subr.mxu0 0.0
  %2226 = vmatpush1.msra.mxu0 0.0
  %2227 = vmatprep.subr.mxu0 0.0
  %2228 = vmatpush1.msra.mxu0 0.0
  %2229 = vmatprep.subr.mxu0 0.0
  %2230 = vmatpush1.msra.mxu0 0.0
  %2231 = vmatprep.subr.mxu0 0.0
  %2232 = vmatpush1.msra.mxu0 0.0
  %2233 = vmatprep.subr.mxu0 0.0
  %2234 = vmatpush1.msra.mxu0 0.0
  %2235 = vmatprep.subr.mxu0 0.0
  %2236 = vmatpush1.msra.mxu0 0.0
  %2237 = vmatprep.subr.mxu0 0.0
  %2238 = vmatpush1.msra.mxu0 0.0
  %2239 = vmatprep.subr.mxu0 0.0
  %2240 = vmatpush1.msra.mxu0 0.0
  %2241 = vmatprep.subr.mxu0 0.0
  %2242 = vmatpush1.msra.mxu0 0.0
  %2243 = vmatprep.subr.mxu0 0.0
  %2244 = vmatpush1.msra.mxu0 0.0
  %2245 = vmatprep.subr.mxu0 0.0
  %2246 = vmatpush1.msra.mxu0 0.0
  %2247 = vmatprep.subr.mxu0 0.0
  %2248 = vmatpush1.msra.mxu0 0.0
  %2249 = vmatprep.subr.mxu0 0.0
  %2250 = vmatpush1.msra.mxu0 0.0
  %2251 = vmatprep.subr.mxu0 0.0
  %2252 = vmatpush1.msra.mxu0 0.0
  %2253 = vmatprep.subr.mxu0 0.0
  %2254 = vmatpush1.msra.mxu0 0.0
  %2255 = vmatprep.subr.mxu0 0.0
  %2256 = vmatpush1.msra.mxu0 0.0
  %2257 = vmatprep.subr.mxu0 0.0
  %2258 = vmatpush1.msra.mxu0 0.0
  %2259 = vmatprep.subr.mxu0 0.0
  %2260 = vmatpush1.msra.mxu0 0.0
  %2261 = vmatprep.subr.mxu0 0.0
  %2262 = vmatpush1.msra.mxu0 0.0
  %2263 = vmatprep.subr.mxu0 0.0
  %2264 = vmatpush1.msra.mxu0 0.0
  %2265 = vmatprep.mubr.f32.mxu0 0.0
  %2266 = vmatmul.mubr.f32.gmra.mrb[0].mxu0 %v2199
  %v2267 = vpop.f32.mrb[0].mxu0
  %v2268 = vadd.f32 0.0, %v2267
  %v2269 = vpop.f32.mrb[0].mxu0
  %v2270 = vadd.f32 0.0, %v2269
  %2271 = vdwg.mxu0
  %2272 = vmatprep.subr.mxu0 %v2189
  %2273 = vmatpush1.msra.mxu0 %v2188
  %2274 = vmatprep.subr.mxu0 0.0
  %2275 = vmatpush1.msra.mxu0 0.0
  %2276 = vmatprep.subr.mxu0 0.0
  %2277 = vmatpush1.msra.mxu0 0.0
  %2278 = vmatprep.subr.mxu0 0.0
  %2279 = vmatpush1.msra.mxu0 0.0
  %2280 = vmatprep.subr.mxu0 0.0
  %2281 = vmatpush1.msra.mxu0 0.0
  %2282 = vmatprep.subr.mxu0 0.0
  %2283 = vmatpush1.msra.mxu0 0.0
  %2284 = vmatprep.subr.mxu0 0.0
  %2285 = vmatpush1.msra.mxu0 0.0
  %2286 = vmatprep.subr.mxu0 0.0
  %2287 = vmatpush1.msra.mxu0 0.0
  %2288 = vmatprep.subr.mxu0 0.0
  %2289 = vmatpush1.msra.mxu0 0.0
  %2290 = vmatprep.subr.mxu0 0.0
  %2291 = vmatpush1.msra.mxu0 0.0
  %2292 = vmatprep.subr.mxu0 0.0
  %2293 = vmatpush1.msra.mxu0 0.0
  %2294 = vmatprep.subr.mxu0 0.0
  %2295 = vmatpush1.msra.mxu0 0.0
  %2296 = vmatprep.subr.mxu0 0.0
  %2297 = vmatpush1.msra.mxu0 0.0
  %2298 = vmatprep.subr.mxu0 0.0
  %2299 = vmatpush1.msra.mxu0 0.0
  %2300 = vmatprep.subr.mxu0 0.0
  %2301 = vmatpush1.msra.mxu0 0.0
  %2302 = vmatprep.subr.mxu0 0.0
  %2303 = vmatpush1.msra.mxu0 0.0
  %2304 = vmatprep.subr.mxu0 0.0
  %2305 = vmatpush1.msra.mxu0 0.0
  %2306 = vmatprep.subr.mxu0 0.0
  %2307 = vmatpush1.msra.mxu0 0.0
  %2308 = vmatprep.subr.mxu0 0.0
  %2309 = vmatpush1.msra.mxu0 0.0
  %2310 = vmatprep.subr.mxu0 0.0
  %2311 = vmatpush1.msra.mxu0 0.0
  %2312 = vmatprep.subr.mxu0 0.0
  %2313 = vmatpush1.msra.mxu0 0.0
  %2314 = vmatprep.subr.mxu0 0.0
  %2315 = vmatpush1.msra.mxu0 0.0
  %2316 = vmatprep.subr.mxu0 0.0
  %2317 = vmatpush1.msra.mxu0 0.0
  %2318 = vmatprep.subr.mxu0 0.0
  %2319 = vmatpush1.msra.mxu0 0.0
  %2320 = vmatprep.subr.mxu0 0.0
  %2321 = vmatpush1.msra.mxu0 0.0
  %2322 = vmatprep.subr.mxu0 0.0
  %2323 = vmatpush1.msra.mxu0 0.0
  %2324 = vmatprep.subr.mxu0 0.0
  %2325 = vmatpush1.msra.mxu0 0.0
  %2326 = vmatprep.subr.mxu0 0.0
  %2327 = vmatpush1.msra.mxu0 0.0
  %2328 = vmatprep.subr.mxu0 0.0
  %2329 = vmatpush1.msra.mxu0 0.0
  %2330 = vmatprep.subr.mxu0 0.0
  %2331 = vmatpush1.msra.mxu0 0.0
  %2332 = vmatprep.subr.mxu0 0.0
  %2333 = vmatpush1.msra.mxu0 0.0
  %2334 = vmatprep.subr.mxu0 0.0
  %2335 = vmatpush1.msra.mxu0 0.0
  %2336 = vmatprep.mubr.f32.mxu0 0.0
  %2337 = vmatmul.mubr.f32.gmra.mrb[0].mxu0 %v2199
  %v2338 = vpop.f32.mrb[0].mxu0
  %v2339 = vadd.f32 0.0, %v2338
  %v2340 = vpop.f32.mrb[0].mxu0
  %v2341 = vadd.f32 0.0, %v2340
  %2342 = vdwg.mxu0
  %2343 = vmatprep.subr.mxu0 %v2191
  %2344 = vmatpush1.msra.mxu0 %v2190
  %2345 = vmatprep.subr.mxu0 0.0
  %2346 = vmatpush1.msra.mxu0 0.0
  %2347 = vmatprep.subr.mxu0 0.0
  %2348 = vmatpush1.msra.mxu0 0.0
  %2349 = vmatprep.subr.mxu0 0.0
  %2350 = vmatpush1.msra.mxu0 0.0
  %2351 = vmatprep.subr.mxu0 0.0
  %2352 = vmatpush1.msra.mxu0 0.0
  %2353 = vmatprep.subr.mxu0 0.0
  %2354 = vmatpush1.msra.mxu0 0.0
  %2355 = vmatprep.subr.mxu0 0.0
  %2356 = vmatpush1.msra.mxu0 0.0
  %2357 = vmatprep.subr.mxu0 0.0
  %2358 = vmatpush1.msra.mxu0 0.0
  %2359 = vmatprep.subr.mxu0 0.0
  %2360 = vmatpush1.msra.mxu0 0.0
  %2361 = vmatprep.subr.mxu0 0.0
  %2362 = vmatpush1.msra.mxu0 0.0
  %2363 = vmatprep.subr.mxu0 0.0
  %2364 = vmatpush1.msra.mxu0 0.0
  %2365 = vmatprep.subr.mxu0 0.0
  %2366 = vmatpush1.msra.mxu0 0.0
  %2367 = vmatprep.subr.mxu0 0.0
  %2368 = vmatpush1.msra.mxu0 0.0
  %2369 = vmatprep.subr.mxu0 0.0
  %2370 = vmatpush1.msra.mxu0 0.0
  %2371 = vmatprep.subr.mxu0 0.0
  %2372 = vmatpush1.msra.mxu0 0.0
  %2373 = vmatprep.subr.mxu0 0.0
  %2374 = vmatpush1.msra.mxu0 0.0
  %2375 = vmatprep.subr.mxu0 0.0
  %2376 = vmatpush1.msra.mxu0 0.0
  %2377 = vmatprep.subr.mxu0 0.0
  %2378 = vmatpush1.msra.mxu0 0.0
  %2379 = vmatprep.subr.mxu0 0.0
  %2380 = vmatpush1.msra.mxu0 0.0
  %2381 = vmatprep.subr.mxu0 0.0
  %2382 = vmatpush1.msra.mxu0 0.0
  %2383 = vmatprep.subr.mxu0 0.0
  %2384 = vmatpush1.msra.mxu0 0.0
  %2385 = vmatprep.subr.mxu0 0.0
  %2386 = vmatpush1.msra.mxu0 0.0
  %2387 = vmatprep.subr.mxu0 0.0
  %2388 = vmatpush1.msra.mxu0 0.0
  %2389 = vmatprep.subr.mxu0 0.0
  %2390 = vmatpush1.msra.mxu0 0.0
  %2391 = vmatprep.subr.mxu0 0.0
  %2392 = vmatpush1.msra.mxu0 0.0
  %2393 = vmatprep.subr.mxu0 0.0
  %2394 = vmatpush1.msra.mxu0 0.0
  %2395 = vmatprep.subr.mxu0 0.0
  %2396 = vmatpush1.msra.mxu0 0.0
  %2397 = vmatprep.subr.mxu0 0.0
  %2398 = vmatpush1.msra.mxu0 0.0
  %2399 = vmatprep.subr.mxu0 0.0
  %2400 = vmatpush1.msra.mxu0 0.0
  %2401 = vmatprep.subr.mxu0 0.0
  %2402 = vmatpush1.msra.mxu0 0.0
  %2403 = vmatprep.subr.mxu0 0.0
  %2404 = vmatpush1.msra.mxu0 0.0
  %2405 = vmatprep.subr.mxu0 0.0
  %2406 = vmatpush1.msra.mxu0 0.0
  %2407 = vmatprep.mubr.f32.mxu0 0.0
  %2408 = vmatmul.mubr.f32.gmra.mrb[0].mxu0 %v2199
  %v2409 = vpop.f32.mrb[0].mxu0
  %v2410 = vadd.f32 0.0, %v2409
  %v2411 = vpop.f32.mrb[0].mxu0
  %v2412 = vadd.f32 0.0, %v2411
  %2413 = vdwg.mxu0
  %v2414 = vadd.f32 %v2163, %v2268
  %v2415 = vadd.f32 %v2164, %v2270
  %v2416 = vadd.f32 %v2165, %v2339
  %v2417 = vadd.f32 %v2166, %v2341
  %v2418 = vadd.f32 %v2167, %v2410
  %v2419 = vadd.f32 %v2168, %v2412
  %s2420 = scalar_lea.vmem %s4, 32
  %v2421 = vld [vmem:[%s2420] sm:$0xf]
  %2422 = vrot.lane.b32.xlu0 %v1653, 109
  %v2423 = vpop.permute.xlu0 %2422
  %2424 = vrot.lane.b32.xlu0 %v1654, 109
  %v2425 = vpop.permute.xlu0 %2424
  %2426 = vrot.lane.b32.xlu0 %v1655, 109
  %v2427 = vpop.permute.xlu0 %2426
  %2428 = vrot.lane.b32.xlu0 %v1656, 109
  %v2429 = vpop.permute.xlu0 %2428
  %2430 = vrot.lane.b32.xlu0 %v1657, 109
  %v2431 = vpop.permute.xlu0 %2430
  %2432 = vrot.lane.b32.xlu0 %v1658, 109
  %v2433 = vpop.permute.xlu0 %2432
  %2434 = vrot.lane.b32.xlu0 %v1659, 109
  %v2435 = vpop.permute.xlu0 %2434
  %vm2436 = vcmask 891904
  %v2437 = vsel %vm2436, %v2423, %v2425
  %v2438 = vsel %vm2436, %v2425, %v2427
  %v2439 = vsel %vm2436, %v2427, %v2429
  %v2440 = vsel %vm2436, %v2429, %v2431
  %v2441 = vsel %vm2436, %v2431, %v2433
  %v2442 = vsel %vm2436, %v2433, %v2435
  %v2450 = vsel %vm467, %v2421, 0
  %2452 = vmatprep.subr.mxu0 %v2438
  %2453 = vmatpush1.msra.mxu0 %v2437
  %2454 = vmatprep.subr.mxu0 0.0
  %2455 = vmatpush1.msra.mxu0 0.0
  %2456 = vmatprep.subr.mxu0 0.0
  %2457 = vmatpush1.msra.mxu0 0.0
  %2458 = vmatprep.subr.mxu0 0.0
  %2459 = vmatpush1.msra.mxu0 0.0
  %2460 = vmatprep.subr.mxu0 0.0
  %2461 = vmatpush1.msra.mxu0 0.0
  %2462 = vmatprep.subr.mxu0 0.0
  %2463 = vmatpush1.msra.mxu0 0.0
  %2464 = vmatprep.subr.mxu0 0.0
  %2465 = vmatpush1.msra.mxu0 0.0
  %2466 = vmatprep.subr.mxu0 0.0
  %2467 = vmatpush1.msra.mxu0 0.0
  %2468 = vmatprep.subr.mxu0 0.0
  %2469 = vmatpush1.msra.mxu0 0.0
  %2470 = vmatprep.subr.mxu0 0.0
  %2471 = vmatpush1.msra.mxu0 0.0
  %2472 = vmatprep.subr.mxu0 0.0
  %2473 = vmatpush1.msra.mxu0 0.0
  %2474 = vmatprep.subr.mxu0 0.0
  %2475 = vmatpush1.msra.mxu0 0.0
  %2476 = vmatprep.subr.mxu0 0.0
  %2477 = vmatpush1.msra.mxu0 0.0
  %2478 = vmatprep.subr.mxu0 0.0
  %2479 = vmatpush1.msra.mxu0 0.0
  %2480 = vmatprep.subr.mxu0 0.0
  %2481 = vmatpush1.msra.mxu0 0.0
  %2482 = vmatprep.subr.mxu0 0.0
  %2483 = vmatpush1.msra.mxu0 0.0
  %2484 = vmatprep.subr.mxu0 0.0
  %2485 = vmatpush1.msra.mxu0 0.0
  %2486 = vmatprep.subr.mxu0 0.0
  %2487 = vmatpush1.msra.mxu0 0.0
  %2488 = vmatprep.subr.mxu0 0.0
  %2489 = vmatpush1.msra.mxu0 0.0
  %2490 = vmatprep.subr.mxu0 0.0
  %2491 = vmatpush1.msra.mxu0 0.0
  %2492 = vmatprep.subr.mxu0 0.0
  %2493 = vmatpush1.msra.mxu0 0.0
  %2494 = vmatprep.subr.mxu0 0.0
  %2495 = vmatpush1.msra.mxu0 0.0
  %2496 = vmatprep.subr.mxu0 0.0
  %2497 = vmatpush1.msra.mxu0 0.0
  %2498 = vmatprep.subr.mxu0 0.0
  %2499 = vmatpush1.msra.mxu0 0.0
  %2500 = vmatprep.subr.mxu0 0.0
  %2501 = vmatpush1.msra.mxu0 0.0
  %2502 = vmatprep.subr.mxu0 0.0
  %2503 = vmatpush1.msra.mxu0 0.0
  %2504 = vmatprep.subr.mxu0 0.0
  %2505 = vmatpush1.msra.mxu0 0.0
  %2506 = vmatprep.subr.mxu0 0.0
  %2507 = vmatpush1.msra.mxu0 0.0
  %2508 = vmatprep.subr.mxu0 0.0
  %2509 = vmatpush1.msra.mxu0 0.0
  %2510 = vmatprep.subr.mxu0 0.0
  %2511 = vmatpush1.msra.mxu0 0.0
  %2512 = vmatprep.subr.mxu0 0.0
  %2513 = vmatpush1.msra.mxu0 0.0
  %2514 = vmatprep.subr.mxu0 0.0
  %2515 = vmatpush1.msra.mxu0 0.0
  %2516 = vmatprep.mubr.f32.mxu0 0.0
  %2517 = vmatmul.mubr.f32.gmra.mrb[0].mxu0 %v2450
  %v2518 = vpop.f32.mrb[0].mxu0
  %v2519 = vadd.f32 0.0, %v2518
  %v2520 = vpop.f32.mrb[0].mxu0
  %v2521 = vadd.f32 0.0, %v2520
  %2522 = vdwg.mxu0
  %2523 = vmatprep.subr.mxu0 %v2440
  %2524 = vmatpush1.msra.mxu0 %v2439
  %2525 = vmatprep.subr.mxu0 0.0
  %2526 = vmatpush1.msra.mxu0 0.0
  %2527 = vmatprep.subr.mxu0 0.0
  %2528 = vmatpush1.msra.mxu0 0.0
  %2529 = vmatprep.subr.mxu0 0.0
  %2530 = vmatpush1.msra.mxu0 0.0
  %2531 = vmatprep.subr.mxu0 0.0
  %2532 = vmatpush1.msra.mxu0 0.0
  %2533 = vmatprep.subr.mxu0 0.0
  %2534 = vmatpush1.msra.mxu0 0.0
  %2535 = vmatprep.subr.mxu0 0.0
  %2536 = vmatpush1.msra.mxu0 0.0
  %2537 = vmatprep.subr.mxu0 0.0
  %2538 = vmatpush1.msra.mxu0 0.0
  %2539 = vmatprep.subr.mxu0 0.0
  %2540 = vmatpush1.msra.mxu0 0.0
  %2541 = vmatprep.subr.mxu0 0.0
  %2542 = vmatpush1.msra.mxu0 0.0
  %2543 = vmatprep.subr.mxu0 0.0
  %2544 = vmatpush1.msra.mxu0 0.0
  %2545 = vmatprep.subr.mxu0 0.0
  %2546 = vmatpush1.msra.mxu0 0.0
  %2547 = vmatprep.subr.mxu0 0.0
  %2548 = vmatpush1.msra.mxu0 0.0
  %2549 = vmatprep.subr.mxu0 0.0
  %2550 = vmatpush1.msra.mxu0 0.0
  %2551 = vmatprep.subr.mxu0 0.0
  %2552 = vmatpush1.msra.mxu0 0.0
  %2553 = vmatprep.subr.mxu0 0.0
  %2554 = vmatpush1.msra.mxu0 0.0
  %2555 = vmatprep.subr.mxu0 0.0
  %2556 = vmatpush1.msra.mxu0 0.0
  %2557 = vmatprep.subr.mxu0 0.0
  %2558 = vmatpush1.msra.mxu0 0.0
  %2559 = vmatprep.subr.mxu0 0.0
  %2560 = vmatpush1.msra.mxu0 0.0
  %2561 = vmatprep.subr.mxu0 0.0
  %2562 = vmatpush1.msra.mxu0 0.0
  %2563 = vmatprep.subr.mxu0 0.0
  %2564 = vmatpush1.msra.mxu0 0.0
  %2565 = vmatprep.subr.mxu0 0.0
  %2566 = vmatpush1.msra.mxu0 0.0
  %2567 = vmatprep.subr.mxu0 0.0
  %2568 = vmatpush1.msra.mxu0 0.0
  %2569 = vmatprep.subr.mxu0 0.0
  %2570 = vmatpush1.msra.mxu0 0.0
  %2571 = vmatprep.subr.mxu0 0.0
  %2572 = vmatpush1.msra.mxu0 0.0
  %2573 = vmatprep.subr.mxu0 0.0
  %2574 = vmatpush1.msra.mxu0 0.0
  %2575 = vmatprep.subr.mxu0 0.0
  %2576 = vmatpush1.msra.mxu0 0.0
  %2577 = vmatprep.subr.mxu0 0.0
  %2578 = vmatpush1.msra.mxu0 0.0
  %2579 = vmatprep.subr.mxu0 0.0
  %2580 = vmatpush1.msra.mxu0 0.0
  %2581 = vmatprep.subr.mxu0 0.0
  %2582 = vmatpush1.msra.mxu0 0.0
  %2583 = vmatprep.subr.mxu0 0.0
  %2584 = vmatpush1.msra.mxu0 0.0
  %2585 = vmatprep.subr.mxu0 0.0
  %2586 = vmatpush1.msra.mxu0 0.0
  %2587 = vmatprep.mubr.f32.mxu0 0.0
  %2588 = vmatmul.mubr.f32.gmra.mrb[0].mxu0 %v2450
  %v2589 = vpop.f32.mrb[0].mxu0
  %v2590 = vadd.f32 0.0, %v2589
  %v2591 = vpop.f32.mrb[0].mxu0
  %v2592 = vadd.f32 0.0, %v2591
  %2593 = vdwg.mxu0
  %2594 = vmatprep.subr.mxu0 %v2442
  %2595 = vmatpush1.msra.mxu0 %v2441
  %2596 = vmatprep.subr.mxu0 0.0
  %2597 = vmatpush1.msra.mxu0 0.0
  %2598 = vmatprep.subr.mxu0 0.0
  %2599 = vmatpush1.msra.mxu0 0.0
  %2600 = vmatprep.subr.mxu0 0.0
  %2601 = vmatpush1.msra.mxu0 0.0
  %2602 = vmatprep.subr.mxu0 0.0
  %2603 = vmatpush1.msra.mxu0 0.0
  %2604 = vmatprep.subr.mxu0 0.0
  %2605 = vmatpush1.msra.mxu0 0.0
  %2606 = vmatprep.subr.mxu0 0.0
  %2607 = vmatpush1.msra.mxu0 0.0
  %2608 = vmatprep.subr.mxu0 0.0
  %2609 = vmatpush1.msra.mxu0 0.0
  %2610 = vmatprep.subr.mxu0 0.0
  %2611 = vmatpush1.msra.mxu0 0.0
  %2612 = vmatprep.subr.mxu0 0.0
  %2613 = vmatpush1.msra.mxu0 0.0
  %2614 = vmatprep.subr.mxu0 0.0
  %2615 = vmatpush1.msra.mxu0 0.0
  %2616 = vmatprep.subr.mxu0 0.0
  %2617 = vmatpush1.msra.mxu0 0.0
  %2618 = vmatprep.subr.mxu0 0.0
  %2619 = vmatpush1.msra.mxu0 0.0
  %2620 = vmatprep.subr.mxu0 0.0
  %2621 = vmatpush1.msra.mxu0 0.0
  %2622 = vmatprep.subr.mxu0 0.0
  %2623 = vmatpush1.msra.mxu0 0.0
  %2624 = vmatprep.subr.mxu0 0.0
  %2625 = vmatpush1.msra.mxu0 0.0
  %2626 = vmatprep.subr.mxu0 0.0
  %2627 = vmatpush1.msra.mxu0 0.0
  %2628 = vmatprep.subr.mxu0 0.0
  %2629 = vmatpush1.msra.mxu0 0.0
  %2630 = vmatprep.subr.mxu0 0.0
  %2631 = vmatpush1.msra.mxu0 0.0
  %2632 = vmatprep.subr.mxu0 0.0
  %2633 = vmatpush1.msra.mxu0 0.0
  %2634 = vmatprep.subr.mxu0 0.0
  %2635 = vmatpush1.msra.mxu0 0.0
  %2636 = vmatprep.subr.mxu0 0.0
  %2637 = vmatpush1.msra.mxu0 0.0
  %2638 = vmatprep.subr.mxu0 0.0
  %2639 = vmatpush1.msra.mxu0 0.0
  %2640 = vmatprep.subr.mxu0 0.0
  %2641 = vmatpush1.msra.mxu0 0.0
  %2642 = vmatprep.subr.mxu0 0.0
  %2643 = vmatpush1.msra.mxu0 0.0
  %2644 = vmatprep.subr.mxu0 0.0
  %2645 = vmatpush1.msra.mxu0 0.0
  %2646 = vmatprep.subr.mxu0 0.0
  %2647 = vmatpush1.msra.mxu0 0.0
  %2648 = vmatprep.subr.mxu0 0.0
  %2649 = vmatpush1.msra.mxu0 0.0
  %2650 = vmatprep.subr.mxu0 0.0
  %2651 = vmatpush1.msra.mxu0 0.0
  %2652 = vmatprep.subr.mxu0 0.0
  %2653 = vmatpush1.msra.mxu0 0.0
  %2654 = vmatprep.subr.mxu0 0.0
  %2655 = vmatpush1.msra.mxu0 0.0
  %2656 = vmatprep.subr.mxu0 0.0
  %2657 = vmatpush1.msra.mxu0 0.0
  %2658 = vmatprep.mubr.f32.mxu0 0.0
  %2659 = vmatmul.mubr.f32.gmra.mrb[0].mxu0 %v2450
  %v2660 = vpop.f32.mrb[0].mxu0
  %v2661 = vadd.f32 0.0, %v2660
  %v2662 = vpop.f32.mrb[0].mxu0
  %v2663 = vadd.f32 0.0, %v2662
  %2664 = vdwg.mxu0
  %v2665 = vadd.f32 %v2414, %v2519
  %v2666 = vadd.f32 %v2415, %v2521
  %v2667 = vadd.f32 %v2416, %v2590
  %v2668 = vadd.f32 %v2417, %v2592
  %v2669 = vadd.f32 %v2418, %v2661
  %v2670 = vadd.f32 %v2419, %v2663
  %v2671 = vld [vmem:[%s5] sm:$0xf]
  %2673 = vset.pattern.permute.xlu0 0
  %2674 = vperm.xlu0 %2673, %v2671
  %v2675 = vpop.permute.xlu0 %2674
  %v2677 = vadd.f32 %v2665, %v2675
  %v2678 = vadd.f32 %v2666, %v2675
  %v2679 = vadd.f32 %v2667, %v2675
  %v2680 = vadd.f32 %v2668, %v2675
  %v2681 = vadd.f32 %v2669, %v2675
  %v2682 = vadd.f32 %v2670, %v2675
  %v2684 = vlaneseq
  %v2685 = vshrl.u32 %v2684, 7
  %v2686 = vsub.s32 0, %v2685
  %v2687 = vrot.slane %v52, %v2686
  %v2688 = vlaneseq
  %v2689 = vshrl.u32 %v2688, 7
  %v2690 = vsub.s32 1, %v2689
  %v2691 = vrot.slane %v52, %v2690
  %v2692 = vlaneseq
  %v2693 = vshrl.u32 %v2692, 7
  %v2694 = vsub.s32 2, %v2693
  %v2695 = vrot.slane %v52, %v2694
  %v2696 = vlaneseq
  %v2697 = vshrl.u32 %v2696, 7
  %v2698 = vsub.s32 3, %v2697
  %v2699 = vrot.slane %v52, %v2698
  %v2700 = vlaneseq
  %v2701 = vshrl.u32 %v2700, 7
  %v2702 = vsub.s32 4, %v2701
  %v2703 = vrot.slane %v52, %v2702
  %v2704 = vlaneseq
  %v2705 = vshrl.u32 %v2704, 7
  %v2706 = vsub.s32 5, %v2705
  %v2707 = vrot.slane %v52, %v2706
  %v2714 = vmul.f32 %v2677, %v2687
  %v2715 = vmul.f32 %v2678, %v2691
  %v2716 = vmul.f32 %v2679, %v2695
  %v2717 = vmul.f32 %v2680, %v2699
  %v2718 = vmul.f32 %v2681, %v2703
  %v2719 = vmul.f32 %v2682, %v2707
  %v2720 = vld [vmem:[%s1] sm:$0xff]
  %v2721 = vld [vmem:[%s1 + $0x8] sm:$0xff]
  %v2722 = vld [vmem:[%s1 + $0x10] sm:$0xff]
  %v2723 = vld [vmem:[%s6] sm:$0xf]
  %v2724 = vld [vmem:[%s7] sm:$0xf]
  %v2728 = vcombine.high %v2720, %v2720
  %v2729 = vcombine.high %v2721, %v2721
  %v2730 = vcombine.high %v2722, %v2722
  %vm2731 = vcmask 31744
  %v2733 = vsel %vm2731, %v2724, 0
  %vm2735 = vcmask 1043456
  %v2736 = vsel %vm2735, %v2720, 0
  %v2738 = vsel %vm2735, %v2728, 0
  %v2740 = vsel %vm2735, %v2721, 0
  %v2742 = vsel %vm2735, %v2729, 0
  %v2744 = vsel %vm2735, %v2722, 0
  %v2746 = vsel %vm2735, %v2730, 0
  %2748 = vmatprep.subr.mxu0 %v2738
  %2749 = vmatpush1.msra.mxu0 %v2736
  %2750 = vmatprep.subr.mxu0 0.0
  %2751 = vmatpush1.msra.mxu0 0.0
  %2752 = vmatprep.subr.mxu0 0.0
  %2753 = vmatpush1.msra.mxu0 0.0
  %2754 = vmatprep.subr.mxu0 0.0
  %2755 = vmatpush1.msra.mxu0 0.0
  %2756 = vmatprep.subr.mxu0 0.0
  %2757 = vmatpush1.msra.mxu0 0.0
  %2758 = vmatprep.subr.mxu0 0.0
  %2759 = vmatpush1.msra.mxu0 0.0
  %2760 = vmatprep.subr.mxu0 0.0
  %2761 = vmatpush1.msra.mxu0 0.0
  %2762 = vmatprep.subr.mxu0 0.0
  %2763 = vmatpush1.msra.mxu0 0.0
  %2764 = vmatprep.subr.mxu0 0.0
  %2765 = vmatpush1.msra.mxu0 0.0
  %2766 = vmatprep.subr.mxu0 0.0
  %2767 = vmatpush1.msra.mxu0 0.0
  %2768 = vmatprep.subr.mxu0 0.0
  %2769 = vmatpush1.msra.mxu0 0.0
  %2770 = vmatprep.subr.mxu0 0.0
  %2771 = vmatpush1.msra.mxu0 0.0
  %2772 = vmatprep.subr.mxu0 0.0
  %2773 = vmatpush1.msra.mxu0 0.0
  %2774 = vmatprep.subr.mxu0 0.0
  %2775 = vmatpush1.msra.mxu0 0.0
  %2776 = vmatprep.subr.mxu0 0.0
  %2777 = vmatpush1.msra.mxu0 0.0
  %2778 = vmatprep.subr.mxu0 0.0
  %2779 = vmatpush1.msra.mxu0 0.0
  %2780 = vmatprep.subr.mxu0 0.0
  %2781 = vmatpush1.msra.mxu0 0.0
  %2782 = vmatprep.subr.mxu0 0.0
  %2783 = vmatpush1.msra.mxu0 0.0
  %2784 = vmatprep.subr.mxu0 0.0
  %2785 = vmatpush1.msra.mxu0 0.0
  %2786 = vmatprep.subr.mxu0 0.0
  %2787 = vmatpush1.msra.mxu0 0.0
  %2788 = vmatprep.subr.mxu0 0.0
  %2789 = vmatpush1.msra.mxu0 0.0
  %2790 = vmatprep.subr.mxu0 0.0
  %2791 = vmatpush1.msra.mxu0 0.0
  %2792 = vmatprep.subr.mxu0 0.0
  %2793 = vmatpush1.msra.mxu0 0.0
  %2794 = vmatprep.subr.mxu0 0.0
  %2795 = vmatpush1.msra.mxu0 0.0
  %2796 = vmatprep.subr.mxu0 0.0
  %2797 = vmatpush1.msra.mxu0 0.0
  %2798 = vmatprep.subr.mxu0 0.0
  %2799 = vmatpush1.msra.mxu0 0.0
  %2800 = vmatprep.subr.mxu0 0.0
  %2801 = vmatpush1.msra.mxu0 0.0
  %2802 = vmatprep.subr.mxu0 0.0
  %2803 = vmatpush1.msra.mxu0 0.0
  %2804 = vmatprep.subr.mxu0 0.0
  %2805 = vmatpush1.msra.mxu0 0.0
  %2806 = vmatprep.subr.mxu0 0.0
  %2807 = vmatpush1.msra.mxu0 0.0
  %2808 = vmatprep.subr.mxu0 0.0
  %2809 = vmatpush1.msra.mxu0 0.0
  %2810 = vmatprep.subr.mxu0 0.0
  %2811 = vmatpush1.msra.mxu0 0.0
  %2812 = vmatprep.mubr.f32.mxu0 0.0
  %2813 = vmatmul.mubr.f32.gmra.mrb[0].mxu0 %v2733
  %v2814 = vpop.f32.mrb[0].mxu0
  %v2815 = vadd.f32 0.0, %v2814
  %v2816 = vpop.f32.mrb[0].mxu0
  %v2817 = vadd.f32 0.0, %v2816
  %2818 = vdwg.mxu0
  %2819 = vmatprep.subr.mxu0 %v2742
  %2820 = vmatpush1.msra.mxu0 %v2740
  %2821 = vmatprep.subr.mxu0 0.0
  %2822 = vmatpush1.msra.mxu0 0.0
  %2823 = vmatprep.subr.mxu0 0.0
  %2824 = vmatpush1.msra.mxu0 0.0
  %2825 = vmatprep.subr.mxu0 0.0
  %2826 = vmatpush1.msra.mxu0 0.0
  %2827 = vmatprep.subr.mxu0 0.0
  %2828 = vmatpush1.msra.mxu0 0.0
  %2829 = vmatprep.subr.mxu0 0.0
  %2830 = vmatpush1.msra.mxu0 0.0
  %2831 = vmatprep.subr.mxu0 0.0
  %2832 = vmatpush1.msra.mxu0 0.0
  %2833 = vmatprep.subr.mxu0 0.0
  %2834 = vmatpush1.msra.mxu0 0.0
  %2835 = vmatprep.subr.mxu0 0.0
  %2836 = vmatpush1.msra.mxu0 0.0
  %2837 = vmatprep.subr.mxu0 0.0
  %2838 = vmatpush1.msra.mxu0 0.0
  %2839 = vmatprep.subr.mxu0 0.0
  %2840 = vmatpush1.msra.mxu0 0.0
  %2841 = vmatprep.subr.mxu0 0.0
  %2842 = vmatpush1.msra.mxu0 0.0
  %2843 = vmatprep.subr.mxu0 0.0
  %2844 = vmatpush1.msra.mxu0 0.0
  %2845 = vmatprep.subr.mxu0 0.0
  %2846 = vmatpush1.msra.mxu0 0.0
  %2847 = vmatprep.subr.mxu0 0.0
  %2848 = vmatpush1.msra.mxu0 0.0
  %2849 = vmatprep.subr.mxu0 0.0
  %2850 = vmatpush1.msra.mxu0 0.0
  %2851 = vmatprep.subr.mxu0 0.0
  %2852 = vmatpush1.msra.mxu0 0.0
  %2853 = vmatprep.subr.mxu0 0.0
  %2854 = vmatpush1.msra.mxu0 0.0
  %2855 = vmatprep.subr.mxu0 0.0
  %2856 = vmatpush1.msra.mxu0 0.0
  %2857 = vmatprep.subr.mxu0 0.0
  %2858 = vmatpush1.msra.mxu0 0.0
  %2859 = vmatprep.subr.mxu0 0.0
  %2860 = vmatpush1.msra.mxu0 0.0
  %2861 = vmatprep.subr.mxu0 0.0
  %2862 = vmatpush1.msra.mxu0 0.0
  %2863 = vmatprep.subr.mxu0 0.0
  %2864 = vmatpush1.msra.mxu0 0.0
  %2865 = vmatprep.subr.mxu0 0.0
  %2866 = vmatpush1.msra.mxu0 0.0
  %2867 = vmatprep.subr.mxu0 0.0
  %2868 = vmatpush1.msra.mxu0 0.0
  %2869 = vmatprep.subr.mxu0 0.0
  %2870 = vmatpush1.msra.mxu0 0.0
  %2871 = vmatprep.subr.mxu0 0.0
  %2872 = vmatpush1.msra.mxu0 0.0
  %2873 = vmatprep.subr.mxu0 0.0
  %2874 = vmatpush1.msra.mxu0 0.0
  %2875 = vmatprep.subr.mxu0 0.0
  %2876 = vmatpush1.msra.mxu0 0.0
  %2877 = vmatprep.subr.mxu0 0.0
  %2878 = vmatpush1.msra.mxu0 0.0
  %2879 = vmatprep.subr.mxu0 0.0
  %2880 = vmatpush1.msra.mxu0 0.0
  %2881 = vmatprep.subr.mxu0 0.0
  %2882 = vmatpush1.msra.mxu0 0.0
  %2883 = vmatprep.mubr.f32.mxu0 0.0
  %2884 = vmatmul.mubr.f32.gmra.mrb[0].mxu0 %v2733
  %v2885 = vpop.f32.mrb[0].mxu0
  %v2886 = vadd.f32 0.0, %v2885
  %v2887 = vpop.f32.mrb[0].mxu0
  %v2888 = vadd.f32 0.0, %v2887
  %2889 = vdwg.mxu0
  %2890 = vmatprep.subr.mxu0 %v2746
  %2891 = vmatpush1.msra.mxu0 %v2744
  %2892 = vmatprep.subr.mxu0 0.0
  %2893 = vmatpush1.msra.mxu0 0.0
  %2894 = vmatprep.subr.mxu0 0.0
  %2895 = vmatpush1.msra.mxu0 0.0
  %2896 = vmatprep.subr.mxu0 0.0
  %2897 = vmatpush1.msra.mxu0 0.0
  %2898 = vmatprep.subr.mxu0 0.0
  %2899 = vmatpush1.msra.mxu0 0.0
  %2900 = vmatprep.subr.mxu0 0.0
  %2901 = vmatpush1.msra.mxu0 0.0
  %2902 = vmatprep.subr.mxu0 0.0
  %2903 = vmatpush1.msra.mxu0 0.0
  %2904 = vmatprep.subr.mxu0 0.0
  %2905 = vmatpush1.msra.mxu0 0.0
  %2906 = vmatprep.subr.mxu0 0.0
  %2907 = vmatpush1.msra.mxu0 0.0
  %2908 = vmatprep.subr.mxu0 0.0
  %2909 = vmatpush1.msra.mxu0 0.0
  %2910 = vmatprep.subr.mxu0 0.0
  %2911 = vmatpush1.msra.mxu0 0.0
  %2912 = vmatprep.subr.mxu0 0.0
  %2913 = vmatpush1.msra.mxu0 0.0
  %2914 = vmatprep.subr.mxu0 0.0
  %2915 = vmatpush1.msra.mxu0 0.0
  %2916 = vmatprep.subr.mxu0 0.0
  %2917 = vmatpush1.msra.mxu0 0.0
  %2918 = vmatprep.subr.mxu0 0.0
  %2919 = vmatpush1.msra.mxu0 0.0
  %2920 = vmatprep.subr.mxu0 0.0
  %2921 = vmatpush1.msra.mxu0 0.0
  %2922 = vmatprep.subr.mxu0 0.0
  %2923 = vmatpush1.msra.mxu0 0.0
  %2924 = vmatprep.subr.mxu0 0.0
  %2925 = vmatpush1.msra.mxu0 0.0
  %2926 = vmatprep.subr.mxu0 0.0
  %2927 = vmatpush1.msra.mxu0 0.0
  %2928 = vmatprep.subr.mxu0 0.0
  %2929 = vmatpush1.msra.mxu0 0.0
  %2930 = vmatprep.subr.mxu0 0.0
  %2931 = vmatpush1.msra.mxu0 0.0
  %2932 = vmatprep.subr.mxu0 0.0
  %2933 = vmatpush1.msra.mxu0 0.0
  %2934 = vmatprep.subr.mxu0 0.0
  %2935 = vmatpush1.msra.mxu0 0.0
  %2936 = vmatprep.subr.mxu0 0.0
  %2937 = vmatpush1.msra.mxu0 0.0
  %2938 = vmatprep.subr.mxu0 0.0
  %2939 = vmatpush1.msra.mxu0 0.0
  %2940 = vmatprep.subr.mxu0 0.0
  %2941 = vmatpush1.msra.mxu0 0.0
  %2942 = vmatprep.subr.mxu0 0.0
  %2943 = vmatpush1.msra.mxu0 0.0
  %2944 = vmatprep.subr.mxu0 0.0
  %2945 = vmatpush1.msra.mxu0 0.0
  %2946 = vmatprep.subr.mxu0 0.0
  %2947 = vmatpush1.msra.mxu0 0.0
  %2948 = vmatprep.subr.mxu0 0.0
  %2949 = vmatpush1.msra.mxu0 0.0
  %2950 = vmatprep.subr.mxu0 0.0
  %2951 = vmatpush1.msra.mxu0 0.0
  %2952 = vmatprep.subr.mxu0 0.0
  %2953 = vmatpush1.msra.mxu0 0.0
  %2954 = vmatprep.mubr.f32.mxu0 0.0
  %2955 = vmatmul.mubr.f32.gmra.mrb[0].mxu0 %v2733
  %v2956 = vpop.f32.mrb[0].mxu0
  %v2957 = vadd.f32 0.0, %v2956
  %v2958 = vpop.f32.mrb[0].mxu0
  %v2959 = vadd.f32 0.0, %v2958
  %2960 = vdwg.mxu0
  %v2962 = vsel %vm2731, %v2723, 0
  %v2965 = vsel %vm2735, %v2714, 0
  %v2968 = vsel %vm2735, %v2715, 0
  %v2971 = vsel %vm2735, %v2716, 0
  %v2974 = vsel %vm2735, %v2717, 0
  %v2977 = vsel %vm2735, %v2718, 0
  %v2980 = vsel %vm2735, %v2719, 0
  %2982 = vmatprep.subr.mxu0 %v2968
  %2983 = vmatpush1.msra.mxu0 %v2965
  %2984 = vmatprep.subr.mxu0 0.0
  %2985 = vmatpush1.msra.mxu0 0.0
  %2986 = vmatprep.subr.mxu0 0.0
  %2987 = vmatpush1.msra.mxu0 0.0
  %2988 = vmatprep.subr.mxu0 0.0
  %2989 = vmatpush1.msra.mxu0 0.0
  %2990 = vmatprep.subr.mxu0 0.0
  %2991 = vmatpush1.msra.mxu0 0.0
  %2992 = vmatprep.subr.mxu0 0.0
  %2993 = vmatpush1.msra.mxu0 0.0
  %2994 = vmatprep.subr.mxu0 0.0
  %2995 = vmatpush1.msra.mxu0 0.0
  %2996 = vmatprep.subr.mxu0 0.0
  %2997 = vmatpush1.msra.mxu0 0.0
  %2998 = vmatprep.subr.mxu0 0.0
  %2999 = vmatpush1.msra.mxu0 0.0
  %3000 = vmatprep.subr.mxu0 0.0
  %3001 = vmatpush1.msra.mxu0 0.0
  %3002 = vmatprep.subr.mxu0 0.0
  %3003 = vmatpush1.msra.mxu0 0.0
  %3004 = vmatprep.subr.mxu0 0.0
  %3005 = vmatpush1.msra.mxu0 0.0
  %3006 = vmatprep.subr.mxu0 0.0
  %3007 = vmatpush1.msra.mxu0 0.0
  %3008 = vmatprep.subr.mxu0 0.0
  %3009 = vmatpush1.msra.mxu0 0.0
  %3010 = vmatprep.subr.mxu0 0.0
  %3011 = vmatpush1.msra.mxu0 0.0
  %3012 = vmatprep.subr.mxu0 0.0
  %3013 = vmatpush1.msra.mxu0 0.0
  %3014 = vmatprep.subr.mxu0 0.0
  %3015 = vmatpush1.msra.mxu0 0.0
  %3016 = vmatprep.subr.mxu0 0.0
  %3017 = vmatpush1.msra.mxu0 0.0
  %3018 = vmatprep.subr.mxu0 0.0
  %3019 = vmatpush1.msra.mxu0 0.0
  %3020 = vmatprep.subr.mxu0 0.0
  %3021 = vmatpush1.msra.mxu0 0.0
  %3022 = vmatprep.subr.mxu0 0.0
  %3023 = vmatpush1.msra.mxu0 0.0
  %3024 = vmatprep.subr.mxu0 0.0
  %3025 = vmatpush1.msra.mxu0 0.0
  %3026 = vmatprep.subr.mxu0 0.0
  %3027 = vmatpush1.msra.mxu0 0.0
  %3028 = vmatprep.subr.mxu0 0.0
  %3029 = vmatpush1.msra.mxu0 0.0
  %3030 = vmatprep.subr.mxu0 0.0
  %3031 = vmatpush1.msra.mxu0 0.0
  %3032 = vmatprep.subr.mxu0 0.0
  %3033 = vmatpush1.msra.mxu0 0.0
  %3034 = vmatprep.subr.mxu0 0.0
  %3035 = vmatpush1.msra.mxu0 0.0
  %3036 = vmatprep.subr.mxu0 0.0
  %3037 = vmatpush1.msra.mxu0 0.0
  %3038 = vmatprep.subr.mxu0 0.0
  %3039 = vmatpush1.msra.mxu0 0.0
  %3040 = vmatprep.subr.mxu0 0.0
  %3041 = vmatpush1.msra.mxu0 0.0
  %3042 = vmatprep.subr.mxu0 0.0
  %3043 = vmatpush1.msra.mxu0 0.0
  %3044 = vmatprep.subr.mxu0 0.0
  %3045 = vmatpush1.msra.mxu0 0.0
  %3046 = vmatprep.mubr.f32.mxu0 0.0
  %3047 = vmatmul.mubr.f32.gmra.mrb[0].mxu0 %v2962
  %v3048 = vpop.f32.mrb[0].mxu0
  %v3049 = vadd.f32 %v2815, %v3048
  %v3050 = vpop.f32.mrb[0].mxu0
  %v3051 = vadd.f32 %v2817, %v3050
  %3052 = vdwg.mxu0
  %3053 = vmatprep.subr.mxu0 %v2974
  %3054 = vmatpush1.msra.mxu0 %v2971
  %3055 = vmatprep.subr.mxu0 0.0
  %3056 = vmatpush1.msra.mxu0 0.0
  %3057 = vmatprep.subr.mxu0 0.0
  %3058 = vmatpush1.msra.mxu0 0.0
  %3059 = vmatprep.subr.mxu0 0.0
  %3060 = vmatpush1.msra.mxu0 0.0
  %3061 = vmatprep.subr.mxu0 0.0
  %3062 = vmatpush1.msra.mxu0 0.0
  %3063 = vmatprep.subr.mxu0 0.0
  %3064 = vmatpush1.msra.mxu0 0.0
  %3065 = vmatprep.subr.mxu0 0.0
  %3066 = vmatpush1.msra.mxu0 0.0
  %3067 = vmatprep.subr.mxu0 0.0
  %3068 = vmatpush1.msra.mxu0 0.0
  %3069 = vmatprep.subr.mxu0 0.0
  %3070 = vmatpush1.msra.mxu0 0.0
  %3071 = vmatprep.subr.mxu0 0.0
  %3072 = vmatpush1.msra.mxu0 0.0
  %3073 = vmatprep.subr.mxu0 0.0
  %3074 = vmatpush1.msra.mxu0 0.0
  %3075 = vmatprep.subr.mxu0 0.0
  %3076 = vmatpush1.msra.mxu0 0.0
  %3077 = vmatprep.subr.mxu0 0.0
  %3078 = vmatpush1.msra.mxu0 0.0
  %3079 = vmatprep.subr.mxu0 0.0
  %3080 = vmatpush1.msra.mxu0 0.0
  %3081 = vmatprep.subr.mxu0 0.0
  %3082 = vmatpush1.msra.mxu0 0.0
  %3083 = vmatprep.subr.mxu0 0.0
  %3084 = vmatpush1.msra.mxu0 0.0
  %3085 = vmatprep.subr.mxu0 0.0
  %3086 = vmatpush1.msra.mxu0 0.0
  %3087 = vmatprep.subr.mxu0 0.0
  %3088 = vmatpush1.msra.mxu0 0.0
  %3089 = vmatprep.subr.mxu0 0.0
  %3090 = vmatpush1.msra.mxu0 0.0
  %3091 = vmatprep.subr.mxu0 0.0
  %3092 = vmatpush1.msra.mxu0 0.0
  %3093 = vmatprep.subr.mxu0 0.0
  %3094 = vmatpush1.msra.mxu0 0.0
  %3095 = vmatprep.subr.mxu0 0.0
  %3096 = vmatpush1.msra.mxu0 0.0
  %3097 = vmatprep.subr.mxu0 0.0
  %3098 = vmatpush1.msra.mxu0 0.0
  %3099 = vmatprep.subr.mxu0 0.0
  %3100 = vmatpush1.msra.mxu0 0.0
  %3101 = vmatprep.subr.mxu0 0.0
  %3102 = vmatpush1.msra.mxu0 0.0
  %3103 = vmatprep.subr.mxu0 0.0
  %3104 = vmatpush1.msra.mxu0 0.0
  %3105 = vmatprep.subr.mxu0 0.0
  %3106 = vmatpush1.msra.mxu0 0.0
  %3107 = vmatprep.subr.mxu0 0.0
  %3108 = vmatpush1.msra.mxu0 0.0
  %3109 = vmatprep.subr.mxu0 0.0
  %3110 = vmatpush1.msra.mxu0 0.0
  %3111 = vmatprep.subr.mxu0 0.0
  %3112 = vmatpush1.msra.mxu0 0.0
  %3113 = vmatprep.subr.mxu0 0.0
  %3114 = vmatpush1.msra.mxu0 0.0
  %3115 = vmatprep.subr.mxu0 0.0
  %3116 = vmatpush1.msra.mxu0 0.0
  %3117 = vmatprep.mubr.f32.mxu0 0.0
  %3118 = vmatmul.mubr.f32.gmra.mrb[0].mxu0 %v2962
  %v3119 = vpop.f32.mrb[0].mxu0
  %v3120 = vadd.f32 %v2886, %v3119
  %v3121 = vpop.f32.mrb[0].mxu0
  %v3122 = vadd.f32 %v2888, %v3121
  %3123 = vdwg.mxu0
  %3124 = vmatprep.subr.mxu0 %v2980
  %3125 = vmatpush1.msra.mxu0 %v2977
  %3126 = vmatprep.subr.mxu0 0.0
  %3127 = vmatpush1.msra.mxu0 0.0
  %3128 = vmatprep.subr.mxu0 0.0
  %3129 = vmatpush1.msra.mxu0 0.0
  %3130 = vmatprep.subr.mxu0 0.0
  %3131 = vmatpush1.msra.mxu0 0.0
  %3132 = vmatprep.subr.mxu0 0.0
  %3133 = vmatpush1.msra.mxu0 0.0
  %3134 = vmatprep.subr.mxu0 0.0
  %3135 = vmatpush1.msra.mxu0 0.0
  %3136 = vmatprep.subr.mxu0 0.0
  %3137 = vmatpush1.msra.mxu0 0.0
  %3138 = vmatprep.subr.mxu0 0.0
  %3139 = vmatpush1.msra.mxu0 0.0
  %3140 = vmatprep.subr.mxu0 0.0
  %3141 = vmatpush1.msra.mxu0 0.0
  %3142 = vmatprep.subr.mxu0 0.0
  %3143 = vmatpush1.msra.mxu0 0.0
  %3144 = vmatprep.subr.mxu0 0.0
  %3145 = vmatpush1.msra.mxu0 0.0
  %3146 = vmatprep.subr.mxu0 0.0
  %3147 = vmatpush1.msra.mxu0 0.0
  %3148 = vmatprep.subr.mxu0 0.0
  %3149 = vmatpush1.msra.mxu0 0.0
  %3150 = vmatprep.subr.mxu0 0.0
  %3151 = vmatpush1.msra.mxu0 0.0
  %3152 = vmatprep.subr.mxu0 0.0
  %3153 = vmatpush1.msra.mxu0 0.0
  %3154 = vmatprep.subr.mxu0 0.0
  %3155 = vmatpush1.msra.mxu0 0.0
  %3156 = vmatprep.subr.mxu0 0.0
  %3157 = vmatpush1.msra.mxu0 0.0
  %3158 = vmatprep.subr.mxu0 0.0
  %3159 = vmatpush1.msra.mxu0 0.0
  %3160 = vmatprep.subr.mxu0 0.0
  %3161 = vmatpush1.msra.mxu0 0.0
  %3162 = vmatprep.subr.mxu0 0.0
  %3163 = vmatpush1.msra.mxu0 0.0
  %3164 = vmatprep.subr.mxu0 0.0
  %3165 = vmatpush1.msra.mxu0 0.0
  %3166 = vmatprep.subr.mxu0 0.0
  %3167 = vmatpush1.msra.mxu0 0.0
  %3168 = vmatprep.subr.mxu0 0.0
  %3169 = vmatpush1.msra.mxu0 0.0
  %3170 = vmatprep.subr.mxu0 0.0
  %3171 = vmatpush1.msra.mxu0 0.0
  %3172 = vmatprep.subr.mxu0 0.0
  %3173 = vmatpush1.msra.mxu0 0.0
  %3174 = vmatprep.subr.mxu0 0.0
  %3175 = vmatpush1.msra.mxu0 0.0
  %3176 = vmatprep.subr.mxu0 0.0
  %3177 = vmatpush1.msra.mxu0 0.0
  %3178 = vmatprep.subr.mxu0 0.0
  %3179 = vmatpush1.msra.mxu0 0.0
  %3180 = vmatprep.subr.mxu0 0.0
  %3181 = vmatpush1.msra.mxu0 0.0
  %3182 = vmatprep.subr.mxu0 0.0
  %3183 = vmatpush1.msra.mxu0 0.0
  %3184 = vmatprep.subr.mxu0 0.0
  %3185 = vmatpush1.msra.mxu0 0.0
  %3186 = vmatprep.subr.mxu0 0.0
  %3187 = vmatpush1.msra.mxu0 0.0
  %3188 = vmatprep.mubr.f32.mxu0 0.0
  %3189 = vmatmul.mubr.f32.gmra.mrb[0].mxu0 %v2962
  %v3190 = vpop.f32.mrb[0].mxu0
  %v3191 = vadd.f32 %v2957, %v3190
  %v3192 = vpop.f32.mrb[0].mxu0
  %v3193 = vadd.f32 %v2959, %v3192
  %3194 = vdwg.mxu0
  %v3195 = vld [vmem:[%s8] sm:$0xf]
  %3197 = vset.pattern.permute.xlu0 0
  %3198 = vperm.xlu0 %3197, %v3195
  %v3199 = vpop.permute.xlu0 %3198
  %v3201 = vadd.f32 %v3049, %v3199
  %v3202 = vadd.f32 %v3051, %v3199
  %v3203 = vadd.f32 %v3120, %v3199
  %v3204 = vadd.f32 %v3122, %v3199
  %v3205 = vadd.f32 %v3191, %v3199
  %v3206 = vadd.f32 %v3193, %v3199
  %v3207 = vmax.f32 %v3201, 0.0
  %v3208 = vmax.f32 %v3202, 0.0
  %v3209 = vmax.f32 %v3203, 0.0
  %v3210 = vmax.f32 %v3204, 0.0
  %v3211 = vmax.f32 %v3205, 0.0
  %v3212 = vmax.f32 %v3206, 0.0
  %v3213 = vld [vmem:[%s9] sm:$0xf]
  %v3214 = vld [vmem:[%s10] sm:$0xf]
  %3216 = vset.pattern.permute.xlu0 0
  %3217 = vperm.xlu0 %3216, %v3214
  %v3218 = vpop.permute.xlu0 %3217
  %v3221 = vsel %vm2731, %v3213, 0
  %v3224 = vsel %vm2735, %v3207, 0
  %v3227 = vsel %vm2735, %v3208, 0
  %v3230 = vsel %vm2735, %v3209, 0
  %v3233 = vsel %vm2735, %v3210, 0
  %v3236 = vsel %vm2735, %v3211, 0
  %v3239 = vsel %vm2735, %v3212, 0
  %3241 = vmatprep.subr.mxu0 %v3227
  %3242 = vmatpush1.msra.mxu0 %v3224
  %3243 = vmatprep.subr.mxu0 0.0
  %3244 = vmatpush1.msra.mxu0 0.0
  %3245 = vmatprep.subr.mxu0 0.0
  %3246 = vmatpush1.msra.mxu0 0.0
  %3247 = vmatprep.subr.mxu0 0.0
  %3248 = vmatpush1.msra.mxu0 0.0
  %3249 = vmatprep.subr.mxu0 0.0
  %3250 = vmatpush1.msra.mxu0 0.0
  %3251 = vmatprep.subr.mxu0 0.0
  %3252 = vmatpush1.msra.mxu0 0.0
  %3253 = vmatprep.subr.mxu0 0.0
  %3254 = vmatpush1.msra.mxu0 0.0
  %3255 = vmatprep.subr.mxu0 0.0
  %3256 = vmatpush1.msra.mxu0 0.0
  %3257 = vmatprep.subr.mxu0 0.0
  %3258 = vmatpush1.msra.mxu0 0.0
  %3259 = vmatprep.subr.mxu0 0.0
  %3260 = vmatpush1.msra.mxu0 0.0
  %3261 = vmatprep.subr.mxu0 0.0
  %3262 = vmatpush1.msra.mxu0 0.0
  %3263 = vmatprep.subr.mxu0 0.0
  %3264 = vmatpush1.msra.mxu0 0.0
  %3265 = vmatprep.subr.mxu0 0.0
  %3266 = vmatpush1.msra.mxu0 0.0
  %3267 = vmatprep.subr.mxu0 0.0
  %3268 = vmatpush1.msra.mxu0 0.0
  %3269 = vmatprep.subr.mxu0 0.0
  %3270 = vmatpush1.msra.mxu0 0.0
  %3271 = vmatprep.subr.mxu0 0.0
  %3272 = vmatpush1.msra.mxu0 0.0
  %3273 = vmatprep.subr.mxu0 0.0
  %3274 = vmatpush1.msra.mxu0 0.0
  %3275 = vmatprep.subr.mxu0 0.0
  %3276 = vmatpush1.msra.mxu0 0.0
  %3277 = vmatprep.subr.mxu0 0.0
  %3278 = vmatpush1.msra.mxu0 0.0
  %3279 = vmatprep.subr.mxu0 0.0
  %3280 = vmatpush1.msra.mxu0 0.0
  %3281 = vmatprep.subr.mxu0 0.0
  %3282 = vmatpush1.msra.mxu0 0.0
  %3283 = vmatprep.subr.mxu0 0.0
  %3284 = vmatpush1.msra.mxu0 0.0
  %3285 = vmatprep.subr.mxu0 0.0
  %3286 = vmatpush1.msra.mxu0 0.0
  %3287 = vmatprep.subr.mxu0 0.0
  %3288 = vmatpush1.msra.mxu0 0.0
  %3289 = vmatprep.subr.mxu0 0.0
  %3290 = vmatpush1.msra.mxu0 0.0
  %3291 = vmatprep.subr.mxu0 0.0
  %3292 = vmatpush1.msra.mxu0 0.0
  %3293 = vmatprep.subr.mxu0 0.0
  %3294 = vmatpush1.msra.mxu0 0.0
  %3295 = vmatprep.subr.mxu0 0.0
  %3296 = vmatpush1.msra.mxu0 0.0
  %3297 = vmatprep.subr.mxu0 0.0
  %3298 = vmatpush1.msra.mxu0 0.0
  %3299 = vmatprep.subr.mxu0 0.0
  %3300 = vmatpush1.msra.mxu0 0.0
  %3301 = vmatprep.subr.mxu0 0.0
  %3302 = vmatpush1.msra.mxu0 0.0
  %3303 = vmatprep.subr.mxu0 0.0
  %3304 = vmatpush1.msra.mxu0 0.0
  %3305 = vmatprep.mubr.f32.mxu0 0.0
  %3306 = vmatmul.mubr.f32.gmra.mrb[0].mxu0 %v3221
  %v3307 = vpop.f32.mrb[0].mxu0
  %v3308 = vadd.f32 %v3218, %v3307
  %v3309 = vpop.f32.mrb[0].mxu0
  %v3310 = vadd.f32 %v3218, %v3309
  %3311 = vdwg.mxu0
  %3312 = vmatprep.subr.mxu0 %v3233
  %3313 = vmatpush1.msra.mxu0 %v3230
  %3314 = vmatprep.subr.mxu0 0.0
  %3315 = vmatpush1.msra.mxu0 0.0
  %3316 = vmatprep.subr.mxu0 0.0
  %3317 = vmatpush1.msra.mxu0 0.0
  %3318 = vmatprep.subr.mxu0 0.0
  %3319 = vmatpush1.msra.mxu0 0.0
  %3320 = vmatprep.subr.mxu0 0.0
  %3321 = vmatpush1.msra.mxu0 0.0
  %3322 = vmatprep.subr.mxu0 0.0
  %3323 = vmatpush1.msra.mxu0 0.0
  %3324 = vmatprep.subr.mxu0 0.0
  %3325 = vmatpush1.msra.mxu0 0.0
  %3326 = vmatprep.subr.mxu0 0.0
  %3327 = vmatpush1.msra.mxu0 0.0
  %3328 = vmatprep.subr.mxu0 0.0
  %3329 = vmatpush1.msra.mxu0 0.0
  %3330 = vmatprep.subr.mxu0 0.0
  %3331 = vmatpush1.msra.mxu0 0.0
  %3332 = vmatprep.subr.mxu0 0.0
  %3333 = vmatpush1.msra.mxu0 0.0
  %3334 = vmatprep.subr.mxu0 0.0
  %3335 = vmatpush1.msra.mxu0 0.0
  %3336 = vmatprep.subr.mxu0 0.0
  %3337 = vmatpush1.msra.mxu0 0.0
  %3338 = vmatprep.subr.mxu0 0.0
  %3339 = vmatpush1.msra.mxu0 0.0
  %3340 = vmatprep.subr.mxu0 0.0
  %3341 = vmatpush1.msra.mxu0 0.0
  %3342 = vmatprep.subr.mxu0 0.0
  %3343 = vmatpush1.msra.mxu0 0.0
  %3344 = vmatprep.subr.mxu0 0.0
  %3345 = vmatpush1.msra.mxu0 0.0
  %3346 = vmatprep.subr.mxu0 0.0
  %3347 = vmatpush1.msra.mxu0 0.0
  %3348 = vmatprep.subr.mxu0 0.0
  %3349 = vmatpush1.msra.mxu0 0.0
  %3350 = vmatprep.subr.mxu0 0.0
  %3351 = vmatpush1.msra.mxu0 0.0
  %3352 = vmatprep.subr.mxu0 0.0
  %3353 = vmatpush1.msra.mxu0 0.0
  %3354 = vmatprep.subr.mxu0 0.0
  %3355 = vmatpush1.msra.mxu0 0.0
  %3356 = vmatprep.subr.mxu0 0.0
  %3357 = vmatpush1.msra.mxu0 0.0
  %3358 = vmatprep.subr.mxu0 0.0
  %3359 = vmatpush1.msra.mxu0 0.0
  %3360 = vmatprep.subr.mxu0 0.0
  %3361 = vmatpush1.msra.mxu0 0.0
  %3362 = vmatprep.subr.mxu0 0.0
  %3363 = vmatpush1.msra.mxu0 0.0
  %3364 = vmatprep.subr.mxu0 0.0
  %3365 = vmatpush1.msra.mxu0 0.0
  %3366 = vmatprep.subr.mxu0 0.0
  %3367 = vmatpush1.msra.mxu0 0.0
  %3368 = vmatprep.subr.mxu0 0.0
  %3369 = vmatpush1.msra.mxu0 0.0
  %3370 = vmatprep.subr.mxu0 0.0
  %3371 = vmatpush1.msra.mxu0 0.0
  %3372 = vmatprep.subr.mxu0 0.0
  %3373 = vmatpush1.msra.mxu0 0.0
  %3374 = vmatprep.subr.mxu0 0.0
  %3375 = vmatpush1.msra.mxu0 0.0
  %3376 = vmatprep.mubr.f32.mxu0 0.0
  %3377 = vmatmul.mubr.f32.gmra.mrb[0].mxu0 %v3221
  %v3378 = vpop.f32.mrb[0].mxu0
  %v3379 = vadd.f32 %v3218, %v3378
  %v3380 = vpop.f32.mrb[0].mxu0
  %v3381 = vadd.f32 %v3218, %v3380
  %3382 = vdwg.mxu0
  %3383 = vmatprep.subr.mxu0 %v3239
  %3384 = vmatpush1.msra.mxu0 %v3236
  %3385 = vmatprep.subr.mxu0 0.0
  %3386 = vmatpush1.msra.mxu0 0.0
  %3387 = vmatprep.subr.mxu0 0.0
  %3388 = vmatpush1.msra.mxu0 0.0
  %3389 = vmatprep.subr.mxu0 0.0
  %3390 = vmatpush1.msra.mxu0 0.0
  %3391 = vmatprep.subr.mxu0 0.0
  %3392 = vmatpush1.msra.mxu0 0.0
  %3393 = vmatprep.subr.mxu0 0.0
  %3394 = vmatpush1.msra.mxu0 0.0
  %3395 = vmatprep.subr.mxu0 0.0
  %3396 = vmatpush1.msra.mxu0 0.0
  %3397 = vmatprep.subr.mxu0 0.0
  %3398 = vmatpush1.msra.mxu0 0.0
  %3399 = vmatprep.subr.mxu0 0.0
  %3400 = vmatpush1.msra.mxu0 0.0
  %3401 = vmatprep.subr.mxu0 0.0
  %3402 = vmatpush1.msra.mxu0 0.0
  %3403 = vmatprep.subr.mxu0 0.0
  %3404 = vmatpush1.msra.mxu0 0.0
  %3405 = vmatprep.subr.mxu0 0.0
  %3406 = vmatpush1.msra.mxu0 0.0
  %3407 = vmatprep.subr.mxu0 0.0
  %3408 = vmatpush1.msra.mxu0 0.0
  %3409 = vmatprep.subr.mxu0 0.0
  %3410 = vmatpush1.msra.mxu0 0.0
  %3411 = vmatprep.subr.mxu0 0.0
  %3412 = vmatpush1.msra.mxu0 0.0
  %3413 = vmatprep.subr.mxu0 0.0
  %3414 = vmatpush1.msra.mxu0 0.0
  %3415 = vmatprep.subr.mxu0 0.0
  %3416 = vmatpush1.msra.mxu0 0.0
  %3417 = vmatprep.subr.mxu0 0.0
  %3418 = vmatpush1.msra.mxu0 0.0
  %3419 = vmatprep.subr.mxu0 0.0
  %3420 = vmatpush1.msra.mxu0 0.0
  %3421 = vmatprep.subr.mxu0 0.0
  %3422 = vmatpush1.msra.mxu0 0.0
  %3423 = vmatprep.subr.mxu0 0.0
  %3424 = vmatpush1.msra.mxu0 0.0
  %3425 = vmatprep.subr.mxu0 0.0
  %3426 = vmatpush1.msra.mxu0 0.0
  %3427 = vmatprep.subr.mxu0 0.0
  %3428 = vmatpush1.msra.mxu0 0.0
  %3429 = vmatprep.subr.mxu0 0.0
  %3430 = vmatpush1.msra.mxu0 0.0
  %3431 = vmatprep.subr.mxu0 0.0
  %3432 = vmatpush1.msra.mxu0 0.0
  %3433 = vmatprep.subr.mxu0 0.0
  %3434 = vmatpush1.msra.mxu0 0.0
  %3435 = vmatprep.subr.mxu0 0.0
  %3436 = vmatpush1.msra.mxu0 0.0
  %3437 = vmatprep.subr.mxu0 0.0
  %3438 = vmatpush1.msra.mxu0 0.0
  %3439 = vmatprep.subr.mxu0 0.0
  %3440 = vmatpush1.msra.mxu0 0.0
  %3441 = vmatprep.subr.mxu0 0.0
  %3442 = vmatpush1.msra.mxu0 0.0
  %3443 = vmatprep.subr.mxu0 0.0
  %3444 = vmatpush1.msra.mxu0 0.0
  %3445 = vmatprep.subr.mxu0 0.0
  %3446 = vmatpush1.msra.mxu0 0.0
  %3447 = vmatprep.mubr.f32.mxu0 0.0
  %3448 = vmatmul.mubr.f32.gmra.mrb[0].mxu0 %v3221
  %v3449 = vpop.f32.mrb[0].mxu0
  %v3450 = vadd.f32 %v3218, %v3449
  %v3451 = vpop.f32.mrb[0].mxu0
  %v3452 = vadd.f32 %v3218, %v3451
  %3453 = vdwg.mxu0
  %v3454 = vxor.u32 %v3308, 2147483648
  %v3455 = vxor.u32 %v3310, 2147483648
  %v3456 = vxor.u32 %v3379, 2147483648
  %v3457 = vxor.u32 %v3381, 2147483648
  %v3458 = vxor.u32 %v3450, 2147483648
  %v3459 = vxor.u32 %v3452, 2147483648
  %v3460 = vmul.f32 %v3454, 1.442695
  %v3461 = vpow.pop %v3460
  %v3462 = vmul.f32 %v3455, 1.442695
  %v3463 = vpow.pop %v3462
  %v3464 = vmul.f32 %v3456, 1.442695
  %v3465 = vpow.pop %v3464
  %v3466 = vmul.f32 %v3457, 1.442695
  %v3467 = vpow.pop %v3466
  %v3468 = vmul.f32 %v3458, 1.442695
  %v3469 = vpow.pop %v3468
  %v3470 = vmul.f32 %v3459, 1.442695
  %v3471 = vpow.pop %v3470
  %v3472 = vadd.f32 %v3461, 1.0
  %v3473 = vadd.f32 %v3463, 1.0
  %v3474 = vadd.f32 %v3465, 1.0
  %v3475 = vadd.f32 %v3467, 1.0
  %v3476 = vadd.f32 %v3469, 1.0
  %v3477 = vadd.f32 %v3471, 1.0
  %v3478 = vrcp.pop %v3472
  %v3479 = vmul.f32 1.0, %v3478
  %v3480 = vrcp.pop %v3473
  %v3481 = vmul.f32 1.0, %v3480
  %v3482 = vrcp.pop %v3474
  %v3483 = vmul.f32 1.0, %v3482
  %v3484 = vrcp.pop %v3475
  %v3485 = vmul.f32 1.0, %v3484
  %v3486 = vrcp.pop %v3476
  %v3487 = vmul.f32 1.0, %v3486
  %v3488 = vrcp.pop %v3477
  %v3489 = vmul.f32 1.0, %v3488
  %v3490 = vadd.f32 %v3479, 1.0
  %v3491 = vadd.f32 %v3481, 1.0
  %v3492 = vadd.f32 %v3483, 1.0
  %v3493 = vadd.f32 %v3485, 1.0
  %v3494 = vadd.f32 %v3487, 1.0
  %v3495 = vadd.f32 %v3489, 1.0
  %v3496 = vmul.f32 %v2714, %v3490
  %v3497 = vmul.f32 %v2715, %v3491
  %v3498 = vmul.f32 %v2716, %v3492
  %v3499 = vmul.f32 %v2717, %v3493
  %v3500 = vmul.f32 %v2718, %v3494
  %v3501 = vmul.f32 %v2719, %v3495
  %3502 = vst [vmem:[#allocation2 + $0x8] sm:$0xf] %v2714
  %3503 = vst [vmem:[#allocation2 + $0x10] sm:$0xf] %v2715
  %3504 = vst [vmem:[#allocation2 + $0x18] sm:$0xf] %v2716
  %3505 = vst [vmem:[#allocation2 + $0x20] sm:$0xf] %v2717
  %3506 = vst [vmem:[#allocation2 + $0x28] sm:$0xf] %v2718
  %3507 = vst [vmem:[#allocation2 + $0x30] sm:$0xf] %v2719
  %v3514 = vrot.slane %v3496, 4
  %v3515 = vrot.slane %v3497, 4
  %v3516 = vrot.slane %v3498, 4
  %v3517 = vrot.slane %v3499, 4
  %v3518 = vrot.slane %v3500, 4
  %v3519 = vrot.slane %v3501, 4
  %3526 = vst [vmem:[#allocation2 + $0x8] sm:$0xf0] %v3514
  %3527 = vst [vmem:[#allocation2 + $0x10] sm:$0xf0] %v3515
  %3528 = vst [vmem:[#allocation2 + $0x18] sm:$0xf0] %v3516
  %3529 = vst [vmem:[#allocation2 + $0x20] sm:$0xf0] %v3517
  %3530 = vst [vmem:[#allocation2 + $0x28] sm:$0xf0] %v3518
  %3531 = vst [vmem:[#allocation2 + $0x30] sm:$0xf0] %v3519
  %v3532 = vld [vmem:[#allocation2] sm:$0xff]
  %v3533 = vld [vmem:[#allocation2 + $0x8] sm:$0xff]
  %v3534 = vld [vmem:[#allocation2 + $0x10] sm:$0xff]
  %v3535 = vld [vmem:[#allocation2 + $0x18] sm:$0xff]
  %v3536 = vld [vmem:[#allocation2 + $0x20] sm:$0xff]
  %v3537 = vld [vmem:[#allocation2 + $0x28] sm:$0xff]
  %v3538 = vld [vmem:[#allocation2 + $0x30] sm:$0xff]
  %v3539 = vld [vmem:[%s11] sm:$0xf]
  %s3540 = scalar_lea.vmem %s11, 4
  %v3541 = vld [vmem:[%s3540] sm:$0xf]
  %3549 = vrot.lane.b32.xlu0 %v3532, 18
  %v3550 = vpop.permute.xlu0 %3549
  %3551 = vrot.lane.b32.xlu0 %v3533, 18
  %v3552 = vpop.permute.xlu0 %3551
  %3553 = vrot.lane.b32.xlu0 %v3534, 18
  %v3554 = vpop.permute.xlu0 %3553
  %3555 = vrot.lane.b32.xlu0 %v3535, 18
  %v3556 = vpop.permute.xlu0 %3555
  %3557 = vrot.lane.b32.xlu0 %v3536, 18
  %v3558 = vpop.permute.xlu0 %3557
  %3559 = vrot.lane.b32.xlu0 %v3537, 18
  %v3560 = vpop.permute.xlu0 %3559
  %3561 = vrot.lane.b32.xlu0 %v3538, 18
  %v3562 = vpop.permute.xlu0 %3561
  %v3563 = vsel %vm454, %v3550, %v3552
  %v3564 = vsel %vm454, %v3552, %v3554
  %v3565 = vsel %vm454, %v3554, %v3556
  %v3566 = vsel %vm454, %v3556, %v3558
  %v3567 = vsel %vm454, %v3558, %v3560
  %v3568 = vsel %vm454, %v3560, %v3562
  %v3576 = vsel %vm467, %v3541, 0
  %3578 = vmatprep.subr.mxu0 %v3564
  %3579 = vmatpush1.msra.mxu0 %v3563
  %3580 = vmatprep.subr.mxu0 0.0
  %3581 = vmatpush1.msra.mxu0 0.0
  %3582 = vmatprep.subr.mxu0 0.0
  %3583 = vmatpush1.msra.mxu0 0.0
  %3584 = vmatprep.subr.mxu0 0.0
  %3585 = vmatpush1.msra.mxu0 0.0
  %3586 = vmatprep.subr.mxu0 0.0
  %3587 = vmatpush1.msra.mxu0 0.0
  %3588 = vmatprep.subr.mxu0 0.0
  %3589 = vmatpush1.msra.mxu0 0.0
  %3590 = vmatprep.subr.mxu0 0.0
  %3591 = vmatpush1.msra.mxu0 0.0
  %3592 = vmatprep.subr.mxu0 0.0
  %3593 = vmatpush1.msra.mxu0 0.0
  %3594 = vmatprep.subr.mxu0 0.0
  %3595 = vmatpush1.msra.mxu0 0.0
  %3596 = vmatprep.subr.mxu0 0.0
  %3597 = vmatpush1.msra.mxu0 0.0
  %3598 = vmatprep.subr.mxu0 0.0
  %3599 = vmatpush1.msra.mxu0 0.0
  %3600 = vmatprep.subr.mxu0 0.0
  %3601 = vmatpush1.msra.mxu0 0.0
  %3602 = vmatprep.subr.mxu0 0.0
  %3603 = vmatpush1.msra.mxu0 0.0
  %3604 = vmatprep.subr.mxu0 0.0
  %3605 = vmatpush1.msra.mxu0 0.0
  %3606 = vmatprep.subr.mxu0 0.0
  %3607 = vmatpush1.msra.mxu0 0.0
  %3608 = vmatprep.subr.mxu0 0.0
  %3609 = vmatpush1.msra.mxu0 0.0
  %3610 = vmatprep.subr.mxu0 0.0
  %3611 = vmatpush1.msra.mxu0 0.0
  %3612 = vmatprep.subr.mxu0 0.0
  %3613 = vmatpush1.msra.mxu0 0.0
  %3614 = vmatprep.subr.mxu0 0.0
  %3615 = vmatpush1.msra.mxu0 0.0
  %3616 = vmatprep.subr.mxu0 0.0
  %3617 = vmatpush1.msra.mxu0 0.0
  %3618 = vmatprep.subr.mxu0 0.0
  %3619 = vmatpush1.msra.mxu0 0.0
  %3620 = vmatprep.subr.mxu0 0.0
  %3621 = vmatpush1.msra.mxu0 0.0
  %3622 = vmatprep.subr.mxu0 0.0
  %3623 = vmatpush1.msra.mxu0 0.0
  %3624 = vmatprep.subr.mxu0 0.0
  %3625 = vmatpush1.msra.mxu0 0.0
  %3626 = vmatprep.subr.mxu0 0.0
  %3627 = vmatpush1.msra.mxu0 0.0
  %3628 = vmatprep.subr.mxu0 0.0
  %3629 = vmatpush1.msra.mxu0 0.0
  %3630 = vmatprep.subr.mxu0 0.0
  %3631 = vmatpush1.msra.mxu0 0.0
  %3632 = vmatprep.subr.mxu0 0.0
  %3633 = vmatpush1.msra.mxu0 0.0
  %3634 = vmatprep.subr.mxu0 0.0
  %3635 = vmatpush1.msra.mxu0 0.0
  %3636 = vmatprep.subr.mxu0 0.0
  %3637 = vmatpush1.msra.mxu0 0.0
  %3638 = vmatprep.subr.mxu0 0.0
  %3639 = vmatpush1.msra.mxu0 0.0
  %3640 = vmatprep.subr.mxu0 0.0
  %3641 = vmatpush1.msra.mxu0 0.0
  %3642 = vmatprep.mubr.f32.mxu0 0.0
  %3643 = vmatmul.mubr.f32.gmra.mrb[0].mxu0 %v3576
  %v3644 = vpop.f32.mrb[0].mxu0
  %v3645 = vadd.f32 0.0, %v3644
  %v3646 = vpop.f32.mrb[0].mxu0
  %v3647 = vadd.f32 0.0, %v3646
  %3648 = vdwg.mxu0
  %3649 = vmatprep.subr.mxu0 %v3566
  %3650 = vmatpush1.msra.mxu0 %v3565
  %3651 = vmatprep.subr.mxu0 0.0
  %3652 = vmatpush1.msra.mxu0 0.0
  %3653 = vmatprep.subr.mxu0 0.0
  %3654 = vmatpush1.msra.mxu0 0.0
  %3655 = vmatprep.subr.mxu0 0.0
  %3656 = vmatpush1.msra.mxu0 0.0
  %3657 = vmatprep.subr.mxu0 0.0
  %3658 = vmatpush1.msra.mxu0 0.0
  %3659 = vmatprep.subr.mxu0 0.0
  %3660 = vmatpush1.msra.mxu0 0.0
  %3661 = vmatprep.subr.mxu0 0.0
  %3662 = vmatpush1.msra.mxu0 0.0
  %3663 = vmatprep.subr.mxu0 0.0
  %3664 = vmatpush1.msra.mxu0 0.0
  %3665 = vmatprep.subr.mxu0 0.0
  %3666 = vmatpush1.msra.mxu0 0.0
  %3667 = vmatprep.subr.mxu0 0.0
  %3668 = vmatpush1.msra.mxu0 0.0
  %3669 = vmatprep.subr.mxu0 0.0
  %3670 = vmatpush1.msra.mxu0 0.0
  %3671 = vmatprep.subr.mxu0 0.0
  %3672 = vmatpush1.msra.mxu0 0.0
  %3673 = vmatprep.subr.mxu0 0.0
  %3674 = vmatpush1.msra.mxu0 0.0
  %3675 = vmatprep.subr.mxu0 0.0
  %3676 = vmatpush1.msra.mxu0 0.0
  %3677 = vmatprep.subr.mxu0 0.0
  %3678 = vmatpush1.msra.mxu0 0.0
  %3679 = vmatprep.subr.mxu0 0.0
  %3680 = vmatpush1.msra.mxu0 0.0
  %3681 = vmatprep.subr.mxu0 0.0
  %3682 = vmatpush1.msra.mxu0 0.0
  %3683 = vmatprep.subr.mxu0 0.0
  %3684 = vmatpush1.msra.mxu0 0.0
  %3685 = vmatprep.subr.mxu0 0.0
  %3686 = vmatpush1.msra.mxu0 0.0
  %3687 = vmatprep.subr.mxu0 0.0
  %3688 = vmatpush1.msra.mxu0 0.0
  %3689 = vmatprep.subr.mxu0 0.0
  %3690 = vmatpush1.msra.mxu0 0.0
  %3691 = vmatprep.subr.mxu0 0.0
  %3692 = vmatpush1.msra.mxu0 0.0
  %3693 = vmatprep.subr.mxu0 0.0
  %3694 = vmatpush1.msra.mxu0 0.0
  %3695 = vmatprep.subr.mxu0 0.0
  %3696 = vmatpush1.msra.mxu0 0.0
  %3697 = vmatprep.subr.mxu0 0.0
  %3698 = vmatpush1.msra.mxu0 0.0
  %3699 = vmatprep.subr.mxu0 0.0
  %3700 = vmatpush1.msra.mxu0 0.0
  %3701 = vmatprep.subr.mxu0 0.0
  %3702 = vmatpush1.msra.mxu0 0.0
  %3703 = vmatprep.subr.mxu0 0.0
  %3704 = vmatpush1.msra.mxu0 0.0
  %3705 = vmatprep.subr.mxu0 0.0
  %3706 = vmatpush1.msra.mxu0 0.0
  %3707 = vmatprep.subr.mxu0 0.0
  %3708 = vmatpush1.msra.mxu0 0.0
  %3709 = vmatprep.subr.mxu0 0.0
  %3710 = vmatpush1.msra.mxu0 0.0
  %3711 = vmatprep.subr.mxu0 0.0
  %3712 = vmatpush1.msra.mxu0 0.0
  %3713 = vmatprep.mubr.f32.mxu0 0.0
  %3714 = vmatmul.mubr.f32.gmra.mrb[0].mxu0 %v3576
  %v3715 = vpop.f32.mrb[0].mxu0
  %v3716 = vadd.f32 0.0, %v3715
  %v3717 = vpop.f32.mrb[0].mxu0
  %v3718 = vadd.f32 0.0, %v3717
  %3719 = vdwg.mxu0
  %3720 = vmatprep.subr.mxu0 %v3568
  %3721 = vmatpush1.msra.mxu0 %v3567
  %3722 = vmatprep.subr.mxu0 0.0
  %3723 = vmatpush1.msra.mxu0 0.0
  %3724 = vmatprep.subr.mxu0 0.0
  %3725 = vmatpush1.msra.mxu0 0.0
  %3726 = vmatprep.subr.mxu0 0.0
  %3727 = vmatpush1.msra.mxu0 0.0
  %3728 = vmatprep.subr.mxu0 0.0
  %3729 = vmatpush1.msra.mxu0 0.0
  %3730 = vmatprep.subr.mxu0 0.0
  %3731 = vmatpush1.msra.mxu0 0.0
  %3732 = vmatprep.subr.mxu0 0.0
  %3733 = vmatpush1.msra.mxu0 0.0
  %3734 = vmatprep.subr.mxu0 0.0
  %3735 = vmatpush1.msra.mxu0 0.0
  %3736 = vmatprep.subr.mxu0 0.0
  %3737 = vmatpush1.msra.mxu0 0.0
  %3738 = vmatprep.subr.mxu0 0.0
  %3739 = vmatpush1.msra.mxu0 0.0
  %3740 = vmatprep.subr.mxu0 0.0
  %3741 = vmatpush1.msra.mxu0 0.0
  %3742 = vmatprep.subr.mxu0 0.0
  %3743 = vmatpush1.msra.mxu0 0.0
  %3744 = vmatprep.subr.mxu0 0.0
  %3745 = vmatpush1.msra.mxu0 0.0
  %3746 = vmatprep.subr.mxu0 0.0
  %3747 = vmatpush1.msra.mxu0 0.0
  %3748 = vmatprep.subr.mxu0 0.0
  %3749 = vmatpush1.msra.mxu0 0.0
  %3750 = vmatprep.subr.mxu0 0.0
  %3751 = vmatpush1.msra.mxu0 0.0
  %3752 = vmatprep.subr.mxu0 0.0
  %3753 = vmatpush1.msra.mxu0 0.0
  %3754 = vmatprep.subr.mxu0 0.0
  %3755 = vmatpush1.msra.mxu0 0.0
  %3756 = vmatprep.subr.mxu0 0.0
  %3757 = vmatpush1.msra.mxu0 0.0
  %3758 = vmatprep.subr.mxu0 0.0
  %3759 = vmatpush1.msra.mxu0 0.0
  %3760 = vmatprep.subr.mxu0 0.0
  %3761 = vmatpush1.msra.mxu0 0.0
  %3762 = vmatprep.subr.mxu0 0.0
  %3763 = vmatpush1.msra.mxu0 0.0
  %3764 = vmatprep.subr.mxu0 0.0
  %3765 = vmatpush1.msra.mxu0 0.0
  %3766 = vmatprep.subr.mxu0 0.0
  %3767 = vmatpush1.msra.mxu0 0.0
  %3768 = vmatprep.subr.mxu0 0.0
  %3769 = vmatpush1.msra.mxu0 0.0
  %3770 = vmatprep.subr.mxu0 0.0
  %3771 = vmatpush1.msra.mxu0 0.0
  %3772 = vmatprep.subr.mxu0 0.0
  %3773 = vmatpush1.msra.mxu0 0.0
  %3774 = vmatprep.subr.mxu0 0.0
  %3775 = vmatpush1.msra.mxu0 0.0
  %3776 = vmatprep.subr.mxu0 0.0
  %3777 = vmatpush1.msra.mxu0 0.0
  %3778 = vmatprep.subr.mxu0 0.0
  %3779 = vmatpush1.msra.mxu0 0.0
  %3780 = vmatprep.subr.mxu0 0.0
  %3781 = vmatpush1.msra.mxu0 0.0
  %3782 = vmatprep.subr.mxu0 0.0
  %3783 = vmatpush1.msra.mxu0 0.0
  %3784 = vmatprep.mubr.f32.mxu0 0.0
  %3785 = vmatmul.mubr.f32.gmra.mrb[0].mxu0 %v3576
  %v3786 = vpop.f32.mrb[0].mxu0
  %v3787 = vadd.f32 0.0, %v3786
  %v3788 = vpop.f32.mrb[0].mxu0
  %v3789 = vadd.f32 0.0, %v3788
  %3790 = vdwg.mxu0
  %3791 = vrot.lane.b32.xlu0 %v3532, 19
  %v3792 = vpop.permute.xlu0 %3791
  %3793 = vrot.lane.b32.xlu0 %v3533, 19
  %v3794 = vpop.permute.xlu0 %3793
  %3795 = vrot.lane.b32.xlu0 %v3534, 19
  %v3796 = vpop.permute.xlu0 %3795
  %3797 = vrot.lane.b32.xlu0 %v3535, 19
  %v3798 = vpop.permute.xlu0 %3797
  %3799 = vrot.lane.b32.xlu0 %v3536, 19
  %v3800 = vpop.permute.xlu0 %3799
  %3801 = vrot.lane.b32.xlu0 %v3537, 19
  %v3802 = vpop.permute.xlu0 %3801
  %3803 = vrot.lane.b32.xlu0 %v3538, 19
  %v3804 = vpop.permute.xlu0 %3803
  %v3805 = vsel %vm698, %v3792, %v3794
  %v3806 = vsel %vm698, %v3794, %v3796
  %v3807 = vsel %vm698, %v3796, %v3798
  %v3808 = vsel %vm698, %v3798, %v3800
  %v3809 = vsel %vm698, %v3800, %v3802
  %v3810 = vsel %vm698, %v3802, %v3804
  %v3818 = vsel %vm467, %v3539, 0
  %3820 = vmatprep.subr.mxu0 %v3806
  %3821 = vmatpush1.msra.mxu0 %v3805
  %3822 = vmatprep.subr.mxu0 0.0
  %3823 = vmatpush1.msra.mxu0 0.0
  %3824 = vmatprep.subr.mxu0 0.0
  %3825 = vmatpush1.msra.mxu0 0.0
  %3826 = vmatprep.subr.mxu0 0.0
  %3827 = vmatpush1.msra.mxu0 0.0
  %3828 = vmatprep.subr.mxu0 0.0
  %3829 = vmatpush1.msra.mxu0 0.0
  %3830 = vmatprep.subr.mxu0 0.0
  %3831 = vmatpush1.msra.mxu0 0.0
  %3832 = vmatprep.subr.mxu0 0.0
  %3833 = vmatpush1.msra.mxu0 0.0
  %3834 = vmatprep.subr.mxu0 0.0
  %3835 = vmatpush1.msra.mxu0 0.0
  %3836 = vmatprep.subr.mxu0 0.0
  %3837 = vmatpush1.msra.mxu0 0.0
  %3838 = vmatprep.subr.mxu0 0.0
  %3839 = vmatpush1.msra.mxu0 0.0
  %3840 = vmatprep.subr.mxu0 0.0
  %3841 = vmatpush1.msra.mxu0 0.0
  %3842 = vmatprep.subr.mxu0 0.0
  %3843 = vmatpush1.msra.mxu0 0.0
  %3844 = vmatprep.subr.mxu0 0.0
  %3845 = vmatpush1.msra.mxu0 0.0
  %3846 = vmatprep.subr.mxu0 0.0
  %3847 = vmatpush1.msra.mxu0 0.0
  %3848 = vmatprep.subr.mxu0 0.0
  %3849 = vmatpush1.msra.mxu0 0.0
  %3850 = vmatprep.subr.mxu0 0.0
  %3851 = vmatpush1.msra.mxu0 0.0
  %3852 = vmatprep.subr.mxu0 0.0
  %3853 = vmatpush1.msra.mxu0 0.0
  %3854 = vmatprep.subr.mxu0 0.0
  %3855 = vmatpush1.msra.mxu0 0.0
  %3856 = vmatprep.subr.mxu0 0.0
  %3857 = vmatpush1.msra.mxu0 0.0
  %3858 = vmatprep.subr.mxu0 0.0
  %3859 = vmatpush1.msra.mxu0 0.0
  %3860 = vmatprep.subr.mxu0 0.0
  %3861 = vmatpush1.msra.mxu0 0.0
  %3862 = vmatprep.subr.mxu0 0.0
  %3863 = vmatpush1.msra.mxu0 0.0
  %3864 = vmatprep.subr.mxu0 0.0
  %3865 = vmatpush1.msra.mxu0 0.0
  %3866 = vmatprep.subr.mxu0 0.0
  %3867 = vmatpush1.msra.mxu0 0.0
  %3868 = vmatprep.subr.mxu0 0.0
  %3869 = vmatpush1.msra.mxu0 0.0
  %3870 = vmatprep.subr.mxu0 0.0
  %3871 = vmatpush1.msra.mxu0 0.0
  %3872 = vmatprep.subr.mxu0 0.0
  %3873 = vmatpush1.msra.mxu0 0.0
  %3874 = vmatprep.subr.mxu0 0.0
  %3875 = vmatpush1.msra.mxu0 0.0
  %3876 = vmatprep.subr.mxu0 0.0
  %3877 = vmatpush1.msra.mxu0 0.0
  %3878 = vmatprep.subr.mxu0 0.0
  %3879 = vmatpush1.msra.mxu0 0.0
  %3880 = vmatprep.subr.mxu0 0.0
  %3881 = vmatpush1.msra.mxu0 0.0
  %3882 = vmatprep.subr.mxu0 0.0
  %3883 = vmatpush1.msra.mxu0 0.0
  %3884 = vmatprep.mubr.f32.mxu0 0.0
  %3885 = vmatmul.mubr.f32.gmra.mrb[0].mxu0 %v3818
  %v3886 = vpop.f32.mrb[0].mxu0
  %v3887 = vadd.f32 %v3645, %v3886
  %v3888 = vpop.f32.mrb[0].mxu0
  %v3889 = vadd.f32 %v3647, %v3888
  %3890 = vdwg.mxu0
  %3891 = vmatprep.subr.mxu0 %v3808
  %3892 = vmatpush1.msra.mxu0 %v3807
  %3893 = vmatprep.subr.mxu0 0.0
  %3894 = vmatpush1.msra.mxu0 0.0
  %3895 = vmatprep.subr.mxu0 0.0
  %3896 = vmatpush1.msra.mxu0 0.0
  %3897 = vmatprep.subr.mxu0 0.0
  %3898 = vmatpush1.msra.mxu0 0.0
  %3899 = vmatprep.subr.mxu0 0.0
  %3900 = vmatpush1.msra.mxu0 0.0
  %3901 = vmatprep.subr.mxu0 0.0
  %3902 = vmatpush1.msra.mxu0 0.0
  %3903 = vmatprep.subr.mxu0 0.0
  %3904 = vmatpush1.msra.mxu0 0.0
  %3905 = vmatprep.subr.mxu0 0.0
  %3906 = vmatpush1.msra.mxu0 0.0
  %3907 = vmatprep.subr.mxu0 0.0
  %3908 = vmatpush1.msra.mxu0 0.0
  %3909 = vmatprep.subr.mxu0 0.0
  %3910 = vmatpush1.msra.mxu0 0.0
  %3911 = vmatprep.subr.mxu0 0.0
  %3912 = vmatpush1.msra.mxu0 0.0
  %3913 = vmatprep.subr.mxu0 0.0
  %3914 = vmatpush1.msra.mxu0 0.0
  %3915 = vmatprep.subr.mxu0 0.0
  %3916 = vmatpush1.msra.mxu0 0.0
  %3917 = vmatprep.subr.mxu0 0.0
  %3918 = vmatpush1.msra.mxu0 0.0
  %3919 = vmatprep.subr.mxu0 0.0
  %3920 = vmatpush1.msra.mxu0 0.0
  %3921 = vmatprep.subr.mxu0 0.0
  %3922 = vmatpush1.msra.mxu0 0.0
  %3923 = vmatprep.subr.mxu0 0.0
  %3924 = vmatpush1.msra.mxu0 0.0
  %3925 = vmatprep.subr.mxu0 0.0
  %3926 = vmatpush1.msra.mxu0 0.0
  %3927 = vmatprep.subr.mxu0 0.0
  %3928 = vmatpush1.msra.mxu0 0.0
  %3929 = vmatprep.subr.mxu0 0.0
  %3930 = vmatpush1.msra.mxu0 0.0
  %3931 = vmatprep.subr.mxu0 0.0
  %3932 = vmatpush1.msra.mxu0 0.0
  %3933 = vmatprep.subr.mxu0 0.0
  %3934 = vmatpush1.msra.mxu0 0.0
  %3935 = vmatprep.subr.mxu0 0.0
  %3936 = vmatpush1.msra.mxu0 0.0
  %3937 = vmatprep.subr.mxu0 0.0
  %3938 = vmatpush1.msra.mxu0 0.0
  %3939 = vmatprep.subr.mxu0 0.0
  %3940 = vmatpush1.msra.mxu0 0.0
  %3941 = vmatprep.subr.mxu0 0.0
  %3942 = vmatpush1.msra.mxu0 0.0
  %3943 = vmatprep.subr.mxu0 0.0
  %3944 = vmatpush1.msra.mxu0 0.0
  %3945 = vmatprep.subr.mxu0 0.0
  %3946 = vmatpush1.msra.mxu0 0.0
  %3947 = vmatprep.subr.mxu0 0.0
  %3948 = vmatpush1.msra.mxu0 0.0
  %3949 = vmatprep.subr.mxu0 0.0
  %3950 = vmatpush1.msra.mxu0 0.0
  %3951 = vmatprep.subr.mxu0 0.0
  %3952 = vmatpush1.msra.mxu0 0.0
  %3953 = vmatprep.subr.mxu0 0.0
  %3954 = vmatpush1.msra.mxu0 0.0
  %3955 = vmatprep.mubr.f32.mxu0 0.0
  %3956 = vmatmul.mubr.f32.gmra.mrb[0].mxu0 %v3818
  %v3957 = vpop.f32.mrb[0].mxu0
  %v3958 = vadd.f32 %v3716, %v3957
  %v3959 = vpop.f32.mrb[0].mxu0
  %v3960 = vadd.f32 %v3718, %v3959
  %3961 = vdwg.mxu0
  %3962 = vmatprep.subr.mxu0 %v3810
  %3963 = vmatpush1.msra.mxu0 %v3809
  %3964 = vmatprep.subr.mxu0 0.0
  %3965 = vmatpush1.msra.mxu0 0.0
  %3966 = vmatprep.subr.mxu0 0.0
  %3967 = vmatpush1.msra.mxu0 0.0
  %3968 = vmatprep.subr.mxu0 0.0
  %3969 = vmatpush1.msra.mxu0 0.0
  %3970 = vmatprep.subr.mxu0 0.0
  %3971 = vmatpush1.msra.mxu0 0.0
  %3972 = vmatprep.subr.mxu0 0.0
  %3973 = vmatpush1.msra.mxu0 0.0
  %3974 = vmatprep.subr.mxu0 0.0
  %3975 = vmatpush1.msra.mxu0 0.0
  %3976 = vmatprep.subr.mxu0 0.0
  %3977 = vmatpush1.msra.mxu0 0.0
  %3978 = vmatprep.subr.mxu0 0.0
  %3979 = vmatpush1.msra.mxu0 0.0
  %3980 = vmatprep.subr.mxu0 0.0
  %3981 = vmatpush1.msra.mxu0 0.0
  %3982 = vmatprep.subr.mxu0 0.0
  %3983 = vmatpush1.msra.mxu0 0.0
  %3984 = vmatprep.subr.mxu0 0.0
  %3985 = vmatpush1.msra.mxu0 0.0
  %3986 = vmatprep.subr.mxu0 0.0
  %3987 = vmatpush1.msra.mxu0 0.0
  %3988 = vmatprep.subr.mxu0 0.0
  %3989 = vmatpush1.msra.mxu0 0.0
  %3990 = vmatprep.subr.mxu0 0.0
  %3991 = vmatpush1.msra.mxu0 0.0
  %3992 = vmatprep.subr.mxu0 0.0
  %3993 = vmatpush1.msra.mxu0 0.0
  %3994 = vmatprep.subr.mxu0 0.0
  %3995 = vmatpush1.msra.mxu0 0.0
  %3996 = vmatprep.subr.mxu0 0.0
  %3997 = vmatpush1.msra.mxu0 0.0
  %3998 = vmatprep.subr.mxu0 0.0
  %3999 = vmatpush1.msra.mxu0 0.0
  %4000 = vmatprep.subr.mxu0 0.0
  %4001 = vmatpush1.msra.mxu0 0.0
  %4002 = vmatprep.subr.mxu0 0.0
  %4003 = vmatpush1.msra.mxu0 0.0
  %4004 = vmatprep.subr.mxu0 0.0
  %4005 = vmatpush1.msra.mxu0 0.0
  %4006 = vmatprep.subr.mxu0 0.0
  %4007 = vmatpush1.msra.mxu0 0.0
  %4008 = vmatprep.subr.mxu0 0.0
  %4009 = vmatpush1.msra.mxu0 0.0
  %4010 = vmatprep.subr.mxu0 0.0
  %4011 = vmatpush1.msra.mxu0 0.0
  %4012 = vmatprep.subr.mxu0 0.0
  %4013 = vmatpush1.msra.mxu0 0.0
  %4014 = vmatprep.subr.mxu0 0.0
  %4015 = vmatpush1.msra.mxu0 0.0
  %4016 = vmatprep.subr.mxu0 0.0
  %4017 = vmatpush1.msra.mxu0 0.0
  %4018 = vmatprep.subr.mxu0 0.0
  %4019 = vmatpush1.msra.mxu0 0.0
  %4020 = vmatprep.subr.mxu0 0.0
  %4021 = vmatpush1.msra.mxu0 0.0
  %4022 = vmatprep.subr.mxu0 0.0
  %4023 = vmatpush1.msra.mxu0 0.0
  %4024 = vmatprep.subr.mxu0 0.0
  %4025 = vmatpush1.msra.mxu0 0.0
  %4026 = vmatprep.mubr.f32.mxu0 0.0
  %4027 = vmatmul.mubr.f32.gmra.mrb[0].mxu0 %v3818
  %v4028 = vpop.f32.mrb[0].mxu0
  %v4029 = vadd.f32 %v3787, %v4028
  %v4030 = vpop.f32.mrb[0].mxu0
  %v4031 = vadd.f32 %v3789, %v4030
  %4032 = vdwg.mxu0
  %s4033 = scalar_lea.vmem %s11, 8
  %v4034 = vld [vmem:[%s4033] sm:$0xf]
  %4035 = vrot.lane.b32.xlu0 %v3532, 17
  %v4036 = vpop.permute.xlu0 %4035
  %4037 = vrot.lane.b32.xlu0 %v3533, 17
  %v4038 = vpop.permute.xlu0 %4037
  %4039 = vrot.lane.b32.xlu0 %v3534, 17
  %v4040 = vpop.permute.xlu0 %4039
  %4041 = vrot.lane.b32.xlu0 %v3535, 17
  %v4042 = vpop.permute.xlu0 %4041
  %4043 = vrot.lane.b32.xlu0 %v3536, 17
  %v4044 = vpop.permute.xlu0 %4043
  %4045 = vrot.lane.b32.xlu0 %v3537, 17
  %v4046 = vpop.permute.xlu0 %4045
  %4047 = vrot.lane.b32.xlu0 %v3538, 17
  %v4048 = vpop.permute.xlu0 %4047
  %v4049 = vsel %vm943, %v4036, %v4038
  %v4050 = vsel %vm943, %v4038, %v4040
  %v4051 = vsel %vm943, %v4040, %v4042
  %v4052 = vsel %vm943, %v4042, %v4044
  %v4053 = vsel %vm943, %v4044, %v4046
  %v4054 = vsel %vm943, %v4046, %v4048
  %v4062 = vsel %vm467, %v4034, 0
  %4064 = vmatprep.subr.mxu0 %v4050
  %4065 = vmatpush1.msra.mxu0 %v4049
  %4066 = vmatprep.subr.mxu0 0.0
  %4067 = vmatpush1.msra.mxu0 0.0
  %4068 = vmatprep.subr.mxu0 0.0
  %4069 = vmatpush1.msra.mxu0 0.0
  %4070 = vmatprep.subr.mxu0 0.0
  %4071 = vmatpush1.msra.mxu0 0.0
  %4072 = vmatprep.subr.mxu0 0.0
  %4073 = vmatpush1.msra.mxu0 0.0
  %4074 = vmatprep.subr.mxu0 0.0
  %4075 = vmatpush1.msra.mxu0 0.0
  %4076 = vmatprep.subr.mxu0 0.0
  %4077 = vmatpush1.msra.mxu0 0.0
  %4078 = vmatprep.subr.mxu0 0.0
  %4079 = vmatpush1.msra.mxu0 0.0
  %4080 = vmatprep.subr.mxu0 0.0
  %4081 = vmatpush1.msra.mxu0 0.0
  %4082 = vmatprep.subr.mxu0 0.0
  %4083 = vmatpush1.msra.mxu0 0.0
  %4084 = vmatprep.subr.mxu0 0.0
  %4085 = vmatpush1.msra.mxu0 0.0
  %4086 = vmatprep.subr.mxu0 0.0
  %4087 = vmatpush1.msra.mxu0 0.0
  %4088 = vmatprep.subr.mxu0 0.0
  %4089 = vmatpush1.msra.mxu0 0.0
  %4090 = vmatprep.subr.mxu0 0.0
  %4091 = vmatpush1.msra.mxu0 0.0
  %4092 = vmatprep.subr.mxu0 0.0
  %4093 = vmatpush1.msra.mxu0 0.0
  %4094 = vmatprep.subr.mxu0 0.0
  %4095 = vmatpush1.msra.mxu0 0.0
  %4096 = vmatprep.subr.mxu0 0.0
  %4097 = vmatpush1.msra.mxu0 0.0
  %4098 = vmatprep.subr.mxu0 0.0
  %4099 = vmatpush1.msra.mxu0 0.0
  %4100 = vmatprep.subr.mxu0 0.0
  %4101 = vmatpush1.msra.mxu0 0.0
  %4102 = vmatprep.subr.mxu0 0.0
  %4103 = vmatpush1.msra.mxu0 0.0
  %4104 = vmatprep.subr.mxu0 0.0
  %4105 = vmatpush1.msra.mxu0 0.0
  %4106 = vmatprep.subr.mxu0 0.0
  %4107 = vmatpush1.msra.mxu0 0.0
  %4108 = vmatprep.subr.mxu0 0.0
  %4109 = vmatpush1.msra.mxu0 0.0
  %4110 = vmatprep.subr.mxu0 0.0
  %4111 = vmatpush1.msra.mxu0 0.0
  %4112 = vmatprep.subr.mxu0 0.0
  %4113 = vmatpush1.msra.mxu0 0.0
  %4114 = vmatprep.subr.mxu0 0.0
  %4115 = vmatpush1.msra.mxu0 0.0
  %4116 = vmatprep.subr.mxu0 0.0
  %4117 = vmatpush1.msra.mxu0 0.0
  %4118 = vmatprep.subr.mxu0 0.0
  %4119 = vmatpush1.msra.mxu0 0.0
  %4120 = vmatprep.subr.mxu0 0.0
  %4121 = vmatpush1.msra.mxu0 0.0
  %4122 = vmatprep.subr.mxu0 0.0
  %4123 = vmatpush1.msra.mxu0 0.0
  %4124 = vmatprep.subr.mxu0 0.0
  %4125 = vmatpush1.msra.mxu0 0.0
  %4126 = vmatprep.subr.mxu0 0.0
  %4127 = vmatpush1.msra.mxu0 0.0
  %4128 = vmatprep.mubr.f32.mxu0 0.0
  %4129 = vmatmul.mubr.f32.gmra.mrb[0].mxu0 %v4062
  %v4130 = vpop.f32.mrb[0].mxu0
  %v4131 = vadd.f32 0.0, %v4130
  %v4132 = vpop.f32.mrb[0].mxu0
  %v4133 = vadd.f32 0.0, %v4132
  %4134 = vdwg.mxu0
  %4135 = vmatprep.subr.mxu0 %v4052
  %4136 = vmatpush1.msra.mxu0 %v4051
  %4137 = vmatprep.subr.mxu0 0.0
  %4138 = vmatpush1.msra.mxu0 0.0
  %4139 = vmatprep.subr.mxu0 0.0
  %4140 = vmatpush1.msra.mxu0 0.0
  %4141 = vmatprep.subr.mxu0 0.0
  %4142 = vmatpush1.msra.mxu0 0.0
  %4143 = vmatprep.subr.mxu0 0.0
  %4144 = vmatpush1.msra.mxu0 0.0
  %4145 = vmatprep.subr.mxu0 0.0
  %4146 = vmatpush1.msra.mxu0 0.0
  %4147 = vmatprep.subr.mxu0 0.0
  %4148 = vmatpush1.msra.mxu0 0.0
  %4149 = vmatprep.subr.mxu0 0.0
  %4150 = vmatpush1.msra.mxu0 0.0
  %4151 = vmatprep.subr.mxu0 0.0
  %4152 = vmatpush1.msra.mxu0 0.0
  %4153 = vmatprep.subr.mxu0 0.0
  %4154 = vmatpush1.msra.mxu0 0.0
  %4155 = vmatprep.subr.mxu0 0.0
  %4156 = vmatpush1.msra.mxu0 0.0
  %4157 = vmatprep.subr.mxu0 0.0
  %4158 = vmatpush1.msra.mxu0 0.0
  %4159 = vmatprep.subr.mxu0 0.0
  %4160 = vmatpush1.msra.mxu0 0.0
  %4161 = vmatprep.subr.mxu0 0.0
  %4162 = vmatpush1.msra.mxu0 0.0
  %4163 = vmatprep.subr.mxu0 0.0
  %4164 = vmatpush1.msra.mxu0 0.0
  %4165 = vmatprep.subr.mxu0 0.0
  %4166 = vmatpush1.msra.mxu0 0.0
  %4167 = vmatprep.subr.mxu0 0.0
  %4168 = vmatpush1.msra.mxu0 0.0
  %4169 = vmatprep.subr.mxu0 0.0
  %4170 = vmatpush1.msra.mxu0 0.0
  %4171 = vmatprep.subr.mxu0 0.0
  %4172 = vmatpush1.msra.mxu0 0.0
  %4173 = vmatprep.subr.mxu0 0.0
  %4174 = vmatpush1.msra.mxu0 0.0
  %4175 = vmatprep.subr.mxu0 0.0
  %4176 = vmatpush1.msra.mxu0 0.0
  %4177 = vmatprep.subr.mxu0 0.0
  %4178 = vmatpush1.msra.mxu0 0.0
  %4179 = vmatprep.subr.mxu0 0.0
  %4180 = vmatpush1.msra.mxu0 0.0
  %4181 = vmatprep.subr.mxu0 0.0
  %4182 = vmatpush1.msra.mxu0 0.0
  %4183 = vmatprep.subr.mxu0 0.0
  %4184 = vmatpush1.msra.mxu0 0.0
  %4185 = vmatprep.subr.mxu0 0.0
  %4186 = vmatpush1.msra.mxu0 0.0
  %4187 = vmatprep.subr.mxu0 0.0
  %4188 = vmatpush1.msra.mxu0 0.0
  %4189 = vmatprep.subr.mxu0 0.0
  %4190 = vmatpush1.msra.mxu0 0.0
  %4191 = vmatprep.subr.mxu0 0.0
  %4192 = vmatpush1.msra.mxu0 0.0
  %4193 = vmatprep.subr.mxu0 0.0
  %4194 = vmatpush1.msra.mxu0 0.0
  %4195 = vmatprep.subr.mxu0 0.0
  %4196 = vmatpush1.msra.mxu0 0.0
  %4197 = vmatprep.subr.mxu0 0.0
  %4198 = vmatpush1.msra.mxu0 0.0
  %4199 = vmatprep.mubr.f32.mxu0 0.0
  %4200 = vmatmul.mubr.f32.gmra.mrb[0].mxu0 %v4062
  %v4201 = vpop.f32.mrb[0].mxu0
  %v4202 = vadd.f32 0.0, %v4201
  %v4203 = vpop.f32.mrb[0].mxu0
  %v4204 = vadd.f32 0.0, %v4203
  %4205 = vdwg.mxu0
  %4206 = vmatprep.subr.mxu0 %v4054
  %4207 = vmatpush1.msra.mxu0 %v4053
  %4208 = vmatprep.subr.mxu0 0.0
  %4209 = vmatpush1.msra.mxu0 0.0
  %4210 = vmatprep.subr.mxu0 0.0
  %4211 = vmatpush1.msra.mxu0 0.0
  %4212 = vmatprep.subr.mxu0 0.0
  %4213 = vmatpush1.msra.mxu0 0.0
  %4214 = vmatprep.subr.mxu0 0.0
  %4215 = vmatpush1.msra.mxu0 0.0
  %4216 = vmatprep.subr.mxu0 0.0
  %4217 = vmatpush1.msra.mxu0 0.0
  %4218 = vmatprep.subr.mxu0 0.0
  %4219 = vmatpush1.msra.mxu0 0.0
  %4220 = vmatprep.subr.mxu0 0.0
  %4221 = vmatpush1.msra.mxu0 0.0
  %4222 = vmatprep.subr.mxu0 0.0
  %4223 = vmatpush1.msra.mxu0 0.0
  %4224 = vmatprep.subr.mxu0 0.0
  %4225 = vmatpush1.msra.mxu0 0.0
  %4226 = vmatprep.subr.mxu0 0.0
  %4227 = vmatpush1.msra.mxu0 0.0
  %4228 = vmatprep.subr.mxu0 0.0
  %4229 = vmatpush1.msra.mxu0 0.0
  %4230 = vmatprep.subr.mxu0 0.0
  %4231 = vmatpush1.msra.mxu0 0.0
  %4232 = vmatprep.subr.mxu0 0.0
  %4233 = vmatpush1.msra.mxu0 0.0
  %4234 = vmatprep.subr.mxu0 0.0
  %4235 = vmatpush1.msra.mxu0 0.0
  %4236 = vmatprep.subr.mxu0 0.0
  %4237 = vmatpush1.msra.mxu0 0.0
  %4238 = vmatprep.subr.mxu0 0.0
  %4239 = vmatpush1.msra.mxu0 0.0
  %4240 = vmatprep.subr.mxu0 0.0
  %4241 = vmatpush1.msra.mxu0 0.0
  %4242 = vmatprep.subr.mxu0 0.0
  %4243 = vmatpush1.msra.mxu0 0.0
  %4244 = vmatprep.subr.mxu0 0.0
  %4245 = vmatpush1.msra.mxu0 0.0
  %4246 = vmatprep.subr.mxu0 0.0
  %4247 = vmatpush1.msra.mxu0 0.0
  %4248 = vmatprep.subr.mxu0 0.0
  %4249 = vmatpush1.msra.mxu0 0.0
  %4250 = vmatprep.subr.mxu0 0.0
  %4251 = vmatpush1.msra.mxu0 0.0
  %4252 = vmatprep.subr.mxu0 0.0
  %4253 = vmatpush1.msra.mxu0 0.0
  %4254 = vmatprep.subr.mxu0 0.0
  %4255 = vmatpush1.msra.mxu0 0.0
  %4256 = vmatprep.subr.mxu0 0.0
  %4257 = vmatpush1.msra.mxu0 0.0
  %4258 = vmatprep.subr.mxu0 0.0
  %4259 = vmatpush1.msra.mxu0 0.0
  %4260 = vmatprep.subr.mxu0 0.0
  %4261 = vmatpush1.msra.mxu0 0.0
  %4262 = vmatprep.subr.mxu0 0.0
  %4263 = vmatpush1.msra.mxu0 0.0
  %4264 = vmatprep.subr.mxu0 0.0
  %4265 = vmatpush1.msra.mxu0 0.0
  %4266 = vmatprep.subr.mxu0 0.0
  %4267 = vmatpush1.msra.mxu0 0.0
  %4268 = vmatprep.subr.mxu0 0.0
  %4269 = vmatpush1.msra.mxu0 0.0
  %4270 = vmatprep.mubr.f32.mxu0 0.0
  %4271 = vmatmul.mubr.f32.gmra.mrb[0].mxu0 %v4062
  %v4272 = vpop.f32.mrb[0].mxu0
  %v4273 = vadd.f32 0.0, %v4272
  %v4274 = vpop.f32.mrb[0].mxu0
  %v4275 = vadd.f32 0.0, %v4274
  %4276 = vdwg.mxu0
  %v4277 = vadd.f32 %v3887, %v4131
  %v4278 = vadd.f32 %v3889, %v4133
  %v4279 = vadd.f32 %v3958, %v4202
  %v4280 = vadd.f32 %v3960, %v4204
  %v4281 = vadd.f32 %v4029, %v4273
  %v4282 = vadd.f32 %v4031, %v4275
  %s4283 = scalar_lea.vmem %s11, 12
  %v4284 = vld [vmem:[%s4283] sm:$0xf]
  %4285 = vrot.lane.b32.xlu0 %v3532, 1
  %v4286 = vpop.permute.xlu0 %4285
  %4287 = vrot.lane.b32.xlu0 %v3533, 1
  %v4288 = vpop.permute.xlu0 %4287
  %4289 = vrot.lane.b32.xlu0 %v3534, 1
  %v4290 = vpop.permute.xlu0 %4289
  %4291 = vrot.lane.b32.xlu0 %v3535, 1
  %v4292 = vpop.permute.xlu0 %4291
  %4293 = vrot.lane.b32.xlu0 %v3536, 1
  %v4294 = vpop.permute.xlu0 %4293
  %4295 = vrot.lane.b32.xlu0 %v3537, 1
  %v4296 = vpop.permute.xlu0 %4295
  %4297 = vrot.lane.b32.xlu0 %v3538, 1
  %v4298 = vpop.permute.xlu0 %4297
  %v4299 = vsel %vm1194, %v4286, %v4288
  %v4300 = vsel %vm1194, %v4288, %v4290
  %v4301 = vsel %vm1194, %v4290, %v4292
  %v4302 = vsel %vm1194, %v4292, %v4294
  %v4303 = vsel %vm1194, %v4294, %v4296
  %v4304 = vsel %vm1194, %v4296, %v4298
  %v4312 = vsel %vm467, %v4284, 0
  %4314 = vmatprep.subr.mxu0 %v4300
  %4315 = vmatpush1.msra.mxu0 %v4299
  %4316 = vmatprep.subr.mxu0 0.0
  %4317 = vmatpush1.msra.mxu0 0.0
  %4318 = vmatprep.subr.mxu0 0.0
  %4319 = vmatpush1.msra.mxu0 0.0
  %4320 = vmatprep.subr.mxu0 0.0
  %4321 = vmatpush1.msra.mxu0 0.0
  %4322 = vmatprep.subr.mxu0 0.0
  %4323 = vmatpush1.msra.mxu0 0.0
  %4324 = vmatprep.subr.mxu0 0.0
  %4325 = vmatpush1.msra.mxu0 0.0
  %4326 = vmatprep.subr.mxu0 0.0
  %4327 = vmatpush1.msra.mxu0 0.0
  %4328 = vmatprep.subr.mxu0 0.0
  %4329 = vmatpush1.msra.mxu0 0.0
  %4330 = vmatprep.subr.mxu0 0.0
  %4331 = vmatpush1.msra.mxu0 0.0
  %4332 = vmatprep.subr.mxu0 0.0
  %4333 = vmatpush1.msra.mxu0 0.0
  %4334 = vmatprep.subr.mxu0 0.0
  %4335 = vmatpush1.msra.mxu0 0.0
  %4336 = vmatprep.subr.mxu0 0.0
  %4337 = vmatpush1.msra.mxu0 0.0
  %4338 = vmatprep.subr.mxu0 0.0
  %4339 = vmatpush1.msra.mxu0 0.0
  %4340 = vmatprep.subr.mxu0 0.0
  %4341 = vmatpush1.msra.mxu0 0.0
  %4342 = vmatprep.subr.mxu0 0.0
  %4343 = vmatpush1.msra.mxu0 0.0
  %4344 = vmatprep.subr.mxu0 0.0
  %4345 = vmatpush1.msra.mxu0 0.0
  %4346 = vmatprep.subr.mxu0 0.0
  %4347 = vmatpush1.msra.mxu0 0.0
  %4348 = vmatprep.subr.mxu0 0.0
  %4349 = vmatpush1.msra.mxu0 0.0
  %4350 = vmatprep.subr.mxu0 0.0
  %4351 = vmatpush1.msra.mxu0 0.0
  %4352 = vmatprep.subr.mxu0 0.0
  %4353 = vmatpush1.msra.mxu0 0.0
  %4354 = vmatprep.subr.mxu0 0.0
  %4355 = vmatpush1.msra.mxu0 0.0
  %4356 = vmatprep.subr.mxu0 0.0
  %4357 = vmatpush1.msra.mxu0 0.0
  %4358 = vmatprep.subr.mxu0 0.0
  %4359 = vmatpush1.msra.mxu0 0.0
  %4360 = vmatprep.subr.mxu0 0.0
  %4361 = vmatpush1.msra.mxu0 0.0
  %4362 = vmatprep.subr.mxu0 0.0
  %4363 = vmatpush1.msra.mxu0 0.0
  %4364 = vmatprep.subr.mxu0 0.0
  %4365 = vmatpush1.msra.mxu0 0.0
  %4366 = vmatprep.subr.mxu0 0.0
  %4367 = vmatpush1.msra.mxu0 0.0
  %4368 = vmatprep.subr.mxu0 0.0
  %4369 = vmatpush1.msra.mxu0 0.0
  %4370 = vmatprep.subr.mxu0 0.0
  %4371 = vmatpush1.msra.mxu0 0.0
  %4372 = vmatprep.subr.mxu0 0.0
  %4373 = vmatpush1.msra.mxu0 0.0
  %4374 = vmatprep.subr.mxu0 0.0
  %4375 = vmatpush1.msra.mxu0 0.0
  %4376 = vmatprep.subr.mxu0 0.0
  %4377 = vmatpush1.msra.mxu0 0.0
  %4378 = vmatprep.mubr.f32.mxu0 0.0
  %4379 = vmatmul.mubr.f32.gmra.mrb[0].mxu0 %v4312
  %v4380 = vpop.f32.mrb[0].mxu0
  %v4381 = vadd.f32 0.0, %v4380
  %v4382 = vpop.f32.mrb[0].mxu0
  %v4383 = vadd.f32 0.0, %v4382
  %4384 = vdwg.mxu0
  %4385 = vmatprep.subr.mxu0 %v4302
  %4386 = vmatpush1.msra.mxu0 %v4301
  %4387 = vmatprep.subr.mxu0 0.0
  %4388 = vmatpush1.msra.mxu0 0.0
  %4389 = vmatprep.subr.mxu0 0.0
  %4390 = vmatpush1.msra.mxu0 0.0
  %4391 = vmatprep.subr.mxu0 0.0
  %4392 = vmatpush1.msra.mxu0 0.0
  %4393 = vmatprep.subr.mxu0 0.0
  %4394 = vmatpush1.msra.mxu0 0.0
  %4395 = vmatprep.subr.mxu0 0.0
  %4396 = vmatpush1.msra.mxu0 0.0
  %4397 = vmatprep.subr.mxu0 0.0
  %4398 = vmatpush1.msra.mxu0 0.0
  %4399 = vmatprep.subr.mxu0 0.0
  %4400 = vmatpush1.msra.mxu0 0.0
  %4401 = vmatprep.subr.mxu0 0.0
  %4402 = vmatpush1.msra.mxu0 0.0
  %4403 = vmatprep.subr.mxu0 0.0
  %4404 = vmatpush1.msra.mxu0 0.0
  %4405 = vmatprep.subr.mxu0 0.0
  %4406 = vmatpush1.msra.mxu0 0.0
  %4407 = vmatprep.subr.mxu0 0.0
  %4408 = vmatpush1.msra.mxu0 0.0
  %4409 = vmatprep.subr.mxu0 0.0
  %4410 = vmatpush1.msra.mxu0 0.0
  %4411 = vmatprep.subr.mxu0 0.0
  %4412 = vmatpush1.msra.mxu0 0.0
  %4413 = vmatprep.subr.mxu0 0.0
  %4414 = vmatpush1.msra.mxu0 0.0
  %4415 = vmatprep.subr.mxu0 0.0
  %4416 = vmatpush1.msra.mxu0 0.0
  %4417 = vmatprep.subr.mxu0 0.0
  %4418 = vmatpush1.msra.mxu0 0.0
  %4419 = vmatprep.subr.mxu0 0.0
  %4420 = vmatpush1.msra.mxu0 0.0
  %4421 = vmatprep.subr.mxu0 0.0
  %4422 = vmatpush1.msra.mxu0 0.0
  %4423 = vmatprep.subr.mxu0 0.0
  %4424 = vmatpush1.msra.mxu0 0.0
  %4425 = vmatprep.subr.mxu0 0.0
  %4426 = vmatpush1.msra.mxu0 0.0
  %4427 = vmatprep.subr.mxu0 0.0
  %4428 = vmatpush1.msra.mxu0 0.0
  %4429 = vmatprep.subr.mxu0 0.0
  %4430 = vmatpush1.msra.mxu0 0.0
  %4431 = vmatprep.subr.mxu0 0.0
  %4432 = vmatpush1.msra.mxu0 0.0
  %4433 = vmatprep.subr.mxu0 0.0
  %4434 = vmatpush1.msra.mxu0 0.0
  %4435 = vmatprep.subr.mxu0 0.0
  %4436 = vmatpush1.msra.mxu0 0.0
  %4437 = vmatprep.subr.mxu0 0.0
  %4438 = vmatpush1.msra.mxu0 0.0
  %4439 = vmatprep.subr.mxu0 0.0
  %4440 = vmatpush1.msra.mxu0 0.0
  %4441 = vmatprep.subr.mxu0 0.0
  %4442 = vmatpush1.msra.mxu0 0.0
  %4443 = vmatprep.subr.mxu0 0.0
  %4444 = vmatpush1.msra.mxu0 0.0
  %4445 = vmatprep.subr.mxu0 0.0
  %4446 = vmatpush1.msra.mxu0 0.0
  %4447 = vmatprep.subr.mxu0 0.0
  %4448 = vmatpush1.msra.mxu0 0.0
  %4449 = vmatprep.mubr.f32.mxu0 0.0
  %4450 = vmatmul.mubr.f32.gmra.mrb[0].mxu0 %v4312
  %v4451 = vpop.f32.mrb[0].mxu0
  %v4452 = vadd.f32 0.0, %v4451
  %v4453 = vpop.f32.mrb[0].mxu0
  %v4454 = vadd.f32 0.0, %v4453
  %4455 = vdwg.mxu0
  %4456 = vmatprep.subr.mxu0 %v4304
  %4457 = vmatpush1.msra.mxu0 %v4303
  %4458 = vmatprep.subr.mxu0 0.0
  %4459 = vmatpush1.msra.mxu0 0.0
  %4460 = vmatprep.subr.mxu0 0.0
  %4461 = vmatpush1.msra.mxu0 0.0
  %4462 = vmatprep.subr.mxu0 0.0
  %4463 = vmatpush1.msra.mxu0 0.0
  %4464 = vmatprep.subr.mxu0 0.0
  %4465 = vmatpush1.msra.mxu0 0.0
  %4466 = vmatprep.subr.mxu0 0.0
  %4467 = vmatpush1.msra.mxu0 0.0
  %4468 = vmatprep.subr.mxu0 0.0
  %4469 = vmatpush1.msra.mxu0 0.0
  %4470 = vmatprep.subr.mxu0 0.0
  %4471 = vmatpush1.msra.mxu0 0.0
  %4472 = vmatprep.subr.mxu0 0.0
  %4473 = vmatpush1.msra.mxu0 0.0
  %4474 = vmatprep.subr.mxu0 0.0
  %4475 = vmatpush1.msra.mxu0 0.0
  %4476 = vmatprep.subr.mxu0 0.0
  %4477 = vmatpush1.msra.mxu0 0.0
  %4478 = vmatprep.subr.mxu0 0.0
  %4479 = vmatpush1.msra.mxu0 0.0
  %4480 = vmatprep.subr.mxu0 0.0
  %4481 = vmatpush1.msra.mxu0 0.0
  %4482 = vmatprep.subr.mxu0 0.0
  %4483 = vmatpush1.msra.mxu0 0.0
  %4484 = vmatprep.subr.mxu0 0.0
  %4485 = vmatpush1.msra.mxu0 0.0
  %4486 = vmatprep.subr.mxu0 0.0
  %4487 = vmatpush1.msra.mxu0 0.0
  %4488 = vmatprep.subr.mxu0 0.0
  %4489 = vmatpush1.msra.mxu0 0.0
  %4490 = vmatprep.subr.mxu0 0.0
  %4491 = vmatpush1.msra.mxu0 0.0
  %4492 = vmatprep.subr.mxu0 0.0
  %4493 = vmatpush1.msra.mxu0 0.0
  %4494 = vmatprep.subr.mxu0 0.0
  %4495 = vmatpush1.msra.mxu0 0.0
  %4496 = vmatprep.subr.mxu0 0.0
  %4497 = vmatpush1.msra.mxu0 0.0
  %4498 = vmatprep.subr.mxu0 0.0
  %4499 = vmatpush1.msra.mxu0 0.0
  %4500 = vmatprep.subr.mxu0 0.0
  %4501 = vmatpush1.msra.mxu0 0.0
  %4502 = vmatprep.subr.mxu0 0.0
  %4503 = vmatpush1.msra.mxu0 0.0
  %4504 = vmatprep.subr.mxu0 0.0
  %4505 = vmatpush1.msra.mxu0 0.0
  %4506 = vmatprep.subr.mxu0 0.0
  %4507 = vmatpush1.msra.mxu0 0.0
  %4508 = vmatprep.subr.mxu0 0.0
  %4509 = vmatpush1.msra.mxu0 0.0
  %4510 = vmatprep.subr.mxu0 0.0
  %4511 = vmatpush1.msra.mxu0 0.0
  %4512 = vmatprep.subr.mxu0 0.0
  %4513 = vmatpush1.msra.mxu0 0.0
  %4514 = vmatprep.subr.mxu0 0.0
  %4515 = vmatpush1.msra.mxu0 0.0
  %4516 = vmatprep.subr.mxu0 0.0
  %4517 = vmatpush1.msra.mxu0 0.0
  %4518 = vmatprep.subr.mxu0 0.0
  %4519 = vmatpush1.msra.mxu0 0.0
  %4520 = vmatprep.mubr.f32.mxu0 0.0
  %4521 = vmatmul.mubr.f32.gmra.mrb[0].mxu0 %v4312
  %v4522 = vpop.f32.mrb[0].mxu0
  %v4523 = vadd.f32 0.0, %v4522
  %v4524 = vpop.f32.mrb[0].mxu0
  %v4525 = vadd.f32 0.0, %v4524
  %4526 = vdwg.mxu0
  %v4527 = vadd.f32 %v4277, %v4381
  %v4528 = vadd.f32 %v4278, %v4383
  %v4529 = vadd.f32 %v4279, %v4452
  %v4530 = vadd.f32 %v4280, %v4454
  %v4531 = vadd.f32 %v4281, %v4523
  %v4532 = vadd.f32 %v4282, %v4525
  %s4533 = scalar_lea.vmem %s11, 16
  %v4534 = vld [vmem:[%s4533] sm:$0xf]
  %v4536 = vsel %vm467, %v4534, 0
  %4538 = vmatprep.subr.mxu0 %v3534
  %4539 = vmatpush1.msra.mxu0 %v3533
  %4540 = vmatprep.subr.mxu0 0.0
  %4541 = vmatpush1.msra.mxu0 0.0
  %4542 = vmatprep.subr.mxu0 0.0
  %4543 = vmatpush1.msra.mxu0 0.0
  %4544 = vmatprep.subr.mxu0 0.0
  %4545 = vmatpush1.msra.mxu0 0.0
  %4546 = vmatprep.subr.mxu0 0.0
  %4547 = vmatpush1.msra.mxu0 0.0
  %4548 = vmatprep.subr.mxu0 0.0
  %4549 = vmatpush1.msra.mxu0 0.0
  %4550 = vmatprep.subr.mxu0 0.0
  %4551 = vmatpush1.msra.mxu0 0.0
  %4552 = vmatprep.subr.mxu0 0.0
  %4553 = vmatpush1.msra.mxu0 0.0
  %4554 = vmatprep.subr.mxu0 0.0
  %4555 = vmatpush1.msra.mxu0 0.0
  %4556 = vmatprep.subr.mxu0 0.0
  %4557 = vmatpush1.msra.mxu0 0.0
  %4558 = vmatprep.subr.mxu0 0.0
  %4559 = vmatpush1.msra.mxu0 0.0
  %4560 = vmatprep.subr.mxu0 0.0
  %4561 = vmatpush1.msra.mxu0 0.0
  %4562 = vmatprep.subr.mxu0 0.0
  %4563 = vmatpush1.msra.mxu0 0.0
  %4564 = vmatprep.subr.mxu0 0.0
  %4565 = vmatpush1.msra.mxu0 0.0
  %4566 = vmatprep.subr.mxu0 0.0
  %4567 = vmatpush1.msra.mxu0 0.0
  %4568 = vmatprep.subr.mxu0 0.0
  %4569 = vmatpush1.msra.mxu0 0.0
  %4570 = vmatprep.subr.mxu0 0.0
  %4571 = vmatpush1.msra.mxu0 0.0
  %4572 = vmatprep.subr.mxu0 0.0
  %4573 = vmatpush1.msra.mxu0 0.0
  %4574 = vmatprep.subr.mxu0 0.0
  %4575 = vmatpush1.msra.mxu0 0.0
  %4576 = vmatprep.subr.mxu0 0.0
  %4577 = vmatpush1.msra.mxu0 0.0
  %4578 = vmatprep.subr.mxu0 0.0
  %4579 = vmatpush1.msra.mxu0 0.0
  %4580 = vmatprep.subr.mxu0 0.0
  %4581 = vmatpush1.msra.mxu0 0.0
  %4582 = vmatprep.subr.mxu0 0.0
  %4583 = vmatpush1.msra.mxu0 0.0
  %4584 = vmatprep.subr.mxu0 0.0
  %4585 = vmatpush1.msra.mxu0 0.0
  %4586 = vmatprep.subr.mxu0 0.0
  %4587 = vmatpush1.msra.mxu0 0.0
  %4588 = vmatprep.subr.mxu0 0.0
  %4589 = vmatpush1.msra.mxu0 0.0
  %4590 = vmatprep.subr.mxu0 0.0
  %4591 = vmatpush1.msra.mxu0 0.0
  %4592 = vmatprep.subr.mxu0 0.0
  %4593 = vmatpush1.msra.mxu0 0.0
  %4594 = vmatprep.subr.mxu0 0.0
  %4595 = vmatpush1.msra.mxu0 0.0
  %4596 = vmatprep.subr.mxu0 0.0
  %4597 = vmatpush1.msra.mxu0 0.0
  %4598 = vmatprep.subr.mxu0 0.0
  %4599 = vmatpush1.msra.mxu0 0.0
  %4600 = vmatprep.subr.mxu0 0.0
  %4601 = vmatpush1.msra.mxu0 0.0
  %4602 = vmatprep.mubr.f32.mxu0 0.0
  %4603 = vmatmul.mubr.f32.gmra.mrb[0].mxu0 %v4536
  %v4604 = vpop.f32.mrb[0].mxu0
  %v4605 = vadd.f32 0.0, %v4604
  %v4606 = vpop.f32.mrb[0].mxu0
  %v4607 = vadd.f32 0.0, %v4606
  %4608 = vdwg.mxu0
  %4609 = vmatprep.subr.mxu0 %v3536
  %4610 = vmatpush1.msra.mxu0 %v3535
  %4611 = vmatprep.subr.mxu0 0.0
  %4612 = vmatpush1.msra.mxu0 0.0
  %4613 = vmatprep.subr.mxu0 0.0
  %4614 = vmatpush1.msra.mxu0 0.0
  %4615 = vmatprep.subr.mxu0 0.0
  %4616 = vmatpush1.msra.mxu0 0.0
  %4617 = vmatprep.subr.mxu0 0.0
  %4618 = vmatpush1.msra.mxu0 0.0
  %4619 = vmatprep.subr.mxu0 0.0
  %4620 = vmatpush1.msra.mxu0 0.0
  %4621 = vmatprep.subr.mxu0 0.0
  %4622 = vmatpush1.msra.mxu0 0.0
  %4623 = vmatprep.subr.mxu0 0.0
  %4624 = vmatpush1.msra.mxu0 0.0
  %4625 = vmatprep.subr.mxu0 0.0
  %4626 = vmatpush1.msra.mxu0 0.0
  %4627 = vmatprep.subr.mxu0 0.0
  %4628 = vmatpush1.msra.mxu0 0.0
  %4629 = vmatprep.subr.mxu0 0.0
  %4630 = vmatpush1.msra.mxu0 0.0
  %4631 = vmatprep.subr.mxu0 0.0
  %4632 = vmatpush1.msra.mxu0 0.0
  %4633 = vmatprep.subr.mxu0 0.0
  %4634 = vmatpush1.msra.mxu0 0.0
  %4635 = vmatprep.subr.mxu0 0.0
  %4636 = vmatpush1.msra.mxu0 0.0
  %4637 = vmatprep.subr.mxu0 0.0
  %4638 = vmatpush1.msra.mxu0 0.0
  %4639 = vmatprep.subr.mxu0 0.0
  %4640 = vmatpush1.msra.mxu0 0.0
  %4641 = vmatprep.subr.mxu0 0.0
  %4642 = vmatpush1.msra.mxu0 0.0
  %4643 = vmatprep.subr.mxu0 0.0
  %4644 = vmatpush1.msra.mxu0 0.0
  %4645 = vmatprep.subr.mxu0 0.0
  %4646 = vmatpush1.msra.mxu0 0.0
  %4647 = vmatprep.subr.mxu0 0.0
  %4648 = vmatpush1.msra.mxu0 0.0
  %4649 = vmatprep.subr.mxu0 0.0
  %4650 = vmatpush1.msra.mxu0 0.0
  %4651 = vmatprep.subr.mxu0 0.0
  %4652 = vmatpush1.msra.mxu0 0.0
  %4653 = vmatprep.subr.mxu0 0.0
  %4654 = vmatpush1.msra.mxu0 0.0
  %4655 = vmatprep.subr.mxu0 0.0
  %4656 = vmatpush1.msra.mxu0 0.0
  %4657 = vmatprep.subr.mxu0 0.0
  %4658 = vmatpush1.msra.mxu0 0.0
  %4659 = vmatprep.subr.mxu0 0.0
  %4660 = vmatpush1.msra.mxu0 0.0
  %4661 = vmatprep.subr.mxu0 0.0
  %4662 = vmatpush1.msra.mxu0 0.0
  %4663 = vmatprep.subr.mxu0 0.0
  %4664 = vmatpush1.msra.mxu0 0.0
  %4665 = vmatprep.subr.mxu0 0.0
  %4666 = vmatpush1.msra.mxu0 0.0
  %4667 = vmatprep.subr.mxu0 0.0
  %4668 = vmatpush1.msra.mxu0 0.0
  %4669 = vmatprep.subr.mxu0 0.0
  %4670 = vmatpush1.msra.mxu0 0.0
  %4671 = vmatprep.subr.mxu0 0.0
  %4672 = vmatpush1.msra.mxu0 0.0
  %4673 = vmatprep.mubr.f32.mxu0 0.0
  %4674 = vmatmul.mubr.f32.gmra.mrb[0].mxu0 %v4536
  %v4675 = vpop.f32.mrb[0].mxu0
  %v4676 = vadd.f32 0.0, %v4675
  %v4677 = vpop.f32.mrb[0].mxu0
  %v4678 = vadd.f32 0.0, %v4677
  %4679 = vdwg.mxu0
  %4680 = vmatprep.subr.mxu0 %v3538
  %4681 = vmatpush1.msra.mxu0 %v3537
  %4682 = vmatprep.subr.mxu0 0.0
  %4683 = vmatpush1.msra.mxu0 0.0
  %4684 = vmatprep.subr.mxu0 0.0
  %4685 = vmatpush1.msra.mxu0 0.0
  %4686 = vmatprep.subr.mxu0 0.0
  %4687 = vmatpush1.msra.mxu0 0.0
  %4688 = vmatprep.subr.mxu0 0.0
  %4689 = vmatpush1.msra.mxu0 0.0
  %4690 = vmatprep.subr.mxu0 0.0
  %4691 = vmatpush1.msra.mxu0 0.0
  %4692 = vmatprep.subr.mxu0 0.0
  %4693 = vmatpush1.msra.mxu0 0.0
  %4694 = vmatprep.subr.mxu0 0.0
  %4695 = vmatpush1.msra.mxu0 0.0
  %4696 = vmatprep.subr.mxu0 0.0
  %4697 = vmatpush1.msra.mxu0 0.0
  %4698 = vmatprep.subr.mxu0 0.0
  %4699 = vmatpush1.msra.mxu0 0.0
  %4700 = vmatprep.subr.mxu0 0.0
  %4701 = vmatpush1.msra.mxu0 0.0
  %4702 = vmatprep.subr.mxu0 0.0
  %4703 = vmatpush1.msra.mxu0 0.0
  %4704 = vmatprep.subr.mxu0 0.0
  %4705 = vmatpush1.msra.mxu0 0.0
  %4706 = vmatprep.subr.mxu0 0.0
  %4707 = vmatpush1.msra.mxu0 0.0
  %4708 = vmatprep.subr.mxu0 0.0
  %4709 = vmatpush1.msra.mxu0 0.0
  %4710 = vmatprep.subr.mxu0 0.0
  %4711 = vmatpush1.msra.mxu0 0.0
  %4712 = vmatprep.subr.mxu0 0.0
  %4713 = vmatpush1.msra.mxu0 0.0
  %4714 = vmatprep.subr.mxu0 0.0
  %4715 = vmatpush1.msra.mxu0 0.0
  %4716 = vmatprep.subr.mxu0 0.0
  %4717 = vmatpush1.msra.mxu0 0.0
  %4718 = vmatprep.subr.mxu0 0.0
  %4719 = vmatpush1.msra.mxu0 0.0
  %4720 = vmatprep.subr.mxu0 0.0
  %4721 = vmatpush1.msra.mxu0 0.0
  %4722 = vmatprep.subr.mxu0 0.0
  %4723 = vmatpush1.msra.mxu0 0.0
  %4724 = vmatprep.subr.mxu0 0.0
  %4725 = vmatpush1.msra.mxu0 0.0
  %4726 = vmatprep.subr.mxu0 0.0
  %4727 = vmatpush1.msra.mxu0 0.0
  %4728 = vmatprep.subr.mxu0 0.0
  %4729 = vmatpush1.msra.mxu0 0.0
  %4730 = vmatprep.subr.mxu0 0.0
  %4731 = vmatpush1.msra.mxu0 0.0
  %4732 = vmatprep.subr.mxu0 0.0
  %4733 = vmatpush1.msra.mxu0 0.0
  %4734 = vmatprep.subr.mxu0 0.0
  %4735 = vmatpush1.msra.mxu0 0.0
  %4736 = vmatprep.subr.mxu0 0.0
  %4737 = vmatpush1.msra.mxu0 0.0
  %4738 = vmatprep.subr.mxu0 0.0
  %4739 = vmatpush1.msra.mxu0 0.0
  %4740 = vmatprep.subr.mxu0 0.0
  %4741 = vmatpush1.msra.mxu0 0.0
  %4742 = vmatprep.subr.mxu0 0.0
  %4743 = vmatpush1.msra.mxu0 0.0
  %4744 = vmatprep.mubr.f32.mxu0 0.0
  %4745 = vmatmul.mubr.f32.gmra.mrb[0].mxu0 %v4536
  %v4746 = vpop.f32.mrb[0].mxu0
  %v4747 = vadd.f32 0.0, %v4746
  %v4748 = vpop.f32.mrb[0].mxu0
  %v4749 = vadd.f32 0.0, %v4748
  %4750 = vdwg.mxu0
  %v4751 = vadd.f32 %v4527, %v4605
  %v4752 = vadd.f32 %v4528, %v4607
  %v4753 = vadd.f32 %v4529, %v4676
  %v4754 = vadd.f32 %v4530, %v4678
  %v4755 = vadd.f32 %v4531, %v4747
  %v4756 = vadd.f32 %v4532, %v4749
  %v4757 = vld [vmem:[#allocation2 + $0x8] sm:$0xff]
  %v4758 = vld [vmem:[#allocation2 + $0x10] sm:$0xff]
  %v4759 = vld [vmem:[#allocation2 + $0x18] sm:$0xff]
  %v4760 = vld [vmem:[#allocation2 + $0x20] sm:$0xff]
  %v4761 = vld [vmem:[#allocation2 + $0x28] sm:$0xff]
  %v4762 = vld [vmem:[#allocation2 + $0x30] sm:$0xff]
  %v4763 = vld [vmem:[#allocation2 + $0x38] sm:$0xff]
  %s4764 = scalar_lea.vmem %s11, 20
  %v4765 = vld [vmem:[%s4764] sm:$0xf]
  %4773 = vrot.lane.b32.xlu0 %v4757, 127
  %v4774 = vpop.permute.xlu0 %4773
  %4775 = vrot.lane.b32.xlu0 %v4758, 127
  %v4776 = vpop.permute.xlu0 %4775
  %4777 = vrot.lane.b32.xlu0 %v4759, 127
  %v4778 = vpop.permute.xlu0 %4777
  %4779 = vrot.lane.b32.xlu0 %v4760, 127
  %v4780 = vpop.permute.xlu0 %4779
  %4781 = vrot.lane.b32.xlu0 %v4761, 127
  %v4782 = vpop.permute.xlu0 %4781
  %4783 = vrot.lane.b32.xlu0 %v4762, 127
  %v4784 = vpop.permute.xlu0 %4783
  %4785 = vrot.lane.b32.xlu0 %v4763, 127
  %v4786 = vpop.permute.xlu0 %4785
  %v4787 = vsel %vm1683, %v4774, %v4776
  %v4788 = vsel %vm1683, %v4776, %v4778
  %v4789 = vsel %vm1683, %v4778, %v4780
  %v4790 = vsel %vm1683, %v4780, %v4782
  %v4791 = vsel %vm1683, %v4782, %v4784
  %v4792 = vsel %vm1683, %v4784, %v4786
  %v4800 = vsel %vm467, %v4765, 0
  %4802 = vmatprep.subr.mxu0 %v4788
  %4803 = vmatpush1.msra.mxu0 %v4787
  %4804 = vmatprep.subr.mxu0 0.0
  %4805 = vmatpush1.msra.mxu0 0.0
  %4806 = vmatprep.subr.mxu0 0.0
  %4807 = vmatpush1.msra.mxu0 0.0
  %4808 = vmatprep.subr.mxu0 0.0
  %4809 = vmatpush1.msra.mxu0 0.0
  %4810 = vmatprep.subr.mxu0 0.0
  %4811 = vmatpush1.msra.mxu0 0.0
  %4812 = vmatprep.subr.mxu0 0.0
  %4813 = vmatpush1.msra.mxu0 0.0
  %4814 = vmatprep.subr.mxu0 0.0
  %4815 = vmatpush1.msra.mxu0 0.0
  %4816 = vmatprep.subr.mxu0 0.0
  %4817 = vmatpush1.msra.mxu0 0.0
  %4818 = vmatprep.subr.mxu0 0.0
  %4819 = vmatpush1.msra.mxu0 0.0
  %4820 = vmatprep.subr.mxu0 0.0
  %4821 = vmatpush1.msra.mxu0 0.0
  %4822 = vmatprep.subr.mxu0 0.0
  %4823 = vmatpush1.msra.mxu0 0.0
  %4824 = vmatprep.subr.mxu0 0.0
  %4825 = vmatpush1.msra.mxu0 0.0
  %4826 = vmatprep.subr.mxu0 0.0
  %4827 = vmatpush1.msra.mxu0 0.0
  %4828 = vmatprep.subr.mxu0 0.0
  %4829 = vmatpush1.msra.mxu0 0.0
  %4830 = vmatprep.subr.mxu0 0.0
  %4831 = vmatpush1.msra.mxu0 0.0
  %4832 = vmatprep.subr.mxu0 0.0
  %4833 = vmatpush1.msra.mxu0 0.0
  %4834 = vmatprep.subr.mxu0 0.0
  %4835 = vmatpush1.msra.mxu0 0.0
  %4836 = vmatprep.subr.mxu0 0.0
  %4837 = vmatpush1.msra.mxu0 0.0
  %4838 = vmatprep.subr.mxu0 0.0
  %4839 = vmatpush1.msra.mxu0 0.0
  %4840 = vmatprep.subr.mxu0 0.0
  %4841 = vmatpush1.msra.mxu0 0.0
  %4842 = vmatprep.subr.mxu0 0.0
  %4843 = vmatpush1.msra.mxu0 0.0
  %4844 = vmatprep.subr.mxu0 0.0
  %4845 = vmatpush1.msra.mxu0 0.0
  %4846 = vmatprep.subr.mxu0 0.0
  %4847 = vmatpush1.msra.mxu0 0.0
  %4848 = vmatprep.subr.mxu0 0.0
  %4849 = vmatpush1.msra.mxu0 0.0
  %4850 = vmatprep.subr.mxu0 0.0
  %4851 = vmatpush1.msra.mxu0 0.0
  %4852 = vmatprep.subr.mxu0 0.0
  %4853 = vmatpush1.msra.mxu0 0.0
  %4854 = vmatprep.subr.mxu0 0.0
  %4855 = vmatpush1.msra.mxu0 0.0
  %4856 = vmatprep.subr.mxu0 0.0
  %4857 = vmatpush1.msra.mxu0 0.0
  %4858 = vmatprep.subr.mxu0 0.0
  %4859 = vmatpush1.msra.mxu0 0.0
  %4860 = vmatprep.subr.mxu0 0.0
  %4861 = vmatpush1.msra.mxu0 0.0
  %4862 = vmatprep.subr.mxu0 0.0
  %4863 = vmatpush1.msra.mxu0 0.0
  %4864 = vmatprep.subr.mxu0 0.0
  %4865 = vmatpush1.msra.mxu0 0.0
  %4866 = vmatprep.mubr.f32.mxu0 0.0
  %4867 = vmatmul.mubr.f32.gmra.mrb[0].mxu0 %v4800
  %v4868 = vpop.f32.mrb[0].mxu0
  %v4869 = vadd.f32 0.0, %v4868
  %v4870 = vpop.f32.mrb[0].mxu0
  %v4871 = vadd.f32 0.0, %v4870
  %4872 = vdwg.mxu0
  %4873 = vmatprep.subr.mxu0 %v4790
  %4874 = vmatpush1.msra.mxu0 %v4789
  %4875 = vmatprep.subr.mxu0 0.0
  %4876 = vmatpush1.msra.mxu0 0.0
  %4877 = vmatprep.subr.mxu0 0.0
  %4878 = vmatpush1.msra.mxu0 0.0
  %4879 = vmatprep.subr.mxu0 0.0
  %4880 = vmatpush1.msra.mxu0 0.0
  %4881 = vmatprep.subr.mxu0 0.0
  %4882 = vmatpush1.msra.mxu0 0.0
  %4883 = vmatprep.subr.mxu0 0.0
  %4884 = vmatpush1.msra.mxu0 0.0
  %4885 = vmatprep.subr.mxu0 0.0
  %4886 = vmatpush1.msra.mxu0 0.0
  %4887 = vmatprep.subr.mxu0 0.0
  %4888 = vmatpush1.msra.mxu0 0.0
  %4889 = vmatprep.subr.mxu0 0.0
  %4890 = vmatpush1.msra.mxu0 0.0
  %4891 = vmatprep.subr.mxu0 0.0
  %4892 = vmatpush1.msra.mxu0 0.0
  %4893 = vmatprep.subr.mxu0 0.0
  %4894 = vmatpush1.msra.mxu0 0.0
  %4895 = vmatprep.subr.mxu0 0.0
  %4896 = vmatpush1.msra.mxu0 0.0
  %4897 = vmatprep.subr.mxu0 0.0
  %4898 = vmatpush1.msra.mxu0 0.0
  %4899 = vmatprep.subr.mxu0 0.0
  %4900 = vmatpush1.msra.mxu0 0.0
  %4901 = vmatprep.subr.mxu0 0.0
  %4902 = vmatpush1.msra.mxu0 0.0
  %4903 = vmatprep.subr.mxu0 0.0
  %4904 = vmatpush1.msra.mxu0 0.0
  %4905 = vmatprep.subr.mxu0 0.0
  %4906 = vmatpush1.msra.mxu0 0.0
  %4907 = vmatprep.subr.mxu0 0.0
  %4908 = vmatpush1.msra.mxu0 0.0
  %4909 = vmatprep.subr.mxu0 0.0
  %4910 = vmatpush1.msra.mxu0 0.0
  %4911 = vmatprep.subr.mxu0 0.0
  %4912 = vmatpush1.msra.mxu0 0.0
  %4913 = vmatprep.subr.mxu0 0.0
  %4914 = vmatpush1.msra.mxu0 0.0
  %4915 = vmatprep.subr.mxu0 0.0
  %4916 = vmatpush1.msra.mxu0 0.0
  %4917 = vmatprep.subr.mxu0 0.0
  %4918 = vmatpush1.msra.mxu0 0.0
  %4919 = vmatprep.subr.mxu0 0.0
  %4920 = vmatpush1.msra.mxu0 0.0
  %4921 = vmatprep.subr.mxu0 0.0
  %4922 = vmatpush1.msra.mxu0 0.0
  %4923 = vmatprep.subr.mxu0 0.0
  %4924 = vmatpush1.msra.mxu0 0.0
  %4925 = vmatprep.subr.mxu0 0.0
  %4926 = vmatpush1.msra.mxu0 0.0
  %4927 = vmatprep.subr.mxu0 0.0
  %4928 = vmatpush1.msra.mxu0 0.0
  %4929 = vmatprep.subr.mxu0 0.0
  %4930 = vmatpush1.msra.mxu0 0.0
  %4931 = vmatprep.subr.mxu0 0.0
  %4932 = vmatpush1.msra.mxu0 0.0
  %4933 = vmatprep.subr.mxu0 0.0
  %4934 = vmatpush1.msra.mxu0 0.0
  %4935 = vmatprep.subr.mxu0 0.0
  %4936 = vmatpush1.msra.mxu0 0.0
  %4937 = vmatprep.mubr.f32.mxu0 0.0
  %4938 = vmatmul.mubr.f32.gmra.mrb[0].mxu0 %v4800
  %v4939 = vpop.f32.mrb[0].mxu0
  %v4940 = vadd.f32 0.0, %v4939
  %v4941 = vpop.f32.mrb[0].mxu0
  %v4942 = vadd.f32 0.0, %v4941
  %4943 = vdwg.mxu0
  %4944 = vmatprep.subr.mxu0 %v4792
  %4945 = vmatpush1.msra.mxu0 %v4791
  %4946 = vmatprep.subr.mxu0 0.0
  %4947 = vmatpush1.msra.mxu0 0.0
  %4948 = vmatprep.subr.mxu0 0.0
  %4949 = vmatpush1.msra.mxu0 0.0
  %4950 = vmatprep.subr.mxu0 0.0
  %4951 = vmatpush1.msra.mxu0 0.0
  %4952 = vmatprep.subr.mxu0 0.0
  %4953 = vmatpush1.msra.mxu0 0.0
  %4954 = vmatprep.subr.mxu0 0.0
  %4955 = vmatpush1.msra.mxu0 0.0
  %4956 = vmatprep.subr.mxu0 0.0
  %4957 = vmatpush1.msra.mxu0 0.0
  %4958 = vmatprep.subr.mxu0 0.0
  %4959 = vmatpush1.msra.mxu0 0.0
  %4960 = vmatprep.subr.mxu0 0.0
  %4961 = vmatpush1.msra.mxu0 0.0
  %4962 = vmatprep.subr.mxu0 0.0
  %4963 = vmatpush1.msra.mxu0 0.0
  %4964 = vmatprep.subr.mxu0 0.0
  %4965 = vmatpush1.msra.mxu0 0.0
  %4966 = vmatprep.subr.mxu0 0.0
  %4967 = vmatpush1.msra.mxu0 0.0
  %4968 = vmatprep.subr.mxu0 0.0
  %4969 = vmatpush1.msra.mxu0 0.0
  %4970 = vmatprep.subr.mxu0 0.0
  %4971 = vmatpush1.msra.mxu0 0.0
  %4972 = vmatprep.subr.mxu0 0.0
  %4973 = vmatpush1.msra.mxu0 0.0
  %4974 = vmatprep.subr.mxu0 0.0
  %4975 = vmatpush1.msra.mxu0 0.0
  %4976 = vmatprep.subr.mxu0 0.0
  %4977 = vmatpush1.msra.mxu0 0.0
  %4978 = vmatprep.subr.mxu0 0.0
  %4979 = vmatpush1.msra.mxu0 0.0
  %4980 = vmatprep.subr.mxu0 0.0
  %4981 = vmatpush1.msra.mxu0 0.0
  %4982 = vmatprep.subr.mxu0 0.0
  %4983 = vmatpush1.msra.mxu0 0.0
  %4984 = vmatprep.subr.mxu0 0.0
  %4985 = vmatpush1.msra.mxu0 0.0
  %4986 = vmatprep.subr.mxu0 0.0
  %4987 = vmatpush1.msra.mxu0 0.0
  %4988 = vmatprep.subr.mxu0 0.0
  %4989 = vmatpush1.msra.mxu0 0.0
  %4990 = vmatprep.subr.mxu0 0.0
  %4991 = vmatpush1.msra.mxu0 0.0
  %4992 = vmatprep.subr.mxu0 0.0
  %4993 = vmatpush1.msra.mxu0 0.0
  %4994 = vmatprep.subr.mxu0 0.0
  %4995 = vmatpush1.msra.mxu0 0.0
  %4996 = vmatprep.subr.mxu0 0.0
  %4997 = vmatpush1.msra.mxu0 0.0
  %4998 = vmatprep.subr.mxu0 0.0
  %4999 = vmatpush1.msra.mxu0 0.0
  %5000 = vmatprep.subr.mxu0 0.0
  %5001 = vmatpush1.msra.mxu0 0.0
  %5002 = vmatprep.subr.mxu0 0.0
  %5003 = vmatpush1.msra.mxu0 0.0
  %5004 = vmatprep.subr.mxu0 0.0
  %5005 = vmatpush1.msra.mxu0 0.0
  %5006 = vmatprep.subr.mxu0 0.0
  %5007 = vmatpush1.msra.mxu0 0.0
  %5008 = vmatprep.mubr.f32.mxu0 0.0
  %5009 = vmatmul.mubr.f32.gmra.mrb[0].mxu0 %v4800
  %v5010 = vpop.f32.mrb[0].mxu0
  %v5011 = vadd.f32 0.0, %v5010
  %v5012 = vpop.f32.mrb[0].mxu0
  %v5013 = vadd.f32 0.0, %v5012
  %5014 = vdwg.mxu0
  %v5015 = vadd.f32 %v4751, %v4869
  %v5016 = vadd.f32 %v4752, %v4871
  %v5017 = vadd.f32 %v4753, %v4940
  %v5018 = vadd.f32 %v4754, %v4942
  %v5019 = vadd.f32 %v4755, %v5011
  %v5020 = vadd.f32 %v4756, %v5013
  %s5021 = scalar_lea.vmem %s11, 24
  %v5022 = vld [vmem:[%s5021] sm:$0xf]
  %5023 = vrot.lane.b32.xlu0 %v4757, 111
  %v5024 = vpop.permute.xlu0 %5023
  %5025 = vrot.lane.b32.xlu0 %v4758, 111
  %v5026 = vpop.permute.xlu0 %5025
  %5027 = vrot.lane.b32.xlu0 %v4759, 111
  %v5028 = vpop.permute.xlu0 %5027
  %5029 = vrot.lane.b32.xlu0 %v4760, 111
  %v5030 = vpop.permute.xlu0 %5029
  %5031 = vrot.lane.b32.xlu0 %v4761, 111
  %v5032 = vpop.permute.xlu0 %5031
  %5033 = vrot.lane.b32.xlu0 %v4762, 111
  %v5034 = vpop.permute.xlu0 %5033
  %5035 = vrot.lane.b32.xlu0 %v4763, 111
  %v5036 = vpop.permute.xlu0 %5035
  %v5037 = vsel %vm1934, %v5024, %v5026
  %v5038 = vsel %vm1934, %v5026, %v5028
  %v5039 = vsel %vm1934, %v5028, %v5030
  %v5040 = vsel %vm1934, %v5030, %v5032
  %v5041 = vsel %vm1934, %v5032, %v5034
  %v5042 = vsel %vm1934, %v5034, %v5036
  %v5050 = vsel %vm467, %v5022, 0
  %5052 = vmatprep.subr.mxu0 %v5038
  %5053 = vmatpush1.msra.mxu0 %v5037
  %5054 = vmatprep.subr.mxu0 0.0
  %5055 = vmatpush1.msra.mxu0 0.0
  %5056 = vmatprep.subr.mxu0 0.0
  %5057 = vmatpush1.msra.mxu0 0.0
  %5058 = vmatprep.subr.mxu0 0.0
  %5059 = vmatpush1.msra.mxu0 0.0
  %5060 = vmatprep.subr.mxu0 0.0
  %5061 = vmatpush1.msra.mxu0 0.0
  %5062 = vmatprep.subr.mxu0 0.0
  %5063 = vmatpush1.msra.mxu0 0.0
  %5064 = vmatprep.subr.mxu0 0.0
  %5065 = vmatpush1.msra.mxu0 0.0
  %5066 = vmatprep.subr.mxu0 0.0
  %5067 = vmatpush1.msra.mxu0 0.0
  %5068 = vmatprep.subr.mxu0 0.0
  %5069 = vmatpush1.msra.mxu0 0.0
  %5070 = vmatprep.subr.mxu0 0.0
  %5071 = vmatpush1.msra.mxu0 0.0
  %5072 = vmatprep.subr.mxu0 0.0
  %5073 = vmatpush1.msra.mxu0 0.0
  %5074 = vmatprep.subr.mxu0 0.0
  %5075 = vmatpush1.msra.mxu0 0.0
  %5076 = vmatprep.subr.mxu0 0.0
  %5077 = vmatpush1.msra.mxu0 0.0
  %5078 = vmatprep.subr.mxu0 0.0
  %5079 = vmatpush1.msra.mxu0 0.0
  %5080 = vmatprep.subr.mxu0 0.0
  %5081 = vmatpush1.msra.mxu0 0.0
  %5082 = vmatprep.subr.mxu0 0.0
  %5083 = vmatpush1.msra.mxu0 0.0
  %5084 = vmatprep.subr.mxu0 0.0
  %5085 = vmatpush1.msra.mxu0 0.0
  %5086 = vmatprep.subr.mxu0 0.0
  %5087 = vmatpush1.msra.mxu0 0.0
  %5088 = vmatprep.subr.mxu0 0.0
  %5089 = vmatpush1.msra.mxu0 0.0
  %5090 = vmatprep.subr.mxu0 0.0
  %5091 = vmatpush1.msra.mxu0 0.0
  %5092 = vmatprep.subr.mxu0 0.0
  %5093 = vmatpush1.msra.mxu0 0.0
  %5094 = vmatprep.subr.mxu0 0.0
  %5095 = vmatpush1.msra.mxu0 0.0
  %5096 = vmatprep.subr.mxu0 0.0
  %5097 = vmatpush1.msra.mxu0 0.0
  %5098 = vmatprep.subr.mxu0 0.0
  %5099 = vmatpush1.msra.mxu0 0.0
  %5100 = vmatprep.subr.mxu0 0.0
  %5101 = vmatpush1.msra.mxu0 0.0
  %5102 = vmatprep.subr.mxu0 0.0
  %5103 = vmatpush1.msra.mxu0 0.0
  %5104 = vmatprep.subr.mxu0 0.0
  %5105 = vmatpush1.msra.mxu0 0.0
  %5106 = vmatprep.subr.mxu0 0.0
  %5107 = vmatpush1.msra.mxu0 0.0
  %5108 = vmatprep.subr.mxu0 0.0
  %5109 = vmatpush1.msra.mxu0 0.0
  %5110 = vmatprep.subr.mxu0 0.0
  %5111 = vmatpush1.msra.mxu0 0.0
  %5112 = vmatprep.subr.mxu0 0.0
  %5113 = vmatpush1.msra.mxu0 0.0
  %5114 = vmatprep.subr.mxu0 0.0
  %5115 = vmatpush1.msra.mxu0 0.0
  %5116 = vmatprep.mubr.f32.mxu0 0.0
  %5117 = vmatmul.mubr.f32.gmra.mrb[0].mxu0 %v5050
  %v5118 = vpop.f32.mrb[0].mxu0
  %v5119 = vadd.f32 0.0, %v5118
  %v5120 = vpop.f32.mrb[0].mxu0
  %v5121 = vadd.f32 0.0, %v5120
  %5122 = vdwg.mxu0
  %5123 = vmatprep.subr.mxu0 %v5040
  %5124 = vmatpush1.msra.mxu0 %v5039
  %5125 = vmatprep.subr.mxu0 0.0
  %5126 = vmatpush1.msra.mxu0 0.0
  %5127 = vmatprep.subr.mxu0 0.0
  %5128 = vmatpush1.msra.mxu0 0.0
  %5129 = vmatprep.subr.mxu0 0.0
  %5130 = vmatpush1.msra.mxu0 0.0
  %5131 = vmatprep.subr.mxu0 0.0
  %5132 = vmatpush1.msra.mxu0 0.0
  %5133 = vmatprep.subr.mxu0 0.0
  %5134 = vmatpush1.msra.mxu0 0.0
  %5135 = vmatprep.subr.mxu0 0.0
  %5136 = vmatpush1.msra.mxu0 0.0
  %5137 = vmatprep.subr.mxu0 0.0
  %5138 = vmatpush1.msra.mxu0 0.0
  %5139 = vmatprep.subr.mxu0 0.0
  %5140 = vmatpush1.msra.mxu0 0.0
  %5141 = vmatprep.subr.mxu0 0.0
  %5142 = vmatpush1.msra.mxu0 0.0
  %5143 = vmatprep.subr.mxu0 0.0
  %5144 = vmatpush1.msra.mxu0 0.0
  %5145 = vmatprep.subr.mxu0 0.0
  %5146 = vmatpush1.msra.mxu0 0.0
  %5147 = vmatprep.subr.mxu0 0.0
  %5148 = vmatpush1.msra.mxu0 0.0
  %5149 = vmatprep.subr.mxu0 0.0
  %5150 = vmatpush1.msra.mxu0 0.0
  %5151 = vmatprep.subr.mxu0 0.0
  %5152 = vmatpush1.msra.mxu0 0.0
  %5153 = vmatprep.subr.mxu0 0.0
  %5154 = vmatpush1.msra.mxu0 0.0
  %5155 = vmatprep.subr.mxu0 0.0
  %5156 = vmatpush1.msra.mxu0 0.0
  %5157 = vmatprep.subr.mxu0 0.0
  %5158 = vmatpush1.msra.mxu0 0.0
  %5159 = vmatprep.subr.mxu0 0.0
  %5160 = vmatpush1.msra.mxu0 0.0
  %5161 = vmatprep.subr.mxu0 0.0
  %5162 = vmatpush1.msra.mxu0 0.0
  %5163 = vmatprep.subr.mxu0 0.0
  %5164 = vmatpush1.msra.mxu0 0.0
  %5165 = vmatprep.subr.mxu0 0.0
  %5166 = vmatpush1.msra.mxu0 0.0
  %5167 = vmatprep.subr.mxu0 0.0
  %5168 = vmatpush1.msra.mxu0 0.0
  %5169 = vmatprep.subr.mxu0 0.0
  %5170 = vmatpush1.msra.mxu0 0.0
  %5171 = vmatprep.subr.mxu0 0.0
  %5172 = vmatpush1.msra.mxu0 0.0
  %5173 = vmatprep.subr.mxu0 0.0
  %5174 = vmatpush1.msra.mxu0 0.0
  %5175 = vmatprep.subr.mxu0 0.0
  %5176 = vmatpush1.msra.mxu0 0.0
  %5177 = vmatprep.subr.mxu0 0.0
  %5178 = vmatpush1.msra.mxu0 0.0
  %5179 = vmatprep.subr.mxu0 0.0
  %5180 = vmatpush1.msra.mxu0 0.0
  %5181 = vmatprep.subr.mxu0 0.0
  %5182 = vmatpush1.msra.mxu0 0.0
  %5183 = vmatprep.subr.mxu0 0.0
  %5184 = vmatpush1.msra.mxu0 0.0
  %5185 = vmatprep.subr.mxu0 0.0
  %5186 = vmatpush1.msra.mxu0 0.0
  %5187 = vmatprep.mubr.f32.mxu0 0.0
  %5188 = vmatmul.mubr.f32.gmra.mrb[0].mxu0 %v5050
  %v5189 = vpop.f32.mrb[0].mxu0
  %v5190 = vadd.f32 0.0, %v5189
  %v5191 = vpop.f32.mrb[0].mxu0
  %v5192 = vadd.f32 0.0, %v5191
  %5193 = vdwg.mxu0
  %5194 = vmatprep.subr.mxu0 %v5042
  %5195 = vmatpush1.msra.mxu0 %v5041
  %5196 = vmatprep.subr.mxu0 0.0
  %5197 = vmatpush1.msra.mxu0 0.0
  %5198 = vmatprep.subr.mxu0 0.0
  %5199 = vmatpush1.msra.mxu0 0.0
  %5200 = vmatprep.subr.mxu0 0.0
  %5201 = vmatpush1.msra.mxu0 0.0
  %5202 = vmatprep.subr.mxu0 0.0
  %5203 = vmatpush1.msra.mxu0 0.0
  %5204 = vmatprep.subr.mxu0 0.0
  %5205 = vmatpush1.msra.mxu0 0.0
  %5206 = vmatprep.subr.mxu0 0.0
  %5207 = vmatpush1.msra.mxu0 0.0
  %5208 = vmatprep.subr.mxu0 0.0
  %5209 = vmatpush1.msra.mxu0 0.0
  %5210 = vmatprep.subr.mxu0 0.0
  %5211 = vmatpush1.msra.mxu0 0.0
  %5212 = vmatprep.subr.mxu0 0.0
  %5213 = vmatpush1.msra.mxu0 0.0
  %5214 = vmatprep.subr.mxu0 0.0
  %5215 = vmatpush1.msra.mxu0 0.0
  %5216 = vmatprep.subr.mxu0 0.0
  %5217 = vmatpush1.msra.mxu0 0.0
  %5218 = vmatprep.subr.mxu0 0.0
  %5219 = vmatpush1.msra.mxu0 0.0
  %5220 = vmatprep.subr.mxu0 0.0
  %5221 = vmatpush1.msra.mxu0 0.0
  %5222 = vmatprep.subr.mxu0 0.0
  %5223 = vmatpush1.msra.mxu0 0.0
  %5224 = vmatprep.subr.mxu0 0.0
  %5225 = vmatpush1.msra.mxu0 0.0
  %5226 = vmatprep.subr.mxu0 0.0
  %5227 = vmatpush1.msra.mxu0 0.0
  %5228 = vmatprep.subr.mxu0 0.0
  %5229 = vmatpush1.msra.mxu0 0.0
  %5230 = vmatprep.subr.mxu0 0.0
  %5231 = vmatpush1.msra.mxu0 0.0
  %5232 = vmatprep.subr.mxu0 0.0
  %5233 = vmatpush1.msra.mxu0 0.0
  %5234 = vmatprep.subr.mxu0 0.0
  %5235 = vmatpush1.msra.mxu0 0.0
  %5236 = vmatprep.subr.mxu0 0.0
  %5237 = vmatpush1.msra.mxu0 0.0
  %5238 = vmatprep.subr.mxu0 0.0
  %5239 = vmatpush1.msra.mxu0 0.0
  %5240 = vmatprep.subr.mxu0 0.0
  %5241 = vmatpush1.msra.mxu0 0.0
  %5242 = vmatprep.subr.mxu0 0.0
  %5243 = vmatpush1.msra.mxu0 0.0
  %5244 = vmatprep.subr.mxu0 0.0
  %5245 = vmatpush1.msra.mxu0 0.0
  %5246 = vmatprep.subr.mxu0 0.0
  %5247 = vmatpush1.msra.mxu0 0.0
  %5248 = vmatprep.subr.mxu0 0.0
  %5249 = vmatpush1.msra.mxu0 0.0
  %5250 = vmatprep.subr.mxu0 0.0
  %5251 = vmatpush1.msra.mxu0 0.0
  %5252 = vmatprep.subr.mxu0 0.0
  %5253 = vmatpush1.msra.mxu0 0.0
  %5254 = vmatprep.subr.mxu0 0.0
  %5255 = vmatpush1.msra.mxu0 0.0
  %5256 = vmatprep.subr.mxu0 0.0
  %5257 = vmatpush1.msra.mxu0 0.0
  %5258 = vmatprep.mubr.f32.mxu0 0.0
  %5259 = vmatmul.mubr.f32.gmra.mrb[0].mxu0 %v5050
  %v5260 = vpop.f32.mrb[0].mxu0
  %v5261 = vadd.f32 0.0, %v5260
  %v5262 = vpop.f32.mrb[0].mxu0
  %v5263 = vadd.f32 0.0, %v5262
  %5264 = vdwg.mxu0
  %v5265 = vadd.f32 %v5015, %v5119
  %v5266 = vadd.f32 %v5016, %v5121
  %v5267 = vadd.f32 %v5017, %v5190
  %v5268 = vadd.f32 %v5018, %v5192
  %v5269 = vadd.f32 %v5019, %v5261
  %v5270 = vadd.f32 %v5020, %v5263
  %s5271 = scalar_lea.vmem %s11, 28
  %v5272 = vld [vmem:[%s5271] sm:$0xf]
  %5273 = vrot.lane.b32.xlu0 %v4757, 110
  %v5274 = vpop.permute.xlu0 %5273
  %5275 = vrot.lane.b32.xlu0 %v4758, 110
  %v5276 = vpop.permute.xlu0 %5275
  %5277 = vrot.lane.b32.xlu0 %v4759, 110
  %v5278 = vpop.permute.xlu0 %5277
  %5279 = vrot.lane.b32.xlu0 %v4760, 110
  %v5280 = vpop.permute.xlu0 %5279
  %5281 = vrot.lane.b32.xlu0 %v4761, 110
  %v5282 = vpop.permute.xlu0 %5281
  %5283 = vrot.lane.b32.xlu0 %v4762, 110
  %v5284 = vpop.permute.xlu0 %5283
  %5285 = vrot.lane.b32.xlu0 %v4763, 110
  %v5286 = vpop.permute.xlu0 %5285
  %v5287 = vsel %vm2185, %v5274, %v5276
  %v5288 = vsel %vm2185, %v5276, %v5278
  %v5289 = vsel %vm2185, %v5278, %v5280
  %v5290 = vsel %vm2185, %v5280, %v5282
  %v5291 = vsel %vm2185, %v5282, %v5284
  %v5292 = vsel %vm2185, %v5284, %v5286
  %v5300 = vsel %vm467, %v5272, 0
  %5302 = vmatprep.subr.mxu0 %v5288
  %5303 = vmatpush1.msra.mxu0 %v5287
  %5304 = vmatprep.subr.mxu0 0.0
  %5305 = vmatpush1.msra.mxu0 0.0
  %5306 = vmatprep.subr.mxu0 0.0
  %5307 = vmatpush1.msra.mxu0 0.0
  %5308 = vmatprep.subr.mxu0 0.0
  %5309 = vmatpush1.msra.mxu0 0.0
  %5310 = vmatprep.subr.mxu0 0.0
  %5311 = vmatpush1.msra.mxu0 0.0
  %5312 = vmatprep.subr.mxu0 0.0
  %5313 = vmatpush1.msra.mxu0 0.0
  %5314 = vmatprep.subr.mxu0 0.0
  %5315 = vmatpush1.msra.mxu0 0.0
  %5316 = vmatprep.subr.mxu0 0.0
  %5317 = vmatpush1.msra.mxu0 0.0
  %5318 = vmatprep.subr.mxu0 0.0
  %5319 = vmatpush1.msra.mxu0 0.0
  %5320 = vmatprep.subr.mxu0 0.0
  %5321 = vmatpush1.msra.mxu0 0.0
  %5322 = vmatprep.subr.mxu0 0.0
  %5323 = vmatpush1.msra.mxu0 0.0
  %5324 = vmatprep.subr.mxu0 0.0
  %5325 = vmatpush1.msra.mxu0 0.0
  %5326 = vmatprep.subr.mxu0 0.0
  %5327 = vmatpush1.msra.mxu0 0.0
  %5328 = vmatprep.subr.mxu0 0.0
  %5329 = vmatpush1.msra.mxu0 0.0
  %5330 = vmatprep.subr.mxu0 0.0
  %5331 = vmatpush1.msra.mxu0 0.0
  %5332 = vmatprep.subr.mxu0 0.0
  %5333 = vmatpush1.msra.mxu0 0.0
  %5334 = vmatprep.subr.mxu0 0.0
  %5335 = vmatpush1.msra.mxu0 0.0
  %5336 = vmatprep.subr.mxu0 0.0
  %5337 = vmatpush1.msra.mxu0 0.0
  %5338 = vmatprep.subr.mxu0 0.0
  %5339 = vmatpush1.msra.mxu0 0.0
  %5340 = vmatprep.subr.mxu0 0.0
  %5341 = vmatpush1.msra.mxu0 0.0
  %5342 = vmatprep.subr.mxu0 0.0
  %5343 = vmatpush1.msra.mxu0 0.0
  %5344 = vmatprep.subr.mxu0 0.0
  %5345 = vmatpush1.msra.mxu0 0.0
  %5346 = vmatprep.subr.mxu0 0.0
  %5347 = vmatpush1.msra.mxu0 0.0
  %5348 = vmatprep.subr.mxu0 0.0
  %5349 = vmatpush1.msra.mxu0 0.0
  %5350 = vmatprep.subr.mxu0 0.0
  %5351 = vmatpush1.msra.mxu0 0.0
  %5352 = vmatprep.subr.mxu0 0.0
  %5353 = vmatpush1.msra.mxu0 0.0
  %5354 = vmatprep.subr.mxu0 0.0
  %5355 = vmatpush1.msra.mxu0 0.0
  %5356 = vmatprep.subr.mxu0 0.0
  %5357 = vmatpush1.msra.mxu0 0.0
  %5358 = vmatprep.subr.mxu0 0.0
  %5359 = vmatpush1.msra.mxu0 0.0
  %5360 = vmatprep.subr.mxu0 0.0
  %5361 = vmatpush1.msra.mxu0 0.0
  %5362 = vmatprep.subr.mxu0 0.0
  %5363 = vmatpush1.msra.mxu0 0.0
  %5364 = vmatprep.subr.mxu0 0.0
  %5365 = vmatpush1.msra.mxu0 0.0
  %5366 = vmatprep.mubr.f32.mxu0 0.0
  %5367 = vmatmul.mubr.f32.gmra.mrb[0].mxu0 %v5300
  %v5368 = vpop.f32.mrb[0].mxu0
  %v5369 = vadd.f32 0.0, %v5368
  %v5370 = vpop.f32.mrb[0].mxu0
  %v5371 = vadd.f32 0.0, %v5370
  %5372 = vdwg.mxu0
  %5373 = vmatprep.subr.mxu0 %v5290
  %5374 = vmatpush1.msra.mxu0 %v5289
  %5375 = vmatprep.subr.mxu0 0.0
  %5376 = vmatpush1.msra.mxu0 0.0
  %5377 = vmatprep.subr.mxu0 0.0
  %5378 = vmatpush1.msra.mxu0 0.0
  %5379 = vmatprep.subr.mxu0 0.0
  %5380 = vmatpush1.msra.mxu0 0.0
  %5381 = vmatprep.subr.mxu0 0.0
  %5382 = vmatpush1.msra.mxu0 0.0
  %5383 = vmatprep.subr.mxu0 0.0
  %5384 = vmatpush1.msra.mxu0 0.0
  %5385 = vmatprep.subr.mxu0 0.0
  %5386 = vmatpush1.msra.mxu0 0.0
  %5387 = vmatprep.subr.mxu0 0.0
  %5388 = vmatpush1.msra.mxu0 0.0
  %5389 = vmatprep.subr.mxu0 0.0
  %5390 = vmatpush1.msra.mxu0 0.0
  %5391 = vmatprep.subr.mxu0 0.0
  %5392 = vmatpush1.msra.mxu0 0.0
  %5393 = vmatprep.subr.mxu0 0.0
  %5394 = vmatpush1.msra.mxu0 0.0
  %5395 = vmatprep.subr.mxu0 0.0
  %5396 = vmatpush1.msra.mxu0 0.0
  %5397 = vmatprep.subr.mxu0 0.0
  %5398 = vmatpush1.msra.mxu0 0.0
  %5399 = vmatprep.subr.mxu0 0.0
  %5400 = vmatpush1.msra.mxu0 0.0
  %5401 = vmatprep.subr.mxu0 0.0
  %5402 = vmatpush1.msra.mxu0 0.0
  %5403 = vmatprep.subr.mxu0 0.0
  %5404 = vmatpush1.msra.mxu0 0.0
  %5405 = vmatprep.subr.mxu0 0.0
  %5406 = vmatpush1.msra.mxu0 0.0
  %5407 = vmatprep.subr.mxu0 0.0
  %5408 = vmatpush1.msra.mxu0 0.0
  %5409 = vmatprep.subr.mxu0 0.0
  %5410 = vmatpush1.msra.mxu0 0.0
  %5411 = vmatprep.subr.mxu0 0.0
  %5412 = vmatpush1.msra.mxu0 0.0
  %5413 = vmatprep.subr.mxu0 0.0
  %5414 = vmatpush1.msra.mxu0 0.0
  %5415 = vmatprep.subr.mxu0 0.0
  %5416 = vmatpush1.msra.mxu0 0.0
  %5417 = vmatprep.subr.mxu0 0.0
  %5418 = vmatpush1.msra.mxu0 0.0
  %5419 = vmatprep.subr.mxu0 0.0
  %5420 = vmatpush1.msra.mxu0 0.0
  %5421 = vmatprep.subr.mxu0 0.0
  %5422 = vmatpush1.msra.mxu0 0.0
  %5423 = vmatprep.subr.mxu0 0.0
  %5424 = vmatpush1.msra.mxu0 0.0
  %5425 = vmatprep.subr.mxu0 0.0
  %5426 = vmatpush1.msra.mxu0 0.0
  %5427 = vmatprep.subr.mxu0 0.0
  %5428 = vmatpush1.msra.mxu0 0.0
  %5429 = vmatprep.subr.mxu0 0.0
  %5430 = vmatpush1.msra.mxu0 0.0
  %5431 = vmatprep.subr.mxu0 0.0
  %5432 = vmatpush1.msra.mxu0 0.0
  %5433 = vmatprep.subr.mxu0 0.0
  %5434 = vmatpush1.msra.mxu0 0.0
  %5435 = vmatprep.subr.mxu0 0.0
  %5436 = vmatpush1.msra.mxu0 0.0
  %5437 = vmatprep.mubr.f32.mxu0 0.0
  %5438 = vmatmul.mubr.f32.gmra.mrb[0].mxu0 %v5300
  %v5439 = vpop.f32.mrb[0].mxu0
  %v5440 = vadd.f32 0.0, %v5439
  %v5441 = vpop.f32.mrb[0].mxu0
  %v5442 = vadd.f32 0.0, %v5441
  %5443 = vdwg.mxu0
  %5444 = vmatprep.subr.mxu0 %v5292
  %5445 = vmatpush1.msra.mxu0 %v5291
  %5446 = vmatprep.subr.mxu0 0.0
  %5447 = vmatpush1.msra.mxu0 0.0
  %5448 = vmatprep.subr.mxu0 0.0
  %5449 = vmatpush1.msra.mxu0 0.0
  %5450 = vmatprep.subr.mxu0 0.0
  %5451 = vmatpush1.msra.mxu0 0.0
  %5452 = vmatprep.subr.mxu0 0.0
  %5453 = vmatpush1.msra.mxu0 0.0
  %5454 = vmatprep.subr.mxu0 0.0
  %5455 = vmatpush1.msra.mxu0 0.0
  %5456 = vmatprep.subr.mxu0 0.0
  %5457 = vmatpush1.msra.mxu0 0.0
  %5458 = vmatprep.subr.mxu0 0.0
  %5459 = vmatpush1.msra.mxu0 0.0
  %5460 = vmatprep.subr.mxu0 0.0
  %5461 = vmatpush1.msra.mxu0 0.0
  %5462 = vmatprep.subr.mxu0 0.0
  %5463 = vmatpush1.msra.mxu0 0.0
  %5464 = vmatprep.subr.mxu0 0.0
  %5465 = vmatpush1.msra.mxu0 0.0
  %5466 = vmatprep.subr.mxu0 0.0
  %5467 = vmatpush1.msra.mxu0 0.0
  %5468 = vmatprep.subr.mxu0 0.0
  %5469 = vmatpush1.msra.mxu0 0.0
  %5470 = vmatprep.subr.mxu0 0.0
  %5471 = vmatpush1.msra.mxu0 0.0
  %5472 = vmatprep.subr.mxu0 0.0
  %5473 = vmatpush1.msra.mxu0 0.0
  %5474 = vmatprep.subr.mxu0 0.0
  %5475 = vmatpush1.msra.mxu0 0.0
  %5476 = vmatprep.subr.mxu0 0.0
  %5477 = vmatpush1.msra.mxu0 0.0
  %5478 = vmatprep.subr.mxu0 0.0
  %5479 = vmatpush1.msra.mxu0 0.0
  %5480 = vmatprep.subr.mxu0 0.0
  %5481 = vmatpush1.msra.mxu0 0.0
  %5482 = vmatprep.subr.mxu0 0.0
  %5483 = vmatpush1.msra.mxu0 0.0
  %5484 = vmatprep.subr.mxu0 0.0
  %5485 = vmatpush1.msra.mxu0 0.0
  %5486 = vmatprep.subr.mxu0 0.0
  %5487 = vmatpush1.msra.mxu0 0.0
  %5488 = vmatprep.subr.mxu0 0.0
  %5489 = vmatpush1.msra.mxu0 0.0
  %5490 = vmatprep.subr.mxu0 0.0
  %5491 = vmatpush1.msra.mxu0 0.0
  %5492 = vmatprep.subr.mxu0 0.0
  %5493 = vmatpush1.msra.mxu0 0.0
  %5494 = vmatprep.subr.mxu0 0.0
  %5495 = vmatpush1.msra.mxu0 0.0
  %5496 = vmatprep.subr.mxu0 0.0
  %5497 = vmatpush1.msra.mxu0 0.0
  %5498 = vmatprep.subr.mxu0 0.0
  %5499 = vmatpush1.msra.mxu0 0.0
  %5500 = vmatprep.subr.mxu0 0.0
  %5501 = vmatpush1.msra.mxu0 0.0
  %5502 = vmatprep.subr.mxu0 0.0
  %5503 = vmatpush1.msra.mxu0 0.0
  %5504 = vmatprep.subr.mxu0 0.0
  %5505 = vmatpush1.msra.mxu0 0.0
  %5506 = vmatprep.subr.mxu0 0.0
  %5507 = vmatpush1.msra.mxu0 0.0
  %5508 = vmatprep.mubr.f32.mxu0 0.0
  %5509 = vmatmul.mubr.f32.gmra.mrb[0].mxu0 %v5300
  %v5510 = vpop.f32.mrb[0].mxu0
  %v5511 = vadd.f32 0.0, %v5510
  %v5512 = vpop.f32.mrb[0].mxu0
  %v5513 = vadd.f32 0.0, %v5512
  %5514 = vdwg.mxu0
  %v5515 = vadd.f32 %v5265, %v5369
  %v5516 = vadd.f32 %v5266, %v5371
  %v5517 = vadd.f32 %v5267, %v5440
  %v5518 = vadd.f32 %v5268, %v5442
  %v5519 = vadd.f32 %v5269, %v5511
  %v5520 = vadd.f32 %v5270, %v5513
  %s5521 = scalar_lea.vmem %s11, 32
  %v5522 = vld [vmem:[%s5521] sm:$0xf]
  %5523 = vrot.lane.b32.xlu0 %v4757, 109
  %v5524 = vpop.permute.xlu0 %5523
  %5525 = vrot.lane.b32.xlu0 %v4758, 109
  %v5526 = vpop.permute.xlu0 %5525
  %5527 = vrot.lane.b32.xlu0 %v4759, 109
  %v5528 = vpop.permute.xlu0 %5527
  %5529 = vrot.lane.b32.xlu0 %v4760, 109
  %v5530 = vpop.permute.xlu0 %5529
  %5531 = vrot.lane.b32.xlu0 %v4761, 109
  %v5532 = vpop.permute.xlu0 %5531
  %5533 = vrot.lane.b32.xlu0 %v4762, 109
  %v5534 = vpop.permute.xlu0 %5533
  %5535 = vrot.lane.b32.xlu0 %v4763, 109
  %v5536 = vpop.permute.xlu0 %5535
  %v5537 = vsel %vm2436, %v5524, %v5526
  %v5538 = vsel %vm2436, %v5526, %v5528
  %v5539 = vsel %vm2436, %v5528, %v5530
  %v5540 = vsel %vm2436, %v5530, %v5532
  %v5541 = vsel %vm2436, %v5532, %v5534
  %v5542 = vsel %vm2436, %v5534, %v5536
  %v5550 = vsel %vm467, %v5522, 0
  %5552 = vmatprep.subr.mxu0 %v5538
  %5553 = vmatpush1.msra.mxu0 %v5537
  %5554 = vmatprep.subr.mxu0 0.0
  %5555 = vmatpush1.msra.mxu0 0.0
  %5556 = vmatprep.subr.mxu0 0.0
  %5557 = vmatpush1.msra.mxu0 0.0
  %5558 = vmatprep.subr.mxu0 0.0
  %5559 = vmatpush1.msra.mxu0 0.0
  %5560 = vmatprep.subr.mxu0 0.0
  %5561 = vmatpush1.msra.mxu0 0.0
  %5562 = vmatprep.subr.mxu0 0.0
  %5563 = vmatpush1.msra.mxu0 0.0
  %5564 = vmatprep.subr.mxu0 0.0
  %5565 = vmatpush1.msra.mxu0 0.0
  %5566 = vmatprep.subr.mxu0 0.0
  %5567 = vmatpush1.msra.mxu0 0.0
  %5568 = vmatprep.subr.mxu0 0.0
  %5569 = vmatpush1.msra.mxu0 0.0
  %5570 = vmatprep.subr.mxu0 0.0
  %5571 = vmatpush1.msra.mxu0 0.0
  %5572 = vmatprep.subr.mxu0 0.0
  %5573 = vmatpush1.msra.mxu0 0.0
  %5574 = vmatprep.subr.mxu0 0.0
  %5575 = vmatpush1.msra.mxu0 0.0
  %5576 = vmatprep.subr.mxu0 0.0
  %5577 = vmatpush1.msra.mxu0 0.0
  %5578 = vmatprep.subr.mxu0 0.0
  %5579 = vmatpush1.msra.mxu0 0.0
  %5580 = vmatprep.subr.mxu0 0.0
  %5581 = vmatpush1.msra.mxu0 0.0
  %5582 = vmatprep.subr.mxu0 0.0
  %5583 = vmatpush1.msra.mxu0 0.0
  %5584 = vmatprep.subr.mxu0 0.0
  %5585 = vmatpush1.msra.mxu0 0.0
  %5586 = vmatprep.subr.mxu0 0.0
  %5587 = vmatpush1.msra.mxu0 0.0
  %5588 = vmatprep.subr.mxu0 0.0
  %5589 = vmatpush1.msra.mxu0 0.0
  %5590 = vmatprep.subr.mxu0 0.0
  %5591 = vmatpush1.msra.mxu0 0.0
  %5592 = vmatprep.subr.mxu0 0.0
  %5593 = vmatpush1.msra.mxu0 0.0
  %5594 = vmatprep.subr.mxu0 0.0
  %5595 = vmatpush1.msra.mxu0 0.0
  %5596 = vmatprep.subr.mxu0 0.0
  %5597 = vmatpush1.msra.mxu0 0.0
  %5598 = vmatprep.subr.mxu0 0.0
  %5599 = vmatpush1.msra.mxu0 0.0
  %5600 = vmatprep.subr.mxu0 0.0
  %5601 = vmatpush1.msra.mxu0 0.0
  %5602 = vmatprep.subr.mxu0 0.0
  %5603 = vmatpush1.msra.mxu0 0.0
  %5604 = vmatprep.subr.mxu0 0.0
  %5605 = vmatpush1.msra.mxu0 0.0
  %5606 = vmatprep.subr.mxu0 0.0
  %5607 = vmatpush1.msra.mxu0 0.0
  %5608 = vmatprep.subr.mxu0 0.0
  %5609 = vmatpush1.msra.mxu0 0.0
  %5610 = vmatprep.subr.mxu0 0.0
  %5611 = vmatpush1.msra.mxu0 0.0
  %5612 = vmatprep.subr.mxu0 0.0
  %5613 = vmatpush1.msra.mxu0 0.0
  %5614 = vmatprep.subr.mxu0 0.0
  %5615 = vmatpush1.msra.mxu0 0.0
  %5616 = vmatprep.mubr.f32.mxu0 0.0
  %5617 = vmatmul.mubr.f32.gmra.mrb[0].mxu0 %v5550
  %v5618 = vpop.f32.mrb[0].mxu0
  %v5619 = vadd.f32 0.0, %v5618
  %v5620 = vpop.f32.mrb[0].mxu0
  %v5621 = vadd.f32 0.0, %v5620
  %5622 = vdwg.mxu0
  %5623 = vmatprep.subr.mxu0 %v5540
  %5624 = vmatpush1.msra.mxu0 %v5539
  %5625 = vmatprep.subr.mxu0 0.0
  %5626 = vmatpush1.msra.mxu0 0.0
  %5627 = vmatprep.subr.mxu0 0.0
  %5628 = vmatpush1.msra.mxu0 0.0
  %5629 = vmatprep.subr.mxu0 0.0
  %5630 = vmatpush1.msra.mxu0 0.0
  %5631 = vmatprep.subr.mxu0 0.0
  %5632 = vmatpush1.msra.mxu0 0.0
  %5633 = vmatprep.subr.mxu0 0.0
  %5634 = vmatpush1.msra.mxu0 0.0
  %5635 = vmatprep.subr.mxu0 0.0
  %5636 = vmatpush1.msra.mxu0 0.0
  %5637 = vmatprep.subr.mxu0 0.0
  %5638 = vmatpush1.msra.mxu0 0.0
  %5639 = vmatprep.subr.mxu0 0.0
  %5640 = vmatpush1.msra.mxu0 0.0
  %5641 = vmatprep.subr.mxu0 0.0
  %5642 = vmatpush1.msra.mxu0 0.0
  %5643 = vmatprep.subr.mxu0 0.0
  %5644 = vmatpush1.msra.mxu0 0.0
  %5645 = vmatprep.subr.mxu0 0.0
  %5646 = vmatpush1.msra.mxu0 0.0
  %5647 = vmatprep.subr.mxu0 0.0
  %5648 = vmatpush1.msra.mxu0 0.0
  %5649 = vmatprep.subr.mxu0 0.0
  %5650 = vmatpush1.msra.mxu0 0.0
  %5651 = vmatprep.subr.mxu0 0.0
  %5652 = vmatpush1.msra.mxu0 0.0
  %5653 = vmatprep.subr.mxu0 0.0
  %5654 = vmatpush1.msra.mxu0 0.0
  %5655 = vmatprep.subr.mxu0 0.0
  %5656 = vmatpush1.msra.mxu0 0.0
  %5657 = vmatprep.subr.mxu0 0.0
  %5658 = vmatpush1.msra.mxu0 0.0
  %5659 = vmatprep.subr.mxu0 0.0
  %5660 = vmatpush1.msra.mxu0 0.0
  %5661 = vmatprep.subr.mxu0 0.0
  %5662 = vmatpush1.msra.mxu0 0.0
  %5663 = vmatprep.subr.mxu0 0.0
  %5664 = vmatpush1.msra.mxu0 0.0
  %5665 = vmatprep.subr.mxu0 0.0
  %5666 = vmatpush1.msra.mxu0 0.0
  %5667 = vmatprep.subr.mxu0 0.0
  %5668 = vmatpush1.msra.mxu0 0.0
  %5669 = vmatprep.subr.mxu0 0.0
  %5670 = vmatpush1.msra.mxu0 0.0
  %5671 = vmatprep.subr.mxu0 0.0
  %5672 = vmatpush1.msra.mxu0 0.0
  %5673 = vmatprep.subr.mxu0 0.0
  %5674 = vmatpush1.msra.mxu0 0.0
  %5675 = vmatprep.subr.mxu0 0.0
  %5676 = vmatpush1.msra.mxu0 0.0
  %5677 = vmatprep.subr.mxu0 0.0
  %5678 = vmatpush1.msra.mxu0 0.0
  %5679 = vmatprep.subr.mxu0 0.0
  %5680 = vmatpush1.msra.mxu0 0.0
  %5681 = vmatprep.subr.mxu0 0.0
  %5682 = vmatpush1.msra.mxu0 0.0
  %5683 = vmatprep.subr.mxu0 0.0
  %5684 = vmatpush1.msra.mxu0 0.0
  %5685 = vmatprep.subr.mxu0 0.0
  %5686 = vmatpush1.msra.mxu0 0.0
  %5687 = vmatprep.mubr.f32.mxu0 0.0
  %5688 = vmatmul.mubr.f32.gmra.mrb[0].mxu0 %v5550
  %v5689 = vpop.f32.mrb[0].mxu0
  %v5690 = vadd.f32 0.0, %v5689
  %v5691 = vpop.f32.mrb[0].mxu0
  %v5692 = vadd.f32 0.0, %v5691
  %5693 = vdwg.mxu0
  %5694 = vmatprep.subr.mxu0 %v5542
  %5695 = vmatpush1.msra.mxu0 %v5541
  %5696 = vmatprep.subr.mxu0 0.0
  %5697 = vmatpush1.msra.mxu0 0.0
  %5698 = vmatprep.subr.mxu0 0.0
  %5699 = vmatpush1.msra.mxu0 0.0
  %5700 = vmatprep.subr.mxu0 0.0
  %5701 = vmatpush1.msra.mxu0 0.0
  %5702 = vmatprep.subr.mxu0 0.0
  %5703 = vmatpush1.msra.mxu0 0.0
  %5704 = vmatprep.subr.mxu0 0.0
  %5705 = vmatpush1.msra.mxu0 0.0
  %5706 = vmatprep.subr.mxu0 0.0
  %5707 = vmatpush1.msra.mxu0 0.0
  %5708 = vmatprep.subr.mxu0 0.0
  %5709 = vmatpush1.msra.mxu0 0.0
  %5710 = vmatprep.subr.mxu0 0.0
  %5711 = vmatpush1.msra.mxu0 0.0
  %5712 = vmatprep.subr.mxu0 0.0
  %5713 = vmatpush1.msra.mxu0 0.0
  %5714 = vmatprep.subr.mxu0 0.0
  %5715 = vmatpush1.msra.mxu0 0.0
  %5716 = vmatprep.subr.mxu0 0.0
  %5717 = vmatpush1.msra.mxu0 0.0
  %5718 = vmatprep.subr.mxu0 0.0
  %5719 = vmatpush1.msra.mxu0 0.0
  %5720 = vmatprep.subr.mxu0 0.0
  %5721 = vmatpush1.msra.mxu0 0.0
  %5722 = vmatprep.subr.mxu0 0.0
  %5723 = vmatpush1.msra.mxu0 0.0
  %5724 = vmatprep.subr.mxu0 0.0
  %5725 = vmatpush1.msra.mxu0 0.0
  %5726 = vmatprep.subr.mxu0 0.0
  %5727 = vmatpush1.msra.mxu0 0.0
  %5728 = vmatprep.subr.mxu0 0.0
  %5729 = vmatpush1.msra.mxu0 0.0
  %5730 = vmatprep.subr.mxu0 0.0
  %5731 = vmatpush1.msra.mxu0 0.0
  %5732 = vmatprep.subr.mxu0 0.0
  %5733 = vmatpush1.msra.mxu0 0.0
  %5734 = vmatprep.subr.mxu0 0.0
  %5735 = vmatpush1.msra.mxu0 0.0
  %5736 = vmatprep.subr.mxu0 0.0
  %5737 = vmatpush1.msra.mxu0 0.0
  %5738 = vmatprep.subr.mxu0 0.0
  %5739 = vmatpush1.msra.mxu0 0.0
  %5740 = vmatprep.subr.mxu0 0.0
  %5741 = vmatpush1.msra.mxu0 0.0
  %5742 = vmatprep.subr.mxu0 0.0
  %5743 = vmatpush1.msra.mxu0 0.0
  %5744 = vmatprep.subr.mxu0 0.0
  %5745 = vmatpush1.msra.mxu0 0.0
  %5746 = vmatprep.subr.mxu0 0.0
  %5747 = vmatpush1.msra.mxu0 0.0
  %5748 = vmatprep.subr.mxu0 0.0
  %5749 = vmatpush1.msra.mxu0 0.0
  %5750 = vmatprep.subr.mxu0 0.0
  %5751 = vmatpush1.msra.mxu0 0.0
  %5752 = vmatprep.subr.mxu0 0.0
  %5753 = vmatpush1.msra.mxu0 0.0
  %5754 = vmatprep.subr.mxu0 0.0
  %5755 = vmatpush1.msra.mxu0 0.0
  %5756 = vmatprep.subr.mxu0 0.0
  %5757 = vmatpush1.msra.mxu0 0.0
  %5758 = vmatprep.mubr.f32.mxu0 0.0
  %5759 = vmatmul.mubr.f32.gmra.mrb[0].mxu0 %v5550
  %v5760 = vpop.f32.mrb[0].mxu0
  %v5761 = vadd.f32 0.0, %v5760
  %v5762 = vpop.f32.mrb[0].mxu0
  %v5763 = vadd.f32 0.0, %v5762
  %5764 = vdwg.mxu0
  %v5765 = vadd.f32 %v5515, %v5619
  %v5766 = vadd.f32 %v5516, %v5621
  %v5767 = vadd.f32 %v5517, %v5690
  %v5768 = vadd.f32 %v5518, %v5692
  %v5769 = vadd.f32 %v5519, %v5761
  %v5770 = vadd.f32 %v5520, %v5763
  %v5771 = vld [vmem:[%s12] sm:$0xf]
  %5773 = vset.pattern.permute.xlu0 0
  %5774 = vperm.xlu0 %5773, %v5771
  %v5775 = vpop.permute.xlu0 %5774
  %v5777 = vadd.f32 %v5765, %v5775
  %v5778 = vadd.f32 %v5766, %v5775
  %v5779 = vadd.f32 %v5767, %v5775
  %v5780 = vadd.f32 %v5768, %v5775
  %v5781 = vadd.f32 %v5769, %v5775
  %v5782 = vadd.f32 %v5770, %v5775
  %v5783 = vmax.f32 %v5777, 0.0
  %v5784 = vmax.f32 %v5778, 0.0
  %v5785 = vmax.f32 %v5779, 0.0
  %v5786 = vmax.f32 %v5780, 0.0
  %v5787 = vmax.f32 %v5781, 0.0
  %v5788 = vmax.f32 %v5782, 0.0
  %v5789 = vmul.f32 %v5783, %v2687
  %v5790 = vmul.f32 %v5784, %v2691
  %v5791 = vmul.f32 %v5785, %v2695
  %v5792 = vmul.f32 %v5786, %v2699
  %v5793 = vmul.f32 %v5787, %v2703
  %v5794 = vmul.f32 %v5788, %v2707
  %5795 = vst [vmem:[#allocation2 + $0x8] sm:$0xf] %v5789
  %5796 = vst [vmem:[#allocation2 + $0x10] sm:$0xf] %v5790
  %5797 = vst [vmem:[#allocation2 + $0x18] sm:$0xf] %v5791
  %5798 = vst [vmem:[#allocation2 + $0x20] sm:$0xf] %v5792
  %5799 = vst [vmem:[#allocation2 + $0x28] sm:$0xf] %v5793
  %5800 = vst [vmem:[#allocation2 + $0x30] sm:$0xf] %v5794
  %v5801 = vld [vmem:[#allocation2] sm:$0xf]
  %v5802 = vld [vmem:[#allocation2 + $0x8] sm:$0xf]
  %v5803 = vld [vmem:[#allocation2 + $0x10] sm:$0xf]
  %v5804 = vld [vmem:[#allocation2 + $0x18] sm:$0xf]
  %v5805 = vld [vmem:[#allocation2 + $0x20] sm:$0xf]
  %v5806 = vld [vmem:[#allocation2 + $0x28] sm:$0xf]
  %v5807 = vld [vmem:[#allocation2 + $0x30] sm:$0xf]
  %v5808 = vld [vmem:[%s13] sm:$0xf]
  %s5809 = scalar_lea.vmem %s13, 4
  %v5810 = vld [vmem:[%s5809] sm:$0xf]
  %5818 = vrot.lane.b32.xlu0 %v5801, 18
  %v5819 = vpop.permute.xlu0 %5818
  %5820 = vrot.lane.b32.xlu0 %v5802, 18
  %v5821 = vpop.permute.xlu0 %5820
  %5822 = vrot.lane.b32.xlu0 %v5803, 18
  %v5823 = vpop.permute.xlu0 %5822
  %5824 = vrot.lane.b32.xlu0 %v5804, 18
  %v5825 = vpop.permute.xlu0 %5824
  %5826 = vrot.lane.b32.xlu0 %v5805, 18
  %v5827 = vpop.permute.xlu0 %5826
  %5828 = vrot.lane.b32.xlu0 %v5806, 18
  %v5829 = vpop.permute.xlu0 %5828
  %5830 = vrot.lane.b32.xlu0 %v5807, 18
  %v5831 = vpop.permute.xlu0 %5830
  %v5832 = vsel %vm454, %v5819, %v5821
  %v5833 = vsel %vm454, %v5821, %v5823
  %v5834 = vsel %vm454, %v5823, %v5825
  %v5835 = vsel %vm454, %v5825, %v5827
  %v5836 = vsel %vm454, %v5827, %v5829
  %v5837 = vsel %vm454, %v5829, %v5831
  %v5839 = vsel %vm2731, %v5810, 0
  %v5841 = vsel %vm2735, %v5832, 0
  %v5843 = vsel %vm2735, %v5833, 0
  %v5845 = vsel %vm2735, %v5834, 0
  %v5847 = vsel %vm2735, %v5835, 0
  %v5849 = vsel %vm2735, %v5836, 0
  %v5851 = vsel %vm2735, %v5837, 0
  %5853 = vmatprep.subr.mxu0 %v5843
  %5854 = vmatpush1.msra.mxu0 %v5841
  %5855 = vmatprep.subr.mxu0 0.0
  %5856 = vmatpush1.msra.mxu0 0.0
  %5857 = vmatprep.subr.mxu0 0.0
  %5858 = vmatpush1.msra.mxu0 0.0
  %5859 = vmatprep.subr.mxu0 0.0
  %5860 = vmatpush1.msra.mxu0 0.0
  %5861 = vmatprep.subr.mxu0 0.0
  %5862 = vmatpush1.msra.mxu0 0.0
  %5863 = vmatprep.subr.mxu0 0.0
  %5864 = vmatpush1.msra.mxu0 0.0
  %5865 = vmatprep.subr.mxu0 0.0
  %5866 = vmatpush1.msra.mxu0 0.0
  %5867 = vmatprep.subr.mxu0 0.0
  %5868 = vmatpush1.msra.mxu0 0.0
  %5869 = vmatprep.subr.mxu0 0.0
  %5870 = vmatpush1.msra.mxu0 0.0
  %5871 = vmatprep.subr.mxu0 0.0
  %5872 = vmatpush1.msra.mxu0 0.0
  %5873 = vmatprep.subr.mxu0 0.0
  %5874 = vmatpush1.msra.mxu0 0.0
  %5875 = vmatprep.subr.mxu0 0.0
  %5876 = vmatpush1.msra.mxu0 0.0
  %5877 = vmatprep.subr.mxu0 0.0
  %5878 = vmatpush1.msra.mxu0 0.0
  %5879 = vmatprep.subr.mxu0 0.0
  %5880 = vmatpush1.msra.mxu0 0.0
  %5881 = vmatprep.subr.mxu0 0.0
  %5882 = vmatpush1.msra.mxu0 0.0
  %5883 = vmatprep.subr.mxu0 0.0
  %5884 = vmatpush1.msra.mxu0 0.0
  %5885 = vmatprep.subr.mxu0 0.0
  %5886 = vmatpush1.msra.mxu0 0.0
  %5887 = vmatprep.subr.mxu0 0.0
  %5888 = vmatpush1.msra.mxu0 0.0
  %5889 = vmatprep.subr.mxu0 0.0
  %5890 = vmatpush1.msra.mxu0 0.0
  %5891 = vmatprep.subr.mxu0 0.0
  %5892 = vmatpush1.msra.mxu0 0.0
  %5893 = vmatprep.subr.mxu0 0.0
  %5894 = vmatpush1.msra.mxu0 0.0
  %5895 = vmatprep.subr.mxu0 0.0
  %5896 = vmatpush1.msra.mxu0 0.0
  %5897 = vmatprep.subr.mxu0 0.0
  %5898 = vmatpush1.msra.mxu0 0.0
  %5899 = vmatprep.subr.mxu0 0.0
  %5900 = vmatpush1.msra.mxu0 0.0
  %5901 = vmatprep.subr.mxu0 0.0
  %5902 = vmatpush1.msra.mxu0 0.0
  %5903 = vmatprep.subr.mxu0 0.0
  %5904 = vmatpush1.msra.mxu0 0.0
  %5905 = vmatprep.subr.mxu0 0.0
  %5906 = vmatpush1.msra.mxu0 0.0
  %5907 = vmatprep.subr.mxu0 0.0
  %5908 = vmatpush1.msra.mxu0 0.0
  %5909 = vmatprep.subr.mxu0 0.0
  %5910 = vmatpush1.msra.mxu0 0.0
  %5911 = vmatprep.subr.mxu0 0.0
  %5912 = vmatpush1.msra.mxu0 0.0
  %5913 = vmatprep.subr.mxu0 0.0
  %5914 = vmatpush1.msra.mxu0 0.0
  %5915 = vmatprep.subr.mxu0 0.0
  %5916 = vmatpush1.msra.mxu0 0.0
  %5917 = vmatprep.mubr.f32.mxu0 0.0
  %5918 = vmatmul.mubr.f32.gmra.mrb[0].mxu0 %v5839
  %v5919 = vpop.f32.mrb[0].mxu0
  %v5920 = vadd.f32 0.0, %v5919
  %v5921 = vpop.f32.mrb[0].mxu0
  %v5922 = vadd.f32 0.0, %v5921
  %5923 = vdwg.mxu0
  %5924 = vmatprep.subr.mxu0 %v5847
  %5925 = vmatpush1.msra.mxu0 %v5845
  %5926 = vmatprep.subr.mxu0 0.0
  %5927 = vmatpush1.msra.mxu0 0.0
  %5928 = vmatprep.subr.mxu0 0.0
  %5929 = vmatpush1.msra.mxu0 0.0
  %5930 = vmatprep.subr.mxu0 0.0
  %5931 = vmatpush1.msra.mxu0 0.0
  %5932 = vmatprep.subr.mxu0 0.0
  %5933 = vmatpush1.msra.mxu0 0.0
  %5934 = vmatprep.subr.mxu0 0.0
  %5935 = vmatpush1.msra.mxu0 0.0
  %5936 = vmatprep.subr.mxu0 0.0
  %5937 = vmatpush1.msra.mxu0 0.0
  %5938 = vmatprep.subr.mxu0 0.0
  %5939 = vmatpush1.msra.mxu0 0.0
  %5940 = vmatprep.subr.mxu0 0.0
  %5941 = vmatpush1.msra.mxu0 0.0
  %5942 = vmatprep.subr.mxu0 0.0
  %5943 = vmatpush1.msra.mxu0 0.0
  %5944 = vmatprep.subr.mxu0 0.0
  %5945 = vmatpush1.msra.mxu0 0.0
  %5946 = vmatprep.subr.mxu0 0.0
  %5947 = vmatpush1.msra.mxu0 0.0
  %5948 = vmatprep.subr.mxu0 0.0
  %5949 = vmatpush1.msra.mxu0 0.0
  %5950 = vmatprep.subr.mxu0 0.0
  %5951 = vmatpush1.msra.mxu0 0.0
  %5952 = vmatprep.subr.mxu0 0.0
  %5953 = vmatpush1.msra.mxu0 0.0
  %5954 = vmatprep.subr.mxu0 0.0
  %5955 = vmatpush1.msra.mxu0 0.0
  %5956 = vmatprep.subr.mxu0 0.0
  %5957 = vmatpush1.msra.mxu0 0.0
  %5958 = vmatprep.subr.mxu0 0.0
  %5959 = vmatpush1.msra.mxu0 0.0
  %5960 = vmatprep.subr.mxu0 0.0
  %5961 = vmatpush1.msra.mxu0 0.0
  %5962 = vmatprep.subr.mxu0 0.0
  %5963 = vmatpush1.msra.mxu0 0.0
  %5964 = vmatprep.subr.mxu0 0.0
  %5965 = vmatpush1.msra.mxu0 0.0
  %5966 = vmatprep.subr.mxu0 0.0
  %5967 = vmatpush1.msra.mxu0 0.0
  %5968 = vmatprep.subr.mxu0 0.0
  %5969 = vmatpush1.msra.mxu0 0.0
  %5970 = vmatprep.subr.mxu0 0.0
  %5971 = vmatpush1.msra.mxu0 0.0
  %5972 = vmatprep.subr.mxu0 0.0
  %5973 = vmatpush1.msra.mxu0 0.0
  %5974 = vmatprep.subr.mxu0 0.0
  %5975 = vmatpush1.msra.mxu0 0.0
  %5976 = vmatprep.subr.mxu0 0.0
  %5977 = vmatpush1.msra.mxu0 0.0
  %5978 = vmatprep.subr.mxu0 0.0
  %5979 = vmatpush1.msra.mxu0 0.0
  %5980 = vmatprep.subr.mxu0 0.0
  %5981 = vmatpush1.msra.mxu0 0.0
  %5982 = vmatprep.subr.mxu0 0.0
  %5983 = vmatpush1.msra.mxu0 0.0
  %5984 = vmatprep.subr.mxu0 0.0
  %5985 = vmatpush1.msra.mxu0 0.0
  %5986 = vmatprep.subr.mxu0 0.0
  %5987 = vmatpush1.msra.mxu0 0.0
  %5988 = vmatprep.mubr.f32.mxu0 0.0
  %5989 = vmatmul.mubr.f32.gmra.mrb[0].mxu0 %v5839
  %v5990 = vpop.f32.mrb[0].mxu0
  %v5991 = vadd.f32 0.0, %v5990
  %v5992 = vpop.f32.mrb[0].mxu0
  %v5993 = vadd.f32 0.0, %v5992
  %5994 = vdwg.mxu0
  %5995 = vmatprep.subr.mxu0 %v5851
  %5996 = vmatpush1.msra.mxu0 %v5849
  %5997 = vmatprep.subr.mxu0 0.0
  %5998 = vmatpush1.msra.mxu0 0.0
  %5999 = vmatprep.subr.mxu0 0.0
  %6000 = vmatpush1.msra.mxu0 0.0
  %6001 = vmatprep.subr.mxu0 0.0
  %6002 = vmatpush1.msra.mxu0 0.0
  %6003 = vmatprep.subr.mxu0 0.0
  %6004 = vmatpush1.msra.mxu0 0.0
  %6005 = vmatprep.subr.mxu0 0.0
  %6006 = vmatpush1.msra.mxu0 0.0
  %6007 = vmatprep.subr.mxu0 0.0
  %6008 = vmatpush1.msra.mxu0 0.0
  %6009 = vmatprep.subr.mxu0 0.0
  %6010 = vmatpush1.msra.mxu0 0.0
  %6011 = vmatprep.subr.mxu0 0.0
  %6012 = vmatpush1.msra.mxu0 0.0
  %6013 = vmatprep.subr.mxu0 0.0
  %6014 = vmatpush1.msra.mxu0 0.0
  %6015 = vmatprep.subr.mxu0 0.0
  %6016 = vmatpush1.msra.mxu0 0.0
  %6017 = vmatprep.subr.mxu0 0.0
  %6018 = vmatpush1.msra.mxu0 0.0
  %6019 = vmatprep.subr.mxu0 0.0
  %6020 = vmatpush1.msra.mxu0 0.0
  %6021 = vmatprep.subr.mxu0 0.0
  %6022 = vmatpush1.msra.mxu0 0.0
  %6023 = vmatprep.subr.mxu0 0.0
  %6024 = vmatpush1.msra.mxu0 0.0
  %6025 = vmatprep.subr.mxu0 0.0
  %6026 = vmatpush1.msra.mxu0 0.0
  %6027 = vmatprep.subr.mxu0 0.0
  %6028 = vmatpush1.msra.mxu0 0.0
  %6029 = vmatprep.subr.mxu0 0.0
  %6030 = vmatpush1.msra.mxu0 0.0
  %6031 = vmatprep.subr.mxu0 0.0
  %6032 = vmatpush1.msra.mxu0 0.0
  %6033 = vmatprep.subr.mxu0 0.0
  %6034 = vmatpush1.msra.mxu0 0.0
  %6035 = vmatprep.subr.mxu0 0.0
  %6036 = vmatpush1.msra.mxu0 0.0
  %6037 = vmatprep.subr.mxu0 0.0
  %6038 = vmatpush1.msra.mxu0 0.0
  %6039 = vmatprep.subr.mxu0 0.0
  %6040 = vmatpush1.msra.mxu0 0.0
  %6041 = vmatprep.subr.mxu0 0.0
  %6042 = vmatpush1.msra.mxu0 0.0
  %6043 = vmatprep.subr.mxu0 0.0
  %6044 = vmatpush1.msra.mxu0 0.0
  %6045 = vmatprep.subr.mxu0 0.0
  %6046 = vmatpush1.msra.mxu0 0.0
  %6047 = vmatprep.subr.mxu0 0.0
  %6048 = vmatpush1.msra.mxu0 0.0
  %6049 = vmatprep.subr.mxu0 0.0
  %6050 = vmatpush1.msra.mxu0 0.0
  %6051 = vmatprep.subr.mxu0 0.0
  %6052 = vmatpush1.msra.mxu0 0.0
  %6053 = vmatprep.subr.mxu0 0.0
  %6054 = vmatpush1.msra.mxu0 0.0
  %6055 = vmatprep.subr.mxu0 0.0
  %6056 = vmatpush1.msra.mxu0 0.0
  %6057 = vmatprep.subr.mxu0 0.0
  %6058 = vmatpush1.msra.mxu0 0.0
  %6059 = vmatprep.mubr.f32.mxu0 0.0
  %6060 = vmatmul.mubr.f32.gmra.mrb[0].mxu0 %v5839
  %v6061 = vpop.f32.mrb[0].mxu0
  %v6062 = vadd.f32 0.0, %v6061
  %v6063 = vpop.f32.mrb[0].mxu0
  %v6064 = vadd.f32 0.0, %v6063
  %6065 = vdwg.mxu0
  %6066 = vrot.lane.b32.xlu0 %v5801, 19
  %v6067 = vpop.permute.xlu0 %6066
  %6068 = vrot.lane.b32.xlu0 %v5802, 19
  %v6069 = vpop.permute.xlu0 %6068
  %6070 = vrot.lane.b32.xlu0 %v5803, 19
  %v6071 = vpop.permute.xlu0 %6070
  %6072 = vrot.lane.b32.xlu0 %v5804, 19
  %v6073 = vpop.permute.xlu0 %6072
  %6074 = vrot.lane.b32.xlu0 %v5805, 19
  %v6075 = vpop.permute.xlu0 %6074
  %6076 = vrot.lane.b32.xlu0 %v5806, 19
  %v6077 = vpop.permute.xlu0 %6076
  %6078 = vrot.lane.b32.xlu0 %v5807, 19
  %v6079 = vpop.permute.xlu0 %6078
  %v6080 = vsel %vm698, %v6067, %v6069
  %v6081 = vsel %vm698, %v6069, %v6071
  %v6082 = vsel %vm698, %v6071, %v6073
  %v6083 = vsel %vm698, %v6073, %v6075
  %v6084 = vsel %vm698, %v6075, %v6077
  %v6085 = vsel %vm698, %v6077, %v6079
  %v6087 = vsel %vm2731, %v5808, 0
  %v6089 = vsel %vm2735, %v6080, 0
  %v6091 = vsel %vm2735, %v6081, 0
  %v6093 = vsel %vm2735, %v6082, 0
  %v6095 = vsel %vm2735, %v6083, 0
  %v6097 = vsel %vm2735, %v6084, 0
  %v6099 = vsel %vm2735, %v6085, 0
  %6101 = vmatprep.subr.mxu0 %v6091
  %6102 = vmatpush1.msra.mxu0 %v6089
  %6103 = vmatprep.subr.mxu0 0.0
  %6104 = vmatpush1.msra.mxu0 0.0
  %6105 = vmatprep.subr.mxu0 0.0
  %6106 = vmatpush1.msra.mxu0 0.0
  %6107 = vmatprep.subr.mxu0 0.0
  %6108 = vmatpush1.msra.mxu0 0.0
  %6109 = vmatprep.subr.mxu0 0.0
  %6110 = vmatpush1.msra.mxu0 0.0
  %6111 = vmatprep.subr.mxu0 0.0
  %6112 = vmatpush1.msra.mxu0 0.0
  %6113 = vmatprep.subr.mxu0 0.0
  %6114 = vmatpush1.msra.mxu0 0.0
  %6115 = vmatprep.subr.mxu0 0.0
  %6116 = vmatpush1.msra.mxu0 0.0
  %6117 = vmatprep.subr.mxu0 0.0
  %6118 = vmatpush1.msra.mxu0 0.0
  %6119 = vmatprep.subr.mxu0 0.0
  %6120 = vmatpush1.msra.mxu0 0.0
  %6121 = vmatprep.subr.mxu0 0.0
  %6122 = vmatpush1.msra.mxu0 0.0
  %6123 = vmatprep.subr.mxu0 0.0
  %6124 = vmatpush1.msra.mxu0 0.0
  %6125 = vmatprep.subr.mxu0 0.0
  %6126 = vmatpush1.msra.mxu0 0.0
  %6127 = vmatprep.subr.mxu0 0.0
  %6128 = vmatpush1.msra.mxu0 0.0
  %6129 = vmatprep.subr.mxu0 0.0
  %6130 = vmatpush1.msra.mxu0 0.0
  %6131 = vmatprep.subr.mxu0 0.0
  %6132 = vmatpush1.msra.mxu0 0.0
  %6133 = vmatprep.subr.mxu0 0.0
  %6134 = vmatpush1.msra.mxu0 0.0
  %6135 = vmatprep.subr.mxu0 0.0
  %6136 = vmatpush1.msra.mxu0 0.0
  %6137 = vmatprep.subr.mxu0 0.0
  %6138 = vmatpush1.msra.mxu0 0.0
  %6139 = vmatprep.subr.mxu0 0.0
  %6140 = vmatpush1.msra.mxu0 0.0
  %6141 = vmatprep.subr.mxu0 0.0
  %6142 = vmatpush1.msra.mxu0 0.0
  %6143 = vmatprep.subr.mxu0 0.0
  %6144 = vmatpush1.msra.mxu0 0.0
  %6145 = vmatprep.subr.mxu0 0.0
  %6146 = vmatpush1.msra.mxu0 0.0
  %6147 = vmatprep.subr.mxu0 0.0
  %6148 = vmatpush1.msra.mxu0 0.0
  %6149 = vmatprep.subr.mxu0 0.0
  %6150 = vmatpush1.msra.mxu0 0.0
  %6151 = vmatprep.subr.mxu0 0.0
  %6152 = vmatpush1.msra.mxu0 0.0
  %6153 = vmatprep.subr.mxu0 0.0
  %6154 = vmatpush1.msra.mxu0 0.0
  %6155 = vmatprep.subr.mxu0 0.0
  %6156 = vmatpush1.msra.mxu0 0.0
  %6157 = vmatprep.subr.mxu0 0.0
  %6158 = vmatpush1.msra.mxu0 0.0
  %6159 = vmatprep.subr.mxu0 0.0
  %6160 = vmatpush1.msra.mxu0 0.0
  %6161 = vmatprep.subr.mxu0 0.0
  %6162 = vmatpush1.msra.mxu0 0.0
  %6163 = vmatprep.subr.mxu0 0.0
  %6164 = vmatpush1.msra.mxu0 0.0
  %6165 = vmatprep.mubr.f32.mxu0 0.0
  %6166 = vmatmul.mubr.f32.gmra.mrb[0].mxu0 %v6087
  %v6167 = vpop.f32.mrb[0].mxu0
  %v6168 = vadd.f32 %v5920, %v6167
  %v6169 = vpop.f32.mrb[0].mxu0
  %v6170 = vadd.f32 %v5922, %v6169
  %6171 = vdwg.mxu0
  %6172 = vmatprep.subr.mxu0 %v6095
  %6173 = vmatpush1.msra.mxu0 %v6093
  %6174 = vmatprep.subr.mxu0 0.0
  %6175 = vmatpush1.msra.mxu0 0.0
  %6176 = vmatprep.subr.mxu0 0.0
  %6177 = vmatpush1.msra.mxu0 0.0
  %6178 = vmatprep.subr.mxu0 0.0
  %6179 = vmatpush1.msra.mxu0 0.0
  %6180 = vmatprep.subr.mxu0 0.0
  %6181 = vmatpush1.msra.mxu0 0.0
  %6182 = vmatprep.subr.mxu0 0.0
  %6183 = vmatpush1.msra.mxu0 0.0
  %6184 = vmatprep.subr.mxu0 0.0
  %6185 = vmatpush1.msra.mxu0 0.0
  %6186 = vmatprep.subr.mxu0 0.0
  %6187 = vmatpush1.msra.mxu0 0.0
  %6188 = vmatprep.subr.mxu0 0.0
  %6189 = vmatpush1.msra.mxu0 0.0
  %6190 = vmatprep.subr.mxu0 0.0
  %6191 = vmatpush1.msra.mxu0 0.0
  %6192 = vmatprep.subr.mxu0 0.0
  %6193 = vmatpush1.msra.mxu0 0.0
  %6194 = vmatprep.subr.mxu0 0.0
  %6195 = vmatpush1.msra.mxu0 0.0
  %6196 = vmatprep.subr.mxu0 0.0
  %6197 = vmatpush1.msra.mxu0 0.0
  %6198 = vmatprep.subr.mxu0 0.0
  %6199 = vmatpush1.msra.mxu0 0.0
  %6200 = vmatprep.subr.mxu0 0.0
  %6201 = vmatpush1.msra.mxu0 0.0
  %6202 = vmatprep.subr.mxu0 0.0
  %6203 = vmatpush1.msra.mxu0 0.0
  %6204 = vmatprep.subr.mxu0 0.0
  %6205 = vmatpush1.msra.mxu0 0.0
  %6206 = vmatprep.subr.mxu0 0.0
  %6207 = vmatpush1.msra.mxu0 0.0
  %6208 = vmatprep.subr.mxu0 0.0
  %6209 = vmatpush1.msra.mxu0 0.0
  %6210 = vmatprep.subr.mxu0 0.0
  %6211 = vmatpush1.msra.mxu0 0.0
  %6212 = vmatprep.subr.mxu0 0.0
  %6213 = vmatpush1.msra.mxu0 0.0
  %6214 = vmatprep.subr.mxu0 0.0
  %6215 = vmatpush1.msra.mxu0 0.0
  %6216 = vmatprep.subr.mxu0 0.0
  %6217 = vmatpush1.msra.mxu0 0.0
  %6218 = vmatprep.subr.mxu0 0.0
  %6219 = vmatpush1.msra.mxu0 0.0
  %6220 = vmatprep.subr.mxu0 0.0
  %6221 = vmatpush1.msra.mxu0 0.0
  %6222 = vmatprep.subr.mxu0 0.0
  %6223 = vmatpush1.msra.mxu0 0.0
  %6224 = vmatprep.subr.mxu0 0.0
  %6225 = vmatpush1.msra.mxu0 0.0
  %6226 = vmatprep.subr.mxu0 0.0
  %6227 = vmatpush1.msra.mxu0 0.0
  %6228 = vmatprep.subr.mxu0 0.0
  %6229 = vmatpush1.msra.mxu0 0.0
  %6230 = vmatprep.subr.mxu0 0.0
  %6231 = vmatpush1.msra.mxu0 0.0
  %6232 = vmatprep.subr.mxu0 0.0
  %6233 = vmatpush1.msra.mxu0 0.0
  %6234 = vmatprep.subr.mxu0 0.0
  %6235 = vmatpush1.msra.mxu0 0.0
  %6236 = vmatprep.mubr.f32.mxu0 0.0
  %6237 = vmatmul.mubr.f32.gmra.mrb[0].mxu0 %v6087
  %v6238 = vpop.f32.mrb[0].mxu0
  %v6239 = vadd.f32 %v5991, %v6238
  %v6240 = vpop.f32.mrb[0].mxu0
  %v6241 = vadd.f32 %v5993, %v6240
  %6242 = vdwg.mxu0
  %6243 = vmatprep.subr.mxu0 %v6099
  %6244 = vmatpush1.msra.mxu0 %v6097
  %6245 = vmatprep.subr.mxu0 0.0
  %6246 = vmatpush1.msra.mxu0 0.0
  %6247 = vmatprep.subr.mxu0 0.0
  %6248 = vmatpush1.msra.mxu0 0.0
  %6249 = vmatprep.subr.mxu0 0.0
  %6250 = vmatpush1.msra.mxu0 0.0
  %6251 = vmatprep.subr.mxu0 0.0
  %6252 = vmatpush1.msra.mxu0 0.0
  %6253 = vmatprep.subr.mxu0 0.0
  %6254 = vmatpush1.msra.mxu0 0.0
  %6255 = vmatprep.subr.mxu0 0.0
  %6256 = vmatpush1.msra.mxu0 0.0
  %6257 = vmatprep.subr.mxu0 0.0
  %6258 = vmatpush1.msra.mxu0 0.0
  %6259 = vmatprep.subr.mxu0 0.0
  %6260 = vmatpush1.msra.mxu0 0.0
  %6261 = vmatprep.subr.mxu0 0.0
  %6262 = vmatpush1.msra.mxu0 0.0
  %6263 = vmatprep.subr.mxu0 0.0
  %6264 = vmatpush1.msra.mxu0 0.0
  %6265 = vmatprep.subr.mxu0 0.0
  %6266 = vmatpush1.msra.mxu0 0.0
  %6267 = vmatprep.subr.mxu0 0.0
  %6268 = vmatpush1.msra.mxu0 0.0
  %6269 = vmatprep.subr.mxu0 0.0
  %6270 = vmatpush1.msra.mxu0 0.0
  %6271 = vmatprep.subr.mxu0 0.0
  %6272 = vmatpush1.msra.mxu0 0.0
  %6273 = vmatprep.subr.mxu0 0.0
  %6274 = vmatpush1.msra.mxu0 0.0
  %6275 = vmatprep.subr.mxu0 0.0
  %6276 = vmatpush1.msra.mxu0 0.0
  %6277 = vmatprep.subr.mxu0 0.0
  %6278 = vmatpush1.msra.mxu0 0.0
  %6279 = vmatprep.subr.mxu0 0.0
  %6280 = vmatpush1.msra.mxu0 0.0
  %6281 = vmatprep.subr.mxu0 0.0
  %6282 = vmatpush1.msra.mxu0 0.0
  %6283 = vmatprep.subr.mxu0 0.0
  %6284 = vmatpush1.msra.mxu0 0.0
  %6285 = vmatprep.subr.mxu0 0.0
  %6286 = vmatpush1.msra.mxu0 0.0
  %6287 = vmatprep.subr.mxu0 0.0
  %6288 = vmatpush1.msra.mxu0 0.0
  %6289 = vmatprep.subr.mxu0 0.0
  %6290 = vmatpush1.msra.mxu0 0.0
  %6291 = vmatprep.subr.mxu0 0.0
  %6292 = vmatpush1.msra.mxu0 0.0
  %6293 = vmatprep.subr.mxu0 0.0
  %6294 = vmatpush1.msra.mxu0 0.0
  %6295 = vmatprep.subr.mxu0 0.0
  %6296 = vmatpush1.msra.mxu0 0.0
  %6297 = vmatprep.subr.mxu0 0.0
  %6298 = vmatpush1.msra.mxu0 0.0
  %6299 = vmatprep.subr.mxu0 0.0
  %6300 = vmatpush1.msra.mxu0 0.0
  %6301 = vmatprep.subr.mxu0 0.0
  %6302 = vmatpush1.msra.mxu0 0.0
  %6303 = vmatprep.subr.mxu0 0.0
  %6304 = vmatpush1.msra.mxu0 0.0
  %6305 = vmatprep.subr.mxu0 0.0
  %6306 = vmatpush1.msra.mxu0 0.0
  %6307 = vmatprep.mubr.f32.mxu0 0.0
  %6308 = vmatmul.mubr.f32.gmra.mrb[0].mxu0 %v6087
  %v6309 = vpop.f32.mrb[0].mxu0
  %v6310 = vadd.f32 %v6062, %v6309
  %v6311 = vpop.f32.mrb[0].mxu0
  %v6312 = vadd.f32 %v6064, %v6311
  %6313 = vdwg.mxu0
  %s6314 = scalar_lea.vmem %s13, 8
  %v6315 = vld [vmem:[%s6314] sm:$0xf]
  %6316 = vrot.lane.b32.xlu0 %v5801, 17
  %v6317 = vpop.permute.xlu0 %6316
  %6318 = vrot.lane.b32.xlu0 %v5802, 17
  %v6319 = vpop.permute.xlu0 %6318
  %6320 = vrot.lane.b32.xlu0 %v5803, 17
  %v6321 = vpop.permute.xlu0 %6320
  %6322 = vrot.lane.b32.xlu0 %v5804, 17
  %v6323 = vpop.permute.xlu0 %6322
  %6324 = vrot.lane.b32.xlu0 %v5805, 17
  %v6325 = vpop.permute.xlu0 %6324
  %6326 = vrot.lane.b32.xlu0 %v5806, 17
  %v6327 = vpop.permute.xlu0 %6326
  %6328 = vrot.lane.b32.xlu0 %v5807, 17
  %v6329 = vpop.permute.xlu0 %6328
  %v6330 = vsel %vm943, %v6317, %v6319
  %v6331 = vsel %vm943, %v6319, %v6321
  %v6332 = vsel %vm943, %v6321, %v6323
  %v6333 = vsel %vm943, %v6323, %v6325
  %v6334 = vsel %vm943, %v6325, %v6327
  %v6335 = vsel %vm943, %v6327, %v6329
  %v6337 = vsel %vm2731, %v6315, 0
  %v6339 = vsel %vm2735, %v6330, 0
  %v6341 = vsel %vm2735, %v6331, 0
  %v6343 = vsel %vm2735, %v6332, 0
  %v6345 = vsel %vm2735, %v6333, 0
  %v6347 = vsel %vm2735, %v6334, 0
  %v6349 = vsel %vm2735, %v6335, 0
  %6351 = vmatprep.subr.mxu0 %v6341
  %6352 = vmatpush1.msra.mxu0 %v6339
  %6353 = vmatprep.subr.mxu0 0.0
  %6354 = vmatpush1.msra.mxu0 0.0
  %6355 = vmatprep.subr.mxu0 0.0
  %6356 = vmatpush1.msra.mxu0 0.0
  %6357 = vmatprep.subr.mxu0 0.0
  %6358 = vmatpush1.msra.mxu0 0.0
  %6359 = vmatprep.subr.mxu0 0.0
  %6360 = vmatpush1.msra.mxu0 0.0
  %6361 = vmatprep.subr.mxu0 0.0
  %6362 = vmatpush1.msra.mxu0 0.0
  %6363 = vmatprep.subr.mxu0 0.0
  %6364 = vmatpush1.msra.mxu0 0.0
  %6365 = vmatprep.subr.mxu0 0.0
  %6366 = vmatpush1.msra.mxu0 0.0
  %6367 = vmatprep.subr.mxu0 0.0
  %6368 = vmatpush1.msra.mxu0 0.0
  %6369 = vmatprep.subr.mxu0 0.0
  %6370 = vmatpush1.msra.mxu0 0.0
  %6371 = vmatprep.subr.mxu0 0.0
  %6372 = vmatpush1.msra.mxu0 0.0
  %6373 = vmatprep.subr.mxu0 0.0
  %6374 = vmatpush1.msra.mxu0 0.0
  %6375 = vmatprep.subr.mxu0 0.0
  %6376 = vmatpush1.msra.mxu0 0.0
  %6377 = vmatprep.subr.mxu0 0.0
  %6378 = vmatpush1.msra.mxu0 0.0
  %6379 = vmatprep.subr.mxu0 0.0
  %6380 = vmatpush1.msra.mxu0 0.0
  %6381 = vmatprep.subr.mxu0 0.0
  %6382 = vmatpush1.msra.mxu0 0.0
  %6383 = vmatprep.subr.mxu0 0.0
  %6384 = vmatpush1.msra.mxu0 0.0
  %6385 = vmatprep.subr.mxu0 0.0
  %6386 = vmatpush1.msra.mxu0 0.0
  %6387 = vmatprep.subr.mxu0 0.0
  %6388 = vmatpush1.msra.mxu0 0.0
  %6389 = vmatprep.subr.mxu0 0.0
  %6390 = vmatpush1.msra.mxu0 0.0
  %6391 = vmatprep.subr.mxu0 0.0
  %6392 = vmatpush1.msra.mxu0 0.0
  %6393 = vmatprep.subr.mxu0 0.0
  %6394 = vmatpush1.msra.mxu0 0.0
  %6395 = vmatprep.subr.mxu0 0.0
  %6396 = vmatpush1.msra.mxu0 0.0
  %6397 = vmatprep.subr.mxu0 0.0
  %6398 = vmatpush1.msra.mxu0 0.0
  %6399 = vmatprep.subr.mxu0 0.0
  %6400 = vmatpush1.msra.mxu0 0.0
  %6401 = vmatprep.subr.mxu0 0.0
  %6402 = vmatpush1.msra.mxu0 0.0
  %6403 = vmatprep.subr.mxu0 0.0
  %6404 = vmatpush1.msra.mxu0 0.0
  %6405 = vmatprep.subr.mxu0 0.0
  %6406 = vmatpush1.msra.mxu0 0.0
  %6407 = vmatprep.subr.mxu0 0.0
  %6408 = vmatpush1.msra.mxu0 0.0
  %6409 = vmatprep.subr.mxu0 0.0
  %6410 = vmatpush1.msra.mxu0 0.0
  %6411 = vmatprep.subr.mxu0 0.0
  %6412 = vmatpush1.msra.mxu0 0.0
  %6413 = vmatprep.subr.mxu0 0.0
  %6414 = vmatpush1.msra.mxu0 0.0
  %6415 = vmatprep.mubr.f32.mxu0 0.0
  %6416 = vmatmul.mubr.f32.gmra.mrb[0].mxu0 %v6337
  %v6417 = vpop.f32.mrb[0].mxu0
  %v6418 = vadd.f32 0.0, %v6417
  %v6419 = vpop.f32.mrb[0].mxu0
  %v6420 = vadd.f32 0.0, %v6419
  %6421 = vdwg.mxu0
  %6422 = vmatprep.subr.mxu0 %v6345
  %6423 = vmatpush1.msra.mxu0 %v6343
  %6424 = vmatprep.subr.mxu0 0.0
  %6425 = vmatpush1.msra.mxu0 0.0
  %6426 = vmatprep.subr.mxu0 0.0
  %6427 = vmatpush1.msra.mxu0 0.0
  %6428 = vmatprep.subr.mxu0 0.0
  %6429 = vmatpush1.msra.mxu0 0.0
  %6430 = vmatprep.subr.mxu0 0.0
  %6431 = vmatpush1.msra.mxu0 0.0
  %6432 = vmatprep.subr.mxu0 0.0
  %6433 = vmatpush1.msra.mxu0 0.0
  %6434 = vmatprep.subr.mxu0 0.0
  %6435 = vmatpush1.msra.mxu0 0.0
  %6436 = vmatprep.subr.mxu0 0.0
  %6437 = vmatpush1.msra.mxu0 0.0
  %6438 = vmatprep.subr.mxu0 0.0
  %6439 = vmatpush1.msra.mxu0 0.0
  %6440 = vmatprep.subr.mxu0 0.0
  %6441 = vmatpush1.msra.mxu0 0.0
  %6442 = vmatprep.subr.mxu0 0.0
  %6443 = vmatpush1.msra.mxu0 0.0
  %6444 = vmatprep.subr.mxu0 0.0
  %6445 = vmatpush1.msra.mxu0 0.0
  %6446 = vmatprep.subr.mxu0 0.0
  %6447 = vmatpush1.msra.mxu0 0.0
  %6448 = vmatprep.subr.mxu0 0.0
  %6449 = vmatpush1.msra.mxu0 0.0
  %6450 = vmatprep.subr.mxu0 0.0
  %6451 = vmatpush1.msra.mxu0 0.0
  %6452 = vmatprep.subr.mxu0 0.0
  %6453 = vmatpush1.msra.mxu0 0.0
  %6454 = vmatprep.subr.mxu0 0.0
  %6455 = vmatpush1.msra.mxu0 0.0
  %6456 = vmatprep.subr.mxu0 0.0
  %6457 = vmatpush1.msra.mxu0 0.0
  %6458 = vmatprep.subr.mxu0 0.0
  %6459 = vmatpush1.msra.mxu0 0.0
  %6460 = vmatprep.subr.mxu0 0.0
  %6461 = vmatpush1.msra.mxu0 0.0
  %6462 = vmatprep.subr.mxu0 0.0
  %6463 = vmatpush1.msra.mxu0 0.0
  %6464 = vmatprep.subr.mxu0 0.0
  %6465 = vmatpush1.msra.mxu0 0.0
  %6466 = vmatprep.subr.mxu0 0.0
  %6467 = vmatpush1.msra.mxu0 0.0
  %6468 = vmatprep.subr.mxu0 0.0
  %6469 = vmatpush1.msra.mxu0 0.0
  %6470 = vmatprep.subr.mxu0 0.0
  %6471 = vmatpush1.msra.mxu0 0.0
  %6472 = vmatprep.subr.mxu0 0.0
  %6473 = vmatpush1.msra.mxu0 0.0
  %6474 = vmatprep.subr.mxu0 0.0
  %6475 = vmatpush1.msra.mxu0 0.0
  %6476 = vmatprep.subr.mxu0 0.0
  %6477 = vmatpush1.msra.mxu0 0.0
  %6478 = vmatprep.subr.mxu0 0.0
  %6479 = vmatpush1.msra.mxu0 0.0
  %6480 = vmatprep.subr.mxu0 0.0
  %6481 = vmatpush1.msra.mxu0 0.0
  %6482 = vmatprep.subr.mxu0 0.0
  %6483 = vmatpush1.msra.mxu0 0.0
  %6484 = vmatprep.subr.mxu0 0.0
  %6485 = vmatpush1.msra.mxu0 0.0
  %6486 = vmatprep.mubr.f32.mxu0 0.0
  %6487 = vmatmul.mubr.f32.gmra.mrb[0].mxu0 %v6337
  %v6488 = vpop.f32.mrb[0].mxu0
  %v6489 = vadd.f32 0.0, %v6488
  %v6490 = vpop.f32.mrb[0].mxu0
  %v6491 = vadd.f32 0.0, %v6490
  %6492 = vdwg.mxu0
  %6493 = vmatprep.subr.mxu0 %v6349
  %6494 = vmatpush1.msra.mxu0 %v6347
  %6495 = vmatprep.subr.mxu0 0.0
  %6496 = vmatpush1.msra.mxu0 0.0
  %6497 = vmatprep.subr.mxu0 0.0
  %6498 = vmatpush1.msra.mxu0 0.0
  %6499 = vmatprep.subr.mxu0 0.0
  %6500 = vmatpush1.msra.mxu0 0.0
  %6501 = vmatprep.subr.mxu0 0.0
  %6502 = vmatpush1.msra.mxu0 0.0
  %6503 = vmatprep.subr.mxu0 0.0
  %6504 = vmatpush1.msra.mxu0 0.0
  %6505 = vmatprep.subr.mxu0 0.0
  %6506 = vmatpush1.msra.mxu0 0.0
  %6507 = vmatprep.subr.mxu0 0.0
  %6508 = vmatpush1.msra.mxu0 0.0
  %6509 = vmatprep.subr.mxu0 0.0
  %6510 = vmatpush1.msra.mxu0 0.0
  %6511 = vmatprep.subr.mxu0 0.0
  %6512 = vmatpush1.msra.mxu0 0.0
  %6513 = vmatprep.subr.mxu0 0.0
  %6514 = vmatpush1.msra.mxu0 0.0
  %6515 = vmatprep.subr.mxu0 0.0
  %6516 = vmatpush1.msra.mxu0 0.0
  %6517 = vmatprep.subr.mxu0 0.0
  %6518 = vmatpush1.msra.mxu0 0.0
  %6519 = vmatprep.subr.mxu0 0.0
  %6520 = vmatpush1.msra.mxu0 0.0
  %6521 = vmatprep.subr.mxu0 0.0
  %6522 = vmatpush1.msra.mxu0 0.0
  %6523 = vmatprep.subr.mxu0 0.0
  %6524 = vmatpush1.msra.mxu0 0.0
  %6525 = vmatprep.subr.mxu0 0.0
  %6526 = vmatpush1.msra.mxu0 0.0
  %6527 = vmatprep.subr.mxu0 0.0
  %6528 = vmatpush1.msra.mxu0 0.0
  %6529 = vmatprep.subr.mxu0 0.0
  %6530 = vmatpush1.msra.mxu0 0.0
  %6531 = vmatprep.subr.mxu0 0.0
  %6532 = vmatpush1.msra.mxu0 0.0
  %6533 = vmatprep.subr.mxu0 0.0
  %6534 = vmatpush1.msra.mxu0 0.0
  %6535 = vmatprep.subr.mxu0 0.0
  %6536 = vmatpush1.msra.mxu0 0.0
  %6537 = vmatprep.subr.mxu0 0.0
  %6538 = vmatpush1.msra.mxu0 0.0
  %6539 = vmatprep.subr.mxu0 0.0
  %6540 = vmatpush1.msra.mxu0 0.0
  %6541 = vmatprep.subr.mxu0 0.0
  %6542 = vmatpush1.msra.mxu0 0.0
  %6543 = vmatprep.subr.mxu0 0.0
  %6544 = vmatpush1.msra.mxu0 0.0
  %6545 = vmatprep.subr.mxu0 0.0
  %6546 = vmatpush1.msra.mxu0 0.0
  %6547 = vmatprep.subr.mxu0 0.0
  %6548 = vmatpush1.msra.mxu0 0.0
  %6549 = vmatprep.subr.mxu0 0.0
  %6550 = vmatpush1.msra.mxu0 0.0
  %6551 = vmatprep.subr.mxu0 0.0
  %6552 = vmatpush1.msra.mxu0 0.0
  %6553 = vmatprep.subr.mxu0 0.0
  %6554 = vmatpush1.msra.mxu0 0.0
  %6555 = vmatprep.subr.mxu0 0.0
  %6556 = vmatpush1.msra.mxu0 0.0
  %6557 = vmatprep.mubr.f32.mxu0 0.0
  %6558 = vmatmul.mubr.f32.gmra.mrb[0].mxu0 %v6337
  %v6559 = vpop.f32.mrb[0].mxu0
  %v6560 = vadd.f32 0.0, %v6559
  %v6561 = vpop.f32.mrb[0].mxu0
  %v6562 = vadd.f32 0.0, %v6561
  %6563 = vdwg.mxu0
  %v6564 = vadd.f32 %v6168, %v6418
  %v6565 = vadd.f32 %v6170, %v6420
  %v6566 = vadd.f32 %v6239, %v6489
  %v6567 = vadd.f32 %v6241, %v6491
  %v6568 = vadd.f32 %v6310, %v6560
  %v6569 = vadd.f32 %v6312, %v6562
  %s6570 = scalar_lea.vmem %s13, 12
  %v6571 = vld [vmem:[%s6570] sm:$0xf]
  %6572 = vrot.lane.b32.xlu0 %v5801, 1
  %v6573 = vpop.permute.xlu0 %6572
  %6574 = vrot.lane.b32.xlu0 %v5802, 1
  %v6575 = vpop.permute.xlu0 %6574
  %6576 = vrot.lane.b32.xlu0 %v5803, 1
  %v6577 = vpop.permute.xlu0 %6576
  %6578 = vrot.lane.b32.xlu0 %v5804, 1
  %v6579 = vpop.permute.xlu0 %6578
  %6580 = vrot.lane.b32.xlu0 %v5805, 1
  %v6581 = vpop.permute.xlu0 %6580
  %6582 = vrot.lane.b32.xlu0 %v5806, 1
  %v6583 = vpop.permute.xlu0 %6582
  %6584 = vrot.lane.b32.xlu0 %v5807, 1
  %v6585 = vpop.permute.xlu0 %6584
  %v6586 = vsel %vm1194, %v6573, %v6575
  %v6587 = vsel %vm1194, %v6575, %v6577
  %v6588 = vsel %vm1194, %v6577, %v6579
  %v6589 = vsel %vm1194, %v6579, %v6581
  %v6590 = vsel %vm1194, %v6581, %v6583
  %v6591 = vsel %vm1194, %v6583, %v6585
  %v6593 = vsel %vm2731, %v6571, 0
  %v6595 = vsel %vm2735, %v6586, 0
  %v6597 = vsel %vm2735, %v6587, 0
  %v6599 = vsel %vm2735, %v6588, 0
  %v6601 = vsel %vm2735, %v6589, 0
  %v6603 = vsel %vm2735, %v6590, 0
  %v6605 = vsel %vm2735, %v6591, 0
  %6607 = vmatprep.subr.mxu0 %v6597
  %6608 = vmatpush1.msra.mxu0 %v6595
  %6609 = vmatprep.subr.mxu0 0.0
  %6610 = vmatpush1.msra.mxu0 0.0
  %6611 = vmatprep.subr.mxu0 0.0
  %6612 = vmatpush1.msra.mxu0 0.0
  %6613 = vmatprep.subr.mxu0 0.0
  %6614 = vmatpush1.msra.mxu0 0.0
  %6615 = vmatprep.subr.mxu0 0.0
  %6616 = vmatpush1.msra.mxu0 0.0
  %6617 = vmatprep.subr.mxu0 0.0
  %6618 = vmatpush1.msra.mxu0 0.0
  %6619 = vmatprep.subr.mxu0 0.0
  %6620 = vmatpush1.msra.mxu0 0.0
  %6621 = vmatprep.subr.mxu0 0.0
  %6622 = vmatpush1.msra.mxu0 0.0
  %6623 = vmatprep.subr.mxu0 0.0
  %6624 = vmatpush1.msra.mxu0 0.0
  %6625 = vmatprep.subr.mxu0 0.0
  %6626 = vmatpush1.msra.mxu0 0.0
  %6627 = vmatprep.subr.mxu0 0.0
  %6628 = vmatpush1.msra.mxu0 0.0
  %6629 = vmatprep.subr.mxu0 0.0
  %6630 = vmatpush1.msra.mxu0 0.0
  %6631 = vmatprep.subr.mxu0 0.0
  %6632 = vmatpush1.msra.mxu0 0.0
  %6633 = vmatprep.subr.mxu0 0.0
  %6634 = vmatpush1.msra.mxu0 0.0
  %6635 = vmatprep.subr.mxu0 0.0
  %6636 = vmatpush1.msra.mxu0 0.0
  %6637 = vmatprep.subr.mxu0 0.0
  %6638 = vmatpush1.msra.mxu0 0.0
  %6639 = vmatprep.subr.mxu0 0.0
  %6640 = vmatpush1.msra.mxu0 0.0
  %6641 = vmatprep.subr.mxu0 0.0
  %6642 = vmatpush1.msra.mxu0 0.0
  %6643 = vmatprep.subr.mxu0 0.0
  %6644 = vmatpush1.msra.mxu0 0.0
  %6645 = vmatprep.subr.mxu0 0.0
  %6646 = vmatpush1.msra.mxu0 0.0
  %6647 = vmatprep.subr.mxu0 0.0
  %6648 = vmatpush1.msra.mxu0 0.0
  %6649 = vmatprep.subr.mxu0 0.0
  %6650 = vmatpush1.msra.mxu0 0.0
  %6651 = vmatprep.subr.mxu0 0.0
  %6652 = vmatpush1.msra.mxu0 0.0
  %6653 = vmatprep.subr.mxu0 0.0
  %6654 = vmatpush1.msra.mxu0 0.0
  %6655 = vmatprep.subr.mxu0 0.0
  %6656 = vmatpush1.msra.mxu0 0.0
  %6657 = vmatprep.subr.mxu0 0.0
  %6658 = vmatpush1.msra.mxu0 0.0
  %6659 = vmatprep.subr.mxu0 0.0
  %6660 = vmatpush1.msra.mxu0 0.0
  %6661 = vmatprep.subr.mxu0 0.0
  %6662 = vmatpush1.msra.mxu0 0.0
  %6663 = vmatprep.subr.mxu0 0.0
  %6664 = vmatpush1.msra.mxu0 0.0
  %6665 = vmatprep.subr.mxu0 0.0
  %6666 = vmatpush1.msra.mxu0 0.0
  %6667 = vmatprep.subr.mxu0 0.0
  %6668 = vmatpush1.msra.mxu0 0.0
  %6669 = vmatprep.subr.mxu0 0.0
  %6670 = vmatpush1.msra.mxu0 0.0
  %6671 = vmatprep.mubr.f32.mxu0 0.0
  %6672 = vmatmul.mubr.f32.gmra.mrb[0].mxu0 %v6593
  %v6673 = vpop.f32.mrb[0].mxu0
  %v6674 = vadd.f32 0.0, %v6673
  %v6675 = vpop.f32.mrb[0].mxu0
  %v6676 = vadd.f32 0.0, %v6675
  %6677 = vdwg.mxu0
  %6678 = vmatprep.subr.mxu0 %v6601
  %6679 = vmatpush1.msra.mxu0 %v6599
  %6680 = vmatprep.subr.mxu0 0.0
  %6681 = vmatpush1.msra.mxu0 0.0
  %6682 = vmatprep.subr.mxu0 0.0
  %6683 = vmatpush1.msra.mxu0 0.0
  %6684 = vmatprep.subr.mxu0 0.0
  %6685 = vmatpush1.msra.mxu0 0.0
  %6686 = vmatprep.subr.mxu0 0.0
  %6687 = vmatpush1.msra.mxu0 0.0
  %6688 = vmatprep.subr.mxu0 0.0
  %6689 = vmatpush1.msra.mxu0 0.0
  %6690 = vmatprep.subr.mxu0 0.0
  %6691 = vmatpush1.msra.mxu0 0.0
  %6692 = vmatprep.subr.mxu0 0.0
  %6693 = vmatpush1.msra.mxu0 0.0
  %6694 = vmatprep.subr.mxu0 0.0
  %6695 = vmatpush1.msra.mxu0 0.0
  %6696 = vmatprep.subr.mxu0 0.0
  %6697 = vmatpush1.msra.mxu0 0.0
  %6698 = vmatprep.subr.mxu0 0.0
  %6699 = vmatpush1.msra.mxu0 0.0
  %6700 = vmatprep.subr.mxu0 0.0
  %6701 = vmatpush1.msra.mxu0 0.0
  %6702 = vmatprep.subr.mxu0 0.0
  %6703 = vmatpush1.msra.mxu0 0.0
  %6704 = vmatprep.subr.mxu0 0.0
  %6705 = vmatpush1.msra.mxu0 0.0
  %6706 = vmatprep.subr.mxu0 0.0
  %6707 = vmatpush1.msra.mxu0 0.0
  %6708 = vmatprep.subr.mxu0 0.0
  %6709 = vmatpush1.msra.mxu0 0.0
  %6710 = vmatprep.subr.mxu0 0.0
  %6711 = vmatpush1.msra.mxu0 0.0
  %6712 = vmatprep.subr.mxu0 0.0
  %6713 = vmatpush1.msra.mxu0 0.0
  %6714 = vmatprep.subr.mxu0 0.0
  %6715 = vmatpush1.msra.mxu0 0.0
  %6716 = vmatprep.subr.mxu0 0.0
  %6717 = vmatpush1.msra.mxu0 0.0
  %6718 = vmatprep.subr.mxu0 0.0
  %6719 = vmatpush1.msra.mxu0 0.0
  %6720 = vmatprep.subr.mxu0 0.0
  %6721 = vmatpush1.msra.mxu0 0.0
  %6722 = vmatprep.subr.mxu0 0.0
  %6723 = vmatpush1.msra.mxu0 0.0
  %6724 = vmatprep.subr.mxu0 0.0
  %6725 = vmatpush1.msra.mxu0 0.0
  %6726 = vmatprep.subr.mxu0 0.0
  %6727 = vmatpush1.msra.mxu0 0.0
  %6728 = vmatprep.subr.mxu0 0.0
  %6729 = vmatpush1.msra.mxu0 0.0
  %6730 = vmatprep.subr.mxu0 0.0
  %6731 = vmatpush1.msra.mxu0 0.0
  %6732 = vmatprep.subr.mxu0 0.0
  %6733 = vmatpush1.msra.mxu0 0.0
  %6734 = vmatprep.subr.mxu0 0.0
  %6735 = vmatpush1.msra.mxu0 0.0
  %6736 = vmatprep.subr.mxu0 0.0
  %6737 = vmatpush1.msra.mxu0 0.0
  %6738 = vmatprep.subr.mxu0 0.0
  %6739 = vmatpush1.msra.mxu0 0.0
  %6740 = vmatprep.subr.mxu0 0.0
  %6741 = vmatpush1.msra.mxu0 0.0
  %6742 = vmatprep.mubr.f32.mxu0 0.0
  %6743 = vmatmul.mubr.f32.gmra.mrb[0].mxu0 %v6593
  %v6744 = vpop.f32.mrb[0].mxu0
  %v6745 = vadd.f32 0.0, %v6744
  %v6746 = vpop.f32.mrb[0].mxu0
  %v6747 = vadd.f32 0.0, %v6746
  %6748 = vdwg.mxu0
  %6749 = vmatprep.subr.mxu0 %v6605
  %6750 = vmatpush1.msra.mxu0 %v6603
  %6751 = vmatprep.subr.mxu0 0.0
  %6752 = vmatpush1.msra.mxu0 0.0
  %6753 = vmatprep.subr.mxu0 0.0
  %6754 = vmatpush1.msra.mxu0 0.0
  %6755 = vmatprep.subr.mxu0 0.0
  %6756 = vmatpush1.msra.mxu0 0.0
  %6757 = vmatprep.subr.mxu0 0.0
  %6758 = vmatpush1.msra.mxu0 0.0
  %6759 = vmatprep.subr.mxu0 0.0
  %6760 = vmatpush1.msra.mxu0 0.0
  %6761 = vmatprep.subr.mxu0 0.0
  %6762 = vmatpush1.msra.mxu0 0.0
  %6763 = vmatprep.subr.mxu0 0.0
  %6764 = vmatpush1.msra.mxu0 0.0
  %6765 = vmatprep.subr.mxu0 0.0
  %6766 = vmatpush1.msra.mxu0 0.0
  %6767 = vmatprep.subr.mxu0 0.0
  %6768 = vmatpush1.msra.mxu0 0.0
  %6769 = vmatprep.subr.mxu0 0.0
  %6770 = vmatpush1.msra.mxu0 0.0
  %6771 = vmatprep.subr.mxu0 0.0
  %6772 = vmatpush1.msra.mxu0 0.0
  %6773 = vmatprep.subr.mxu0 0.0
  %6774 = vmatpush1.msra.mxu0 0.0
  %6775 = vmatprep.subr.mxu0 0.0
  %6776 = vmatpush1.msra.mxu0 0.0
  %6777 = vmatprep.subr.mxu0 0.0
  %6778 = vmatpush1.msra.mxu0 0.0
  %6779 = vmatprep.subr.mxu0 0.0
  %6780 = vmatpush1.msra.mxu0 0.0
  %6781 = vmatprep.subr.mxu0 0.0
  %6782 = vmatpush1.msra.mxu0 0.0
  %6783 = vmatprep.subr.mxu0 0.0
  %6784 = vmatpush1.msra.mxu0 0.0
  %6785 = vmatprep.subr.mxu0 0.0
  %6786 = vmatpush1.msra.mxu0 0.0
  %6787 = vmatprep.subr.mxu0 0.0
  %6788 = vmatpush1.msra.mxu0 0.0
  %6789 = vmatprep.subr.mxu0 0.0
  %6790 = vmatpush1.msra.mxu0 0.0
  %6791 = vmatprep.subr.mxu0 0.0
  %6792 = vmatpush1.msra.mxu0 0.0
  %6793 = vmatprep.subr.mxu0 0.0
  %6794 = vmatpush1.msra.mxu0 0.0
  %6795 = vmatprep.subr.mxu0 0.0
  %6796 = vmatpush1.msra.mxu0 0.0
  %6797 = vmatprep.subr.mxu0 0.0
  %6798 = vmatpush1.msra.mxu0 0.0
  %6799 = vmatprep.subr.mxu0 0.0
  %6800 = vmatpush1.msra.mxu0 0.0
  %6801 = vmatprep.subr.mxu0 0.0
  %6802 = vmatpush1.msra.mxu0 0.0
  %6803 = vmatprep.subr.mxu0 0.0
  %6804 = vmatpush1.msra.mxu0 0.0
  %6805 = vmatprep.subr.mxu0 0.0
  %6806 = vmatpush1.msra.mxu0 0.0
  %6807 = vmatprep.subr.mxu0 0.0
  %6808 = vmatpush1.msra.mxu0 0.0
  %6809 = vmatprep.subr.mxu0 0.0
  %6810 = vmatpush1.msra.mxu0 0.0
  %6811 = vmatprep.subr.mxu0 0.0
  %6812 = vmatpush1.msra.mxu0 0.0
  %6813 = vmatprep.mubr.f32.mxu0 0.0
  %6814 = vmatmul.mubr.f32.gmra.mrb[0].mxu0 %v6593
  %v6815 = vpop.f32.mrb[0].mxu0
  %v6816 = vadd.f32 0.0, %v6815
  %v6817 = vpop.f32.mrb[0].mxu0
  %v6818 = vadd.f32 0.0, %v6817
  %6819 = vdwg.mxu0
  %v6820 = vadd.f32 %v6564, %v6674
  %v6821 = vadd.f32 %v6565, %v6676
  %v6822 = vadd.f32 %v6566, %v6745
  %v6823 = vadd.f32 %v6567, %v6747
  %v6824 = vadd.f32 %v6568, %v6816
  %v6825 = vadd.f32 %v6569, %v6818
  %s6826 = scalar_lea.vmem %s13, 16
  %v6827 = vld [vmem:[%s6826] sm:$0xf]
  %v6829 = vsel %vm2731, %v6827, 0
  %v6831 = vsel %vm2735, %v5802, 0
  %v6833 = vsel %vm2735, %v5803, 0
  %v6835 = vsel %vm2735, %v5804, 0
  %v6837 = vsel %vm2735, %v5805, 0
  %v6839 = vsel %vm2735, %v5806, 0
  %v6841 = vsel %vm2735, %v5807, 0
  %6843 = vmatprep.subr.mxu0 %v6833
  %6844 = vmatpush1.msra.mxu0 %v6831
  %6845 = vmatprep.subr.mxu0 0.0
  %6846 = vmatpush1.msra.mxu0 0.0
  %6847 = vmatprep.subr.mxu0 0.0
  %6848 = vmatpush1.msra.mxu0 0.0
  %6849 = vmatprep.subr.mxu0 0.0
  %6850 = vmatpush1.msra.mxu0 0.0
  %6851 = vmatprep.subr.mxu0 0.0
  %6852 = vmatpush1.msra.mxu0 0.0
  %6853 = vmatprep.subr.mxu0 0.0
  %6854 = vmatpush1.msra.mxu0 0.0
  %6855 = vmatprep.subr.mxu0 0.0
  %6856 = vmatpush1.msra.mxu0 0.0
  %6857 = vmatprep.subr.mxu0 0.0
  %6858 = vmatpush1.msra.mxu0 0.0
  %6859 = vmatprep.subr.mxu0 0.0
  %6860 = vmatpush1.msra.mxu0 0.0
  %6861 = vmatprep.subr.mxu0 0.0
  %6862 = vmatpush1.msra.mxu0 0.0
  %6863 = vmatprep.subr.mxu0 0.0
  %6864 = vmatpush1.msra.mxu0 0.0
  %6865 = vmatprep.subr.mxu0 0.0
  %6866 = vmatpush1.msra.mxu0 0.0
  %6867 = vmatprep.subr.mxu0 0.0
  %6868 = vmatpush1.msra.mxu0 0.0
  %6869 = vmatprep.subr.mxu0 0.0
  %6870 = vmatpush1.msra.mxu0 0.0
  %6871 = vmatprep.subr.mxu0 0.0
  %6872 = vmatpush1.msra.mxu0 0.0
  %6873 = vmatprep.subr.mxu0 0.0
  %6874 = vmatpush1.msra.mxu0 0.0
  %6875 = vmatprep.subr.mxu0 0.0
  %6876 = vmatpush1.msra.mxu0 0.0
  %6877 = vmatprep.subr.mxu0 0.0
  %6878 = vmatpush1.msra.mxu0 0.0
  %6879 = vmatprep.subr.mxu0 0.0
  %6880 = vmatpush1.msra.mxu0 0.0
  %6881 = vmatprep.subr.mxu0 0.0
  %6882 = vmatpush1.msra.mxu0 0.0
  %6883 = vmatprep.subr.mxu0 0.0
  %6884 = vmatpush1.msra.mxu0 0.0
  %6885 = vmatprep.subr.mxu0 0.0
  %6886 = vmatpush1.msra.mxu0 0.0
  %6887 = vmatprep.subr.mxu0 0.0
  %6888 = vmatpush1.msra.mxu0 0.0
  %6889 = vmatprep.subr.mxu0 0.0
  %6890 = vmatpush1.msra.mxu0 0.0
  %6891 = vmatprep.subr.mxu0 0.0
  %6892 = vmatpush1.msra.mxu0 0.0
  %6893 = vmatprep.subr.mxu0 0.0
  %6894 = vmatpush1.msra.mxu0 0.0
  %6895 = vmatprep.subr.mxu0 0.0
  %6896 = vmatpush1.msra.mxu0 0.0
  %6897 = vmatprep.subr.mxu0 0.0
  %6898 = vmatpush1.msra.mxu0 0.0
  %6899 = vmatprep.subr.mxu0 0.0
  %6900 = vmatpush1.msra.mxu0 0.0
  %6901 = vmatprep.subr.mxu0 0.0
  %6902 = vmatpush1.msra.mxu0 0.0
  %6903 = vmatprep.subr.mxu0 0.0
  %6904 = vmatpush1.msra.mxu0 0.0
  %6905 = vmatprep.subr.mxu0 0.0
  %6906 = vmatpush1.msra.mxu0 0.0
  %6907 = vmatprep.mubr.f32.mxu0 0.0
  %6908 = vmatmul.mubr.f32.gmra.mrb[0].mxu0 %v6829
  %v6909 = vpop.f32.mrb[0].mxu0
  %v6910 = vadd.f32 0.0, %v6909
  %v6911 = vpop.f32.mrb[0].mxu0
  %v6912 = vadd.f32 0.0, %v6911
  %6913 = vdwg.mxu0
  %6914 = vmatprep.subr.mxu0 %v6837
  %6915 = vmatpush1.msra.mxu0 %v6835
  %6916 = vmatprep.subr.mxu0 0.0
  %6917 = vmatpush1.msra.mxu0 0.0
  %6918 = vmatprep.subr.mxu0 0.0
  %6919 = vmatpush1.msra.mxu0 0.0
  %6920 = vmatprep.subr.mxu0 0.0
  %6921 = vmatpush1.msra.mxu0 0.0
  %6922 = vmatprep.subr.mxu0 0.0
  %6923 = vmatpush1.msra.mxu0 0.0
  %6924 = vmatprep.subr.mxu0 0.0
  %6925 = vmatpush1.msra.mxu0 0.0
  %6926 = vmatprep.subr.mxu0 0.0
  %6927 = vmatpush1.msra.mxu0 0.0
  %6928 = vmatprep.subr.mxu0 0.0
  %6929 = vmatpush1.msra.mxu0 0.0
  %6930 = vmatprep.subr.mxu0 0.0
  %6931 = vmatpush1.msra.mxu0 0.0
  %6932 = vmatprep.subr.mxu0 0.0
  %6933 = vmatpush1.msra.mxu0 0.0
  %6934 = vmatprep.subr.mxu0 0.0
  %6935 = vmatpush1.msra.mxu0 0.0
  %6936 = vmatprep.subr.mxu0 0.0
  %6937 = vmatpush1.msra.mxu0 0.0
  %6938 = vmatprep.subr.mxu0 0.0
  %6939 = vmatpush1.msra.mxu0 0.0
  %6940 = vmatprep.subr.mxu0 0.0
  %6941 = vmatpush1.msra.mxu0 0.0
  %6942 = vmatprep.subr.mxu0 0.0
  %6943 = vmatpush1.msra.mxu0 0.0
  %6944 = vmatprep.subr.mxu0 0.0
  %6945 = vmatpush1.msra.mxu0 0.0
  %6946 = vmatprep.subr.mxu0 0.0
  %6947 = vmatpush1.msra.mxu0 0.0
  %6948 = vmatprep.subr.mxu0 0.0
  %6949 = vmatpush1.msra.mxu0 0.0
  %6950 = vmatprep.subr.mxu0 0.0
  %6951 = vmatpush1.msra.mxu0 0.0
  %6952 = vmatprep.subr.mxu0 0.0
  %6953 = vmatpush1.msra.mxu0 0.0
  %6954 = vmatprep.subr.mxu0 0.0
  %6955 = vmatpush1.msra.mxu0 0.0
  %6956 = vmatprep.subr.mxu0 0.0
  %6957 = vmatpush1.msra.mxu0 0.0
  %6958 = vmatprep.subr.mxu0 0.0
  %6959 = vmatpush1.msra.mxu0 0.0
  %6960 = vmatprep.subr.mxu0 0.0
  %6961 = vmatpush1.msra.mxu0 0.0
  %6962 = vmatprep.subr.mxu0 0.0
  %6963 = vmatpush1.msra.mxu0 0.0
  %6964 = vmatprep.subr.mxu0 0.0
  %6965 = vmatpush1.msra.mxu0 0.0
  %6966 = vmatprep.subr.mxu0 0.0
  %6967 = vmatpush1.msra.mxu0 0.0
  %6968 = vmatprep.subr.mxu0 0.0
  %6969 = vmatpush1.msra.mxu0 0.0
  %6970 = vmatprep.subr.mxu0 0.0
  %6971 = vmatpush1.msra.mxu0 0.0
  %6972 = vmatprep.subr.mxu0 0.0
  %6973 = vmatpush1.msra.mxu0 0.0
  %6974 = vmatprep.subr.mxu0 0.0
  %6975 = vmatpush1.msra.mxu0 0.0
  %6976 = vmatprep.subr.mxu0 0.0
  %6977 = vmatpush1.msra.mxu0 0.0
  %6978 = vmatprep.mubr.f32.mxu0 0.0
  %6979 = vmatmul.mubr.f32.gmra.mrb[0].mxu0 %v6829
  %v6980 = vpop.f32.mrb[0].mxu0
  %v6981 = vadd.f32 0.0, %v6980
  %v6982 = vpop.f32.mrb[0].mxu0
  %v6983 = vadd.f32 0.0, %v6982
  %6984 = vdwg.mxu0
  %6985 = vmatprep.subr.mxu0 %v6841
  %6986 = vmatpush1.msra.mxu0 %v6839
  %6987 = vmatprep.subr.mxu0 0.0
  %6988 = vmatpush1.msra.mxu0 0.0
  %6989 = vmatprep.subr.mxu0 0.0
  %6990 = vmatpush1.msra.mxu0 0.0
  %6991 = vmatprep.subr.mxu0 0.0
  %6992 = vmatpush1.msra.mxu0 0.0
  %6993 = vmatprep.subr.mxu0 0.0
  %6994 = vmatpush1.msra.mxu0 0.0
  %6995 = vmatprep.subr.mxu0 0.0
  %6996 = vmatpush1.msra.mxu0 0.0
  %6997 = vmatprep.subr.mxu0 0.0
  %6998 = vmatpush1.msra.mxu0 0.0
  %6999 = vmatprep.subr.mxu0 0.0
  %7000 = vmatpush1.msra.mxu0 0.0
  %7001 = vmatprep.subr.mxu0 0.0
  %7002 = vmatpush1.msra.mxu0 0.0
  %7003 = vmatprep.subr.mxu0 0.0
  %7004 = vmatpush1.msra.mxu0 0.0
  %7005 = vmatprep.subr.mxu0 0.0
  %7006 = vmatpush1.msra.mxu0 0.0
  %7007 = vmatprep.subr.mxu0 0.0
  %7008 = vmatpush1.msra.mxu0 0.0
  %7009 = vmatprep.subr.mxu0 0.0
  %7010 = vmatpush1.msra.mxu0 0.0
  %7011 = vmatprep.subr.mxu0 0.0
  %7012 = vmatpush1.msra.mxu0 0.0
  %7013 = vmatprep.subr.mxu0 0.0
  %7014 = vmatpush1.msra.mxu0 0.0
  %7015 = vmatprep.subr.mxu0 0.0
  %7016 = vmatpush1.msra.mxu0 0.0
  %7017 = vmatprep.subr.mxu0 0.0
  %7018 = vmatpush1.msra.mxu0 0.0
  %7019 = vmatprep.subr.mxu0 0.0
  %7020 = vmatpush1.msra.mxu0 0.0
  %7021 = vmatprep.subr.mxu0 0.0
  %7022 = vmatpush1.msra.mxu0 0.0
  %7023 = vmatprep.subr.mxu0 0.0
  %7024 = vmatpush1.msra.mxu0 0.0
  %7025 = vmatprep.subr.mxu0 0.0
  %7026 = vmatpush1.msra.mxu0 0.0
  %7027 = vmatprep.subr.mxu0 0.0
  %7028 = vmatpush1.msra.mxu0 0.0
  %7029 = vmatprep.subr.mxu0 0.0
  %7030 = vmatpush1.msra.mxu0 0.0
  %7031 = vmatprep.subr.mxu0 0.0
  %7032 = vmatpush1.msra.mxu0 0.0
  %7033 = vmatprep.subr.mxu0 0.0
  %7034 = vmatpush1.msra.mxu0 0.0
  %7035 = vmatprep.subr.mxu0 0.0
  %7036 = vmatpush1.msra.mxu0 0.0
  %7037 = vmatprep.subr.mxu0 0.0
  %7038 = vmatpush1.msra.mxu0 0.0
  %7039 = vmatprep.subr.mxu0 0.0
  %7040 = vmatpush1.msra.mxu0 0.0
  %7041 = vmatprep.subr.mxu0 0.0
  %7042 = vmatpush1.msra.mxu0 0.0
  %7043 = vmatprep.subr.mxu0 0.0
  %7044 = vmatpush1.msra.mxu0 0.0
  %7045 = vmatprep.subr.mxu0 0.0
  %7046 = vmatpush1.msra.mxu0 0.0
  %7047 = vmatprep.subr.mxu0 0.0
  %7048 = vmatpush1.msra.mxu0 0.0
  %7049 = vmatprep.mubr.f32.mxu0 0.0
  %7050 = vmatmul.mubr.f32.gmra.mrb[0].mxu0 %v6829
  %v7051 = vpop.f32.mrb[0].mxu0
  %v7052 = vadd.f32 0.0, %v7051
  %v7053 = vpop.f32.mrb[0].mxu0
  %v7054 = vadd.f32 0.0, %v7053
  %7055 = vdwg.mxu0
  %v7056 = vadd.f32 %v6820, %v6910
  %v7057 = vadd.f32 %v6821, %v6912
  %v7058 = vadd.f32 %v6822, %v6981
  %v7059 = vadd.f32 %v6823, %v6983
  %v7060 = vadd.f32 %v6824, %v7052
  %v7061 = vadd.f32 %v6825, %v7054
  %v7062 = vld [vmem:[#allocation2 + $0x8] sm:$0xf]
  %v7063 = vld [vmem:[#allocation2 + $0x10] sm:$0xf]
  %v7064 = vld [vmem:[#allocation2 + $0x18] sm:$0xf]
  %v7065 = vld [vmem:[#allocation2 + $0x20] sm:$0xf]
  %v7066 = vld [vmem:[#allocation2 + $0x28] sm:$0xf]
  %v7067 = vld [vmem:[#allocation2 + $0x30] sm:$0xf]
  %v7068 = vld [vmem:[#allocation2 + $0x38] sm:$0xf]
  %s7069 = scalar_lea.vmem %s13, 20
  %v7070 = vld [vmem:[%s7069] sm:$0xf]
  %7078 = vrot.lane.b32.xlu0 %v7062, 127
  %v7079 = vpop.permute.xlu0 %7078
  %7080 = vrot.lane.b32.xlu0 %v7063, 127
  %v7081 = vpop.permute.xlu0 %7080
  %7082 = vrot.lane.b32.xlu0 %v7064, 127
  %v7083 = vpop.permute.xlu0 %7082
  %7084 = vrot.lane.b32.xlu0 %v7065, 127
  %v7085 = vpop.permute.xlu0 %7084
  %7086 = vrot.lane.b32.xlu0 %v7066, 127
  %v7087 = vpop.permute.xlu0 %7086
  %7088 = vrot.lane.b32.xlu0 %v7067, 127
  %v7089 = vpop.permute.xlu0 %7088
  %7090 = vrot.lane.b32.xlu0 %v7068, 127
  %v7091 = vpop.permute.xlu0 %7090
  %v7092 = vsel %vm1683, %v7079, %v7081
  %v7093 = vsel %vm1683, %v7081, %v7083
  %v7094 = vsel %vm1683, %v7083, %v7085
  %v7095 = vsel %vm1683, %v7085, %v7087
  %v7096 = vsel %vm1683, %v7087, %v7089
  %v7097 = vsel %vm1683, %v7089, %v7091
  %v7099 = vsel %vm2731, %v7070, 0
  %v7101 = vsel %vm2735, %v7092, 0
  %v7103 = vsel %vm2735, %v7093, 0
  %v7105 = vsel %vm2735, %v7094, 0
  %v7107 = vsel %vm2735, %v7095, 0
  %v7109 = vsel %vm2735, %v7096, 0
  %v7111 = vsel %vm2735, %v7097, 0
  %7113 = vmatprep.subr.mxu0 %v7103
  %7114 = vmatpush1.msra.mxu0 %v7101
  %7115 = vmatprep.subr.mxu0 0.0
  %7116 = vmatpush1.msra.mxu0 0.0
  %7117 = vmatprep.subr.mxu0 0.0
  %7118 = vmatpush1.msra.mxu0 0.0
  %7119 = vmatprep.subr.mxu0 0.0
  %7120 = vmatpush1.msra.mxu0 0.0
  %7121 = vmatprep.subr.mxu0 0.0
  %7122 = vmatpush1.msra.mxu0 0.0
  %7123 = vmatprep.subr.mxu0 0.0
  %7124 = vmatpush1.msra.mxu0 0.0
  %7125 = vmatprep.subr.mxu0 0.0
  %7126 = vmatpush1.msra.mxu0 0.0
  %7127 = vmatprep.subr.mxu0 0.0
  %7128 = vmatpush1.msra.mxu0 0.0
  %7129 = vmatprep.subr.mxu0 0.0
  %7130 = vmatpush1.msra.mxu0 0.0
  %7131 = vmatprep.subr.mxu0 0.0
  %7132 = vmatpush1.msra.mxu0 0.0
  %7133 = vmatprep.subr.mxu0 0.0
  %7134 = vmatpush1.msra.mxu0 0.0
  %7135 = vmatprep.subr.mxu0 0.0
  %7136 = vmatpush1.msra.mxu0 0.0
  %7137 = vmatprep.subr.mxu0 0.0
  %7138 = vmatpush1.msra.mxu0 0.0
  %7139 = vmatprep.subr.mxu0 0.0
  %7140 = vmatpush1.msra.mxu0 0.0
  %7141 = vmatprep.subr.mxu0 0.0
  %7142 = vmatpush1.msra.mxu0 0.0
  %7143 = vmatprep.subr.mxu0 0.0
  %7144 = vmatpush1.msra.mxu0 0.0
  %7145 = vmatprep.subr.mxu0 0.0
  %7146 = vmatpush1.msra.mxu0 0.0
  %7147 = vmatprep.subr.mxu0 0.0
  %7148 = vmatpush1.msra.mxu0 0.0
  %7149 = vmatprep.subr.mxu0 0.0
  %7150 = vmatpush1.msra.mxu0 0.0
  %7151 = vmatprep.subr.mxu0 0.0
  %7152 = vmatpush1.msra.mxu0 0.0
  %7153 = vmatprep.subr.mxu0 0.0
  %7154 = vmatpush1.msra.mxu0 0.0
  %7155 = vmatprep.subr.mxu0 0.0
  %7156 = vmatpush1.msra.mxu0 0.0
  %7157 = vmatprep.subr.mxu0 0.0
  %7158 = vmatpush1.msra.mxu0 0.0
  %7159 = vmatprep.subr.mxu0 0.0
  %7160 = vmatpush1.msra.mxu0 0.0
  %7161 = vmatprep.subr.mxu0 0.0
  %7162 = vmatpush1.msra.mxu0 0.0
  %7163 = vmatprep.subr.mxu0 0.0
  %7164 = vmatpush1.msra.mxu0 0.0
  %7165 = vmatprep.subr.mxu0 0.0
  %7166 = vmatpush1.msra.mxu0 0.0
  %7167 = vmatprep.subr.mxu0 0.0
  %7168 = vmatpush1.msra.mxu0 0.0
  %7169 = vmatprep.subr.mxu0 0.0
  %7170 = vmatpush1.msra.mxu0 0.0
  %7171 = vmatprep.subr.mxu0 0.0
  %7172 = vmatpush1.msra.mxu0 0.0
  %7173 = vmatprep.subr.mxu0 0.0
  %7174 = vmatpush1.msra.mxu0 0.0
  %7175 = vmatprep.subr.mxu0 0.0
  %7176 = vmatpush1.msra.mxu0 0.0
  %7177 = vmatprep.mubr.f32.mxu0 0.0
  %7178 = vmatmul.mubr.f32.gmra.mrb[0].mxu0 %v7099
  %v7179 = vpop.f32.mrb[0].mxu0
  %v7180 = vadd.f32 0.0, %v7179
  %v7181 = vpop.f32.mrb[0].mxu0
  %v7182 = vadd.f32 0.0, %v7181
  %7183 = vdwg.mxu0
  %7184 = vmatprep.subr.mxu0 %v7107
  %7185 = vmatpush1.msra.mxu0 %v7105
  %7186 = vmatprep.subr.mxu0 0.0
  %7187 = vmatpush1.msra.mxu0 0.0
  %7188 = vmatprep.subr.mxu0 0.0
  %7189 = vmatpush1.msra.mxu0 0.0
  %7190 = vmatprep.subr.mxu0 0.0
  %7191 = vmatpush1.msra.mxu0 0.0
  %7192 = vmatprep.subr.mxu0 0.0
  %7193 = vmatpush1.msra.mxu0 0.0
  %7194 = vmatprep.subr.mxu0 0.0
  %7195 = vmatpush1.msra.mxu0 0.0
  %7196 = vmatprep.subr.mxu0 0.0
  %7197 = vmatpush1.msra.mxu0 0.0
  %7198 = vmatprep.subr.mxu0 0.0
  %7199 = vmatpush1.msra.mxu0 0.0
  %7200 = vmatprep.subr.mxu0 0.0
  %7201 = vmatpush1.msra.mxu0 0.0
  %7202 = vmatprep.subr.mxu0 0.0
  %7203 = vmatpush1.msra.mxu0 0.0
  %7204 = vmatprep.subr.mxu0 0.0
  %7205 = vmatpush1.msra.mxu0 0.0
  %7206 = vmatprep.subr.mxu0 0.0
  %7207 = vmatpush1.msra.mxu0 0.0
  %7208 = vmatprep.subr.mxu0 0.0
  %7209 = vmatpush1.msra.mxu0 0.0
  %7210 = vmatprep.subr.mxu0 0.0
  %7211 = vmatpush1.msra.mxu0 0.0
  %7212 = vmatprep.subr.mxu0 0.0
  %7213 = vmatpush1.msra.mxu0 0.0
  %7214 = vmatprep.subr.mxu0 0.0
  %7215 = vmatpush1.msra.mxu0 0.0
  %7216 = vmatprep.subr.mxu0 0.0
  %7217 = vmatpush1.msra.mxu0 0.0
  %7218 = vmatprep.subr.mxu0 0.0
  %7219 = vmatpush1.msra.mxu0 0.0
  %7220 = vmatprep.subr.mxu0 0.0
  %7221 = vmatpush1.msra.mxu0 0.0
  %7222 = vmatprep.subr.mxu0 0.0
  %7223 = vmatpush1.msra.mxu0 0.0
  %7224 = vmatprep.subr.mxu0 0.0
  %7225 = vmatpush1.msra.mxu0 0.0
  %7226 = vmatprep.subr.mxu0 0.0
  %7227 = vmatpush1.msra.mxu0 0.0
  %7228 = vmatprep.subr.mxu0 0.0
  %7229 = vmatpush1.msra.mxu0 0.0
  %7230 = vmatprep.subr.mxu0 0.0
  %7231 = vmatpush1.msra.mxu0 0.0
  %7232 = vmatprep.subr.mxu0 0.0
  %7233 = vmatpush1.msra.mxu0 0.0
  %7234 = vmatprep.subr.mxu0 0.0
  %7235 = vmatpush1.msra.mxu0 0.0
  %7236 = vmatprep.subr.mxu0 0.0
  %7237 = vmatpush1.msra.mxu0 0.0
  %7238 = vmatprep.subr.mxu0 0.0
  %7239 = vmatpush1.msra.mxu0 0.0
  %7240 = vmatprep.subr.mxu0 0.0
  %7241 = vmatpush1.msra.mxu0 0.0
  %7242 = vmatprep.subr.mxu0 0.0
  %7243 = vmatpush1.msra.mxu0 0.0
  %7244 = vmatprep.subr.mxu0 0.0
  %7245 = vmatpush1.msra.mxu0 0.0
  %7246 = vmatprep.subr.mxu0 0.0
  %7247 = vmatpush1.msra.mxu0 0.0
  %7248 = vmatprep.mubr.f32.mxu0 0.0
  %7249 = vmatmul.mubr.f32.gmra.mrb[0].mxu0 %v7099
  %v7250 = vpop.f32.mrb[0].mxu0
  %v7251 = vadd.f32 0.0, %v7250
  %v7252 = vpop.f32.mrb[0].mxu0
  %v7253 = vadd.f32 0.0, %v7252
  %7254 = vdwg.mxu0
  %7255 = vmatprep.subr.mxu0 %v7111
  %7256 = vmatpush1.msra.mxu0 %v7109
  %7257 = vmatprep.subr.mxu0 0.0
  %7258 = vmatpush1.msra.mxu0 0.0
  %7259 = vmatprep.subr.mxu0 0.0
  %7260 = vmatpush1.msra.mxu0 0.0
  %7261 = vmatprep.subr.mxu0 0.0
  %7262 = vmatpush1.msra.mxu0 0.0
  %7263 = vmatprep.subr.mxu0 0.0
  %7264 = vmatpush1.msra.mxu0 0.0
  %7265 = vmatprep.subr.mxu0 0.0
  %7266 = vmatpush1.msra.mxu0 0.0
  %7267 = vmatprep.subr.mxu0 0.0
  %7268 = vmatpush1.msra.mxu0 0.0
  %7269 = vmatprep.subr.mxu0 0.0
  %7270 = vmatpush1.msra.mxu0 0.0
  %7271 = vmatprep.subr.mxu0 0.0
  %7272 = vmatpush1.msra.mxu0 0.0
  %7273 = vmatprep.subr.mxu0 0.0
  %7274 = vmatpush1.msra.mxu0 0.0
  %7275 = vmatprep.subr.mxu0 0.0
  %7276 = vmatpush1.msra.mxu0 0.0
  %7277 = vmatprep.subr.mxu0 0.0
  %7278 = vmatpush1.msra.mxu0 0.0
  %7279 = vmatprep.subr.mxu0 0.0
  %7280 = vmatpush1.msra.mxu0 0.0
  %7281 = vmatprep.subr.mxu0 0.0
  %7282 = vmatpush1.msra.mxu0 0.0
  %7283 = vmatprep.subr.mxu0 0.0
  %7284 = vmatpush1.msra.mxu0 0.0
  %7285 = vmatprep.subr.mxu0 0.0
  %7286 = vmatpush1.msra.mxu0 0.0
  %7287 = vmatprep.subr.mxu0 0.0
  %7288 = vmatpush1.msra.mxu0 0.0
  %7289 = vmatprep.subr.mxu0 0.0
  %7290 = vmatpush1.msra.mxu0 0.0
  %7291 = vmatprep.subr.mxu0 0.0
  %7292 = vmatpush1.msra.mxu0 0.0
  %7293 = vmatprep.subr.mxu0 0.0
  %7294 = vmatpush1.msra.mxu0 0.0
  %7295 = vmatprep.subr.mxu0 0.0
  %7296 = vmatpush1.msra.mxu0 0.0
  %7297 = vmatprep.subr.mxu0 0.0
  %7298 = vmatpush1.msra.mxu0 0.0
  %7299 = vmatprep.subr.mxu0 0.0
  %7300 = vmatpush1.msra.mxu0 0.0
  %7301 = vmatprep.subr.mxu0 0.0
  %7302 = vmatpush1.msra.mxu0 0.0
  %7303 = vmatprep.subr.mxu0 0.0
  %7304 = vmatpush1.msra.mxu0 0.0
  %7305 = vmatprep.subr.mxu0 0.0
  %7306 = vmatpush1.msra.mxu0 0.0
  %7307 = vmatprep.subr.mxu0 0.0
  %7308 = vmatpush1.msra.mxu0 0.0
  %7309 = vmatprep.subr.mxu0 0.0
  %7310 = vmatpush1.msra.mxu0 0.0
  %7311 = vmatprep.subr.mxu0 0.0
  %7312 = vmatpush1.msra.mxu0 0.0
  %7313 = vmatprep.subr.mxu0 0.0
  %7314 = vmatpush1.msra.mxu0 0.0
  %7315 = vmatprep.subr.mxu0 0.0
  %7316 = vmatpush1.msra.mxu0 0.0
  %7317 = vmatprep.subr.mxu0 0.0
  %7318 = vmatpush1.msra.mxu0 0.0
  %7319 = vmatprep.mubr.f32.mxu0 0.0
  %7320 = vmatmul.mubr.f32.gmra.mrb[0].mxu0 %v7099
  %v7321 = vpop.f32.mrb[0].mxu0
  %v7322 = vadd.f32 0.0, %v7321
  %v7323 = vpop.f32.mrb[0].mxu0
  %v7324 = vadd.f32 0.0, %v7323
  %7325 = vdwg.mxu0
  %v7326 = vadd.f32 %v7056, %v7180
  %v7327 = vadd.f32 %v7057, %v7182
  %v7328 = vadd.f32 %v7058, %v7251
  %v7329 = vadd.f32 %v7059, %v7253
  %v7330 = vadd.f32 %v7060, %v7322
  %v7331 = vadd.f32 %v7061, %v7324
  %s7332 = scalar_lea.vmem %s13, 24
  %v7333 = vld [vmem:[%s7332] sm:$0xf]
  %7334 = vrot.lane.b32.xlu0 %v7062, 111
  %v7335 = vpop.permute.xlu0 %7334
  %7336 = vrot.lane.b32.xlu0 %v7063, 111
  %v7337 = vpop.permute.xlu0 %7336
  %7338 = vrot.lane.b32.xlu0 %v7064, 111
  %v7339 = vpop.permute.xlu0 %7338
  %7340 = vrot.lane.b32.xlu0 %v7065, 111
  %v7341 = vpop.permute.xlu0 %7340
  %7342 = vrot.lane.b32.xlu0 %v7066, 111
  %v7343 = vpop.permute.xlu0 %7342
  %7344 = vrot.lane.b32.xlu0 %v7067, 111
  %v7345 = vpop.permute.xlu0 %7344
  %7346 = vrot.lane.b32.xlu0 %v7068, 111
  %v7347 = vpop.permute.xlu0 %7346
  %v7348 = vsel %vm1934, %v7335, %v7337
  %v7349 = vsel %vm1934, %v7337, %v7339
  %v7350 = vsel %vm1934, %v7339, %v7341
  %v7351 = vsel %vm1934, %v7341, %v7343
  %v7352 = vsel %vm1934, %v7343, %v7345
  %v7353 = vsel %vm1934, %v7345, %v7347
  %v7355 = vsel %vm2731, %v7333, 0
  %v7357 = vsel %vm2735, %v7348, 0
  %v7359 = vsel %vm2735, %v7349, 0
  %v7361 = vsel %vm2735, %v7350, 0
  %v7363 = vsel %vm2735, %v7351, 0
  %v7365 = vsel %vm2735, %v7352, 0
  %v7367 = vsel %vm2735, %v7353, 0
  %7369 = vmatprep.subr.mxu0 %v7359
  %7370 = vmatpush1.msra.mxu0 %v7357
  %7371 = vmatprep.subr.mxu0 0.0
  %7372 = vmatpush1.msra.mxu0 0.0
  %7373 = vmatprep.subr.mxu0 0.0
  %7374 = vmatpush1.msra.mxu0 0.0
  %7375 = vmatprep.subr.mxu0 0.0
  %7376 = vmatpush1.msra.mxu0 0.0
  %7377 = vmatprep.subr.mxu0 0.0
  %7378 = vmatpush1.msra.mxu0 0.0
  %7379 = vmatprep.subr.mxu0 0.0
  %7380 = vmatpush1.msra.mxu0 0.0
  %7381 = vmatprep.subr.mxu0 0.0
  %7382 = vmatpush1.msra.mxu0 0.0
  %7383 = vmatprep.subr.mxu0 0.0
  %7384 = vmatpush1.msra.mxu0 0.0
  %7385 = vmatprep.subr.mxu0 0.0
  %7386 = vmatpush1.msra.mxu0 0.0
  %7387 = vmatprep.subr.mxu0 0.0
  %7388 = vmatpush1.msra.mxu0 0.0
  %7389 = vmatprep.subr.mxu0 0.0
  %7390 = vmatpush1.msra.mxu0 0.0
  %7391 = vmatprep.subr.mxu0 0.0
  %7392 = vmatpush1.msra.mxu0 0.0
  %7393 = vmatprep.subr.mxu0 0.0
  %7394 = vmatpush1.msra.mxu0 0.0
  %7395 = vmatprep.subr.mxu0 0.0
  %7396 = vmatpush1.msra.mxu0 0.0
  %7397 = vmatprep.subr.mxu0 0.0
  %7398 = vmatpush1.msra.mxu0 0.0
  %7399 = vmatprep.subr.mxu0 0.0
  %7400 = vmatpush1.msra.mxu0 0.0
  %7401 = vmatprep.subr.mxu0 0.0
  %7402 = vmatpush1.msra.mxu0 0.0
  %7403 = vmatprep.subr.mxu0 0.0
  %7404 = vmatpush1.msra.mxu0 0.0
  %7405 = vmatprep.subr.mxu0 0.0
  %7406 = vmatpush1.msra.mxu0 0.0
  %7407 = vmatprep.subr.mxu0 0.0
  %7408 = vmatpush1.msra.mxu0 0.0
  %7409 = vmatprep.subr.mxu0 0.0
  %7410 = vmatpush1.msra.mxu0 0.0
  %7411 = vmatprep.subr.mxu0 0.0
  %7412 = vmatpush1.msra.mxu0 0.0
  %7413 = vmatprep.subr.mxu0 0.0
  %7414 = vmatpush1.msra.mxu0 0.0
  %7415 = vmatprep.subr.mxu0 0.0
  %7416 = vmatpush1.msra.mxu0 0.0
  %7417 = vmatprep.subr.mxu0 0.0
  %7418 = vmatpush1.msra.mxu0 0.0
  %7419 = vmatprep.subr.mxu0 0.0
  %7420 = vmatpush1.msra.mxu0 0.0
  %7421 = vmatprep.subr.mxu0 0.0
  %7422 = vmatpush1.msra.mxu0 0.0
  %7423 = vmatprep.subr.mxu0 0.0
  %7424 = vmatpush1.msra.mxu0 0.0
  %7425 = vmatprep.subr.mxu0 0.0
  %7426 = vmatpush1.msra.mxu0 0.0
  %7427 = vmatprep.subr.mxu0 0.0
  %7428 = vmatpush1.msra.mxu0 0.0
  %7429 = vmatprep.subr.mxu0 0.0
  %7430 = vmatpush1.msra.mxu0 0.0
  %7431 = vmatprep.subr.mxu0 0.0
  %7432 = vmatpush1.msra.mxu0 0.0
  %7433 = vmatprep.mubr.f32.mxu0 0.0
  %7434 = vmatmul.mubr.f32.gmra.mrb[0].mxu0 %v7355
  %v7435 = vpop.f32.mrb[0].mxu0
  %v7436 = vadd.f32 0.0, %v7435
  %v7437 = vpop.f32.mrb[0].mxu0
  %v7438 = vadd.f32 0.0, %v7437
  %7439 = vdwg.mxu0
  %7440 = vmatprep.subr.mxu0 %v7363
  %7441 = vmatpush1.msra.mxu0 %v7361
  %7442 = vmatprep.subr.mxu0 0.0
  %7443 = vmatpush1.msra.mxu0 0.0
  %7444 = vmatprep.subr.mxu0 0.0
  %7445 = vmatpush1.msra.mxu0 0.0
  %7446 = vmatprep.subr.mxu0 0.0
  %7447 = vmatpush1.msra.mxu0 0.0
  %7448 = vmatprep.subr.mxu0 0.0
  %7449 = vmatpush1.msra.mxu0 0.0
  %7450 = vmatprep.subr.mxu0 0.0
  %7451 = vmatpush1.msra.mxu0 0.0
  %7452 = vmatprep.subr.mxu0 0.0
  %7453 = vmatpush1.msra.mxu0 0.0
  %7454 = vmatprep.subr.mxu0 0.0
  %7455 = vmatpush1.msra.mxu0 0.0
  %7456 = vmatprep.subr.mxu0 0.0
  %7457 = vmatpush1.msra.mxu0 0.0
  %7458 = vmatprep.subr.mxu0 0.0
  %7459 = vmatpush1.msra.mxu0 0.0
  %7460 = vmatprep.subr.mxu0 0.0
  %7461 = vmatpush1.msra.mxu0 0.0
  %7462 = vmatprep.subr.mxu0 0.0
  %7463 = vmatpush1.msra.mxu0 0.0
  %7464 = vmatprep.subr.mxu0 0.0
  %7465 = vmatpush1.msra.mxu0 0.0
  %7466 = vmatprep.subr.mxu0 0.0
  %7467 = vmatpush1.msra.mxu0 0.0
  %7468 = vmatprep.subr.mxu0 0.0
  %7469 = vmatpush1.msra.mxu0 0.0
  %7470 = vmatprep.subr.mxu0 0.0
  %7471 = vmatpush1.msra.mxu0 0.0
  %7472 = vmatprep.subr.mxu0 0.0
  %7473 = vmatpush1.msra.mxu0 0.0
  %7474 = vmatprep.subr.mxu0 0.0
  %7475 = vmatpush1.msra.mxu0 0.0
  %7476 = vmatprep.subr.mxu0 0.0
  %7477 = vmatpush1.msra.mxu0 0.0
  %7478 = vmatprep.subr.mxu0 0.0
  %7479 = vmatpush1.msra.mxu0 0.0
  %7480 = vmatprep.subr.mxu0 0.0
  %7481 = vmatpush1.msra.mxu0 0.0
  %7482 = vmatprep.subr.mxu0 0.0
  %7483 = vmatpush1.msra.mxu0 0.0
  %7484 = vmatprep.subr.mxu0 0.0
  %7485 = vmatpush1.msra.mxu0 0.0
  %7486 = vmatprep.subr.mxu0 0.0
  %7487 = vmatpush1.msra.mxu0 0.0
  %7488 = vmatprep.subr.mxu0 0.0
  %7489 = vmatpush1.msra.mxu0 0.0
  %7490 = vmatprep.subr.mxu0 0.0
  %7491 = vmatpush1.msra.mxu0 0.0
  %7492 = vmatprep.subr.mxu0 0.0
  %7493 = vmatpush1.msra.mxu0 0.0
  %7494 = vmatprep.subr.mxu0 0.0
  %7495 = vmatpush1.msra.mxu0 0.0
  %7496 = vmatprep.subr.mxu0 0.0
  %7497 = vmatpush1.msra.mxu0 0.0
  %7498 = vmatprep.subr.mxu0 0.0
  %7499 = vmatpush1.msra.mxu0 0.0
  %7500 = vmatprep.subr.mxu0 0.0
  %7501 = vmatpush1.msra.mxu0 0.0
  %7502 = vmatprep.subr.mxu0 0.0
  %7503 = vmatpush1.msra.mxu0 0.0
  %7504 = vmatprep.mubr.f32.mxu0 0.0
  %7505 = vmatmul.mubr.f32.gmra.mrb[0].mxu0 %v7355
  %v7506 = vpop.f32.mrb[0].mxu0
  %v7507 = vadd.f32 0.0, %v7506
  %v7508 = vpop.f32.mrb[0].mxu0
  %v7509 = vadd.f32 0.0, %v7508
  %7510 = vdwg.mxu0
  %7511 = vmatprep.subr.mxu0 %v7367
  %7512 = vmatpush1.msra.mxu0 %v7365
  %7513 = vmatprep.subr.mxu0 0.0
  %7514 = vmatpush1.msra.mxu0 0.0
  %7515 = vmatprep.subr.mxu0 0.0
  %7516 = vmatpush1.msra.mxu0 0.0
  %7517 = vmatprep.subr.mxu0 0.0
  %7518 = vmatpush1.msra.mxu0 0.0
  %7519 = vmatprep.subr.mxu0 0.0
  %7520 = vmatpush1.msra.mxu0 0.0
  %7521 = vmatprep.subr.mxu0 0.0
  %7522 = vmatpush1.msra.mxu0 0.0
  %7523 = vmatprep.subr.mxu0 0.0
  %7524 = vmatpush1.msra.mxu0 0.0
  %7525 = vmatprep.subr.mxu0 0.0
  %7526 = vmatpush1.msra.mxu0 0.0
  %7527 = vmatprep.subr.mxu0 0.0
  %7528 = vmatpush1.msra.mxu0 0.0
  %7529 = vmatprep.subr.mxu0 0.0
  %7530 = vmatpush1.msra.mxu0 0.0
  %7531 = vmatprep.subr.mxu0 0.0
  %7532 = vmatpush1.msra.mxu0 0.0
  %7533 = vmatprep.subr.mxu0 0.0
  %7534 = vmatpush1.msra.mxu0 0.0
  %7535 = vmatprep.subr.mxu0 0.0
  %7536 = vmatpush1.msra.mxu0 0.0
  %7537 = vmatprep.subr.mxu0 0.0
  %7538 = vmatpush1.msra.mxu0 0.0
  %7539 = vmatprep.subr.mxu0 0.0
  %7540 = vmatpush1.msra.mxu0 0.0
  %7541 = vmatprep.subr.mxu0 0.0
  %7542 = vmatpush1.msra.mxu0 0.0
  %7543 = vmatprep.subr.mxu0 0.0
  %7544 = vmatpush1.msra.mxu0 0.0
  %7545 = vmatprep.subr.mxu0 0.0
  %7546 = vmatpush1.msra.mxu0 0.0
  %7547 = vmatprep.subr.mxu0 0.0
  %7548 = vmatpush1.msra.mxu0 0.0
  %7549 = vmatprep.subr.mxu0 0.0
  %7550 = vmatpush1.msra.mxu0 0.0
  %7551 = vmatprep.subr.mxu0 0.0
  %7552 = vmatpush1.msra.mxu0 0.0
  %7553 = vmatprep.subr.mxu0 0.0
  %7554 = vmatpush1.msra.mxu0 0.0
  %7555 = vmatprep.subr.mxu0 0.0
  %7556 = vmatpush1.msra.mxu0 0.0
  %7557 = vmatprep.subr.mxu0 0.0
  %7558 = vmatpush1.msra.mxu0 0.0
  %7559 = vmatprep.subr.mxu0 0.0
  %7560 = vmatpush1.msra.mxu0 0.0
  %7561 = vmatprep.subr.mxu0 0.0
  %7562 = vmatpush1.msra.mxu0 0.0
  %7563 = vmatprep.subr.mxu0 0.0
  %7564 = vmatpush1.msra.mxu0 0.0
  %7565 = vmatprep.subr.mxu0 0.0
  %7566 = vmatpush1.msra.mxu0 0.0
  %7567 = vmatprep.subr.mxu0 0.0
  %7568 = vmatpush1.msra.mxu0 0.0
  %7569 = vmatprep.subr.mxu0 0.0
  %7570 = vmatpush1.msra.mxu0 0.0
  %7571 = vmatprep.subr.mxu0 0.0
  %7572 = vmatpush1.msra.mxu0 0.0
  %7573 = vmatprep.subr.mxu0 0.0
  %7574 = vmatpush1.msra.mxu0 0.0
  %7575 = vmatprep.mubr.f32.mxu0 0.0
  %7576 = vmatmul.mubr.f32.gmra.mrb[0].mxu0 %v7355
  %v7577 = vpop.f32.mrb[0].mxu0
  %v7578 = vadd.f32 0.0, %v7577
  %v7579 = vpop.f32.mrb[0].mxu0
  %v7580 = vadd.f32 0.0, %v7579
  %7581 = vdwg.mxu0
  %v7582 = vadd.f32 %v7326, %v7436
  %v7583 = vadd.f32 %v7327, %v7438
  %v7584 = vadd.f32 %v7328, %v7507
  %v7585 = vadd.f32 %v7329, %v7509
  %v7586 = vadd.f32 %v7330, %v7578
  %v7587 = vadd.f32 %v7331, %v7580
  %s7588 = scalar_lea.vmem %s13, 28
  %v7589 = vld [vmem:[%s7588] sm:$0xf]
  %7590 = vrot.lane.b32.xlu0 %v7062, 110
  %v7591 = vpop.permute.xlu0 %7590
  %7592 = vrot.lane.b32.xlu0 %v7063, 110
  %v7593 = vpop.permute.xlu0 %7592
  %7594 = vrot.lane.b32.xlu0 %v7064, 110
  %v7595 = vpop.permute.xlu0 %7594
  %7596 = vrot.lane.b32.xlu0 %v7065, 110
  %v7597 = vpop.permute.xlu0 %7596
  %7598 = vrot.lane.b32.xlu0 %v7066, 110
  %v7599 = vpop.permute.xlu0 %7598
  %7600 = vrot.lane.b32.xlu0 %v7067, 110
  %v7601 = vpop.permute.xlu0 %7600
  %7602 = vrot.lane.b32.xlu0 %v7068, 110
  %v7603 = vpop.permute.xlu0 %7602
  %v7604 = vsel %vm2185, %v7591, %v7593
  %v7605 = vsel %vm2185, %v7593, %v7595
  %v7606 = vsel %vm2185, %v7595, %v7597
  %v7607 = vsel %vm2185, %v7597, %v7599
  %v7608 = vsel %vm2185, %v7599, %v7601
  %v7609 = vsel %vm2185, %v7601, %v7603
  %v7611 = vsel %vm2731, %v7589, 0
  %v7613 = vsel %vm2735, %v7604, 0
  %v7615 = vsel %vm2735, %v7605, 0
  %v7617 = vsel %vm2735, %v7606, 0
  %v7619 = vsel %vm2735, %v7607, 0
  %v7621 = vsel %vm2735, %v7608, 0
  %v7623 = vsel %vm2735, %v7609, 0
  %7625 = vmatprep.subr.mxu0 %v7615
  %7626 = vmatpush1.msra.mxu0 %v7613
  %7627 = vmatprep.subr.mxu0 0.0
  %7628 = vmatpush1.msra.mxu0 0.0
  %7629 = vmatprep.subr.mxu0 0.0
  %7630 = vmatpush1.msra.mxu0 0.0
  %7631 = vmatprep.subr.mxu0 0.0
  %7632 = vmatpush1.msra.mxu0 0.0
  %7633 = vmatprep.subr.mxu0 0.0
  %7634 = vmatpush1.msra.mxu0 0.0
  %7635 = vmatprep.subr.mxu0 0.0
  %7636 = vmatpush1.msra.mxu0 0.0
  %7637 = vmatprep.subr.mxu0 0.0
  %7638 = vmatpush1.msra.mxu0 0.0
  %7639 = vmatprep.subr.mxu0 0.0
  %7640 = vmatpush1.msra.mxu0 0.0
  %7641 = vmatprep.subr.mxu0 0.0
  %7642 = vmatpush1.msra.mxu0 0.0
  %7643 = vmatprep.subr.mxu0 0.0
  %7644 = vmatpush1.msra.mxu0 0.0
  %7645 = vmatprep.subr.mxu0 0.0
  %7646 = vmatpush1.msra.mxu0 0.0
  %7647 = vmatprep.subr.mxu0 0.0
  %7648 = vmatpush1.msra.mxu0 0.0
  %7649 = vmatprep.subr.mxu0 0.0
  %7650 = vmatpush1.msra.mxu0 0.0
  %7651 = vmatprep.subr.mxu0 0.0
  %7652 = vmatpush1.msra.mxu0 0.0
  %7653 = vmatprep.subr.mxu0 0.0
  %7654 = vmatpush1.msra.mxu0 0.0
  %7655 = vmatprep.subr.mxu0 0.0
  %7656 = vmatpush1.msra.mxu0 0.0
  %7657 = vmatprep.subr.mxu0 0.0
  %7658 = vmatpush1.msra.mxu0 0.0
  %7659 = vmatprep.subr.mxu0 0.0
  %7660 = vmatpush1.msra.mxu0 0.0
  %7661 = vmatprep.subr.mxu0 0.0
  %7662 = vmatpush1.msra.mxu0 0.0
  %7663 = vmatprep.subr.mxu0 0.0
  %7664 = vmatpush1.msra.mxu0 0.0
  %7665 = vmatprep.subr.mxu0 0.0
  %7666 = vmatpush1.msra.mxu0 0.0
  %7667 = vmatprep.subr.mxu0 0.0
  %7668 = vmatpush1.msra.mxu0 0.0
  %7669 = vmatprep.subr.mxu0 0.0
  %7670 = vmatpush1.msra.mxu0 0.0
  %7671 = vmatprep.subr.mxu0 0.0
  %7672 = vmatpush1.msra.mxu0 0.0
  %7673 = vmatprep.subr.mxu0 0.0
  %7674 = vmatpush1.msra.mxu0 0.0
  %7675 = vmatprep.subr.mxu0 0.0
  %7676 = vmatpush1.msra.mxu0 0.0
  %7677 = vmatprep.subr.mxu0 0.0
  %7678 = vmatpush1.msra.mxu0 0.0
  %7679 = vmatprep.subr.mxu0 0.0
  %7680 = vmatpush1.msra.mxu0 0.0
  %7681 = vmatprep.subr.mxu0 0.0
  %7682 = vmatpush1.msra.mxu0 0.0
  %7683 = vmatprep.subr.mxu0 0.0
  %7684 = vmatpush1.msra.mxu0 0.0
  %7685 = vmatprep.subr.mxu0 0.0
  %7686 = vmatpush1.msra.mxu0 0.0
  %7687 = vmatprep.subr.mxu0 0.0
  %7688 = vmatpush1.msra.mxu0 0.0
  %7689 = vmatprep.mubr.f32.mxu0 0.0
  %7690 = vmatmul.mubr.f32.gmra.mrb[0].mxu0 %v7611
  %v7691 = vpop.f32.mrb[0].mxu0
  %v7692 = vadd.f32 0.0, %v7691
  %v7693 = vpop.f32.mrb[0].mxu0
  %v7694 = vadd.f32 0.0, %v7693
  %7695 = vdwg.mxu0
  %7696 = vmatprep.subr.mxu0 %v7619
  %7697 = vmatpush1.msra.mxu0 %v7617
  %7698 = vmatprep.subr.mxu0 0.0
  %7699 = vmatpush1.msra.mxu0 0.0
  %7700 = vmatprep.subr.mxu0 0.0
  %7701 = vmatpush1.msra.mxu0 0.0
  %7702 = vmatprep.subr.mxu0 0.0
  %7703 = vmatpush1.msra.mxu0 0.0
  %7704 = vmatprep.subr.mxu0 0.0
  %7705 = vmatpush1.msra.mxu0 0.0
  %7706 = vmatprep.subr.mxu0 0.0
  %7707 = vmatpush1.msra.mxu0 0.0
  %7708 = vmatprep.subr.mxu0 0.0
  %7709 = vmatpush1.msra.mxu0 0.0
  %7710 = vmatprep.subr.mxu0 0.0
  %7711 = vmatpush1.msra.mxu0 0.0
  %7712 = vmatprep.subr.mxu0 0.0
  %7713 = vmatpush1.msra.mxu0 0.0
  %7714 = vmatprep.subr.mxu0 0.0
  %7715 = vmatpush1.msra.mxu0 0.0
  %7716 = vmatprep.subr.mxu0 0.0
  %7717 = vmatpush1.msra.mxu0 0.0
  %7718 = vmatprep.subr.mxu0 0.0
  %7719 = vmatpush1.msra.mxu0 0.0
  %7720 = vmatprep.subr.mxu0 0.0
  %7721 = vmatpush1.msra.mxu0 0.0
  %7722 = vmatprep.subr.mxu0 0.0
  %7723 = vmatpush1.msra.mxu0 0.0
  %7724 = vmatprep.subr.mxu0 0.0
  %7725 = vmatpush1.msra.mxu0 0.0
  %7726 = vmatprep.subr.mxu0 0.0
  %7727 = vmatpush1.msra.mxu0 0.0
  %7728 = vmatprep.subr.mxu0 0.0
  %7729 = vmatpush1.msra.mxu0 0.0
  %7730 = vmatprep.subr.mxu0 0.0
  %7731 = vmatpush1.msra.mxu0 0.0
  %7732 = vmatprep.subr.mxu0 0.0
  %7733 = vmatpush1.msra.mxu0 0.0
  %7734 = vmatprep.subr.mxu0 0.0
  %7735 = vmatpush1.msra.mxu0 0.0
  %7736 = vmatprep.subr.mxu0 0.0
  %7737 = vmatpush1.msra.mxu0 0.0
  %7738 = vmatprep.subr.mxu0 0.0
  %7739 = vmatpush1.msra.mxu0 0.0
  %7740 = vmatprep.subr.mxu0 0.0
  %7741 = vmatpush1.msra.mxu0 0.0
  %7742 = vmatprep.subr.mxu0 0.0
  %7743 = vmatpush1.msra.mxu0 0.0
  %7744 = vmatprep.subr.mxu0 0.0
  %7745 = vmatpush1.msra.mxu0 0.0
  %7746 = vmatprep.subr.mxu0 0.0
  %7747 = vmatpush1.msra.mxu0 0.0
  %7748 = vmatprep.subr.mxu0 0.0
  %7749 = vmatpush1.msra.mxu0 0.0
  %7750 = vmatprep.subr.mxu0 0.0
  %7751 = vmatpush1.msra.mxu0 0.0
  %7752 = vmatprep.subr.mxu0 0.0
  %7753 = vmatpush1.msra.mxu0 0.0
  %7754 = vmatprep.subr.mxu0 0.0
  %7755 = vmatpush1.msra.mxu0 0.0
  %7756 = vmatprep.subr.mxu0 0.0
  %7757 = vmatpush1.msra.mxu0 0.0
  %7758 = vmatprep.subr.mxu0 0.0
  %7759 = vmatpush1.msra.mxu0 0.0
  %7760 = vmatprep.mubr.f32.mxu0 0.0
  %7761 = vmatmul.mubr.f32.gmra.mrb[0].mxu0 %v7611
  %v7762 = vpop.f32.mrb[0].mxu0
  %v7763 = vadd.f32 0.0, %v7762
  %v7764 = vpop.f32.mrb[0].mxu0
  %v7765 = vadd.f32 0.0, %v7764
  %7766 = vdwg.mxu0
  %7767 = vmatprep.subr.mxu0 %v7623
  %7768 = vmatpush1.msra.mxu0 %v7621
  %7769 = vmatprep.subr.mxu0 0.0
  %7770 = vmatpush1.msra.mxu0 0.0
  %7771 = vmatprep.subr.mxu0 0.0
  %7772 = vmatpush1.msra.mxu0 0.0
  %7773 = vmatprep.subr.mxu0 0.0
  %7774 = vmatpush1.msra.mxu0 0.0
  %7775 = vmatprep.subr.mxu0 0.0
  %7776 = vmatpush1.msra.mxu0 0.0
  %7777 = vmatprep.subr.mxu0 0.0
  %7778 = vmatpush1.msra.mxu0 0.0
  %7779 = vmatprep.subr.mxu0 0.0
  %7780 = vmatpush1.msra.mxu0 0.0
  %7781 = vmatprep.subr.mxu0 0.0
  %7782 = vmatpush1.msra.mxu0 0.0
  %7783 = vmatprep.subr.mxu0 0.0
  %7784 = vmatpush1.msra.mxu0 0.0
  %7785 = vmatprep.subr.mxu0 0.0
  %7786 = vmatpush1.msra.mxu0 0.0
  %7787 = vmatprep.subr.mxu0 0.0
  %7788 = vmatpush1.msra.mxu0 0.0
  %7789 = vmatprep.subr.mxu0 0.0
  %7790 = vmatpush1.msra.mxu0 0.0
  %7791 = vmatprep.subr.mxu0 0.0
  %7792 = vmatpush1.msra.mxu0 0.0
  %7793 = vmatprep.subr.mxu0 0.0
  %7794 = vmatpush1.msra.mxu0 0.0
  %7795 = vmatprep.subr.mxu0 0.0
  %7796 = vmatpush1.msra.mxu0 0.0
  %7797 = vmatprep.subr.mxu0 0.0
  %7798 = vmatpush1.msra.mxu0 0.0
  %7799 = vmatprep.subr.mxu0 0.0
  %7800 = vmatpush1.msra.mxu0 0.0
  %7801 = vmatprep.subr.mxu0 0.0
  %7802 = vmatpush1.msra.mxu0 0.0
  %7803 = vmatprep.subr.mxu0 0.0
  %7804 = vmatpush1.msra.mxu0 0.0
  %7805 = vmatprep.subr.mxu0 0.0
  %7806 = vmatpush1.msra.mxu0 0.0
  %7807 = vmatprep.subr.mxu0 0.0
  %7808 = vmatpush1.msra.mxu0 0.0
  %7809 = vmatprep.subr.mxu0 0.0
  %7810 = vmatpush1.msra.mxu0 0.0
  %7811 = vmatprep.subr.mxu0 0.0
  %7812 = vmatpush1.msra.mxu0 0.0
  %7813 = vmatprep.subr.mxu0 0.0
  %7814 = vmatpush1.msra.mxu0 0.0
  %7815 = vmatprep.subr.mxu0 0.0
  %7816 = vmatpush1.msra.mxu0 0.0
  %7817 = vmatprep.subr.mxu0 0.0
  %7818 = vmatpush1.msra.mxu0 0.0
  %7819 = vmatprep.subr.mxu0 0.0
  %7820 = vmatpush1.msra.mxu0 0.0
  %7821 = vmatprep.subr.mxu0 0.0
  %7822 = vmatpush1.msra.mxu0 0.0
  %7823 = vmatprep.subr.mxu0 0.0
  %7824 = vmatpush1.msra.mxu0 0.0
  %7825 = vmatprep.subr.mxu0 0.0
  %7826 = vmatpush1.msra.mxu0 0.0
  %7827 = vmatprep.subr.mxu0 0.0
  %7828 = vmatpush1.msra.mxu0 0.0
  %7829 = vmatprep.subr.mxu0 0.0
  %7830 = vmatpush1.msra.mxu0 0.0
  %7831 = vmatprep.mubr.f32.mxu0 0.0
  %7832 = vmatmul.mubr.f32.gmra.mrb[0].mxu0 %v7611
  %v7833 = vpop.f32.mrb[0].mxu0
  %v7834 = vadd.f32 0.0, %v7833
  %v7835 = vpop.f32.mrb[0].mxu0
  %v7836 = vadd.f32 0.0, %v7835
  %7837 = vdwg.mxu0
  %v7838 = vadd.f32 %v7582, %v7692
  %v7839 = vadd.f32 %v7583, %v7694
  %v7840 = vadd.f32 %v7584, %v7763
  %v7841 = vadd.f32 %v7585, %v7765
  %v7842 = vadd.f32 %v7586, %v7834
  %v7843 = vadd.f32 %v7587, %v7836
  %s7844 = scalar_lea.vmem %s13, 32
  %v7845 = vld [vmem:[%s7844] sm:$0xf]
  %7846 = vrot.lane.b32.xlu0 %v7062, 109
  %v7847 = vpop.permute.xlu0 %7846
  %7848 = vrot.lane.b32.xlu0 %v7063, 109
  %v7849 = vpop.permute.xlu0 %7848
  %7850 = vrot.lane.b32.xlu0 %v7064, 109
  %v7851 = vpop.permute.xlu0 %7850
  %7852 = vrot.lane.b32.xlu0 %v7065, 109
  %v7853 = vpop.permute.xlu0 %7852
  %7854 = vrot.lane.b32.xlu0 %v7066, 109
  %v7855 = vpop.permute.xlu0 %7854
  %7856 = vrot.lane.b32.xlu0 %v7067, 109
  %v7857 = vpop.permute.xlu0 %7856
  %7858 = vrot.lane.b32.xlu0 %v7068, 109
  %v7859 = vpop.permute.xlu0 %7858
  %v7860 = vsel %vm2436, %v7847, %v7849
  %v7861 = vsel %vm2436, %v7849, %v7851
  %v7862 = vsel %vm2436, %v7851, %v7853
  %v7863 = vsel %vm2436, %v7853, %v7855
  %v7864 = vsel %vm2436, %v7855, %v7857
  %v7865 = vsel %vm2436, %v7857, %v7859
  %v7867 = vsel %vm2731, %v7845, 0
  %v7869 = vsel %vm2735, %v7860, 0
  %v7871 = vsel %vm2735, %v7861, 0
  %v7873 = vsel %vm2735, %v7862, 0
  %v7875 = vsel %vm2735, %v7863, 0
  %v7877 = vsel %vm2735, %v7864, 0
  %v7879 = vsel %vm2735, %v7865, 0
  %7881 = vmatprep.subr.mxu0 %v7871
  %7882 = vmatpush1.msra.mxu0 %v7869
  %7883 = vmatprep.subr.mxu0 0.0
  %7884 = vmatpush1.msra.mxu0 0.0
  %7885 = vmatprep.subr.mxu0 0.0
  %7886 = vmatpush1.msra.mxu0 0.0
  %7887 = vmatprep.subr.mxu0 0.0
  %7888 = vmatpush1.msra.mxu0 0.0
  %7889 = vmatprep.subr.mxu0 0.0
  %7890 = vmatpush1.msra.mxu0 0.0
  %7891 = vmatprep.subr.mxu0 0.0
  %7892 = vmatpush1.msra.mxu0 0.0
  %7893 = vmatprep.subr.mxu0 0.0
  %7894 = vmatpush1.msra.mxu0 0.0
  %7895 = vmatprep.subr.mxu0 0.0
  %7896 = vmatpush1.msra.mxu0 0.0
  %7897 = vmatprep.subr.mxu0 0.0
  %7898 = vmatpush1.msra.mxu0 0.0
  %7899 = vmatprep.subr.mxu0 0.0
  %7900 = vmatpush1.msra.mxu0 0.0
  %7901 = vmatprep.subr.mxu0 0.0
  %7902 = vmatpush1.msra.mxu0 0.0
  %7903 = vmatprep.subr.mxu0 0.0
  %7904 = vmatpush1.msra.mxu0 0.0
  %7905 = vmatprep.subr.mxu0 0.0
  %7906 = vmatpush1.msra.mxu0 0.0
  %7907 = vmatprep.subr.mxu0 0.0
  %7908 = vmatpush1.msra.mxu0 0.0
  %7909 = vmatprep.subr.mxu0 0.0
  %7910 = vmatpush1.msra.mxu0 0.0
  %7911 = vmatprep.subr.mxu0 0.0
  %7912 = vmatpush1.msra.mxu0 0.0
  %7913 = vmatprep.subr.mxu0 0.0
  %7914 = vmatpush1.msra.mxu0 0.0
  %7915 = vmatprep.subr.mxu0 0.0
  %7916 = vmatpush1.msra.mxu0 0.0
  %7917 = vmatprep.subr.mxu0 0.0
  %7918 = vmatpush1.msra.mxu0 0.0
  %7919 = vmatprep.subr.mxu0 0.0
  %7920 = vmatpush1.msra.mxu0 0.0
  %7921 = vmatprep.subr.mxu0 0.0
  %7922 = vmatpush1.msra.mxu0 0.0
  %7923 = vmatprep.subr.mxu0 0.0
  %7924 = vmatpush1.msra.mxu0 0.0
  %7925 = vmatprep.subr.mxu0 0.0
  %7926 = vmatpush1.msra.mxu0 0.0
  %7927 = vmatprep.subr.mxu0 0.0
  %7928 = vmatpush1.msra.mxu0 0.0
  %7929 = vmatprep.subr.mxu0 0.0
  %7930 = vmatpush1.msra.mxu0 0.0
  %7931 = vmatprep.subr.mxu0 0.0
  %7932 = vmatpush1.msra.mxu0 0.0
  %7933 = vmatprep.subr.mxu0 0.0
  %7934 = vmatpush1.msra.mxu0 0.0
  %7935 = vmatprep.subr.mxu0 0.0
  %7936 = vmatpush1.msra.mxu0 0.0
  %7937 = vmatprep.subr.mxu0 0.0
  %7938 = vmatpush1.msra.mxu0 0.0
  %7939 = vmatprep.subr.mxu0 0.0
  %7940 = vmatpush1.msra.mxu0 0.0
  %7941 = vmatprep.subr.mxu0 0.0
  %7942 = vmatpush1.msra.mxu0 0.0
  %7943 = vmatprep.subr.mxu0 0.0
  %7944 = vmatpush1.msra.mxu0 0.0
  %7945 = vmatprep.mubr.f32.mxu0 0.0
  %7946 = vmatmul.mubr.f32.gmra.mrb[0].mxu0 %v7867
  %v7947 = vpop.f32.mrb[0].mxu0
  %v7948 = vadd.f32 0.0, %v7947
  %v7949 = vpop.f32.mrb[0].mxu0
  %v7950 = vadd.f32 0.0, %v7949
  %7951 = vdwg.mxu0
  %7952 = vmatprep.subr.mxu0 %v7875
  %7953 = vmatpush1.msra.mxu0 %v7873
  %7954 = vmatprep.subr.mxu0 0.0
  %7955 = vmatpush1.msra.mxu0 0.0
  %7956 = vmatprep.subr.mxu0 0.0
  %7957 = vmatpush1.msra.mxu0 0.0
  %7958 = vmatprep.subr.mxu0 0.0
  %7959 = vmatpush1.msra.mxu0 0.0
  %7960 = vmatprep.subr.mxu0 0.0
  %7961 = vmatpush1.msra.mxu0 0.0
  %7962 = vmatprep.subr.mxu0 0.0
  %7963 = vmatpush1.msra.mxu0 0.0
  %7964 = vmatprep.subr.mxu0 0.0
  %7965 = vmatpush1.msra.mxu0 0.0
  %7966 = vmatprep.subr.mxu0 0.0
  %7967 = vmatpush1.msra.mxu0 0.0
  %7968 = vmatprep.subr.mxu0 0.0
  %7969 = vmatpush1.msra.mxu0 0.0
  %7970 = vmatprep.subr.mxu0 0.0
  %7971 = vmatpush1.msra.mxu0 0.0
  %7972 = vmatprep.subr.mxu0 0.0
  %7973 = vmatpush1.msra.mxu0 0.0
  %7974 = vmatprep.subr.mxu0 0.0
  %7975 = vmatpush1.msra.mxu0 0.0
  %7976 = vmatprep.subr.mxu0 0.0
  %7977 = vmatpush1.msra.mxu0 0.0
  %7978 = vmatprep.subr.mxu0 0.0
  %7979 = vmatpush1.msra.mxu0 0.0
  %7980 = vmatprep.subr.mxu0 0.0
  %7981 = vmatpush1.msra.mxu0 0.0
  %7982 = vmatprep.subr.mxu0 0.0
  %7983 = vmatpush1.msra.mxu0 0.0
  %7984 = vmatprep.subr.mxu0 0.0
  %7985 = vmatpush1.msra.mxu0 0.0
  %7986 = vmatprep.subr.mxu0 0.0
  %7987 = vmatpush1.msra.mxu0 0.0
  %7988 = vmatprep.subr.mxu0 0.0
  %7989 = vmatpush1.msra.mxu0 0.0
  %7990 = vmatprep.subr.mxu0 0.0
  %7991 = vmatpush1.msra.mxu0 0.0
  %7992 = vmatprep.subr.mxu0 0.0
  %7993 = vmatpush1.msra.mxu0 0.0
  %7994 = vmatprep.subr.mxu0 0.0
  %7995 = vmatpush1.msra.mxu0 0.0
  %7996 = vmatprep.subr.mxu0 0.0
  %7997 = vmatpush1.msra.mxu0 0.0
  %7998 = vmatprep.subr.mxu0 0.0
  %7999 = vmatpush1.msra.mxu0 0.0
  %8000 = vmatprep.subr.mxu0 0.0
  %8001 = vmatpush1.msra.mxu0 0.0
  %8002 = vmatprep.subr.mxu0 0.0
  %8003 = vmatpush1.msra.mxu0 0.0
  %8004 = vmatprep.subr.mxu0 0.0
  %8005 = vmatpush1.msra.mxu0 0.0
  %8006 = vmatprep.subr.mxu0 0.0
  %8007 = vmatpush1.msra.mxu0 0.0
  %8008 = vmatprep.subr.mxu0 0.0
  %8009 = vmatpush1.msra.mxu0 0.0
  %8010 = vmatprep.subr.mxu0 0.0
  %8011 = vmatpush1.msra.mxu0 0.0
  %8012 = vmatprep.subr.mxu0 0.0
  %8013 = vmatpush1.msra.mxu0 0.0
  %8014 = vmatprep.subr.mxu0 0.0
  %8015 = vmatpush1.msra.mxu0 0.0
  %8016 = vmatprep.mubr.f32.mxu0 0.0
  %8017 = vmatmul.mubr.f32.gmra.mrb[0].mxu0 %v7867
  %v8018 = vpop.f32.mrb[0].mxu0
  %v8019 = vadd.f32 0.0, %v8018
  %v8020 = vpop.f32.mrb[0].mxu0
  %v8021 = vadd.f32 0.0, %v8020
  %8022 = vdwg.mxu0
  %8023 = vmatprep.subr.mxu0 %v7879
  %8024 = vmatpush1.msra.mxu0 %v7877
  %8025 = vmatprep.subr.mxu0 0.0
  %8026 = vmatpush1.msra.mxu0 0.0
  %8027 = vmatprep.subr.mxu0 0.0
  %8028 = vmatpush1.msra.mxu0 0.0
  %8029 = vmatprep.subr.mxu0 0.0
  %8030 = vmatpush1.msra.mxu0 0.0
  %8031 = vmatprep.subr.mxu0 0.0
  %8032 = vmatpush1.msra.mxu0 0.0
  %8033 = vmatprep.subr.mxu0 0.0
  %8034 = vmatpush1.msra.mxu0 0.0
  %8035 = vmatprep.subr.mxu0 0.0
  %8036 = vmatpush1.msra.mxu0 0.0
  %8037 = vmatprep.subr.mxu0 0.0
  %8038 = vmatpush1.msra.mxu0 0.0
  %8039 = vmatprep.subr.mxu0 0.0
  %8040 = vmatpush1.msra.mxu0 0.0
  %8041 = vmatprep.subr.mxu0 0.0
  %8042 = vmatpush1.msra.mxu0 0.0
  %8043 = vmatprep.subr.mxu0 0.0
  %8044 = vmatpush1.msra.mxu0 0.0
  %8045 = vmatprep.subr.mxu0 0.0
  %8046 = vmatpush1.msra.mxu0 0.0
  %8047 = vmatprep.subr.mxu0 0.0
  %8048 = vmatpush1.msra.mxu0 0.0
  %8049 = vmatprep.subr.mxu0 0.0
  %8050 = vmatpush1.msra.mxu0 0.0
  %8051 = vmatprep.subr.mxu0 0.0
  %8052 = vmatpush1.msra.mxu0 0.0
  %8053 = vmatprep.subr.mxu0 0.0
  %8054 = vmatpush1.msra.mxu0 0.0
  %8055 = vmatprep.subr.mxu0 0.0
  %8056 = vmatpush1.msra.mxu0 0.0
  %8057 = vmatprep.subr.mxu0 0.0
  %8058 = vmatpush1.msra.mxu0 0.0
  %8059 = vmatprep.subr.mxu0 0.0
  %8060 = vmatpush1.msra.mxu0 0.0
  %8061 = vmatprep.subr.mxu0 0.0
  %8062 = vmatpush1.msra.mxu0 0.0
  %8063 = vmatprep.subr.mxu0 0.0
  %8064 = vmatpush1.msra.mxu0 0.0
  %8065 = vmatprep.subr.mxu0 0.0
  %8066 = vmatpush1.msra.mxu0 0.0
  %8067 = vmatprep.subr.mxu0 0.0
  %8068 = vmatpush1.msra.mxu0 0.0
  %8069 = vmatprep.subr.mxu0 0.0
  %8070 = vmatpush1.msra.mxu0 0.0
  %8071 = vmatprep.subr.mxu0 0.0
  %8072 = vmatpush1.msra.mxu0 0.0
  %8073 = vmatprep.subr.mxu0 0.0
  %8074 = vmatpush1.msra.mxu0 0.0
  %8075 = vmatprep.subr.mxu0 0.0
  %8076 = vmatpush1.msra.mxu0 0.0
  %8077 = vmatprep.subr.mxu0 0.0
  %8078 = vmatpush1.msra.mxu0 0.0
  %8079 = vmatprep.subr.mxu0 0.0
  %8080 = vmatpush1.msra.mxu0 0.0
  %8081 = vmatprep.subr.mxu0 0.0
  %8082 = vmatpush1.msra.mxu0 0.0
  %8083 = vmatprep.subr.mxu0 0.0
  %8084 = vmatpush1.msra.mxu0 0.0
  %8085 = vmatprep.subr.mxu0 0.0
  %8086 = vmatpush1.msra.mxu0 0.0
  %8087 = vmatprep.mubr.f32.mxu0 0.0
  %8088 = vmatmul.mubr.f32.gmra.mrb[0].mxu0 %v7867
  %v8089 = vpop.f32.mrb[0].mxu0
  %v8090 = vadd.f32 0.0, %v8089
  %v8091 = vpop.f32.mrb[0].mxu0
  %v8092 = vadd.f32 0.0, %v8091
  %8093 = vdwg.mxu0
  %v8094 = vadd.f32 %v7838, %v7948
  %v8095 = vadd.f32 %v7839, %v7950
  %v8096 = vadd.f32 %v7840, %v8019
  %v8097 = vadd.f32 %v7841, %v8021
  %v8098 = vadd.f32 %v7842, %v8090
  %v8099 = vadd.f32 %v7843, %v8092
  %v8100 = vld [vmem:[%s14] sm:$0xf]
  %8102 = vset.pattern.permute.xlu0 0
  %8103 = vperm.xlu0 %8102, %v8100
  %v8104 = vpop.permute.xlu0 %8103
  %v8106 = vadd.f32 %v8094, %v8104
  %v8107 = vadd.f32 %v8095, %v8104
  %v8108 = vadd.f32 %v8096, %v8104
  %v8109 = vadd.f32 %v8097, %v8104
  %v8110 = vadd.f32 %v8098, %v8104
  %v8111 = vadd.f32 %v8099, %v8104
  %v8112 = vmax.f32 %v8106, 0.0
  %v8113 = vmax.f32 %v8107, 0.0
  %v8114 = vmax.f32 %v8108, 0.0
  %v8115 = vmax.f32 %v8109, 0.0
  %v8116 = vmax.f32 %v8110, 0.0
  %v8117 = vmax.f32 %v8111, 0.0
  %v8124 = vcombine.low %v8112, %v8113
  %v8125 = vcombine.low %v8114, %v8115
  %v8126 = vcombine.low %v8116, %v8117
  %8130 = vst [vmem:[%s15] sm:$0xff] %v8124
  %8131 = vst [vmem:[%s15 + $0x8] sm:$0xff] %v8125
  %8132 = vst [vmem:[%s15 + $0x10] sm:$0xff] %v8126
  // Predicated region
  $region62: #{upconv_forward.1} parent=0 // pred_check
    _
  $region63: #{upconv_forward.1} parent=0 // pred_check_branch
    %8134 = sbr.rel (0) target = $region65
  $region64: #{upconv_forward.1} parent=0 // pred_region
    _
  $region65: #{upconv_forward.1} parent=0 // pred_fallthru
    _
  // Predicated region
  $region66: #{upconv_forward.1} parent=0 // pred_check
    _
  $region67: #{upconv_forward.1} parent=0 // pred_check_branch
    %8136 = sbr.rel (0) target = $region69
  $region68: #{upconv_forward.1} parent=0 // pred_region
    _
  $region69: #{upconv_forward.1} parent=0 // pred_fallthru
    _

</llo_original>
